<compile_context>
chip_gen: v7x
topology: tpu7x:2x2x1
jax: 0.10.0
libtpu: 0.0.40
codegen_flags: <defaults>
</compile_context>

<pallas_src>
import jax
import jax.numpy as jnp
from jax import lax
from jax.experimental import pallas as pl
from jax.experimental.pallas import tpu as pltpu


def _relu6_dwconv_bn_relu6_kernel(x_ref, w_ref, g_ref, b_ref, o_ref, xw_ref):
    # x_ref : (N, H, W, C)     input channel block (C = channel-block width)
    # w_ref : (3, 3, C)        depthwise 3x3 taps
    # g_ref : (1, C)           BN gamma
    # b_ref : (1, C)           BN beta
    # o_ref : (N, H, W, C)     output block (also stages the conv accumulator)
    # xw_ref: (N, H, W+2, C)   VMEM scratch: ReLU6(x), zero halo along W only
    N, H, W, C = o_ref.shape

    # --- stage ReLU6(x) with a 1-wide zero halo along W.  The H halo is
    # --- handled below by statically skipping out-of-range taps.  Row-wise
    # --- stores keep live vregs small; only the 2 border columns are zeroed.
    zero_col = jnp.zeros((N, H, 1, C), dtype=xw_ref.dtype)
    xw_ref[:, :, 0:1, :] = zero_col
    xw_ref[:, :, W + 1:W + 2, :] = zero_col
    for h in range(H):
        xw_ref[:, h, 1:W + 1, :] = jnp.clip(x_ref[:, h, :, :], 0.0, 6.0)

    # --- depthwise 3x3 conv, one output row at a time, staged into o_ref.
    # --- BN mean statistic accumulated on the fly (pass 1 of 2).
    s = jnp.zeros((1, 1, C), jnp.float32)
    for h in range(H):
        acc = None
        for dy in range(3):
            hy = h + dy - 1
            if hy < 0 or hy >= H:          # implicit zero row (H padding)
                continue
            for dx in range(3):
                wk = w_ref[dy, dx:dx + 1, :]                    # (1, C)
                term = xw_ref[:, hy, dx:dx + W, :] * wk         # (N, W, C)
                acc = term if acc is None else acc + term
        o_ref[:, h, :, :] = acc
        s = s + jnp.sum(acc, axis=(0, 1), keepdims=True)        # (1, 1, C)

    cnt_inv = 1.0 / float(N * H * W)
    mean = s * cnt_inv                                          # (1, 1, C)

    # --- pass 2: variance around the mean (safer than E[x^2] - mean^2),
    # --- re-reading the staged conv result from o_ref (VMEM, nearly free).
    v = jnp.zeros((1, 1, C), jnp.float32)
    for h in range(H):
        d = o_ref[:, h, :, :] - mean
        v = v + jnp.sum(d * d, axis=(0, 1), keepdims=True)
    var = v * cnt_inv                                           # biased (PyTorch train norm)

    inv = lax.rsqrt(var + 1e-5)
    scale = g_ref[...].reshape(1, 1, C) * inv
    shift = b_ref[...].reshape(1, 1, C) - mean * scale

    # --- fused affine + final ReLU6, in place over o_ref, row-wise.
    for h in range(H):
        o_ref[:, h, :, :] = jnp.clip(o_ref[:, h, :, :] * scale + shift, 0.0, 6.0)


def relu6_dwconv_bn_relu6_nhwc(x_nhwc, w_33c, gamma, beta, *, c_blocks=1):
    """Channels-last entry point (preferred: no layout HBM passes).

    x_nhwc: (N, H, W, C); w_33c: (3, 3, C) depthwise taps; gamma/beta: (C,).
    c_blocks=1 -> single grid step (best on single-TC v5e/v6e).
    c_blocks=2 -> two 128-aligned channel blocks sharded across v7x's 2 TCs.
    """
    N, H, W, C = x_nhwc.shape
    if c_blocks <= 1:
        cb = C                                     # full-width block, no padding
    else:
        cb = ((C + c_blocks - 1) // c_blocks + 127) // 128 * 128
    grid = (pl.cdiv(C, cb),)

    return pl.pallas_call(
        _relu6_dwconv_bn_relu6_kernel,
        out_shape=jax.ShapeDtypeStruct((N, H, W, C), jnp.float32),
        grid=grid,
        in_specs=[
            pl.BlockSpec((N, H, W, cb), lambda c: (0, 0, 0, c)),
            pl.BlockSpec((3, 3, cb), lambda c: (0, 0, c)),
            pl.BlockSpec((1, cb), lambda c: (0, c)),
            pl.BlockSpec((1, cb), lambda c: (0, c)),
        ],
        out_specs=pl.BlockSpec((N, H, W, cb), lambda c: (0, 0, 0, c)),
        scratch_shapes=[pltpu.VMEM((N, H, W + 2, cb), jnp.float32)],
        compiler_params=pltpu.CompilerParams(
            dimension_semantics=("parallel",)),
    )(x_nhwc.astype(jnp.float32),
      w_33c.astype(jnp.float32),
      gamma.astype(jnp.float32).reshape(1, C),
      beta.astype(jnp.float32).reshape(1, C))


def relu6_dwconv_bn_relu6(x_nchw, w_oihw, gamma, beta, *, c_blocks=1):
    """NCHW adapter matching the PyTorch module interface.

    TODO(synk): keep activations channels-last in the surrounding layers to drop
    these two transpose HBM passes (call relu6_dwconv_bn_relu6_nhwc directly).
    """
    x = jnp.transpose(x_nchw, (0, 2, 3, 1))                 # NCHW -> NHWC
    w = jnp.transpose(w_oihw[:, 0, :, :], (1, 2, 0))        # (C,1,3,3) -> (3,3,C)
    y = relu6_dwconv_bn_relu6_nhwc(x, w, gamma, beta, c_blocks=c_blocks)
    return jnp.transpose(y, (0, 3, 1, 2))                   # back to NCHW


def _reference(x_nchw, w_oihw, gamma, beta):
    """Pure-JAX reference mirroring the PyTorch forward (training-mode BN)."""
    x = jnp.clip(x_nchw, 0.0, 6.0)
    y = lax.conv_general_dilated(
        x, w_oihw, window_strides=(1, 1), padding=((1, 1), (1, 1)),
        feature_group_count=x.shape[1],
        dimension_numbers=("NCHW", "OIHW", "NCHW"),
        precision=lax.Precision.HIGHEST)
    mean = jnp.mean(y, axis=(0, 2, 3), keepdims=True)
    var = jnp.mean((y - mean) ** 2, axis=(0, 2, 3), keepdims=True)
    yn = (y - mean) * lax.rsqrt(var + 1e-5)
    yn = yn * gamma.reshape(1, -1, 1, 1) + beta.reshape(1, -1, 1, 1)
    return jnp.clip(yn, 0.0, 6.0)


if __name__ == "__main__":
    # Shapes implied by the module: x131 = (1, 960, 7, 7); C = 960 fixed by the conv.
    N, C, H, W = 1, 960, 7, 7
    key = jax.random.PRNGKey(0)
    kx, kw, kg, kb = jax.random.split(key, 4)

    x = jax.random.normal(kx, (N, C, H, W), dtype=jnp.float32) * 2.0
    w = jax.random.normal(kw, (C, 1, 3, 3), dtype=jnp.float32) * 0.2    # depthwise weights
    gamma = 1.0 + 0.1 * jax.random.normal(kg, (C,), dtype=jnp.float32)  # BN weight
    beta = 0.1 * jax.random.normal(kb, (C,), dtype=jnp.float32)         # BN bias

    fn = jax.jit(relu6_dwconv_bn_relu6)
    out = jax.block_until_ready(fn(x, w, gamma, beta))

    ref = _reference(x, w, gamma, beta)
    assert out.shape == (N, C, H, W)
    err = float(jnp.max(jnp.abs(out - ref)))
    assert err < 5e-4, f"max abs err = {err}"

    print("KERNEL_OK")
</pallas_src>

<mosaic_0001>
module attributes {stable_mosaic.version = 11 : i64} {
  func.func @_relu6_dwconv_bn_relu6_kernel(%arg0: i32, %arg1: memref<1x7x7x960xf32, #tpu.memory_space<vmem>>, %arg2: memref<3x3x960xf32, #tpu.memory_space<vmem>>, %arg3: memref<1x960xf32, #tpu.memory_space<vmem>>, %arg4: memref<1x960xf32, #tpu.memory_space<vmem>>, %arg5: memref<1x7x7x960xf32, #tpu.memory_space<vmem>>, %arg6: memref<1x7x9x960xf32, #tpu.memory_space<vmem>>) attributes {dimension_semantics = [#tpu.dimension_semantics<parallel>], iteration_bounds = array<i64: 1>, scalar_prefetch = 0 : i64, scratch_operands = 1 : i64, tpu.core_type = #tpu.core_type<tc>, window_params = [{transform_indices = @transform_0, window_bounds = array<i64: 1, 7, 7, 960>}, {transform_indices = @transform_1, window_bounds = array<i64: 3, 3, 960>}, {transform_indices = @transform_2, window_bounds = array<i64: 1, 960>}, {transform_indices = @transform_3, window_bounds = array<i64: 1, 960>}, {transform_indices = @transform_4, window_bounds = array<i64: 1, 7, 7, 960>}]} {
    %cst = arith.constant 0.000000e+00 : f32
    %0 = vector.broadcast %cst : f32 to vector<1x7x1x960xf32>
    %c0 = arith.constant 0 : index
    %c0_0 = arith.constant 0 : index
    %c0_1 = arith.constant 0 : index
    %c0_2 = arith.constant 0 : index
    %1 = vector.load %arg6[%c0, %c0_0, %c0_1, %c0_2] : memref<1x7x9x960xf32, #tpu.memory_space<vmem>>, vector<1x7x1x960xf32>
    tpu.vector_store %arg6[%c0, %c0_0, %c0_1, %c0_2], %0 {strides = array<i32>} : memref<1x7x9x960xf32, #tpu.memory_space<vmem>>, vector<1x7x1x960xf32>,
    %c0_3 = arith.constant 0 : index
    %c0_4 = arith.constant 0 : index
    %c8 = arith.constant 8 : index
    %c0_5 = arith.constant 0 : index
    %2 = vector.load %arg6[%c0_3, %c0_4, %c8, %c0_5] : memref<1x7x9x960xf32, #tpu.memory_space<vmem>>, vector<1x7x1x960xf32>
    tpu.vector_store %arg6[%c0_3, %c0_4, %c8, %c0_5], %0 {strides = array<i32>} : memref<1x7x9x960xf32, #tpu.memory_space<vmem>>, vector<1x7x1x960xf32>,
    %c0_6 = arith.constant 0 : index
    %c0_7 = arith.constant 0 : index
    %c0_8 = arith.constant 0 : index
    %c0_9 = arith.constant 0 : index
    %3 = vector.load %arg1[%c0_6, %c0_7, %c0_8, %c0_9] : memref<1x7x7x960xf32, #tpu.memory_space<vmem>>, vector<1x1x7x960xf32>
    %4 = vector.shape_cast %3 : vector<1x1x7x960xf32> to vector<1x7x960xf32>
    %cst_10 = arith.constant 0.000000e+00 : f32
    %cst_11 = arith.constant 6.000000e+00 : f32
    %5 = vector.broadcast %cst_10 : f32 to vector<1x7x960xf32>
    %6 = arith.maximumf %5, %4 : vector<1x7x960xf32>
    %7 = vector.broadcast %cst_11 : f32 to vector<1x7x960xf32>
    %8 = arith.minimumf %7, %6 : vector<1x7x960xf32>
    %c0_12 = arith.constant 0 : index
    %c0_13 = arith.constant 0 : index
    %c1 = arith.constant 1 : index
    %c0_14 = arith.constant 0 : index
    %9 = vector.load %arg6[%c0_12, %c0_13, %c1, %c0_14] : memref<1x7x9x960xf32, #tpu.memory_space<vmem>>, vector<1x1x7x960xf32>
    %10 = vector.shape_cast %9 : vector<1x1x7x960xf32> to vector<1x7x960xf32>
    %11 = vector.shape_cast %8 : vector<1x7x960xf32> to vector<1x1x7x960xf32>
    tpu.vector_store %arg6[%c0_12, %c0_13, %c1, %c0_14], %11 {strides = array<i32>} : memref<1x7x9x960xf32, #tpu.memory_space<vmem>>, vector<1x1x7x960xf32>,
    %c0_15 = arith.constant 0 : index
    %c1_16 = arith.constant 1 : index
    %c0_17 = arith.constant 0 : index
    %c0_18 = arith.constant 0 : index
    %12 = vector.load %arg1[%c0_15, %c1_16, %c0_17, %c0_18] : memref<1x7x7x960xf32, #tpu.memory_space<vmem>>, vector<1x1x7x960xf32>
    %13 = vector.shape_cast %12 : vector<1x1x7x960xf32> to vector<1x7x960xf32>
    %cst_19 = arith.constant 0.000000e+00 : f32
    %cst_20 = arith.constant 6.000000e+00 : f32
    %14 = vector.broadcast %cst_19 : f32 to vector<1x7x960xf32>
    %15 = arith.maximumf %14, %13 : vector<1x7x960xf32>
    %16 = vector.broadcast %cst_20 : f32 to vector<1x7x960xf32>
    %17 = arith.minimumf %16, %15 : vector<1x7x960xf32>
    %c0_21 = arith.constant 0 : index
    %c1_22 = arith.constant 1 : index
    %c1_23 = arith.constant 1 : index
    %c0_24 = arith.constant 0 : index
    %18 = vector.load %arg6[%c0_21, %c1_22, %c1_23, %c0_24] : memref<1x7x9x960xf32, #tpu.memory_space<vmem>>, vector<1x1x7x960xf32>
    %19 = vector.shape_cast %18 : vector<1x1x7x960xf32> to vector<1x7x960xf32>
    %20 = vector.shape_cast %17 : vector<1x7x960xf32> to vector<1x1x7x960xf32>
    tpu.vector_store %arg6[%c0_21, %c1_22, %c1_23, %c0_24], %20 {strides = array<i32>} : memref<1x7x9x960xf32, #tpu.memory_space<vmem>>, vector<1x1x7x960xf32>,
    %c0_25 = arith.constant 0 : index
    %c2 = arith.constant 2 : index
    %c0_26 = arith.constant 0 : index
    %c0_27 = arith.constant 0 : index
    %21 = vector.load %arg1[%c0_25, %c2, %c0_26, %c0_27] : memref<1x7x7x960xf32, #tpu.memory_space<vmem>>, vector<1x1x7x960xf32>
    %22 = vector.shape_cast %21 : vector<1x1x7x960xf32> to vector<1x7x960xf32>
    %cst_28 = arith.constant 0.000000e+00 : f32
    %cst_29 = arith.constant 6.000000e+00 : f32
    %23 = vector.broadcast %cst_28 : f32 to vector<1x7x960xf32>
    %24 = arith.maximumf %23, %22 : vector<1x7x960xf32>
    %25 = vector.broadcast %cst_29 : f32 to vector<1x7x960xf32>
    %26 = arith.minimumf %25, %24 : vector<1x7x960xf32>
    %c0_30 = arith.constant 0 : index
    %c2_31 = arith.constant 2 : index
    %c1_32 = arith.constant 1 : index
    %c0_33 = arith.constant 0 : index
    %27 = vector.load %arg6[%c0_30, %c2_31, %c1_32, %c0_33] : memref<1x7x9x960xf32, #tpu.memory_space<vmem>>, vector<1x1x7x960xf32>
    %28 = vector.shape_cast %27 : vector<1x1x7x960xf32> to vector<1x7x960xf32>
    %29 = vector.shape_cast %26 : vector<1x7x960xf32> to vector<1x1x7x960xf32>
    tpu.vector_store %arg6[%c0_30, %c2_31, %c1_32, %c0_33], %29 {strides = array<i32>} : memref<1x7x9x960xf32, #tpu.memory_space<vmem>>, vector<1x1x7x960xf32>,
    %c0_34 = arith.constant 0 : index
    %c3 = arith.constant 3 : index
    %c0_35 = arith.constant 0 : index
    %c0_36 = arith.constant 0 : index
    %30 = vector.load %arg1[%c0_34, %c3, %c0_35, %c0_36] : memref<1x7x7x960xf32, #tpu.memory_space<vmem>>, vector<1x1x7x960xf32>
    %31 = vector.shape_cast %30 : vector<1x1x7x960xf32> to vector<1x7x960xf32>
    %cst_37 = arith.constant 0.000000e+00 : f32
    %cst_38 = arith.constant 6.000000e+00 : f32
    %32 = vector.broadcast %cst_37 : f32 to vector<1x7x960xf32>
    %33 = arith.maximumf %32, %31 : vector<1x7x960xf32>
    %34 = vector.broadcast %cst_38 : f32 to vector<1x7x960xf32>
    %35 = arith.minimumf %34, %33 : vector<1x7x960xf32>
    %c0_39 = arith.constant 0 : index
    %c3_40 = arith.constant 3 : index
    %c1_41 = arith.constant 1 : index
    %c0_42 = arith.constant 0 : index
    %36 = vector.load %arg6[%c0_39, %c3_40, %c1_41, %c0_42] : memref<1x7x9x960xf32, #tpu.memory_space<vmem>>, vector<1x1x7x960xf32>
    %37 = vector.shape_cast %36 : vector<1x1x7x960xf32> to vector<1x7x960xf32>
    %38 = vector.shape_cast %35 : vector<1x7x960xf32> to vector<1x1x7x960xf32>
    tpu.vector_store %arg6[%c0_39, %c3_40, %c1_41, %c0_42], %38 {strides = array<i32>} : memref<1x7x9x960xf32, #tpu.memory_space<vmem>>, vector<1x1x7x960xf32>,
    %c0_43 = arith.constant 0 : index
    %c4 = arith.constant 4 : index
    %c0_44 = arith.constant 0 : index
    %c0_45 = arith.constant 0 : index
    %39 = vector.load %arg1[%c0_43, %c4, %c0_44, %c0_45] : memref<1x7x7x960xf32, #tpu.memory_space<vmem>>, vector<1x1x7x960xf32>
    %40 = vector.shape_cast %39 : vector<1x1x7x960xf32> to vector<1x7x960xf32>
    %cst_46 = arith.constant 0.000000e+00 : f32
    %cst_47 = arith.constant 6.000000e+00 : f32
    %41 = vector.broadcast %cst_46 : f32 to vector<1x7x960xf32>
    %42 = arith.maximumf %41, %40 : vector<1x7x960xf32>
    %43 = vector.broadcast %cst_47 : f32 to vector<1x7x960xf32>
    %44 = arith.minimumf %43, %42 : vector<1x7x960xf32>
    %c0_48 = arith.constant 0 : index
    %c4_49 = arith.constant 4 : index
    %c1_50 = arith.constant 1 : index
    %c0_51 = arith.constant 0 : index
    %45 = vector.load %arg6[%c0_48, %c4_49, %c1_50, %c0_51] : memref<1x7x9x960xf32, #tpu.memory_space<vmem>>, vector<1x1x7x960xf32>
    %46 = vector.shape_cast %45 : vector<1x1x7x960xf32> to vector<1x7x960xf32>
    %47 = vector.shape_cast %44 : vector<1x7x960xf32> to vector<1x1x7x960xf32>
    tpu.vector_store %arg6[%c0_48, %c4_49, %c1_50, %c0_51], %47 {strides = array<i32>} : memref<1x7x9x960xf32, #tpu.memory_space<vmem>>, vector<1x1x7x960xf32>,
    %c0_52 = arith.constant 0 : index
    %c5 = arith.constant 5 : index
    %c0_53 = arith.constant 0 : index
    %c0_54 = arith.constant 0 : index
    %48 = vector.load %arg1[%c0_52, %c5, %c0_53, %c0_54] : memref<1x7x7x960xf32, #tpu.memory_space<vmem>>, vector<1x1x7x960xf32>
    %49 = vector.shape_cast %48 : vector<1x1x7x960xf32> to vector<1x7x960xf32>
    %cst_55 = arith.constant 0.000000e+00 : f32
    %cst_56 = arith.constant 6.000000e+00 : f32
    %50 = vector.broadcast %cst_55 : f32 to vector<1x7x960xf32>
    %51 = arith.maximumf %50, %49 : vector<1x7x960xf32>
    %52 = vector.broadcast %cst_56 : f32 to vector<1x7x960xf32>
    %53 = arith.minimumf %52, %51 : vector<1x7x960xf32>
    %c0_57 = arith.constant 0 : index
    %c5_58 = arith.constant 5 : index
    %c1_59 = arith.constant 1 : index
    %c0_60 = arith.constant 0 : index
    %54 = vector.load %arg6[%c0_57, %c5_58, %c1_59, %c0_60] : memref<1x7x9x960xf32, #tpu.memory_space<vmem>>, vector<1x1x7x960xf32>
    %55 = vector.shape_cast %54 : vector<1x1x7x960xf32> to vector<1x7x960xf32>
    %56 = vector.shape_cast %53 : vector<1x7x960xf32> to vector<1x1x7x960xf32>
    tpu.vector_store %arg6[%c0_57, %c5_58, %c1_59, %c0_60], %56 {strides = array<i32>} : memref<1x7x9x960xf32, #tpu.memory_space<vmem>>, vector<1x1x7x960xf32>,
    %c0_61 = arith.constant 0 : index
    %c6 = arith.constant 6 : index
    %c0_62 = arith.constant 0 : index
    %c0_63 = arith.constant 0 : index
    %57 = vector.load %arg1[%c0_61, %c6, %c0_62, %c0_63] : memref<1x7x7x960xf32, #tpu.memory_space<vmem>>, vector<1x1x7x960xf32>
    %58 = vector.shape_cast %57 : vector<1x1x7x960xf32> to vector<1x7x960xf32>
    %cst_64 = arith.constant 0.000000e+00 : f32
    %cst_65 = arith.constant 6.000000e+00 : f32
    %59 = vector.broadcast %cst_64 : f32 to vector<1x7x960xf32>
    %60 = arith.maximumf %59, %58 : vector<1x7x960xf32>
    %61 = vector.broadcast %cst_65 : f32 to vector<1x7x960xf32>
    %62 = arith.minimumf %61, %60 : vector<1x7x960xf32>
    %c0_66 = arith.constant 0 : index
    %c6_67 = arith.constant 6 : index
    %c1_68 = arith.constant 1 : index
    %c0_69 = arith.constant 0 : index
    %63 = vector.load %arg6[%c0_66, %c6_67, %c1_68, %c0_69] : memref<1x7x9x960xf32, #tpu.memory_space<vmem>>, vector<1x1x7x960xf32>
    %64 = vector.shape_cast %63 : vector<1x1x7x960xf32> to vector<1x7x960xf32>
    %65 = vector.shape_cast %62 : vector<1x7x960xf32> to vector<1x1x7x960xf32>
    tpu.vector_store %arg6[%c0_66, %c6_67, %c1_68, %c0_69], %65 {strides = array<i32>} : memref<1x7x9x960xf32, #tpu.memory_space<vmem>>, vector<1x1x7x960xf32>,
    %cst_70 = arith.constant 0.000000e+00 : f32
    %66 = vector.broadcast %cst_70 : f32 to vector<1x1x960xf32>
    %c1_71 = arith.constant 1 : index
    %c0_72 = arith.constant 0 : index
    %c0_73 = arith.constant 0 : index
    %67 = vector.load %arg2[%c1_71, %c0_72, %c0_73] : memref<3x3x960xf32, #tpu.memory_space<vmem>>, vector<1x1x960xf32>
    %68 = vector.shape_cast %67 : vector<1x1x960xf32> to vector<1x960xf32>
    %c0_74 = arith.constant 0 : index
    %c0_75 = arith.constant 0 : index
    %c0_76 = arith.constant 0 : index
    %c0_77 = arith.constant 0 : index
    %69 = vector.load %arg6[%c0_74, %c0_75, %c0_76, %c0_77] : memref<1x7x9x960xf32, #tpu.memory_space<vmem>>, vector<1x1x7x960xf32>
    %70 = vector.shape_cast %69 : vector<1x1x7x960xf32> to vector<1x7x960xf32>
    %71 = vector.shape_cast %68 : vector<1x960xf32> to vector<1x1x960xf32>
    %72 = vector.broadcast %71 : vector<1x1x960xf32> to vector<1x7x960xf32>
    %73 = arith.mulf %70, %72 : vector<1x7x960xf32>
    %c1_78 = arith.constant 1 : index
    %c1_79 = arith.constant 1 : index
    %c0_80 = arith.constant 0 : index
    %74 = vector.load %arg2[%c1_78, %c1_79, %c0_80] : memref<3x3x960xf32, #tpu.memory_space<vmem>>, vector<1x1x960xf32>
    %75 = vector.shape_cast %74 : vector<1x1x960xf32> to vector<1x960xf32>
    %c0_81 = arith.constant 0 : index
    %c0_82 = arith.constant 0 : index
    %c1_83 = arith.constant 1 : index
    %c0_84 = arith.constant 0 : index
    %76 = vector.load %arg6[%c0_81, %c0_82, %c1_83, %c0_84] : memref<1x7x9x960xf32, #tpu.memory_space<vmem>>, vector<1x1x7x960xf32>
    %77 = vector.shape_cast %76 : vector<1x1x7x960xf32> to vector<1x7x960xf32>
    %78 = vector.shape_cast %75 : vector<1x960xf32> to vector<1x1x960xf32>
    %79 = vector.broadcast %78 : vector<1x1x960xf32> to vector<1x7x960xf32>
    %80 = arith.mulf %77, %79 : vector<1x7x960xf32>
    %81 = arith.addf %73, %80 : vector<1x7x960xf32>
    %c1_85 = arith.constant 1 : index
    %c2_86 = arith.constant 2 : index
    %c0_87 = arith.constant 0 : index
    %82 = vector.load %arg2[%c1_85, %c2_86, %c0_87] : memref<3x3x960xf32, #tpu.memory_space<vmem>>, vector<1x1x960xf32>
    %83 = vector.shape_cast %82 : vector<1x1x960xf32> to vector<1x960xf32>
    %c0_88 = arith.constant 0 : index
    %c0_89 = arith.constant 0 : index
    %c2_90 = arith.constant 2 : index
    %c0_91 = arith.constant 0 : index
    %84 = vector.load %arg6[%c0_88, %c0_89, %c2_90, %c0_91] : memref<1x7x9x960xf32, #tpu.memory_space<vmem>>, vector<1x1x7x960xf32>
    %85 = vector.shape_cast %84 : vector<1x1x7x960xf32> to vector<1x7x960xf32>
    %86 = vector.shape_cast %83 : vector<1x960xf32> to vector<1x1x960xf32>
    %87 = vector.broadcast %86 : vector<1x1x960xf32> to vector<1x7x960xf32>
    %88 = arith.mulf %85, %87 : vector<1x7x960xf32>
    %89 = arith.addf %81, %88 : vector<1x7x960xf32>
    %c2_92 = arith.constant 2 : index
    %c0_93 = arith.constant 0 : index
    %c0_94 = arith.constant 0 : index
    %90 = vector.load %arg2[%c2_92, %c0_93, %c0_94] : memref<3x3x960xf32, #tpu.memory_space<vmem>>, vector<1x1x960xf32>
    %91 = vector.shape_cast %90 : vector<1x1x960xf32> to vector<1x960xf32>
    %c0_95 = arith.constant 0 : index
    %c1_96 = arith.constant 1 : index
    %c0_97 = arith.constant 0 : index
    %c0_98 = arith.constant 0 : index
    %92 = vector.load %arg6[%c0_95, %c1_96, %c0_97, %c0_98] : memref<1x7x9x960xf32, #tpu.memory_space<vmem>>, vector<1x1x7x960xf32>
    %93 = vector.shape_cast %92 : vector<1x1x7x960xf32> to vector<1x7x960xf32>
    %94 = vector.shape_cast %91 : vector<1x960xf32> to vector<1x1x960xf32>
    %95 = vector.broadcast %94 : vector<1x1x960xf32> to vector<1x7x960xf32>
    %96 = arith.mulf %93, %95 : vector<1x7x960xf32>
    %97 = arith.addf %89, %96 : vector<1x7x960xf32>
    %c2_99 = arith.constant 2 : index
    %c1_100 = arith.constant 1 : index
    %c0_101 = arith.constant 0 : index
    %98 = vector.load %arg2[%c2_99, %c1_100, %c0_101] : memref<3x3x960xf32, #tpu.memory_space<vmem>>, vector<1x1x960xf32>
    %99 = vector.shape_cast %98 : vector<1x1x960xf32> to vector<1x960xf32>
    %c0_102 = arith.constant 0 : index
    %c1_103 = arith.constant 1 : index
    %c1_104 = arith.constant 1 : index
    %c0_105 = arith.constant 0 : index
    %100 = vector.load %arg6[%c0_102, %c1_103, %c1_104, %c0_105] : memref<1x7x9x960xf32, #tpu.memory_space<vmem>>, vector<1x1x7x960xf32>
    %101 = vector.shape_cast %100 : vector<1x1x7x960xf32> to vector<1x7x960xf32>
    %102 = vector.shape_cast %99 : vector<1x960xf32> to vector<1x1x960xf32>
    %103 = vector.broadcast %102 : vector<1x1x960xf32> to vector<1x7x960xf32>
    %104 = arith.mulf %101, %103 : vector<1x7x960xf32>
    %105 = arith.addf %97, %104 : vector<1x7x960xf32>
    %c2_106 = arith.constant 2 : index
    %c2_107 = arith.constant 2 : index
    %c0_108 = arith.constant 0 : index
    %106 = vector.load %arg2[%c2_106, %c2_107, %c0_108] : memref<3x3x960xf32, #tpu.memory_space<vmem>>, vector<1x1x960xf32>
    %107 = vector.shape_cast %106 : vector<1x1x960xf32> to vector<1x960xf32>
    %c0_109 = arith.constant 0 : index
    %c1_110 = arith.constant 1 : index
    %c2_111 = arith.constant 2 : index
    %c0_112 = arith.constant 0 : index
    %108 = vector.load %arg6[%c0_109, %c1_110, %c2_111, %c0_112] : memref<1x7x9x960xf32, #tpu.memory_space<vmem>>, vector<1x1x7x960xf32>
    %109 = vector.shape_cast %108 : vector<1x1x7x960xf32> to vector<1x7x960xf32>
    %110 = vector.shape_cast %107 : vector<1x960xf32> to vector<1x1x960xf32>
    %111 = vector.broadcast %110 : vector<1x1x960xf32> to vector<1x7x960xf32>
    %112 = arith.mulf %109, %111 : vector<1x7x960xf32>
    %113 = arith.addf %105, %112 : vector<1x7x960xf32>
    %c0_113 = arith.constant 0 : index
    %c0_114 = arith.constant 0 : index
    %c0_115 = arith.constant 0 : index
    %c0_116 = arith.constant 0 : index
    %114 = vector.load %arg5[%c0_113, %c0_114, %c0_115, %c0_116] : memref<1x7x7x960xf32, #tpu.memory_space<vmem>>, vector<1x1x7x960xf32>
    %115 = vector.shape_cast %114 : vector<1x1x7x960xf32> to vector<1x7x960xf32>
    %116 = vector.shape_cast %113 : vector<1x7x960xf32> to vector<1x1x7x960xf32>
    tpu.vector_store %arg5[%c0_113, %c0_114, %c0_115, %c0_116], %116 {strides = array<i32>} : memref<1x7x7x960xf32, #tpu.memory_space<vmem>>, vector<1x1x7x960xf32>,
    %cst_117 = arith.constant dense<0.000000e+00> : vector<960xf32>
    %117 = vector.multi_reduction <add>, %113, %cst_117 [0, 1] : vector<1x7x960xf32> to vector<960xf32>
    %118 = vector.shape_cast %117 : vector<960xf32> to vector<1x1x960xf32>
    %119 = arith.addf %66, %118 : vector<1x1x960xf32>
    %c0_118 = arith.constant 0 : index
    %c0_119 = arith.constant 0 : index
    %c0_120 = arith.constant 0 : index
    %120 = vector.load %arg2[%c0_118, %c0_119, %c0_120] : memref<3x3x960xf32, #tpu.memory_space<vmem>>, vector<1x1x960xf32>
    %121 = vector.shape_cast %120 : vector<1x1x960xf32> to vector<1x960xf32>
    %c0_121 = arith.constant 0 : index
    %c0_122 = arith.constant 0 : index
    %c0_123 = arith.constant 0 : index
    %c0_124 = arith.constant 0 : index
    %122 = vector.load %arg6[%c0_121, %c0_122, %c0_123, %c0_124] : memref<1x7x9x960xf32, #tpu.memory_space<vmem>>, vector<1x1x7x960xf32>
    %123 = vector.shape_cast %122 : vector<1x1x7x960xf32> to vector<1x7x960xf32>
    %124 = vector.shape_cast %121 : vector<1x960xf32> to vector<1x1x960xf32>
    %125 = vector.broadcast %124 : vector<1x1x960xf32> to vector<1x7x960xf32>
    %126 = arith.mulf %123, %125 : vector<1x7x960xf32>
    %c0_125 = arith.constant 0 : index
    %c1_126 = arith.constant 1 : index
    %c0_127 = arith.constant 0 : index
    %127 = vector.load %arg2[%c0_125, %c1_126, %c0_127] : memref<3x3x960xf32, #tpu.memory_space<vmem>>, vector<1x1x960xf32>
    %128 = vector.shape_cast %127 : vector<1x1x960xf32> to vector<1x960xf32>
    %c0_128 = arith.constant 0 : index
    %c0_129 = arith.constant 0 : index
    %c1_130 = arith.constant 1 : index
    %c0_131 = arith.constant 0 : index
    %129 = vector.load %arg6[%c0_128, %c0_129, %c1_130, %c0_131] : memref<1x7x9x960xf32, #tpu.memory_space<vmem>>, vector<1x1x7x960xf32>
    %130 = vector.shape_cast %129 : vector<1x1x7x960xf32> to vector<1x7x960xf32>
    %131 = vector.shape_cast %128 : vector<1x960xf32> to vector<1x1x960xf32>
    %132 = vector.broadcast %131 : vector<1x1x960xf32> to vector<1x7x960xf32>
    %133 = arith.mulf %130, %132 : vector<1x7x960xf32>
    %134 = arith.addf %126, %133 : vector<1x7x960xf32>
    %c0_132 = arith.constant 0 : index
    %c2_133 = arith.constant 2 : index
    %c0_134 = arith.constant 0 : index
    %135 = vector.load %arg2[%c0_132, %c2_133, %c0_134] : memref<3x3x960xf32, #tpu.memory_space<vmem>>, vector<1x1x960xf32>
    %136 = vector.shape_cast %135 : vector<1x1x960xf32> to vector<1x960xf32>
    %c0_135 = arith.constant 0 : index
    %c0_136 = arith.constant 0 : index
    %c2_137 = arith.constant 2 : index
    %c0_138 = arith.constant 0 : index
    %137 = vector.load %arg6[%c0_135, %c0_136, %c2_137, %c0_138] : memref<1x7x9x960xf32, #tpu.memory_space<vmem>>, vector<1x1x7x960xf32>
    %138 = vector.shape_cast %137 : vector<1x1x7x960xf32> to vector<1x7x960xf32>
    %139 = vector.shape_cast %136 : vector<1x960xf32> to vector<1x1x960xf32>
    %140 = vector.broadcast %139 : vector<1x1x960xf32> to vector<1x7x960xf32>
    %141 = arith.mulf %138, %140 : vector<1x7x960xf32>
    %142 = arith.addf %134, %141 : vector<1x7x960xf32>
    %c1_139 = arith.constant 1 : index
    %c0_140 = arith.constant 0 : index
    %c0_141 = arith.constant 0 : index
    %143 = vector.load %arg2[%c1_139, %c0_140, %c0_141] : memref<3x3x960xf32, #tpu.memory_space<vmem>>, vector<1x1x960xf32>
    %144 = vector.shape_cast %143 : vector<1x1x960xf32> to vector<1x960xf32>
    %c0_142 = arith.constant 0 : index
    %c1_143 = arith.constant 1 : index
    %c0_144 = arith.constant 0 : index
    %c0_145 = arith.constant 0 : index
    %145 = vector.load %arg6[%c0_142, %c1_143, %c0_144, %c0_145] : memref<1x7x9x960xf32, #tpu.memory_space<vmem>>, vector<1x1x7x960xf32>
    %146 = vector.shape_cast %145 : vector<1x1x7x960xf32> to vector<1x7x960xf32>
    %147 = vector.shape_cast %144 : vector<1x960xf32> to vector<1x1x960xf32>
    %148 = vector.broadcast %147 : vector<1x1x960xf32> to vector<1x7x960xf32>
    %149 = arith.mulf %146, %148 : vector<1x7x960xf32>
    %150 = arith.addf %142, %149 : vector<1x7x960xf32>
    %c1_146 = arith.constant 1 : index
    %c1_147 = arith.constant 1 : index
    %c0_148 = arith.constant 0 : index
    %151 = vector.load %arg2[%c1_146, %c1_147, %c0_148] : memref<3x3x960xf32, #tpu.memory_space<vmem>>, vector<1x1x960xf32>
    %152 = vector.shape_cast %151 : vector<1x1x960xf32> to vector<1x960xf32>
    %c0_149 = arith.constant 0 : index
    %c1_150 = arith.constant 1 : index
    %c1_151 = arith.constant 1 : index
    %c0_152 = arith.constant 0 : index
    %153 = vector.load %arg6[%c0_149, %c1_150, %c1_151, %c0_152] : memref<1x7x9x960xf32, #tpu.memory_space<vmem>>, vector<1x1x7x960xf32>
    %154 = vector.shape_cast %153 : vector<1x1x7x960xf32> to vector<1x7x960xf32>
    %155 = vector.shape_cast %152 : vector<1x960xf32> to vector<1x1x960xf32>
    %156 = vector.broadcast %155 : vector<1x1x960xf32> to vector<1x7x960xf32>
    %157 = arith.mulf %154, %156 : vector<1x7x960xf32>
    %158 = arith.addf %150, %157 : vector<1x7x960xf32>
    %c1_153 = arith.constant 1 : index
    %c2_154 = arith.constant 2 : index
    %c0_155 = arith.constant 0 : index
    %159 = vector.load %arg2[%c1_153, %c2_154, %c0_155] : memref<3x3x960xf32, #tpu.memory_space<vmem>>, vector<1x1x960xf32>
    %160 = vector.shape_cast %159 : vector<1x1x960xf32> to vector<1x960xf32>
    %c0_156 = arith.constant 0 : index
    %c1_157 = arith.constant 1 : index
    %c2_158 = arith.constant 2 : index
    %c0_159 = arith.constant 0 : index
    %161 = vector.load %arg6[%c0_156, %c1_157, %c2_158, %c0_159] : memref<1x7x9x960xf32, #tpu.memory_space<vmem>>, vector<1x1x7x960xf32>
    %162 = vector.shape_cast %161 : vector<1x1x7x960xf32> to vector<1x7x960xf32>
    %163 = vector.shape_cast %160 : vector<1x960xf32> to vector<1x1x960xf32>
    %164 = vector.broadcast %163 : vector<1x1x960xf32> to vector<1x7x960xf32>
    %165 = arith.mulf %162, %164 : vector<1x7x960xf32>
    %166 = arith.addf %158, %165 : vector<1x7x960xf32>
    %c2_160 = arith.constant 2 : index
    %c0_161 = arith.constant 0 : index
    %c0_162 = arith.constant 0 : index
    %167 = vector.load %arg2[%c2_160, %c0_161, %c0_162] : memref<3x3x960xf32, #tpu.memory_space<vmem>>, vector<1x1x960xf32>
    %168 = vector.shape_cast %167 : vector<1x1x960xf32> to vector<1x960xf32>
    %c0_163 = arith.constant 0 : index
    %c2_164 = arith.constant 2 : index
    %c0_165 = arith.constant 0 : index
    %c0_166 = arith.constant 0 : index
    %169 = vector.load %arg6[%c0_163, %c2_164, %c0_165, %c0_166] : memref<1x7x9x960xf32, #tpu.memory_space<vmem>>, vector<1x1x7x960xf32>
    %170 = vector.shape_cast %169 : vector<1x1x7x960xf32> to vector<1x7x960xf32>
    %171 = vector.shape_cast %168 : vector<1x960xf32> to vector<1x1x960xf32>
    %172 = vector.broadcast %171 : vector<1x1x960xf32> to vector<1x7x960xf32>
    %173 = arith.mulf %170, %172 : vector<1x7x960xf32>
    %174 = arith.addf %166, %173 : vector<1x7x960xf32>
    %c2_167 = arith.constant 2 : index
    %c1_168 = arith.constant 1 : index
    %c0_169 = arith.constant 0 : index
    %175 = vector.load %arg2[%c2_167, %c1_168, %c0_169] : memref<3x3x960xf32, #tpu.memory_space<vmem>>, vector<1x1x960xf32>
    %176 = vector.shape_cast %175 : vector<1x1x960xf32> to vector<1x960xf32>
    %c0_170 = arith.constant 0 : index
    %c2_171 = arith.constant 2 : index
    %c1_172 = arith.constant 1 : index
    %c0_173 = arith.constant 0 : index
    %177 = vector.load %arg6[%c0_170, %c2_171, %c1_172, %c0_173] : memref<1x7x9x960xf32, #tpu.memory_space<vmem>>, vector<1x1x7x960xf32>
    %178 = vector.shape_cast %177 : vector<1x1x7x960xf32> to vector<1x7x960xf32>
    %179 = vector.shape_cast %176 : vector<1x960xf32> to vector<1x1x960xf32>
    %180 = vector.broadcast %179 : vector<1x1x960xf32> to vector<1x7x960xf32>
    %181 = arith.mulf %178, %180 : vector<1x7x960xf32>
    %182 = arith.addf %174, %181 : vector<1x7x960xf32>
    %c2_174 = arith.constant 2 : index
    %c2_175 = arith.constant 2 : index
    %c0_176 = arith.constant 0 : index
    %183 = vector.load %arg2[%c2_174, %c2_175, %c0_176] : memref<3x3x960xf32, #tpu.memory_space<vmem>>, vector<1x1x960xf32>
    %184 = vector.shape_cast %183 : vector<1x1x960xf32> to vector<1x960xf32>
    %c0_177 = arith.constant 0 : index
    %c2_178 = arith.constant 2 : index
    %c2_179 = arith.constant 2 : index
    %c0_180 = arith.constant 0 : index
    %185 = vector.load %arg6[%c0_177, %c2_178, %c2_179, %c0_180] : memref<1x7x9x960xf32, #tpu.memory_space<vmem>>, vector<1x1x7x960xf32>
    %186 = vector.shape_cast %185 : vector<1x1x7x960xf32> to vector<1x7x960xf32>
    %187 = vector.shape_cast %184 : vector<1x960xf32> to vector<1x1x960xf32>
    %188 = vector.broadcast %187 : vector<1x1x960xf32> to vector<1x7x960xf32>
    %189 = arith.mulf %186, %188 : vector<1x7x960xf32>
    %190 = arith.addf %182, %189 : vector<1x7x960xf32>
    %c0_181 = arith.constant 0 : index
    %c1_182 = arith.constant 1 : index
    %c0_183 = arith.constant 0 : index
    %c0_184 = arith.constant 0 : index
    %191 = vector.load %arg5[%c0_181, %c1_182, %c0_183, %c0_184] : memref<1x7x7x960xf32, #tpu.memory_space<vmem>>, vector<1x1x7x960xf32>
    %192 = vector.shape_cast %191 : vector<1x1x7x960xf32> to vector<1x7x960xf32>
    %193 = vector.shape_cast %190 : vector<1x7x960xf32> to vector<1x1x7x960xf32>
    tpu.vector_store %arg5[%c0_181, %c1_182, %c0_183, %c0_184], %193 {strides = array<i32>} : memref<1x7x7x960xf32, #tpu.memory_space<vmem>>, vector<1x1x7x960xf32>,
    %cst_185 = arith.constant dense<0.000000e+00> : vector<960xf32>
    %194 = vector.multi_reduction <add>, %190, %cst_185 [0, 1] : vector<1x7x960xf32> to vector<960xf32>
    %195 = vector.shape_cast %194 : vector<960xf32> to vector<1x1x960xf32>
    %196 = arith.addf %119, %195 : vector<1x1x960xf32>
    %c0_186 = arith.constant 0 : index
    %c0_187 = arith.constant 0 : index
    %c0_188 = arith.constant 0 : index
    %197 = vector.load %arg2[%c0_186, %c0_187, %c0_188] : memref<3x3x960xf32, #tpu.memory_space<vmem>>, vector<1x1x960xf32>
    %198 = vector.shape_cast %197 : vector<1x1x960xf32> to vector<1x960xf32>
    %c0_189 = arith.constant 0 : index
    %c1_190 = arith.constant 1 : index
    %c0_191 = arith.constant 0 : index
    %c0_192 = arith.constant 0 : index
    %199 = vector.load %arg6[%c0_189, %c1_190, %c0_191, %c0_192] : memref<1x7x9x960xf32, #tpu.memory_space<vmem>>, vector<1x1x7x960xf32>
    %200 = vector.shape_cast %199 : vector<1x1x7x960xf32> to vector<1x7x960xf32>
    %201 = vector.shape_cast %198 : vector<1x960xf32> to vector<1x1x960xf32>
    %202 = vector.broadcast %201 : vector<1x1x960xf32> to vector<1x7x960xf32>
    %203 = arith.mulf %200, %202 : vector<1x7x960xf32>
    %c0_193 = arith.constant 0 : index
    %c1_194 = arith.constant 1 : index
    %c0_195 = arith.constant 0 : index
    %204 = vector.load %arg2[%c0_193, %c1_194, %c0_195] : memref<3x3x960xf32, #tpu.memory_space<vmem>>, vector<1x1x960xf32>
    %205 = vector.shape_cast %204 : vector<1x1x960xf32> to vector<1x960xf32>
    %c0_196 = arith.constant 0 : index
    %c1_197 = arith.constant 1 : index
    %c1_198 = arith.constant 1 : index
    %c0_199 = arith.constant 0 : index
    %206 = vector.load %arg6[%c0_196, %c1_197, %c1_198, %c0_199] : memref<1x7x9x960xf32, #tpu.memory_space<vmem>>, vector<1x1x7x960xf32>
    %207 = vector.shape_cast %206 : vector<1x1x7x960xf32> to vector<1x7x960xf32>
    %208 = vector.shape_cast %205 : vector<1x960xf32> to vector<1x1x960xf32>
    %209 = vector.broadcast %208 : vector<1x1x960xf32> to vector<1x7x960xf32>
    %210 = arith.mulf %207, %209 : vector<1x7x960xf32>
    %211 = arith.addf %203, %210 : vector<1x7x960xf32>
    %c0_200 = arith.constant 0 : index
    %c2_201 = arith.constant 2 : index
    %c0_202 = arith.constant 0 : index
    %212 = vector.load %arg2[%c0_200, %c2_201, %c0_202] : memref<3x3x960xf32, #tpu.memory_space<vmem>>, vector<1x1x960xf32>
    %213 = vector.shape_cast %212 : vector<1x1x960xf32> to vector<1x960xf32>
    %c0_203 = arith.constant 0 : index
    %c1_204 = arith.constant 1 : index
    %c2_205 = arith.constant 2 : index
    %c0_206 = arith.constant 0 : index
    %214 = vector.load %arg6[%c0_203, %c1_204, %c2_205, %c0_206] : memref<1x7x9x960xf32, #tpu.memory_space<vmem>>, vector<1x1x7x960xf32>
    %215 = vector.shape_cast %214 : vector<1x1x7x960xf32> to vector<1x7x960xf32>
    %216 = vector.shape_cast %213 : vector<1x960xf32> to vector<1x1x960xf32>
    %217 = vector.broadcast %216 : vector<1x1x960xf32> to vector<1x7x960xf32>
    %218 = arith.mulf %215, %217 : vector<1x7x960xf32>
    %219 = arith.addf %211, %218 : vector<1x7x960xf32>
    %c1_207 = arith.constant 1 : index
    %c0_208 = arith.constant 0 : index
    %c0_209 = arith.constant 0 : index
    %220 = vector.load %arg2[%c1_207, %c0_208, %c0_209] : memref<3x3x960xf32, #tpu.memory_space<vmem>>, vector<1x1x960xf32>
    %221 = vector.shape_cast %220 : vector<1x1x960xf32> to vector<1x960xf32>
    %c0_210 = arith.constant 0 : index
    %c2_211 = arith.constant 2 : index
    %c0_212 = arith.constant 0 : index
    %c0_213 = arith.constant 0 : index
    %222 = vector.load %arg6[%c0_210, %c2_211, %c0_212, %c0_213] : memref<1x7x9x960xf32, #tpu.memory_space<vmem>>, vector<1x1x7x960xf32>
    %223 = vector.shape_cast %222 : vector<1x1x7x960xf32> to vector<1x7x960xf32>
    %224 = vector.shape_cast %221 : vector<1x960xf32> to vector<1x1x960xf32>
    %225 = vector.broadcast %224 : vector<1x1x960xf32> to vector<1x7x960xf32>
    %226 = arith.mulf %223, %225 : vector<1x7x960xf32>
    %227 = arith.addf %219, %226 : vector<1x7x960xf32>
    %c1_214 = arith.constant 1 : index
    %c1_215 = arith.constant 1 : index
    %c0_216 = arith.constant 0 : index
    %228 = vector.load %arg2[%c1_214, %c1_215, %c0_216] : memref<3x3x960xf32, #tpu.memory_space<vmem>>, vector<1x1x960xf32>
    %229 = vector.shape_cast %228 : vector<1x1x960xf32> to vector<1x960xf32>
    %c0_217 = arith.constant 0 : index
    %c2_218 = arith.constant 2 : index
    %c1_219 = arith.constant 1 : index
    %c0_220 = arith.constant 0 : index
    %230 = vector.load %arg6[%c0_217, %c2_218, %c1_219, %c0_220] : memref<1x7x9x960xf32, #tpu.memory_space<vmem>>, vector<1x1x7x960xf32>
    %231 = vector.shape_cast %230 : vector<1x1x7x960xf32> to vector<1x7x960xf32>
    %232 = vector.shape_cast %229 : vector<1x960xf32> to vector<1x1x960xf32>
    %233 = vector.broadcast %232 : vector<1x1x960xf32> to vector<1x7x960xf32>
    %234 = arith.mulf %231, %233 : vector<1x7x960xf32>
    %235 = arith.addf %227, %234 : vector<1x7x960xf32>
    %c1_221 = arith.constant 1 : index
    %c2_222 = arith.constant 2 : index
    %c0_223 = arith.constant 0 : index
    %236 = vector.load %arg2[%c1_221, %c2_222, %c0_223] : memref<3x3x960xf32, #tpu.memory_space<vmem>>, vector<1x1x960xf32>
    %237 = vector.shape_cast %236 : vector<1x1x960xf32> to vector<1x960xf32>
    %c0_224 = arith.constant 0 : index
    %c2_225 = arith.constant 2 : index
    %c2_226 = arith.constant 2 : index
    %c0_227 = arith.constant 0 : index
    %238 = vector.load %arg6[%c0_224, %c2_225, %c2_226, %c0_227] : memref<1x7x9x960xf32, #tpu.memory_space<vmem>>, vector<1x1x7x960xf32>
    %239 = vector.shape_cast %238 : vector<1x1x7x960xf32> to vector<1x7x960xf32>
    %240 = vector.shape_cast %237 : vector<1x960xf32> to vector<1x1x960xf32>
    %241 = vector.broadcast %240 : vector<1x1x960xf32> to vector<1x7x960xf32>
    %242 = arith.mulf %239, %241 : vector<1x7x960xf32>
    %243 = arith.addf %235, %242 : vector<1x7x960xf32>
    %c2_228 = arith.constant 2 : index
    %c0_229 = arith.constant 0 : index
    %c0_230 = arith.constant 0 : index
    %244 = vector.load %arg2[%c2_228, %c0_229, %c0_230] : memref<3x3x960xf32, #tpu.memory_space<vmem>>, vector<1x1x960xf32>
    %245 = vector.shape_cast %244 : vector<1x1x960xf32> to vector<1x960xf32>
    %c0_231 = arith.constant 0 : index
    %c3_232 = arith.constant 3 : index
    %c0_233 = arith.constant 0 : index
    %c0_234 = arith.constant 0 : index
    %246 = vector.load %arg6[%c0_231, %c3_232, %c0_233, %c0_234] : memref<1x7x9x960xf32, #tpu.memory_space<vmem>>, vector<1x1x7x960xf32>
    %247 = vector.shape_cast %246 : vector<1x1x7x960xf32> to vector<1x7x960xf32>
    %248 = vector.shape_cast %245 : vector<1x960xf32> to vector<1x1x960xf32>
    %249 = vector.broadcast %248 : vector<1x1x960xf32> to vector<1x7x960xf32>
    %250 = arith.mulf %247, %249 : vector<1x7x960xf32>
    %251 = arith.addf %243, %250 : vector<1x7x960xf32>
    %c2_235 = arith.constant 2 : index
    %c1_236 = arith.constant 1 : index
    %c0_237 = arith.constant 0 : index
    %252 = vector.load %arg2[%c2_235, %c1_236, %c0_237] : memref<3x3x960xf32, #tpu.memory_space<vmem>>, vector<1x1x960xf32>
    %253 = vector.shape_cast %252 : vector<1x1x960xf32> to vector<1x960xf32>
    %c0_238 = arith.constant 0 : index
    %c3_239 = arith.constant 3 : index
    %c1_240 = arith.constant 1 : index
    %c0_241 = arith.constant 0 : index
    %254 = vector.load %arg6[%c0_238, %c3_239, %c1_240, %c0_241] : memref<1x7x9x960xf32, #tpu.memory_space<vmem>>, vector<1x1x7x960xf32>
    %255 = vector.shape_cast %254 : vector<1x1x7x960xf32> to vector<1x7x960xf32>
    %256 = vector.shape_cast %253 : vector<1x960xf32> to vector<1x1x960xf32>
    %257 = vector.broadcast %256 : vector<1x1x960xf32> to vector<1x7x960xf32>
    %258 = arith.mulf %255, %257 : vector<1x7x960xf32>
    %259 = arith.addf %251, %258 : vector<1x7x960xf32>
    %c2_242 = arith.constant 2 : index
    %c2_243 = arith.constant 2 : index
    %c0_244 = arith.constant 0 : index
    %260 = vector.load %arg2[%c2_242, %c2_243, %c0_244] : memref<3x3x960xf32, #tpu.memory_space<vmem>>, vector<1x1x960xf32>
    %261 = vector.shape_cast %260 : vector<1x1x960xf32> to vector<1x960xf32>
    %c0_245 = arith.constant 0 : index
    %c3_246 = arith.constant 3 : index
    %c2_247 = arith.constant 2 : index
    %c0_248 = arith.constant 0 : index
    %262 = vector.load %arg6[%c0_245, %c3_246, %c2_247, %c0_248] : memref<1x7x9x960xf32, #tpu.memory_space<vmem>>, vector<1x1x7x960xf32>
    %263 = vector.shape_cast %262 : vector<1x1x7x960xf32> to vector<1x7x960xf32>
    %264 = vector.shape_cast %261 : vector<1x960xf32> to vector<1x1x960xf32>
    %265 = vector.broadcast %264 : vector<1x1x960xf32> to vector<1x7x960xf32>
    %266 = arith.mulf %263, %265 : vector<1x7x960xf32>
    %267 = arith.addf %259, %266 : vector<1x7x960xf32>
    %c0_249 = arith.constant 0 : index
    %c2_250 = arith.constant 2 : index
    %c0_251 = arith.constant 0 : index
    %c0_252 = arith.constant 0 : index
    %268 = vector.load %arg5[%c0_249, %c2_250, %c0_251, %c0_252] : memref<1x7x7x960xf32, #tpu.memory_space<vmem>>, vector<1x1x7x960xf32>
    %269 = vector.shape_cast %268 : vector<1x1x7x960xf32> to vector<1x7x960xf32>
    %270 = vector.shape_cast %267 : vector<1x7x960xf32> to vector<1x1x7x960xf32>
    tpu.vector_store %arg5[%c0_249, %c2_250, %c0_251, %c0_252], %270 {strides = array<i32>} : memref<1x7x7x960xf32, #tpu.memory_space<vmem>>, vector<1x1x7x960xf32>,
    %cst_253 = arith.constant dense<0.000000e+00> : vector<960xf32>
    %271 = vector.multi_reduction <add>, %267, %cst_253 [0, 1] : vector<1x7x960xf32> to vector<960xf32>
    %272 = vector.shape_cast %271 : vector<960xf32> to vector<1x1x960xf32>
    %273 = arith.addf %196, %272 : vector<1x1x960xf32>
    %c0_254 = arith.constant 0 : index
    %c0_255 = arith.constant 0 : index
    %c0_256 = arith.constant 0 : index
    %274 = vector.load %arg2[%c0_254, %c0_255, %c0_256] : memref<3x3x960xf32, #tpu.memory_space<vmem>>, vector<1x1x960xf32>
    %275 = vector.shape_cast %274 : vector<1x1x960xf32> to vector<1x960xf32>
    %c0_257 = arith.constant 0 : index
    %c2_258 = arith.constant 2 : index
    %c0_259 = arith.constant 0 : index
    %c0_260 = arith.constant 0 : index
    %276 = vector.load %arg6[%c0_257, %c2_258, %c0_259, %c0_260] : memref<1x7x9x960xf32, #tpu.memory_space<vmem>>, vector<1x1x7x960xf32>
    %277 = vector.shape_cast %276 : vector<1x1x7x960xf32> to vector<1x7x960xf32>
    %278 = vector.shape_cast %275 : vector<1x960xf32> to vector<1x1x960xf32>
    %279 = vector.broadcast %278 : vector<1x1x960xf32> to vector<1x7x960xf32>
    %280 = arith.mulf %277, %279 : vector<1x7x960xf32>
    %c0_261 = arith.constant 0 : index
    %c1_262 = arith.constant 1 : index
    %c0_263 = arith.constant 0 : index
    %281 = vector.load %arg2[%c0_261, %c1_262, %c0_263] : memref<3x3x960xf32, #tpu.memory_space<vmem>>, vector<1x1x960xf32>
    %282 = vector.shape_cast %281 : vector<1x1x960xf32> to vector<1x960xf32>
    %c0_264 = arith.constant 0 : index
    %c2_265 = arith.constant 2 : index
    %c1_266 = arith.constant 1 : index
    %c0_267 = arith.constant 0 : index
    %283 = vector.load %arg6[%c0_264, %c2_265, %c1_266, %c0_267] : memref<1x7x9x960xf32, #tpu.memory_space<vmem>>, vector<1x1x7x960xf32>
    %284 = vector.shape_cast %283 : vector<1x1x7x960xf32> to vector<1x7x960xf32>
    %285 = vector.shape_cast %282 : vector<1x960xf32> to vector<1x1x960xf32>
    %286 = vector.broadcast %285 : vector<1x1x960xf32> to vector<1x7x960xf32>
    %287 = arith.mulf %284, %286 : vector<1x7x960xf32>
    %288 = arith.addf %280, %287 : vector<1x7x960xf32>
    %c0_268 = arith.constant 0 : index
    %c2_269 = arith.constant 2 : index
    %c0_270 = arith.constant 0 : index
    %289 = vector.load %arg2[%c0_268, %c2_269, %c0_270] : memref<3x3x960xf32, #tpu.memory_space<vmem>>, vector<1x1x960xf32>
    %290 = vector.shape_cast %289 : vector<1x1x960xf32> to vector<1x960xf32>
    %c0_271 = arith.constant 0 : index
    %c2_272 = arith.constant 2 : index
    %c2_273 = arith.constant 2 : index
    %c0_274 = arith.constant 0 : index
    %291 = vector.load %arg6[%c0_271, %c2_272, %c2_273, %c0_274] : memref<1x7x9x960xf32, #tpu.memory_space<vmem>>, vector<1x1x7x960xf32>
    %292 = vector.shape_cast %291 : vector<1x1x7x960xf32> to vector<1x7x960xf32>
    %293 = vector.shape_cast %290 : vector<1x960xf32> to vector<1x1x960xf32>
    %294 = vector.broadcast %293 : vector<1x1x960xf32> to vector<1x7x960xf32>
    %295 = arith.mulf %292, %294 : vector<1x7x960xf32>
    %296 = arith.addf %288, %295 : vector<1x7x960xf32>
    %c1_275 = arith.constant 1 : index
    %c0_276 = arith.constant 0 : index
    %c0_277 = arith.constant 0 : index
    %297 = vector.load %arg2[%c1_275, %c0_276, %c0_277] : memref<3x3x960xf32, #tpu.memory_space<vmem>>, vector<1x1x960xf32>
    %298 = vector.shape_cast %297 : vector<1x1x960xf32> to vector<1x960xf32>
    %c0_278 = arith.constant 0 : index
    %c3_279 = arith.constant 3 : index
    %c0_280 = arith.constant 0 : index
    %c0_281 = arith.constant 0 : index
    %299 = vector.load %arg6[%c0_278, %c3_279, %c0_280, %c0_281] : memref<1x7x9x960xf32, #tpu.memory_space<vmem>>, vector<1x1x7x960xf32>
    %300 = vector.shape_cast %299 : vector<1x1x7x960xf32> to vector<1x7x960xf32>
    %301 = vector.shape_cast %298 : vector<1x960xf32> to vector<1x1x960xf32>
    %302 = vector.broadcast %301 : vector<1x1x960xf32> to vector<1x7x960xf32>
    %303 = arith.mulf %300, %302 : vector<1x7x960xf32>
    %304 = arith.addf %296, %303 : vector<1x7x960xf32>
    %c1_282 = arith.constant 1 : index
    %c1_283 = arith.constant 1 : index
    %c0_284 = arith.constant 0 : index
    %305 = vector.load %arg2[%c1_282, %c1_283, %c0_284] : memref<3x3x960xf32, #tpu.memory_space<vmem>>, vector<1x1x960xf32>
    %306 = vector.shape_cast %305 : vector<1x1x960xf32> to vector<1x960xf32>
    %c0_285 = arith.constant 0 : index
    %c3_286 = arith.constant 3 : index
    %c1_287 = arith.constant 1 : index
    %c0_288 = arith.constant 0 : index
    %307 = vector.load %arg6[%c0_285, %c3_286, %c1_287, %c0_288] : memref<1x7x9x960xf32, #tpu.memory_space<vmem>>, vector<1x1x7x960xf32>
    %308 = vector.shape_cast %307 : vector<1x1x7x960xf32> to vector<1x7x960xf32>
    %309 = vector.shape_cast %306 : vector<1x960xf32> to vector<1x1x960xf32>
    %310 = vector.broadcast %309 : vector<1x1x960xf32> to vector<1x7x960xf32>
    %311 = arith.mulf %308, %310 : vector<1x7x960xf32>
    %312 = arith.addf %304, %311 : vector<1x7x960xf32>
    %c1_289 = arith.constant 1 : index
    %c2_290 = arith.constant 2 : index
    %c0_291 = arith.constant 0 : index
    %313 = vector.load %arg2[%c1_289, %c2_290, %c0_291] : memref<3x3x960xf32, #tpu.memory_space<vmem>>, vector<1x1x960xf32>
    %314 = vector.shape_cast %313 : vector<1x1x960xf32> to vector<1x960xf32>
    %c0_292 = arith.constant 0 : index
    %c3_293 = arith.constant 3 : index
    %c2_294 = arith.constant 2 : index
    %c0_295 = arith.constant 0 : index
    %315 = vector.load %arg6[%c0_292, %c3_293, %c2_294, %c0_295] : memref<1x7x9x960xf32, #tpu.memory_space<vmem>>, vector<1x1x7x960xf32>
    %316 = vector.shape_cast %315 : vector<1x1x7x960xf32> to vector<1x7x960xf32>
    %317 = vector.shape_cast %314 : vector<1x960xf32> to vector<1x1x960xf32>
    %318 = vector.broadcast %317 : vector<1x1x960xf32> to vector<1x7x960xf32>
    %319 = arith.mulf %316, %318 : vector<1x7x960xf32>
    %320 = arith.addf %312, %319 : vector<1x7x960xf32>
    %c2_296 = arith.constant 2 : index
    %c0_297 = arith.constant 0 : index
    %c0_298 = arith.constant 0 : index
    %321 = vector.load %arg2[%c2_296, %c0_297, %c0_298] : memref<3x3x960xf32, #tpu.memory_space<vmem>>, vector<1x1x960xf32>
    %322 = vector.shape_cast %321 : vector<1x1x960xf32> to vector<1x960xf32>
    %c0_299 = arith.constant 0 : index
    %c4_300 = arith.constant 4 : index
    %c0_301 = arith.constant 0 : index
    %c0_302 = arith.constant 0 : index
    %323 = vector.load %arg6[%c0_299, %c4_300, %c0_301, %c0_302] : memref<1x7x9x960xf32, #tpu.memory_space<vmem>>, vector<1x1x7x960xf32>
    %324 = vector.shape_cast %323 : vector<1x1x7x960xf32> to vector<1x7x960xf32>
    %325 = vector.shape_cast %322 : vector<1x960xf32> to vector<1x1x960xf32>
    %326 = vector.broadcast %325 : vector<1x1x960xf32> to vector<1x7x960xf32>
    %327 = arith.mulf %324, %326 : vector<1x7x960xf32>
    %328 = arith.addf %320, %327 : vector<1x7x960xf32>
    %c2_303 = arith.constant 2 : index
    %c1_304 = arith.constant 1 : index
    %c0_305 = arith.constant 0 : index
    %329 = vector.load %arg2[%c2_303, %c1_304, %c0_305] : memref<3x3x960xf32, #tpu.memory_space<vmem>>, vector<1x1x960xf32>
    %330 = vector.shape_cast %329 : vector<1x1x960xf32> to vector<1x960xf32>
    %c0_306 = arith.constant 0 : index
    %c4_307 = arith.constant 4 : index
    %c1_308 = arith.constant 1 : index
    %c0_309 = arith.constant 0 : index
    %331 = vector.load %arg6[%c0_306, %c4_307, %c1_308, %c0_309] : memref<1x7x9x960xf32, #tpu.memory_space<vmem>>, vector<1x1x7x960xf32>
    %332 = vector.shape_cast %331 : vector<1x1x7x960xf32> to vector<1x7x960xf32>
    %333 = vector.shape_cast %330 : vector<1x960xf32> to vector<1x1x960xf32>
    %334 = vector.broadcast %333 : vector<1x1x960xf32> to vector<1x7x960xf32>
    %335 = arith.mulf %332, %334 : vector<1x7x960xf32>
    %336 = arith.addf %328, %335 : vector<1x7x960xf32>
    %c2_310 = arith.constant 2 : index
    %c2_311 = arith.constant 2 : index
    %c0_312 = arith.constant 0 : index
    %337 = vector.load %arg2[%c2_310, %c2_311, %c0_312] : memref<3x3x960xf32, #tpu.memory_space<vmem>>, vector<1x1x960xf32>
    %338 = vector.shape_cast %337 : vector<1x1x960xf32> to vector<1x960xf32>
    %c0_313 = arith.constant 0 : index
    %c4_314 = arith.constant 4 : index
    %c2_315 = arith.constant 2 : index
    %c0_316 = arith.constant 0 : index
    %339 = vector.load %arg6[%c0_313, %c4_314, %c2_315, %c0_316] : memref<1x7x9x960xf32, #tpu.memory_space<vmem>>, vector<1x1x7x960xf32>
    %340 = vector.shape_cast %339 : vector<1x1x7x960xf32> to vector<1x7x960xf32>
    %341 = vector.shape_cast %338 : vector<1x960xf32> to vector<1x1x960xf32>
    %342 = vector.broadcast %341 : vector<1x1x960xf32> to vector<1x7x960xf32>
    %343 = arith.mulf %340, %342 : vector<1x7x960xf32>
    %344 = arith.addf %336, %343 : vector<1x7x960xf32>
    %c0_317 = arith.constant 0 : index
    %c3_318 = arith.constant 3 : index
    %c0_319 = arith.constant 0 : index
    %c0_320 = arith.constant 0 : index
    %345 = vector.load %arg5[%c0_317, %c3_318, %c0_319, %c0_320] : memref<1x7x7x960xf32, #tpu.memory_space<vmem>>, vector<1x1x7x960xf32>
    %346 = vector.shape_cast %345 : vector<1x1x7x960xf32> to vector<1x7x960xf32>
    %347 = vector.shape_cast %344 : vector<1x7x960xf32> to vector<1x1x7x960xf32>
    tpu.vector_store %arg5[%c0_317, %c3_318, %c0_319, %c0_320], %347 {strides = array<i32>} : memref<1x7x7x960xf32, #tpu.memory_space<vmem>>, vector<1x1x7x960xf32>,
    %cst_321 = arith.constant dense<0.000000e+00> : vector<960xf32>
    %348 = vector.multi_reduction <add>, %344, %cst_321 [0, 1] : vector<1x7x960xf32> to vector<960xf32>
    %349 = vector.shape_cast %348 : vector<960xf32> to vector<1x1x960xf32>
    %350 = arith.addf %273, %349 : vector<1x1x960xf32>
    %c0_322 = arith.constant 0 : index
    %c0_323 = arith.constant 0 : index
    %c0_324 = arith.constant 0 : index
    %351 = vector.load %arg2[%c0_322, %c0_323, %c0_324] : memref<3x3x960xf32, #tpu.memory_space<vmem>>, vector<1x1x960xf32>
    %352 = vector.shape_cast %351 : vector<1x1x960xf32> to vector<1x960xf32>
    %c0_325 = arith.constant 0 : index
    %c3_326 = arith.constant 3 : index
    %c0_327 = arith.constant 0 : index
    %c0_328 = arith.constant 0 : index
    %353 = vector.load %arg6[%c0_325, %c3_326, %c0_327, %c0_328] : memref<1x7x9x960xf32, #tpu.memory_space<vmem>>, vector<1x1x7x960xf32>
    %354 = vector.shape_cast %353 : vector<1x1x7x960xf32> to vector<1x7x960xf32>
    %355 = vector.shape_cast %352 : vector<1x960xf32> to vector<1x1x960xf32>
    %356 = vector.broadcast %355 : vector<1x1x960xf32> to vector<1x7x960xf32>
    %357 = arith.mulf %354, %356 : vector<1x7x960xf32>
    %c0_329 = arith.constant 0 : index
    %c1_330 = arith.constant 1 : index
    %c0_331 = arith.constant 0 : index
    %358 = vector.load %arg2[%c0_329, %c1_330, %c0_331] : memref<3x3x960xf32, #tpu.memory_space<vmem>>, vector<1x1x960xf32>
    %359 = vector.shape_cast %358 : vector<1x1x960xf32> to vector<1x960xf32>
    %c0_332 = arith.constant 0 : index
    %c3_333 = arith.constant 3 : index
    %c1_334 = arith.constant 1 : index
    %c0_335 = arith.constant 0 : index
    %360 = vector.load %arg6[%c0_332, %c3_333, %c1_334, %c0_335] : memref<1x7x9x960xf32, #tpu.memory_space<vmem>>, vector<1x1x7x960xf32>
    %361 = vector.shape_cast %360 : vector<1x1x7x960xf32> to vector<1x7x960xf32>
    %362 = vector.shape_cast %359 : vector<1x960xf32> to vector<1x1x960xf32>
    %363 = vector.broadcast %362 : vector<1x1x960xf32> to vector<1x7x960xf32>
    %364 = arith.mulf %361, %363 : vector<1x7x960xf32>
    %365 = arith.addf %357, %364 : vector<1x7x960xf32>
    %c0_336 = arith.constant 0 : index
    %c2_337 = arith.constant 2 : index
    %c0_338 = arith.constant 0 : index
    %366 = vector.load %arg2[%c0_336, %c2_337, %c0_338] : memref<3x3x960xf32, #tpu.memory_space<vmem>>, vector<1x1x960xf32>
    %367 = vector.shape_cast %366 : vector<1x1x960xf32> to vector<1x960xf32>
    %c0_339 = arith.constant 0 : index
    %c3_340 = arith.constant 3 : index
    %c2_341 = arith.constant 2 : index
    %c0_342 = arith.constant 0 : index
    %368 = vector.load %arg6[%c0_339, %c3_340, %c2_341, %c0_342] : memref<1x7x9x960xf32, #tpu.memory_space<vmem>>, vector<1x1x7x960xf32>
    %369 = vector.shape_cast %368 : vector<1x1x7x960xf32> to vector<1x7x960xf32>
    %370 = vector.shape_cast %367 : vector<1x960xf32> to vector<1x1x960xf32>
    %371 = vector.broadcast %370 : vector<1x1x960xf32> to vector<1x7x960xf32>
    %372 = arith.mulf %369, %371 : vector<1x7x960xf32>
    %373 = arith.addf %365, %372 : vector<1x7x960xf32>
    %c1_343 = arith.constant 1 : index
    %c0_344 = arith.constant 0 : index
    %c0_345 = arith.constant 0 : index
    %374 = vector.load %arg2[%c1_343, %c0_344, %c0_345] : memref<3x3x960xf32, #tpu.memory_space<vmem>>, vector<1x1x960xf32>
    %375 = vector.shape_cast %374 : vector<1x1x960xf32> to vector<1x960xf32>
    %c0_346 = arith.constant 0 : index
    %c4_347 = arith.constant 4 : index
    %c0_348 = arith.constant 0 : index
    %c0_349 = arith.constant 0 : index
    %376 = vector.load %arg6[%c0_346, %c4_347, %c0_348, %c0_349] : memref<1x7x9x960xf32, #tpu.memory_space<vmem>>, vector<1x1x7x960xf32>
    %377 = vector.shape_cast %376 : vector<1x1x7x960xf32> to vector<1x7x960xf32>
    %378 = vector.shape_cast %375 : vector<1x960xf32> to vector<1x1x960xf32>
    %379 = vector.broadcast %378 : vector<1x1x960xf32> to vector<1x7x960xf32>
    %380 = arith.mulf %377, %379 : vector<1x7x960xf32>
    %381 = arith.addf %373, %380 : vector<1x7x960xf32>
    %c1_350 = arith.constant 1 : index
    %c1_351 = arith.constant 1 : index
    %c0_352 = arith.constant 0 : index
    %382 = vector.load %arg2[%c1_350, %c1_351, %c0_352] : memref<3x3x960xf32, #tpu.memory_space<vmem>>, vector<1x1x960xf32>
    %383 = vector.shape_cast %382 : vector<1x1x960xf32> to vector<1x960xf32>
    %c0_353 = arith.constant 0 : index
    %c4_354 = arith.constant 4 : index
    %c1_355 = arith.constant 1 : index
    %c0_356 = arith.constant 0 : index
    %384 = vector.load %arg6[%c0_353, %c4_354, %c1_355, %c0_356] : memref<1x7x9x960xf32, #tpu.memory_space<vmem>>, vector<1x1x7x960xf32>
    %385 = vector.shape_cast %384 : vector<1x1x7x960xf32> to vector<1x7x960xf32>
    %386 = vector.shape_cast %383 : vector<1x960xf32> to vector<1x1x960xf32>
    %387 = vector.broadcast %386 : vector<1x1x960xf32> to vector<1x7x960xf32>
    %388 = arith.mulf %385, %387 : vector<1x7x960xf32>
    %389 = arith.addf %381, %388 : vector<1x7x960xf32>
    %c1_357 = arith.constant 1 : index
    %c2_358 = arith.constant 2 : index
    %c0_359 = arith.constant 0 : index
    %390 = vector.load %arg2[%c1_357, %c2_358, %c0_359] : memref<3x3x960xf32, #tpu.memory_space<vmem>>, vector<1x1x960xf32>
    %391 = vector.shape_cast %390 : vector<1x1x960xf32> to vector<1x960xf32>
    %c0_360 = arith.constant 0 : index
    %c4_361 = arith.constant 4 : index
    %c2_362 = arith.constant 2 : index
    %c0_363 = arith.constant 0 : index
    %392 = vector.load %arg6[%c0_360, %c4_361, %c2_362, %c0_363] : memref<1x7x9x960xf32, #tpu.memory_space<vmem>>, vector<1x1x7x960xf32>
    %393 = vector.shape_cast %392 : vector<1x1x7x960xf32> to vector<1x7x960xf32>
    %394 = vector.shape_cast %391 : vector<1x960xf32> to vector<1x1x960xf32>
    %395 = vector.broadcast %394 : vector<1x1x960xf32> to vector<1x7x960xf32>
    %396 = arith.mulf %393, %395 : vector<1x7x960xf32>
    %397 = arith.addf %389, %396 : vector<1x7x960xf32>
    %c2_364 = arith.constant 2 : index
    %c0_365 = arith.constant 0 : index
    %c0_366 = arith.constant 0 : index
    %398 = vector.load %arg2[%c2_364, %c0_365, %c0_366] : memref<3x3x960xf32, #tpu.memory_space<vmem>>, vector<1x1x960xf32>
    %399 = vector.shape_cast %398 : vector<1x1x960xf32> to vector<1x960xf32>
    %c0_367 = arith.constant 0 : index
    %c5_368 = arith.constant 5 : index
    %c0_369 = arith.constant 0 : index
    %c0_370 = arith.constant 0 : index
    %400 = vector.load %arg6[%c0_367, %c5_368, %c0_369, %c0_370] : memref<1x7x9x960xf32, #tpu.memory_space<vmem>>, vector<1x1x7x960xf32>
    %401 = vector.shape_cast %400 : vector<1x1x7x960xf32> to vector<1x7x960xf32>
    %402 = vector.shape_cast %399 : vector<1x960xf32> to vector<1x1x960xf32>
    %403 = vector.broadcast %402 : vector<1x1x960xf32> to vector<1x7x960xf32>
    %404 = arith.mulf %401, %403 : vector<1x7x960xf32>
    %405 = arith.addf %397, %404 : vector<1x7x960xf32>
    %c2_371 = arith.constant 2 : index
    %c1_372 = arith.constant 1 : index
    %c0_373 = arith.constant 0 : index
    %406 = vector.load %arg2[%c2_371, %c1_372, %c0_373] : memref<3x3x960xf32, #tpu.memory_space<vmem>>, vector<1x1x960xf32>
    %407 = vector.shape_cast %406 : vector<1x1x960xf32> to vector<1x960xf32>
    %c0_374 = arith.constant 0 : index
    %c5_375 = arith.constant 5 : index
    %c1_376 = arith.constant 1 : index
    %c0_377 = arith.constant 0 : index
    %408 = vector.load %arg6[%c0_374, %c5_375, %c1_376, %c0_377] : memref<1x7x9x960xf32, #tpu.memory_space<vmem>>, vector<1x1x7x960xf32>
    %409 = vector.shape_cast %408 : vector<1x1x7x960xf32> to vector<1x7x960xf32>
    %410 = vector.shape_cast %407 : vector<1x960xf32> to vector<1x1x960xf32>
    %411 = vector.broadcast %410 : vector<1x1x960xf32> to vector<1x7x960xf32>
    %412 = arith.mulf %409, %411 : vector<1x7x960xf32>
    %413 = arith.addf %405, %412 : vector<1x7x960xf32>
    %c2_378 = arith.constant 2 : index
    %c2_379 = arith.constant 2 : index
    %c0_380 = arith.constant 0 : index
    %414 = vector.load %arg2[%c2_378, %c2_379, %c0_380] : memref<3x3x960xf32, #tpu.memory_space<vmem>>, vector<1x1x960xf32>
    %415 = vector.shape_cast %414 : vector<1x1x960xf32> to vector<1x960xf32>
    %c0_381 = arith.constant 0 : index
    %c5_382 = arith.constant 5 : index
    %c2_383 = arith.constant 2 : index
    %c0_384 = arith.constant 0 : index
    %416 = vector.load %arg6[%c0_381, %c5_382, %c2_383, %c0_384] : memref<1x7x9x960xf32, #tpu.memory_space<vmem>>, vector<1x1x7x960xf32>
    %417 = vector.shape_cast %416 : vector<1x1x7x960xf32> to vector<1x7x960xf32>
    %418 = vector.shape_cast %415 : vector<1x960xf32> to vector<1x1x960xf32>
    %419 = vector.broadcast %418 : vector<1x1x960xf32> to vector<1x7x960xf32>
    %420 = arith.mulf %417, %419 : vector<1x7x960xf32>
    %421 = arith.addf %413, %420 : vector<1x7x960xf32>
    %c0_385 = arith.constant 0 : index
    %c4_386 = arith.constant 4 : index
    %c0_387 = arith.constant 0 : index
    %c0_388 = arith.constant 0 : index
    %422 = vector.load %arg5[%c0_385, %c4_386, %c0_387, %c0_388] : memref<1x7x7x960xf32, #tpu.memory_space<vmem>>, vector<1x1x7x960xf32>
    %423 = vector.shape_cast %422 : vector<1x1x7x960xf32> to vector<1x7x960xf32>
    %424 = vector.shape_cast %421 : vector<1x7x960xf32> to vector<1x1x7x960xf32>
    tpu.vector_store %arg5[%c0_385, %c4_386, %c0_387, %c0_388], %424 {strides = array<i32>} : memref<1x7x7x960xf32, #tpu.memory_space<vmem>>, vector<1x1x7x960xf32>,
    %cst_389 = arith.constant dense<0.000000e+00> : vector<960xf32>
    %425 = vector.multi_reduction <add>, %421, %cst_389 [0, 1] : vector<1x7x960xf32> to vector<960xf32>
    %426 = vector.shape_cast %425 : vector<960xf32> to vector<1x1x960xf32>
    %427 = arith.addf %350, %426 : vector<1x1x960xf32>
    %c0_390 = arith.constant 0 : index
    %c0_391 = arith.constant 0 : index
    %c0_392 = arith.constant 0 : index
    %428 = vector.load %arg2[%c0_390, %c0_391, %c0_392] : memref<3x3x960xf32, #tpu.memory_space<vmem>>, vector<1x1x960xf32>
    %429 = vector.shape_cast %428 : vector<1x1x960xf32> to vector<1x960xf32>
    %c0_393 = arith.constant 0 : index
    %c4_394 = arith.constant 4 : index
    %c0_395 = arith.constant 0 : index
    %c0_396 = arith.constant 0 : index
    %430 = vector.load %arg6[%c0_393, %c4_394, %c0_395, %c0_396] : memref<1x7x9x960xf32, #tpu.memory_space<vmem>>, vector<1x1x7x960xf32>
    %431 = vector.shape_cast %430 : vector<1x1x7x960xf32> to vector<1x7x960xf32>
    %432 = vector.shape_cast %429 : vector<1x960xf32> to vector<1x1x960xf32>
    %433 = vector.broadcast %432 : vector<1x1x960xf32> to vector<1x7x960xf32>
    %434 = arith.mulf %431, %433 : vector<1x7x960xf32>
    %c0_397 = arith.constant 0 : index
    %c1_398 = arith.constant 1 : index
    %c0_399 = arith.constant 0 : index
    %435 = vector.load %arg2[%c0_397, %c1_398, %c0_399] : memref<3x3x960xf32, #tpu.memory_space<vmem>>, vector<1x1x960xf32>
    %436 = vector.shape_cast %435 : vector<1x1x960xf32> to vector<1x960xf32>
    %c0_400 = arith.constant 0 : index
    %c4_401 = arith.constant 4 : index
    %c1_402 = arith.constant 1 : index
    %c0_403 = arith.constant 0 : index
    %437 = vector.load %arg6[%c0_400, %c4_401, %c1_402, %c0_403] : memref<1x7x9x960xf32, #tpu.memory_space<vmem>>, vector<1x1x7x960xf32>
    %438 = vector.shape_cast %437 : vector<1x1x7x960xf32> to vector<1x7x960xf32>
    %439 = vector.shape_cast %436 : vector<1x960xf32> to vector<1x1x960xf32>
    %440 = vector.broadcast %439 : vector<1x1x960xf32> to vector<1x7x960xf32>
    %441 = arith.mulf %438, %440 : vector<1x7x960xf32>
    %442 = arith.addf %434, %441 : vector<1x7x960xf32>
    %c0_404 = arith.constant 0 : index
    %c2_405 = arith.constant 2 : index
    %c0_406 = arith.constant 0 : index
    %443 = vector.load %arg2[%c0_404, %c2_405, %c0_406] : memref<3x3x960xf32, #tpu.memory_space<vmem>>, vector<1x1x960xf32>
    %444 = vector.shape_cast %443 : vector<1x1x960xf32> to vector<1x960xf32>
    %c0_407 = arith.constant 0 : index
    %c4_408 = arith.constant 4 : index
    %c2_409 = arith.constant 2 : index
    %c0_410 = arith.constant 0 : index
    %445 = vector.load %arg6[%c0_407, %c4_408, %c2_409, %c0_410] : memref<1x7x9x960xf32, #tpu.memory_space<vmem>>, vector<1x1x7x960xf32>
    %446 = vector.shape_cast %445 : vector<1x1x7x960xf32> to vector<1x7x960xf32>
    %447 = vector.shape_cast %444 : vector<1x960xf32> to vector<1x1x960xf32>
    %448 = vector.broadcast %447 : vector<1x1x960xf32> to vector<1x7x960xf32>
    %449 = arith.mulf %446, %448 : vector<1x7x960xf32>
    %450 = arith.addf %442, %449 : vector<1x7x960xf32>
    %c1_411 = arith.constant 1 : index
    %c0_412 = arith.constant 0 : index
    %c0_413 = arith.constant 0 : index
    %451 = vector.load %arg2[%c1_411, %c0_412, %c0_413] : memref<3x3x960xf32, #tpu.memory_space<vmem>>, vector<1x1x960xf32>
    %452 = vector.shape_cast %451 : vector<1x1x960xf32> to vector<1x960xf32>
    %c0_414 = arith.constant 0 : index
    %c5_415 = arith.constant 5 : index
    %c0_416 = arith.constant 0 : index
    %c0_417 = arith.constant 0 : index
    %453 = vector.load %arg6[%c0_414, %c5_415, %c0_416, %c0_417] : memref<1x7x9x960xf32, #tpu.memory_space<vmem>>, vector<1x1x7x960xf32>
    %454 = vector.shape_cast %453 : vector<1x1x7x960xf32> to vector<1x7x960xf32>
    %455 = vector.shape_cast %452 : vector<1x960xf32> to vector<1x1x960xf32>
    %456 = vector.broadcast %455 : vector<1x1x960xf32> to vector<1x7x960xf32>
    %457 = arith.mulf %454, %456 : vector<1x7x960xf32>
    %458 = arith.addf %450, %457 : vector<1x7x960xf32>
    %c1_418 = arith.constant 1 : index
    %c1_419 = arith.constant 1 : index
    %c0_420 = arith.constant 0 : index
    %459 = vector.load %arg2[%c1_418, %c1_419, %c0_420] : memref<3x3x960xf32, #tpu.memory_space<vmem>>, vector<1x1x960xf32>
    %460 = vector.shape_cast %459 : vector<1x1x960xf32> to vector<1x960xf32>
    %c0_421 = arith.constant 0 : index
    %c5_422 = arith.constant 5 : index
    %c1_423 = arith.constant 1 : index
    %c0_424 = arith.constant 0 : index
    %461 = vector.load %arg6[%c0_421, %c5_422, %c1_423, %c0_424] : memref<1x7x9x960xf32, #tpu.memory_space<vmem>>, vector<1x1x7x960xf32>
    %462 = vector.shape_cast %461 : vector<1x1x7x960xf32> to vector<1x7x960xf32>
    %463 = vector.shape_cast %460 : vector<1x960xf32> to vector<1x1x960xf32>
    %464 = vector.broadcast %463 : vector<1x1x960xf32> to vector<1x7x960xf32>
    %465 = arith.mulf %462, %464 : vector<1x7x960xf32>
    %466 = arith.addf %458, %465 : vector<1x7x960xf32>
    %c1_425 = arith.constant 1 : index
    %c2_426 = arith.constant 2 : index
    %c0_427 = arith.constant 0 : index
    %467 = vector.load %arg2[%c1_425, %c2_426, %c0_427] : memref<3x3x960xf32, #tpu.memory_space<vmem>>, vector<1x1x960xf32>
    %468 = vector.shape_cast %467 : vector<1x1x960xf32> to vector<1x960xf32>
    %c0_428 = arith.constant 0 : index
    %c5_429 = arith.constant 5 : index
    %c2_430 = arith.constant 2 : index
    %c0_431 = arith.constant 0 : index
    %469 = vector.load %arg6[%c0_428, %c5_429, %c2_430, %c0_431] : memref<1x7x9x960xf32, #tpu.memory_space<vmem>>, vector<1x1x7x960xf32>
    %470 = vector.shape_cast %469 : vector<1x1x7x960xf32> to vector<1x7x960xf32>
    %471 = vector.shape_cast %468 : vector<1x960xf32> to vector<1x1x960xf32>
    %472 = vector.broadcast %471 : vector<1x1x960xf32> to vector<1x7x960xf32>
    %473 = arith.mulf %470, %472 : vector<1x7x960xf32>
    %474 = arith.addf %466, %473 : vector<1x7x960xf32>
    %c2_432 = arith.constant 2 : index
    %c0_433 = arith.constant 0 : index
    %c0_434 = arith.constant 0 : index
    %475 = vector.load %arg2[%c2_432, %c0_433, %c0_434] : memref<3x3x960xf32, #tpu.memory_space<vmem>>, vector<1x1x960xf32>
    %476 = vector.shape_cast %475 : vector<1x1x960xf32> to vector<1x960xf32>
    %c0_435 = arith.constant 0 : index
    %c6_436 = arith.constant 6 : index
    %c0_437 = arith.constant 0 : index
    %c0_438 = arith.constant 0 : index
    %477 = vector.load %arg6[%c0_435, %c6_436, %c0_437, %c0_438] : memref<1x7x9x960xf32, #tpu.memory_space<vmem>>, vector<1x1x7x960xf32>
    %478 = vector.shape_cast %477 : vector<1x1x7x960xf32> to vector<1x7x960xf32>
    %479 = vector.shape_cast %476 : vector<1x960xf32> to vector<1x1x960xf32>
    %480 = vector.broadcast %479 : vector<1x1x960xf32> to vector<1x7x960xf32>
    %481 = arith.mulf %478, %480 : vector<1x7x960xf32>
    %482 = arith.addf %474, %481 : vector<1x7x960xf32>
    %c2_439 = arith.constant 2 : index
    %c1_440 = arith.constant 1 : index
    %c0_441 = arith.constant 0 : index
    %483 = vector.load %arg2[%c2_439, %c1_440, %c0_441] : memref<3x3x960xf32, #tpu.memory_space<vmem>>, vector<1x1x960xf32>
    %484 = vector.shape_cast %483 : vector<1x1x960xf32> to vector<1x960xf32>
    %c0_442 = arith.constant 0 : index
    %c6_443 = arith.constant 6 : index
    %c1_444 = arith.constant 1 : index
    %c0_445 = arith.constant 0 : index
    %485 = vector.load %arg6[%c0_442, %c6_443, %c1_444, %c0_445] : memref<1x7x9x960xf32, #tpu.memory_space<vmem>>, vector<1x1x7x960xf32>
    %486 = vector.shape_cast %485 : vector<1x1x7x960xf32> to vector<1x7x960xf32>
    %487 = vector.shape_cast %484 : vector<1x960xf32> to vector<1x1x960xf32>
    %488 = vector.broadcast %487 : vector<1x1x960xf32> to vector<1x7x960xf32>
    %489 = arith.mulf %486, %488 : vector<1x7x960xf32>
    %490 = arith.addf %482, %489 : vector<1x7x960xf32>
    %c2_446 = arith.constant 2 : index
    %c2_447 = arith.constant 2 : index
    %c0_448 = arith.constant 0 : index
    %491 = vector.load %arg2[%c2_446, %c2_447, %c0_448] : memref<3x3x960xf32, #tpu.memory_space<vmem>>, vector<1x1x960xf32>
    %492 = vector.shape_cast %491 : vector<1x1x960xf32> to vector<1x960xf32>
    %c0_449 = arith.constant 0 : index
    %c6_450 = arith.constant 6 : index
    %c2_451 = arith.constant 2 : index
    %c0_452 = arith.constant 0 : index
    %493 = vector.load %arg6[%c0_449, %c6_450, %c2_451, %c0_452] : memref<1x7x9x960xf32, #tpu.memory_space<vmem>>, vector<1x1x7x960xf32>
    %494 = vector.shape_cast %493 : vector<1x1x7x960xf32> to vector<1x7x960xf32>
    %495 = vector.shape_cast %492 : vector<1x960xf32> to vector<1x1x960xf32>
    %496 = vector.broadcast %495 : vector<1x1x960xf32> to vector<1x7x960xf32>
    %497 = arith.mulf %494, %496 : vector<1x7x960xf32>
    %498 = arith.addf %490, %497 : vector<1x7x960xf32>
    %c0_453 = arith.constant 0 : index
    %c5_454 = arith.constant 5 : index
    %c0_455 = arith.constant 0 : index
    %c0_456 = arith.constant 0 : index
    %499 = vector.load %arg5[%c0_453, %c5_454, %c0_455, %c0_456] : memref<1x7x7x960xf32, #tpu.memory_space<vmem>>, vector<1x1x7x960xf32>
    %500 = vector.shape_cast %499 : vector<1x1x7x960xf32> to vector<1x7x960xf32>
    %501 = vector.shape_cast %498 : vector<1x7x960xf32> to vector<1x1x7x960xf32>
    tpu.vector_store %arg5[%c0_453, %c5_454, %c0_455, %c0_456], %501 {strides = array<i32>} : memref<1x7x7x960xf32, #tpu.memory_space<vmem>>, vector<1x1x7x960xf32>,
    %cst_457 = arith.constant dense<0.000000e+00> : vector<960xf32>
    %502 = vector.multi_reduction <add>, %498, %cst_457 [0, 1] : vector<1x7x960xf32> to vector<960xf32>
    %503 = vector.shape_cast %502 : vector<960xf32> to vector<1x1x960xf32>
    %504 = arith.addf %427, %503 : vector<1x1x960xf32>
    %c0_458 = arith.constant 0 : index
    %c0_459 = arith.constant 0 : index
    %c0_460 = arith.constant 0 : index
    %505 = vector.load %arg2[%c0_458, %c0_459, %c0_460] : memref<3x3x960xf32, #tpu.memory_space<vmem>>, vector<1x1x960xf32>
    %506 = vector.shape_cast %505 : vector<1x1x960xf32> to vector<1x960xf32>
    %c0_461 = arith.constant 0 : index
    %c5_462 = arith.constant 5 : index
    %c0_463 = arith.constant 0 : index
    %c0_464 = arith.constant 0 : index
    %507 = vector.load %arg6[%c0_461, %c5_462, %c0_463, %c0_464] : memref<1x7x9x960xf32, #tpu.memory_space<vmem>>, vector<1x1x7x960xf32>
    %508 = vector.shape_cast %507 : vector<1x1x7x960xf32> to vector<1x7x960xf32>
    %509 = vector.shape_cast %506 : vector<1x960xf32> to vector<1x1x960xf32>
    %510 = vector.broadcast %509 : vector<1x1x960xf32> to vector<1x7x960xf32>
    %511 = arith.mulf %508, %510 : vector<1x7x960xf32>
    %c0_465 = arith.constant 0 : index
    %c1_466 = arith.constant 1 : index
    %c0_467 = arith.constant 0 : index
    %512 = vector.load %arg2[%c0_465, %c1_466, %c0_467] : memref<3x3x960xf32, #tpu.memory_space<vmem>>, vector<1x1x960xf32>
    %513 = vector.shape_cast %512 : vector<1x1x960xf32> to vector<1x960xf32>
    %c0_468 = arith.constant 0 : index
    %c5_469 = arith.constant 5 : index
    %c1_470 = arith.constant 1 : index
    %c0_471 = arith.constant 0 : index
    %514 = vector.load %arg6[%c0_468, %c5_469, %c1_470, %c0_471] : memref<1x7x9x960xf32, #tpu.memory_space<vmem>>, vector<1x1x7x960xf32>
    %515 = vector.shape_cast %514 : vector<1x1x7x960xf32> to vector<1x7x960xf32>
    %516 = vector.shape_cast %513 : vector<1x960xf32> to vector<1x1x960xf32>
    %517 = vector.broadcast %516 : vector<1x1x960xf32> to vector<1x7x960xf32>
    %518 = arith.mulf %515, %517 : vector<1x7x960xf32>
    %519 = arith.addf %511, %518 : vector<1x7x960xf32>
    %c0_472 = arith.constant 0 : index
    %c2_473 = arith.constant 2 : index
    %c0_474 = arith.constant 0 : index
    %520 = vector.load %arg2[%c0_472, %c2_473, %c0_474] : memref<3x3x960xf32, #tpu.memory_space<vmem>>, vector<1x1x960xf32>
    %521 = vector.shape_cast %520 : vector<1x1x960xf32> to vector<1x960xf32>
    %c0_475 = arith.constant 0 : index
    %c5_476 = arith.constant 5 : index
    %c2_477 = arith.constant 2 : index
    %c0_478 = arith.constant 0 : index
    %522 = vector.load %arg6[%c0_475, %c5_476, %c2_477, %c0_478] : memref<1x7x9x960xf32, #tpu.memory_space<vmem>>, vector<1x1x7x960xf32>
    %523 = vector.shape_cast %522 : vector<1x1x7x960xf32> to vector<1x7x960xf32>
    %524 = vector.shape_cast %521 : vector<1x960xf32> to vector<1x1x960xf32>
    %525 = vector.broadcast %524 : vector<1x1x960xf32> to vector<1x7x960xf32>
    %526 = arith.mulf %523, %525 : vector<1x7x960xf32>
    %527 = arith.addf %519, %526 : vector<1x7x960xf32>
    %c1_479 = arith.constant 1 : index
    %c0_480 = arith.constant 0 : index
    %c0_481 = arith.constant 0 : index
    %528 = vector.load %arg2[%c1_479, %c0_480, %c0_481] : memref<3x3x960xf32, #tpu.memory_space<vmem>>, vector<1x1x960xf32>
    %529 = vector.shape_cast %528 : vector<1x1x960xf32> to vector<1x960xf32>
    %c0_482 = arith.constant 0 : index
    %c6_483 = arith.constant 6 : index
    %c0_484 = arith.constant 0 : index
    %c0_485 = arith.constant 0 : index
    %530 = vector.load %arg6[%c0_482, %c6_483, %c0_484, %c0_485] : memref<1x7x9x960xf32, #tpu.memory_space<vmem>>, vector<1x1x7x960xf32>
    %531 = vector.shape_cast %530 : vector<1x1x7x960xf32> to vector<1x7x960xf32>
    %532 = vector.shape_cast %529 : vector<1x960xf32> to vector<1x1x960xf32>
    %533 = vector.broadcast %532 : vector<1x1x960xf32> to vector<1x7x960xf32>
    %534 = arith.mulf %531, %533 : vector<1x7x960xf32>
    %535 = arith.addf %527, %534 : vector<1x7x960xf32>
    %c1_486 = arith.constant 1 : index
    %c1_487 = arith.constant 1 : index
    %c0_488 = arith.constant 0 : index
    %536 = vector.load %arg2[%c1_486, %c1_487, %c0_488] : memref<3x3x960xf32, #tpu.memory_space<vmem>>, vector<1x1x960xf32>
    %537 = vector.shape_cast %536 : vector<1x1x960xf32> to vector<1x960xf32>
    %c0_489 = arith.constant 0 : index
    %c6_490 = arith.constant 6 : index
    %c1_491 = arith.constant 1 : index
    %c0_492 = arith.constant 0 : index
    %538 = vector.load %arg6[%c0_489, %c6_490, %c1_491, %c0_492] : memref<1x7x9x960xf32, #tpu.memory_space<vmem>>, vector<1x1x7x960xf32>
    %539 = vector.shape_cast %538 : vector<1x1x7x960xf32> to vector<1x7x960xf32>
    %540 = vector.shape_cast %537 : vector<1x960xf32> to vector<1x1x960xf32>
    %541 = vector.broadcast %540 : vector<1x1x960xf32> to vector<1x7x960xf32>
    %542 = arith.mulf %539, %541 : vector<1x7x960xf32>
    %543 = arith.addf %535, %542 : vector<1x7x960xf32>
    %c1_493 = arith.constant 1 : index
    %c2_494 = arith.constant 2 : index
    %c0_495 = arith.constant 0 : index
    %544 = vector.load %arg2[%c1_493, %c2_494, %c0_495] : memref<3x3x960xf32, #tpu.memory_space<vmem>>, vector<1x1x960xf32>
    %545 = vector.shape_cast %544 : vector<1x1x960xf32> to vector<1x960xf32>
    %c0_496 = arith.constant 0 : index
    %c6_497 = arith.constant 6 : index
    %c2_498 = arith.constant 2 : index
    %c0_499 = arith.constant 0 : index
    %546 = vector.load %arg6[%c0_496, %c6_497, %c2_498, %c0_499] : memref<1x7x9x960xf32, #tpu.memory_space<vmem>>, vector<1x1x7x960xf32>
    %547 = vector.shape_cast %546 : vector<1x1x7x960xf32> to vector<1x7x960xf32>
    %548 = vector.shape_cast %545 : vector<1x960xf32> to vector<1x1x960xf32>
    %549 = vector.broadcast %548 : vector<1x1x960xf32> to vector<1x7x960xf32>
    %550 = arith.mulf %547, %549 : vector<1x7x960xf32>
    %551 = arith.addf %543, %550 : vector<1x7x960xf32>
    %c0_500 = arith.constant 0 : index
    %c6_501 = arith.constant 6 : index
    %c0_502 = arith.constant 0 : index
    %c0_503 = arith.constant 0 : index
    %552 = vector.load %arg5[%c0_500, %c6_501, %c0_502, %c0_503] : memref<1x7x7x960xf32, #tpu.memory_space<vmem>>, vector<1x1x7x960xf32>
    %553 = vector.shape_cast %552 : vector<1x1x7x960xf32> to vector<1x7x960xf32>
    %554 = vector.shape_cast %551 : vector<1x7x960xf32> to vector<1x1x7x960xf32>
    tpu.vector_store %arg5[%c0_500, %c6_501, %c0_502, %c0_503], %554 {strides = array<i32>} : memref<1x7x7x960xf32, #tpu.memory_space<vmem>>, vector<1x1x7x960xf32>,
    %cst_504 = arith.constant dense<0.000000e+00> : vector<960xf32>
    %555 = vector.multi_reduction <add>, %551, %cst_504 [0, 1] : vector<1x7x960xf32> to vector<960xf32>
    %556 = vector.shape_cast %555 : vector<960xf32> to vector<1x1x960xf32>
    %557 = arith.addf %504, %556 : vector<1x1x960xf32>
    %cst_505 = arith.constant 0.0204081628 : f32
    %558 = vector.broadcast %cst_505 : f32 to vector<1x1x960xf32>
    %559 = arith.mulf %557, %558 : vector<1x1x960xf32>
    %cst_506 = arith.constant 0.000000e+00 : f32
    %560 = vector.broadcast %cst_506 : f32 to vector<1x1x960xf32>
    %c0_507 = arith.constant 0 : index
    %c0_508 = arith.constant 0 : index
    %c0_509 = arith.constant 0 : index
    %c0_510 = arith.constant 0 : index
    %561 = vector.load %arg5[%c0_507, %c0_508, %c0_509, %c0_510] : memref<1x7x7x960xf32, #tpu.memory_space<vmem>>, vector<1x1x7x960xf32>
    %562 = vector.shape_cast %561 : vector<1x1x7x960xf32> to vector<1x7x960xf32>
    %563 = vector.broadcast %559 : vector<1x1x960xf32> to vector<1x7x960xf32>
    %564 = arith.subf %562, %563 : vector<1x7x960xf32>
    %565 = arith.mulf %564, %564 : vector<1x7x960xf32>
    %cst_511 = arith.constant dense<0.000000e+00> : vector<960xf32>
    %566 = vector.multi_reduction <add>, %565, %cst_511 [0, 1] : vector<1x7x960xf32> to vector<960xf32>
    %567 = vector.shape_cast %566 : vector<960xf32> to vector<1x1x960xf32>
    %568 = arith.addf %560, %567 : vector<1x1x960xf32>
    %c0_512 = arith.constant 0 : index
    %c1_513 = arith.constant 1 : index
    %c0_514 = arith.constant 0 : index
    %c0_515 = arith.constant 0 : index
    %569 = vector.load %arg5[%c0_512, %c1_513, %c0_514, %c0_515] : memref<1x7x7x960xf32, #tpu.memory_space<vmem>>, vector<1x1x7x960xf32>
    %570 = vector.shape_cast %569 : vector<1x1x7x960xf32> to vector<1x7x960xf32>
    %571 = vector.broadcast %559 : vector<1x1x960xf32> to vector<1x7x960xf32>
    %572 = arith.subf %570, %571 : vector<1x7x960xf32>
    %573 = arith.mulf %572, %572 : vector<1x7x960xf32>
    %cst_516 = arith.constant dense<0.000000e+00> : vector<960xf32>
    %574 = vector.multi_reduction <add>, %573, %cst_516 [0, 1] : vector<1x7x960xf32> to vector<960xf32>
    %575 = vector.shape_cast %574 : vector<960xf32> to vector<1x1x960xf32>
    %576 = arith.addf %568, %575 : vector<1x1x960xf32>
    %c0_517 = arith.constant 0 : index
    %c2_518 = arith.constant 2 : index
    %c0_519 = arith.constant 0 : index
    %c0_520 = arith.constant 0 : index
    %577 = vector.load %arg5[%c0_517, %c2_518, %c0_519, %c0_520] : memref<1x7x7x960xf32, #tpu.memory_space<vmem>>, vector<1x1x7x960xf32>
    %578 = vector.shape_cast %577 : vector<1x1x7x960xf32> to vector<1x7x960xf32>
    %579 = vector.broadcast %559 : vector<1x1x960xf32> to vector<1x7x960xf32>
    %580 = arith.subf %578, %579 : vector<1x7x960xf32>
    %581 = arith.mulf %580, %580 : vector<1x7x960xf32>
    %cst_521 = arith.constant dense<0.000000e+00> : vector<960xf32>
    %582 = vector.multi_reduction <add>, %581, %cst_521 [0, 1] : vector<1x7x960xf32> to vector<960xf32>
    %583 = vector.shape_cast %582 : vector<960xf32> to vector<1x1x960xf32>
    %584 = arith.addf %576, %583 : vector<1x1x960xf32>
    %c0_522 = arith.constant 0 : index
    %c3_523 = arith.constant 3 : index
    %c0_524 = arith.constant 0 : index
    %c0_525 = arith.constant 0 : index
    %585 = vector.load %arg5[%c0_522, %c3_523, %c0_524, %c0_525] : memref<1x7x7x960xf32, #tpu.memory_space<vmem>>, vector<1x1x7x960xf32>
    %586 = vector.shape_cast %585 : vector<1x1x7x960xf32> to vector<1x7x960xf32>
    %587 = vector.broadcast %559 : vector<1x1x960xf32> to vector<1x7x960xf32>
    %588 = arith.subf %586, %587 : vector<1x7x960xf32>
    %589 = arith.mulf %588, %588 : vector<1x7x960xf32>
    %cst_526 = arith.constant dense<0.000000e+00> : vector<960xf32>
    %590 = vector.multi_reduction <add>, %589, %cst_526 [0, 1] : vector<1x7x960xf32> to vector<960xf32>
    %591 = vector.shape_cast %590 : vector<960xf32> to vector<1x1x960xf32>
    %592 = arith.addf %584, %591 : vector<1x1x960xf32>
    %c0_527 = arith.constant 0 : index
    %c4_528 = arith.constant 4 : index
    %c0_529 = arith.constant 0 : index
    %c0_530 = arith.constant 0 : index
    %593 = vector.load %arg5[%c0_527, %c4_528, %c0_529, %c0_530] : memref<1x7x7x960xf32, #tpu.memory_space<vmem>>, vector<1x1x7x960xf32>
    %594 = vector.shape_cast %593 : vector<1x1x7x960xf32> to vector<1x7x960xf32>
    %595 = vector.broadcast %559 : vector<1x1x960xf32> to vector<1x7x960xf32>
    %596 = arith.subf %594, %595 : vector<1x7x960xf32>
    %597 = arith.mulf %596, %596 : vector<1x7x960xf32>
    %cst_531 = arith.constant dense<0.000000e+00> : vector<960xf32>
    %598 = vector.multi_reduction <add>, %597, %cst_531 [0, 1] : vector<1x7x960xf32> to vector<960xf32>
    %599 = vector.shape_cast %598 : vector<960xf32> to vector<1x1x960xf32>
    %600 = arith.addf %592, %599 : vector<1x1x960xf32>
    %c0_532 = arith.constant 0 : index
    %c5_533 = arith.constant 5 : index
    %c0_534 = arith.constant 0 : index
    %c0_535 = arith.constant 0 : index
    %601 = vector.load %arg5[%c0_532, %c5_533, %c0_534, %c0_535] : memref<1x7x7x960xf32, #tpu.memory_space<vmem>>, vector<1x1x7x960xf32>
    %602 = vector.shape_cast %601 : vector<1x1x7x960xf32> to vector<1x7x960xf32>
    %603 = vector.broadcast %559 : vector<1x1x960xf32> to vector<1x7x960xf32>
    %604 = arith.subf %602, %603 : vector<1x7x960xf32>
    %605 = arith.mulf %604, %604 : vector<1x7x960xf32>
    %cst_536 = arith.constant dense<0.000000e+00> : vector<960xf32>
    %606 = vector.multi_reduction <add>, %605, %cst_536 [0, 1] : vector<1x7x960xf32> to vector<960xf32>
    %607 = vector.shape_cast %606 : vector<960xf32> to vector<1x1x960xf32>
    %608 = arith.addf %600, %607 : vector<1x1x960xf32>
    %c0_537 = arith.constant 0 : index
    %c6_538 = arith.constant 6 : index
    %c0_539 = arith.constant 0 : index
    %c0_540 = arith.constant 0 : index
    %609 = vector.load %arg5[%c0_537, %c6_538, %c0_539, %c0_540] : memref<1x7x7x960xf32, #tpu.memory_space<vmem>>, vector<1x1x7x960xf32>
    %610 = vector.shape_cast %609 : vector<1x1x7x960xf32> to vector<1x7x960xf32>
    %611 = vector.broadcast %559 : vector<1x1x960xf32> to vector<1x7x960xf32>
    %612 = arith.subf %610, %611 : vector<1x7x960xf32>
    %613 = arith.mulf %612, %612 : vector<1x7x960xf32>
    %cst_541 = arith.constant dense<0.000000e+00> : vector<960xf32>
    %614 = vector.multi_reduction <add>, %613, %cst_541 [0, 1] : vector<1x7x960xf32> to vector<960xf32>
    %615 = vector.shape_cast %614 : vector<960xf32> to vector<1x1x960xf32>
    %616 = arith.addf %608, %615 : vector<1x1x960xf32>
    %cst_542 = arith.constant 0.0204081628 : f32
    %617 = vector.broadcast %cst_542 : f32 to vector<1x1x960xf32>
    %618 = arith.mulf %616, %617 : vector<1x1x960xf32>
    %cst_543 = arith.constant 9.99999974E-6 : f32
    %619 = vector.broadcast %cst_543 : f32 to vector<1x1x960xf32>
    %620 = arith.addf %618, %619 : vector<1x1x960xf32>
    %621 = math.rsqrt %620 : vector<1x1x960xf32>
    %c0_544 = arith.constant 0 : index
    %c0_545 = arith.constant 0 : index
    %622 = vector.load %arg3[%c0_544, %c0_545] : memref<1x960xf32, #tpu.memory_space<vmem>>, vector<1x960xf32>
    %623 = vector.shape_cast %622 : vector<1x960xf32> to vector<1x1x960xf32>
    %624 = arith.mulf %623, %621 : vector<1x1x960xf32>
    %c0_546 = arith.constant 0 : index
    %c0_547 = arith.constant 0 : index
    %625 = vector.load %arg4[%c0_546, %c0_547] : memref<1x960xf32, #tpu.memory_space<vmem>>, vector<1x960xf32>
    %626 = vector.shape_cast %625 : vector<1x960xf32> to vector<1x1x960xf32>
    %627 = arith.mulf %559, %624 : vector<1x1x960xf32>
    %628 = arith.subf %626, %627 : vector<1x1x960xf32>
    %c0_548 = arith.constant 0 : index
    %c0_549 = arith.constant 0 : index
    %c0_550 = arith.constant 0 : index
    %c0_551 = arith.constant 0 : index
    %629 = vector.load %arg5[%c0_548, %c0_549, %c0_550, %c0_551] : memref<1x7x7x960xf32, #tpu.memory_space<vmem>>, vector<1x1x7x960xf32>
    %630 = vector.shape_cast %629 : vector<1x1x7x960xf32> to vector<1x7x960xf32>
    %631 = vector.broadcast %624 : vector<1x1x960xf32> to vector<1x7x960xf32>
    %632 = arith.mulf %630, %631 : vector<1x7x960xf32>
    %633 = vector.broadcast %628 : vector<1x1x960xf32> to vector<1x7x960xf32>
    %634 = arith.addf %632, %633 : vector<1x7x960xf32>
    %cst_552 = arith.constant 0.000000e+00 : f32
    %cst_553 = arith.constant 6.000000e+00 : f32
    %635 = vector.broadcast %cst_552 : f32 to vector<1x7x960xf32>
    %636 = arith.maximumf %635, %634 : vector<1x7x960xf32>
    %637 = vector.broadcast %cst_553 : f32 to vector<1x7x960xf32>
    %638 = arith.minimumf %637, %636 : vector<1x7x960xf32>
    %c0_554 = arith.constant 0 : index
    %c0_555 = arith.constant 0 : index
    %c0_556 = arith.constant 0 : index
    %c0_557 = arith.constant 0 : index
    %639 = vector.load %arg5[%c0_554, %c0_555, %c0_556, %c0_557] : memref<1x7x7x960xf32, #tpu.memory_space<vmem>>, vector<1x1x7x960xf32>
    %640 = vector.shape_cast %639 : vector<1x1x7x960xf32> to vector<1x7x960xf32>
    %641 = vector.shape_cast %638 : vector<1x7x960xf32> to vector<1x1x7x960xf32>
    tpu.vector_store %arg5[%c0_554, %c0_555, %c0_556, %c0_557], %641 {strides = array<i32>} : memref<1x7x7x960xf32, #tpu.memory_space<vmem>>, vector<1x1x7x960xf32>,
    %c0_558 = arith.constant 0 : index
    %c1_559 = arith.constant 1 : index
    %c0_560 = arith.constant 0 : index
    %c0_561 = arith.constant 0 : index
    %642 = vector.load %arg5[%c0_558, %c1_559, %c0_560, %c0_561] : memref<1x7x7x960xf32, #tpu.memory_space<vmem>>, vector<1x1x7x960xf32>
    %643 = vector.shape_cast %642 : vector<1x1x7x960xf32> to vector<1x7x960xf32>
    %644 = vector.broadcast %624 : vector<1x1x960xf32> to vector<1x7x960xf32>
    %645 = arith.mulf %643, %644 : vector<1x7x960xf32>
    %646 = vector.broadcast %628 : vector<1x1x960xf32> to vector<1x7x960xf32>
    %647 = arith.addf %645, %646 : vector<1x7x960xf32>
    %cst_562 = arith.constant 0.000000e+00 : f32
    %cst_563 = arith.constant 6.000000e+00 : f32
    %648 = vector.broadcast %cst_562 : f32 to vector<1x7x960xf32>
    %649 = arith.maximumf %648, %647 : vector<1x7x960xf32>
    %650 = vector.broadcast %cst_563 : f32 to vector<1x7x960xf32>
    %651 = arith.minimumf %650, %649 : vector<1x7x960xf32>
    %c0_564 = arith.constant 0 : index
    %c1_565 = arith.constant 1 : index
    %c0_566 = arith.constant 0 : index
    %c0_567 = arith.constant 0 : index
    %652 = vector.load %arg5[%c0_564, %c1_565, %c0_566, %c0_567] : memref<1x7x7x960xf32, #tpu.memory_space<vmem>>, vector<1x1x7x960xf32>
    %653 = vector.shape_cast %652 : vector<1x1x7x960xf32> to vector<1x7x960xf32>
    %654 = vector.shape_cast %651 : vector<1x7x960xf32> to vector<1x1x7x960xf32>
    tpu.vector_store %arg5[%c0_564, %c1_565, %c0_566, %c0_567], %654 {strides = array<i32>} : memref<1x7x7x960xf32, #tpu.memory_space<vmem>>, vector<1x1x7x960xf32>,
    %c0_568 = arith.constant 0 : index
    %c2_569 = arith.constant 2 : index
    %c0_570 = arith.constant 0 : index
    %c0_571 = arith.constant 0 : index
    %655 = vector.load %arg5[%c0_568, %c2_569, %c0_570, %c0_571] : memref<1x7x7x960xf32, #tpu.memory_space<vmem>>, vector<1x1x7x960xf32>
    %656 = vector.shape_cast %655 : vector<1x1x7x960xf32> to vector<1x7x960xf32>
    %657 = vector.broadcast %624 : vector<1x1x960xf32> to vector<1x7x960xf32>
    %658 = arith.mulf %656, %657 : vector<1x7x960xf32>
    %659 = vector.broadcast %628 : vector<1x1x960xf32> to vector<1x7x960xf32>
    %660 = arith.addf %658, %659 : vector<1x7x960xf32>
    %cst_572 = arith.constant 0.000000e+00 : f32
    %cst_573 = arith.constant 6.000000e+00 : f32
    %661 = vector.broadcast %cst_572 : f32 to vector<1x7x960xf32>
    %662 = arith.maximumf %661, %660 : vector<1x7x960xf32>
    %663 = vector.broadcast %cst_573 : f32 to vector<1x7x960xf32>
    %664 = arith.minimumf %663, %662 : vector<1x7x960xf32>
    %c0_574 = arith.constant 0 : index
    %c2_575 = arith.constant 2 : index
    %c0_576 = arith.constant 0 : index
    %c0_577 = arith.constant 0 : index
    %665 = vector.load %arg5[%c0_574, %c2_575, %c0_576, %c0_577] : memref<1x7x7x960xf32, #tpu.memory_space<vmem>>, vector<1x1x7x960xf32>
    %666 = vector.shape_cast %665 : vector<1x1x7x960xf32> to vector<1x7x960xf32>
    %667 = vector.shape_cast %664 : vector<1x7x960xf32> to vector<1x1x7x960xf32>
    tpu.vector_store %arg5[%c0_574, %c2_575, %c0_576, %c0_577], %667 {strides = array<i32>} : memref<1x7x7x960xf32, #tpu.memory_space<vmem>>, vector<1x1x7x960xf32>,
    %c0_578 = arith.constant 0 : index
    %c3_579 = arith.constant 3 : index
    %c0_580 = arith.constant 0 : index
    %c0_581 = arith.constant 0 : index
    %668 = vector.load %arg5[%c0_578, %c3_579, %c0_580, %c0_581] : memref<1x7x7x960xf32, #tpu.memory_space<vmem>>, vector<1x1x7x960xf32>
    %669 = vector.shape_cast %668 : vector<1x1x7x960xf32> to vector<1x7x960xf32>
    %670 = vector.broadcast %624 : vector<1x1x960xf32> to vector<1x7x960xf32>
    %671 = arith.mulf %669, %670 : vector<1x7x960xf32>
    %672 = vector.broadcast %628 : vector<1x1x960xf32> to vector<1x7x960xf32>
    %673 = arith.addf %671, %672 : vector<1x7x960xf32>
    %cst_582 = arith.constant 0.000000e+00 : f32
    %cst_583 = arith.constant 6.000000e+00 : f32
    %674 = vector.broadcast %cst_582 : f32 to vector<1x7x960xf32>
    %675 = arith.maximumf %674, %673 : vector<1x7x960xf32>
    %676 = vector.broadcast %cst_583 : f32 to vector<1x7x960xf32>
    %677 = arith.minimumf %676, %675 : vector<1x7x960xf32>
    %c0_584 = arith.constant 0 : index
    %c3_585 = arith.constant 3 : index
    %c0_586 = arith.constant 0 : index
    %c0_587 = arith.constant 0 : index
    %678 = vector.load %arg5[%c0_584, %c3_585, %c0_586, %c0_587] : memref<1x7x7x960xf32, #tpu.memory_space<vmem>>, vector<1x1x7x960xf32>
    %679 = vector.shape_cast %678 : vector<1x1x7x960xf32> to vector<1x7x960xf32>
    %680 = vector.shape_cast %677 : vector<1x7x960xf32> to vector<1x1x7x960xf32>
    tpu.vector_store %arg5[%c0_584, %c3_585, %c0_586, %c0_587], %680 {strides = array<i32>} : memref<1x7x7x960xf32, #tpu.memory_space<vmem>>, vector<1x1x7x960xf32>,
    %c0_588 = arith.constant 0 : index
    %c4_589 = arith.constant 4 : index
    %c0_590 = arith.constant 0 : index
    %c0_591 = arith.constant 0 : index
    %681 = vector.load %arg5[%c0_588, %c4_589, %c0_590, %c0_591] : memref<1x7x7x960xf32, #tpu.memory_space<vmem>>, vector<1x1x7x960xf32>
    %682 = vector.shape_cast %681 : vector<1x1x7x960xf32> to vector<1x7x960xf32>
    %683 = vector.broadcast %624 : vector<1x1x960xf32> to vector<1x7x960xf32>
    %684 = arith.mulf %682, %683 : vector<1x7x960xf32>
    %685 = vector.broadcast %628 : vector<1x1x960xf32> to vector<1x7x960xf32>
    %686 = arith.addf %684, %685 : vector<1x7x960xf32>
    %cst_592 = arith.constant 0.000000e+00 : f32
    %cst_593 = arith.constant 6.000000e+00 : f32
    %687 = vector.broadcast %cst_592 : f32 to vector<1x7x960xf32>
    %688 = arith.maximumf %687, %686 : vector<1x7x960xf32>
    %689 = vector.broadcast %cst_593 : f32 to vector<1x7x960xf32>
    %690 = arith.minimumf %689, %688 : vector<1x7x960xf32>
    %c0_594 = arith.constant 0 : index
    %c4_595 = arith.constant 4 : index
    %c0_596 = arith.constant 0 : index
    %c0_597 = arith.constant 0 : index
    %691 = vector.load %arg5[%c0_594, %c4_595, %c0_596, %c0_597] : memref<1x7x7x960xf32, #tpu.memory_space<vmem>>, vector<1x1x7x960xf32>
    %692 = vector.shape_cast %691 : vector<1x1x7x960xf32> to vector<1x7x960xf32>
    %693 = vector.shape_cast %690 : vector<1x7x960xf32> to vector<1x1x7x960xf32>
    tpu.vector_store %arg5[%c0_594, %c4_595, %c0_596, %c0_597], %693 {strides = array<i32>} : memref<1x7x7x960xf32, #tpu.memory_space<vmem>>, vector<1x1x7x960xf32>,
    %c0_598 = arith.constant 0 : index
    %c5_599 = arith.constant 5 : index
    %c0_600 = arith.constant 0 : index
    %c0_601 = arith.constant 0 : index
    %694 = vector.load %arg5[%c0_598, %c5_599, %c0_600, %c0_601] : memref<1x7x7x960xf32, #tpu.memory_space<vmem>>, vector<1x1x7x960xf32>
    %695 = vector.shape_cast %694 : vector<1x1x7x960xf32> to vector<1x7x960xf32>
    %696 = vector.broadcast %624 : vector<1x1x960xf32> to vector<1x7x960xf32>
    %697 = arith.mulf %695, %696 : vector<1x7x960xf32>
    %698 = vector.broadcast %628 : vector<1x1x960xf32> to vector<1x7x960xf32>
    %699 = arith.addf %697, %698 : vector<1x7x960xf32>
    %cst_602 = arith.constant 0.000000e+00 : f32
    %cst_603 = arith.constant 6.000000e+00 : f32
    %700 = vector.broadcast %cst_602 : f32 to vector<1x7x960xf32>
    %701 = arith.maximumf %700, %699 : vector<1x7x960xf32>
    %702 = vector.broadcast %cst_603 : f32 to vector<1x7x960xf32>
    %703 = arith.minimumf %702, %701 : vector<1x7x960xf32>
    %c0_604 = arith.constant 0 : index
    %c5_605 = arith.constant 5 : index
    %c0_606 = arith.constant 0 : index
    %c0_607 = arith.constant 0 : index
    %704 = vector.load %arg5[%c0_604, %c5_605, %c0_606, %c0_607] : memref<1x7x7x960xf32, #tpu.memory_space<vmem>>, vector<1x1x7x960xf32>
    %705 = vector.shape_cast %704 : vector<1x1x7x960xf32> to vector<1x7x960xf32>
    %706 = vector.shape_cast %703 : vector<1x7x960xf32> to vector<1x1x7x960xf32>
    tpu.vector_store %arg5[%c0_604, %c5_605, %c0_606, %c0_607], %706 {strides = array<i32>} : memref<1x7x7x960xf32, #tpu.memory_space<vmem>>, vector<1x1x7x960xf32>,
    %c0_608 = arith.constant 0 : index
    %c6_609 = arith.constant 6 : index
    %c0_610 = arith.constant 0 : index
    %c0_611 = arith.constant 0 : index
    %707 = vector.load %arg5[%c0_608, %c6_609, %c0_610, %c0_611] : memref<1x7x7x960xf32, #tpu.memory_space<vmem>>, vector<1x1x7x960xf32>
    %708 = vector.shape_cast %707 : vector<1x1x7x960xf32> to vector<1x7x960xf32>
    %709 = vector.broadcast %624 : vector<1x1x960xf32> to vector<1x7x960xf32>
    %710 = arith.mulf %708, %709 : vector<1x7x960xf32>
    %711 = vector.broadcast %628 : vector<1x1x960xf32> to vector<1x7x960xf32>
    %712 = arith.addf %710, %711 : vector<1x7x960xf32>
    %cst_612 = arith.constant 0.000000e+00 : f32
    %cst_613 = arith.constant 6.000000e+00 : f32
    %713 = vector.broadcast %cst_612 : f32 to vector<1x7x960xf32>
    %714 = arith.maximumf %713, %712 : vector<1x7x960xf32>
    %715 = vector.broadcast %cst_613 : f32 to vector<1x7x960xf32>
    %716 = arith.minimumf %715, %714 : vector<1x7x960xf32>
    %c0_614 = arith.constant 0 : index
    %c6_615 = arith.constant 6 : index
    %c0_616 = arith.constant 0 : index
    %c0_617 = arith.constant 0 : index
    %717 = vector.load %arg5[%c0_614, %c6_615, %c0_616, %c0_617] : memref<1x7x7x960xf32, #tpu.memory_space<vmem>>, vector<1x1x7x960xf32>
    %718 = vector.shape_cast %717 : vector<1x1x7x960xf32> to vector<1x7x960xf32>
    %719 = vector.shape_cast %716 : vector<1x7x960xf32> to vector<1x1x7x960xf32>
    tpu.vector_store %arg5[%c0_614, %c6_615, %c0_616, %c0_617], %719 {strides = array<i32>} : memref<1x7x7x960xf32, #tpu.memory_space<vmem>>, vector<1x1x7x960xf32>,
    return
  }
  func.func @transform_0(%arg0: i32) -> (i32, i32, i32, i32) {
    %c0_i32 = arith.constant 0 : i32
    %c0_i32_0 = arith.constant 0 : i32
    %c0_i32_1 = arith.constant 0 : i32
    %c0_i32_2 = arith.constant 0 : i32
    return %c0_i32, %c0_i32_0, %c0_i32_1, %arg0 : i32, i32, i32, i32
  }
  func.func @transform_1(%arg0: i32) -> (i32, i32, i32) {
    %c0_i32 = arith.constant 0 : i32
    %c0_i32_0 = arith.constant 0 : i32
    %c0_i32_1 = arith.constant 0 : i32
    return %c0_i32, %c0_i32_0, %arg0 : i32, i32, i32
  }
  func.func @transform_2(%arg0: i32) -> (i32, i32) {
    %c0_i32 = arith.constant 0 : i32
    %c0_i32_0 = arith.constant 0 : i32
    return %c0_i32, %arg0 : i32, i32
  }
  func.func @transform_3(%arg0: i32) -> (i32, i32) {
    %c0_i32 = arith.constant 0 : i32
    %c0_i32_0 = arith.constant 0 : i32
    return %c0_i32, %arg0 : i32, i32
  }
  func.func @transform_4(%arg0: i32) -> (i32, i32, i32, i32) {
    %c0_i32 = arith.constant 0 : i32
    %c0_i32_0 = arith.constant 0 : i32
    %c0_i32_1 = arith.constant 0 : i32
    %c0_i32_2 = arith.constant 0 : i32
    return %c0_i32, %c0_i32_0, %c0_i32_1, %arg0 : i32, i32, i32, i32
  }
}

</mosaic_0001>

<llo_original>
// kernel: relu6_dwconv_bn_relu6.1
$region0: #{relu6_dwconv_bn_relu6.1}
  #allocation0 [shape = 'u32[]', space=smem, size = 0x4, offset = 0x4, fixed_abs, tag = 'smem constant byte address 0x4 - core index']
  #allocation1 [shape = 'u32[144,128]{1,0:T(1,128)}', space=vmem, size = 0x12000, scoped, tag = 'internal scratch']
  #allocation2 [shape = 'f32[1,7,9,960]{3,2,1,0:T(8,128)}', space=vmem, size = 0x70000, scoped, tag = 'scratch operand']
  %s0 = inlined_call_operand.vmem [shape: f32[1,7,7,960], index: 0, kind: input, shape index: {}]
  %s1 = inlined_call_operand.vmem [shape: f32[3,3,960], index: 1, kind: input, shape index: {}]
  %s2 = inlined_call_operand.vmem [shape: f32[1,960], index: 2, kind: input, shape index: {}]
  %s3 = inlined_call_operand.vmem [shape: f32[1,960], index: 3, kind: input, shape index: {}]
  %s4 = inlined_call_operand.vmem [shape: f32[1,7,7,960], index: 4, kind: output, shape index: {}]
  %s5 = sld [smem:[#allocation0]]
  $region26: #{relu6_dwconv_bn_relu6.1} parent=0
    _
  %s7 = ssub.s32 1, %s5
  %s8 = scalar_select 0, %s7, %s5
  // Predicated region
  $region2: #{relu6_dwconv_bn_relu6.1} parent=0 // pred_check
    _
  $region3: #{relu6_dwconv_bn_relu6.1} parent=0 // pred_check_branch
    %10 = sbr.rel (0) target = $region5
  $region4: #{relu6_dwconv_bn_relu6.1} parent=0 // pred_region
    _
  $region5: #{relu6_dwconv_bn_relu6.1} parent=0 // pred_fallthru
    _
  // Predicated region
  $region6: #{relu6_dwconv_bn_relu6.1} parent=0 // pred_check
    _
  $region7: #{relu6_dwconv_bn_relu6.1} parent=0 // pred_check_branch
    %12 = sbr.rel (0) target = $region9
  $region8: #{relu6_dwconv_bn_relu6.1} parent=0 // pred_region
    _
  $region9: #{relu6_dwconv_bn_relu6.1} parent=0 // pred_fallthru
    _
  // Predicated region
  $region10: #{relu6_dwconv_bn_relu6.1} parent=0 // pred_check
    _
  $region11: #{relu6_dwconv_bn_relu6.1} parent=0 // pred_check_branch
    %14 = sbr.rel (0) target = $region13
  $region12: #{relu6_dwconv_bn_relu6.1} parent=0 // pred_region
    _
  $region13: #{relu6_dwconv_bn_relu6.1} parent=0 // pred_fallthru
    _
  // Predicated region
  $region14: #{relu6_dwconv_bn_relu6.1} parent=0 // pred_check
    _
  $region15: #{relu6_dwconv_bn_relu6.1} parent=0 // pred_check_branch
    %16 = sbr.rel (0) target = $region17
  $region16: #{relu6_dwconv_bn_relu6.1} parent=0 // pred_region
    _
  $region17: #{relu6_dwconv_bn_relu6.1} parent=0 // pred_fallthru
    _
  %v17 = vlaneseq
  %vm18 = vcmp.ge.s32.totalorder %v17, 0
  %vm19 = vcmp.lt.s32.totalorder %v17, 960
  %vm20 = vmand %vm18, %vm19
  %21 = vst.msk [vmem:[#allocation2] ss:$8 sm:$0xf] %vm20, 0.0
  %22 = vst.msk [vmem:[#allocation2] ss:$8 sm:$0xf0] %vm20, 0.0
  %s23 = scalar_lea.vmem [#allocation2], 128
  %24 = vst.msk [vmem:[%s23] ss:$8 sm:$0xf] %vm20, 0.0
  %25 = vst.msk [vmem:[%s23] ss:$8 sm:$0xf0] %vm20, 0.0
  %s26 = scalar_lea.vmem [#allocation2], 256
  %27 = vst.msk [vmem:[%s26] ss:$8 sm:$0xf] %vm20, 0.0
  %28 = vst.msk [vmem:[%s26] ss:$8 sm:$0xf0] %vm20, 0.0
  %s29 = scalar_lea.vmem [#allocation2], 384
  %30 = vst.msk [vmem:[%s29] ss:$8 sm:$0xf] %vm20, 0.0
  %31 = vst.msk [vmem:[%s29] ss:$8 sm:$0xf0] %vm20, 0.0
  %s32 = scalar_lea.vmem [#allocation2], 512
  %33 = vst.msk [vmem:[%s32] ss:$8 sm:$0xf] %vm20, 0.0
  %34 = vst.msk [vmem:[%s32] ss:$8 sm:$0xf0] %vm20, 0.0
  %s35 = scalar_lea.vmem [#allocation2], 640
  %36 = vst.msk [vmem:[%s35] ss:$8 sm:$0xf] %vm20, 0.0
  %37 = vst.msk [vmem:[%s35] ss:$8 sm:$0xf0] %vm20, 0.0
  %s38 = scalar_lea.vmem [#allocation2], 768
  %39 = vst.msk [vmem:[%s38] ss:$8 sm:$0xf] %vm20, 0.0
  %40 = vst.msk [vmem:[%s38] ss:$8 sm:$0xf0] %vm20, 0.0
  %s41 = scalar_lea.vmem [#allocation2], 64
  %42 = vst.msk [vmem:[%s41] ss:$8 sm:$0xf] %vm20, 0.0
  %43 = vst.msk [vmem:[%s41] ss:$8 sm:$0xf0] %vm20, 0.0
  %s44 = scalar_lea.vmem [#allocation2], 192
  %45 = vst.msk [vmem:[%s44] ss:$8 sm:$0xf] %vm20, 0.0
  %46 = vst.msk [vmem:[%s44] ss:$8 sm:$0xf0] %vm20, 0.0
  %s47 = scalar_lea.vmem [#allocation2], 320
  %48 = vst.msk [vmem:[%s47] ss:$8 sm:$0xf] %vm20, 0.0
  %49 = vst.msk [vmem:[%s47] ss:$8 sm:$0xf0] %vm20, 0.0
  %s50 = scalar_lea.vmem [#allocation2], 448
  %51 = vst.msk [vmem:[%s50] ss:$8 sm:$0xf] %vm20, 0.0
  %52 = vst.msk [vmem:[%s50] ss:$8 sm:$0xf0] %vm20, 0.0
  %s53 = scalar_lea.vmem [#allocation2], 576
  %54 = vst.msk [vmem:[%s53] ss:$8 sm:$0xf] %vm20, 0.0
  %55 = vst.msk [vmem:[%s53] ss:$8 sm:$0xf0] %vm20, 0.0
  %s56 = scalar_lea.vmem [#allocation2], 704
  %57 = vst.msk [vmem:[%s56] ss:$8 sm:$0xf] %vm20, 0.0
  %58 = vst.msk [vmem:[%s56] ss:$8 sm:$0xf0] %vm20, 0.0
  %s59 = scalar_lea.vmem [#allocation2], 832
  %60 = vst.msk [vmem:[%s59] ss:$8 sm:$0xf] %vm20, 0.0
  %61 = vst.msk [vmem:[%s59] ss:$8 sm:$0xf0] %vm20, 0.0
  %v62 = vld [vmem:[%s0] sm:$0x7f]
  %v63 = vld [vmem:[%s0 + $0x8] sm:$0x7f]
  %v64 = vld [vmem:[%s0 + $0x10] sm:$0x7f]
  %v65 = vld [vmem:[%s0 + $0x18] sm:$0x7f]
  %v66 = vld [vmem:[%s0 + $0x20] sm:$0x7f]
  %v67 = vld [vmem:[%s0 + $0x28] sm:$0x7f]
  %v68 = vld [vmem:[%s0 + $0x30] sm:$0x7f]
  %v69 = vld [vmem:[%s0 + $0x38] sm:$0x7f]
  %v70 = vmax.f32 %v62, 0.0
  %v71 = vmax.f32 %v63, 0.0
  %v72 = vmax.f32 %v64, 0.0
  %v73 = vmax.f32 %v65, 0.0
  %v74 = vmax.f32 %v66, 0.0
  %v75 = vmax.f32 %v67, 0.0
  %v76 = vmax.f32 %v68, 0.0
  %v77 = vmax.f32 %v69, 0.0
  %v78 = vmin.f32 %v70, 6.0
  %v79 = vmin.f32 %v71, 6.0
  %v80 = vmin.f32 %v72, 6.0
  %v81 = vmin.f32 %v73, 6.0
  %v82 = vmin.f32 %v74, 6.0
  %v83 = vmin.f32 %v75, 6.0
  %v84 = vmin.f32 %v76, 6.0
  %v85 = vmin.f32 %v77, 6.0
  %v94 = vrot.slane %v78, 7
  %v95 = vrot.slane %v79, 7
  %v96 = vrot.slane %v80, 7
  %v97 = vrot.slane %v81, 7
  %v98 = vrot.slane %v82, 7
  %v99 = vrot.slane %v83, 7
  %v100 = vrot.slane %v84, 7
  %v101 = vrot.slane %v85, 7
  %110 = vst [vmem:[#allocation2] sm:$0xfe] %v94
  %111 = vst [vmem:[#allocation2 + $0x8] sm:$0xfe] %v95
  %112 = vst [vmem:[#allocation2 + $0x10] sm:$0xfe] %v96
  %113 = vst [vmem:[#allocation2 + $0x18] sm:$0xfe] %v97
  %114 = vst [vmem:[#allocation2 + $0x20] sm:$0xfe] %v98
  %115 = vst [vmem:[#allocation2 + $0x28] sm:$0xfe] %v99
  %116 = vst [vmem:[#allocation2 + $0x30] sm:$0xfe] %v100
  %vm117 = vcmask 523265
  %118 = vst.msk [vmem:[#allocation2 + $0x38] sm:$0xfe] %vm117, %v101
  %s119 = scalar_lea.vmem %s0, 64
  %v120 = vld [vmem:[%s119] sm:$0x7f]
  %v121 = vld [vmem:[%s119 + $0x8] sm:$0x7f]
  %v122 = vld [vmem:[%s119 + $0x10] sm:$0x7f]
  %v123 = vld [vmem:[%s119 + $0x18] sm:$0x7f]
  %v124 = vld [vmem:[%s119 + $0x20] sm:$0x7f]
  %v125 = vld [vmem:[%s119 + $0x28] sm:$0x7f]
  %v126 = vld [vmem:[%s119 + $0x30] sm:$0x7f]
  %v127 = vld [vmem:[%s119 + $0x38] sm:$0x7f]
  %v128 = vmax.f32 %v120, 0.0
  %v129 = vmax.f32 %v121, 0.0
  %v130 = vmax.f32 %v122, 0.0
  %v131 = vmax.f32 %v123, 0.0
  %v132 = vmax.f32 %v124, 0.0
  %v133 = vmax.f32 %v125, 0.0
  %v134 = vmax.f32 %v126, 0.0
  %v135 = vmax.f32 %v127, 0.0
  %v136 = vmin.f32 %v128, 6.0
  %v137 = vmin.f32 %v129, 6.0
  %v138 = vmin.f32 %v130, 6.0
  %v139 = vmin.f32 %v131, 6.0
  %v140 = vmin.f32 %v132, 6.0
  %v141 = vmin.f32 %v133, 6.0
  %v142 = vmin.f32 %v134, 6.0
  %v143 = vmin.f32 %v135, 6.0
  %v152 = vrot.slane %v136, 7
  %v153 = vrot.slane %v137, 7
  %v154 = vrot.slane %v138, 7
  %v155 = vrot.slane %v139, 7
  %v156 = vrot.slane %v140, 7
  %v157 = vrot.slane %v141, 7
  %v158 = vrot.slane %v142, 7
  %v159 = vrot.slane %v143, 7
  %s168 = scalar_lea.vmem [#allocation2], 128
  %169 = vst [vmem:[%s168] sm:$0xfe] %v152
  %170 = vst [vmem:[%s168 + $0x8] sm:$0xfe] %v153
  %171 = vst [vmem:[%s168 + $0x10] sm:$0xfe] %v154
  %172 = vst [vmem:[%s168 + $0x18] sm:$0xfe] %v155
  %173 = vst [vmem:[%s168 + $0x20] sm:$0xfe] %v156
  %174 = vst [vmem:[%s168 + $0x28] sm:$0xfe] %v157
  %175 = vst [vmem:[%s168 + $0x30] sm:$0xfe] %v158
  %176 = vst.msk [vmem:[%s168 + $0x38] sm:$0xfe] %vm117, %v159
  %s177 = scalar_lea.vmem %s0, 128
  %v178 = vld [vmem:[%s177] sm:$0x7f]
  %v179 = vld [vmem:[%s177 + $0x8] sm:$0x7f]
  %v180 = vld [vmem:[%s177 + $0x10] sm:$0x7f]
  %v181 = vld [vmem:[%s177 + $0x18] sm:$0x7f]
  %v182 = vld [vmem:[%s177 + $0x20] sm:$0x7f]
  %v183 = vld [vmem:[%s177 + $0x28] sm:$0x7f]
  %v184 = vld [vmem:[%s177 + $0x30] sm:$0x7f]
  %v185 = vld [vmem:[%s177 + $0x38] sm:$0x7f]
  %v186 = vmax.f32 %v178, 0.0
  %v187 = vmax.f32 %v179, 0.0
  %v188 = vmax.f32 %v180, 0.0
  %v189 = vmax.f32 %v181, 0.0
  %v190 = vmax.f32 %v182, 0.0
  %v191 = vmax.f32 %v183, 0.0
  %v192 = vmax.f32 %v184, 0.0
  %v193 = vmax.f32 %v185, 0.0
  %v194 = vmin.f32 %v186, 6.0
  %v195 = vmin.f32 %v187, 6.0
  %v196 = vmin.f32 %v188, 6.0
  %v197 = vmin.f32 %v189, 6.0
  %v198 = vmin.f32 %v190, 6.0
  %v199 = vmin.f32 %v191, 6.0
  %v200 = vmin.f32 %v192, 6.0
  %v201 = vmin.f32 %v193, 6.0
  %v210 = vrot.slane %v194, 7
  %v211 = vrot.slane %v195, 7
  %v212 = vrot.slane %v196, 7
  %v213 = vrot.slane %v197, 7
  %v214 = vrot.slane %v198, 7
  %v215 = vrot.slane %v199, 7
  %v216 = vrot.slane %v200, 7
  %v217 = vrot.slane %v201, 7
  %s226 = scalar_lea.vmem [#allocation2], 256
  %227 = vst [vmem:[%s226] sm:$0xfe] %v210
  %228 = vst [vmem:[%s226 + $0x8] sm:$0xfe] %v211
  %229 = vst [vmem:[%s226 + $0x10] sm:$0xfe] %v212
  %230 = vst [vmem:[%s226 + $0x18] sm:$0xfe] %v213
  %231 = vst [vmem:[%s226 + $0x20] sm:$0xfe] %v214
  %232 = vst [vmem:[%s226 + $0x28] sm:$0xfe] %v215
  %233 = vst [vmem:[%s226 + $0x30] sm:$0xfe] %v216
  %234 = vst.msk [vmem:[%s226 + $0x38] sm:$0xfe] %vm117, %v217
  %s235 = scalar_lea.vmem %s0, 192
  %v236 = vld [vmem:[%s235] sm:$0x7f]
  %v237 = vld [vmem:[%s235 + $0x8] sm:$0x7f]
  %v238 = vld [vmem:[%s235 + $0x10] sm:$0x7f]
  %v239 = vld [vmem:[%s235 + $0x18] sm:$0x7f]
  %v240 = vld [vmem:[%s235 + $0x20] sm:$0x7f]
  %v241 = vld [vmem:[%s235 + $0x28] sm:$0x7f]
  %v242 = vld [vmem:[%s235 + $0x30] sm:$0x7f]
  %v243 = vld [vmem:[%s235 + $0x38] sm:$0x7f]
  %v244 = vmax.f32 %v236, 0.0
  %v245 = vmax.f32 %v237, 0.0
  %v246 = vmax.f32 %v238, 0.0
  %v247 = vmax.f32 %v239, 0.0
  %v248 = vmax.f32 %v240, 0.0
  %v249 = vmax.f32 %v241, 0.0
  %v250 = vmax.f32 %v242, 0.0
  %v251 = vmax.f32 %v243, 0.0
  %v252 = vmin.f32 %v244, 6.0
  %v253 = vmin.f32 %v245, 6.0
  %v254 = vmin.f32 %v246, 6.0
  %v255 = vmin.f32 %v247, 6.0
  %v256 = vmin.f32 %v248, 6.0
  %v257 = vmin.f32 %v249, 6.0
  %v258 = vmin.f32 %v250, 6.0
  %v259 = vmin.f32 %v251, 6.0
  %v268 = vrot.slane %v252, 7
  %v269 = vrot.slane %v253, 7
  %v270 = vrot.slane %v254, 7
  %v271 = vrot.slane %v255, 7
  %v272 = vrot.slane %v256, 7
  %v273 = vrot.slane %v257, 7
  %v274 = vrot.slane %v258, 7
  %v275 = vrot.slane %v259, 7
  %s284 = scalar_lea.vmem [#allocation2], 384
  %285 = vst [vmem:[%s284] sm:$0xfe] %v268
  %286 = vst [vmem:[%s284 + $0x8] sm:$0xfe] %v269
  %287 = vst [vmem:[%s284 + $0x10] sm:$0xfe] %v270
  %288 = vst [vmem:[%s284 + $0x18] sm:$0xfe] %v271
  %289 = vst [vmem:[%s284 + $0x20] sm:$0xfe] %v272
  %290 = vst [vmem:[%s284 + $0x28] sm:$0xfe] %v273
  %291 = vst [vmem:[%s284 + $0x30] sm:$0xfe] %v274
  %292 = vst.msk [vmem:[%s284 + $0x38] sm:$0xfe] %vm117, %v275
  %s293 = scalar_lea.vmem %s0, 256
  %v294 = vld [vmem:[%s293] sm:$0x7f]
  %v295 = vld [vmem:[%s293 + $0x8] sm:$0x7f]
  %v296 = vld [vmem:[%s293 + $0x10] sm:$0x7f]
  %v297 = vld [vmem:[%s293 + $0x18] sm:$0x7f]
  %v298 = vld [vmem:[%s293 + $0x20] sm:$0x7f]
  %v299 = vld [vmem:[%s293 + $0x28] sm:$0x7f]
  %v300 = vld [vmem:[%s293 + $0x30] sm:$0x7f]
  %v301 = vld [vmem:[%s293 + $0x38] sm:$0x7f]
  %v302 = vmax.f32 %v294, 0.0
  %v303 = vmax.f32 %v295, 0.0
  %v304 = vmax.f32 %v296, 0.0
  %v305 = vmax.f32 %v297, 0.0
  %v306 = vmax.f32 %v298, 0.0
  %v307 = vmax.f32 %v299, 0.0
  %v308 = vmax.f32 %v300, 0.0
  %v309 = vmax.f32 %v301, 0.0
  %v310 = vmin.f32 %v302, 6.0
  %v311 = vmin.f32 %v303, 6.0
  %v312 = vmin.f32 %v304, 6.0
  %v313 = vmin.f32 %v305, 6.0
  %v314 = vmin.f32 %v306, 6.0
  %v315 = vmin.f32 %v307, 6.0
  %v316 = vmin.f32 %v308, 6.0
  %v317 = vmin.f32 %v309, 6.0
  %v326 = vrot.slane %v310, 7
  %v327 = vrot.slane %v311, 7
  %v328 = vrot.slane %v312, 7
  %v329 = vrot.slane %v313, 7
  %v330 = vrot.slane %v314, 7
  %v331 = vrot.slane %v315, 7
  %v332 = vrot.slane %v316, 7
  %v333 = vrot.slane %v317, 7
  %s342 = scalar_lea.vmem [#allocation2], 512
  %343 = vst [vmem:[%s342] sm:$0xfe] %v326
  %344 = vst [vmem:[%s342 + $0x8] sm:$0xfe] %v327
  %345 = vst [vmem:[%s342 + $0x10] sm:$0xfe] %v328
  %346 = vst [vmem:[%s342 + $0x18] sm:$0xfe] %v329
  %347 = vst [vmem:[%s342 + $0x20] sm:$0xfe] %v330
  %348 = vst [vmem:[%s342 + $0x28] sm:$0xfe] %v331
  %349 = vst [vmem:[%s342 + $0x30] sm:$0xfe] %v332
  %350 = vst.msk [vmem:[%s342 + $0x38] sm:$0xfe] %vm117, %v333
  %s351 = scalar_lea.vmem %s0, 320
  %v352 = vld [vmem:[%s351] sm:$0x7f]
  %v353 = vld [vmem:[%s351 + $0x8] sm:$0x7f]
  %v354 = vld [vmem:[%s351 + $0x10] sm:$0x7f]
  %v355 = vld [vmem:[%s351 + $0x18] sm:$0x7f]
  %v356 = vld [vmem:[%s351 + $0x20] sm:$0x7f]
  %v357 = vld [vmem:[%s351 + $0x28] sm:$0x7f]
  %v358 = vld [vmem:[%s351 + $0x30] sm:$0x7f]
  %v359 = vld [vmem:[%s351 + $0x38] sm:$0x7f]
  %v360 = vmax.f32 %v352, 0.0
  %v361 = vmax.f32 %v353, 0.0
  %v362 = vmax.f32 %v354, 0.0
  %v363 = vmax.f32 %v355, 0.0
  %v364 = vmax.f32 %v356, 0.0
  %v365 = vmax.f32 %v357, 0.0
  %v366 = vmax.f32 %v358, 0.0
  %v367 = vmax.f32 %v359, 0.0
  %v368 = vmin.f32 %v360, 6.0
  %v369 = vmin.f32 %v361, 6.0
  %v370 = vmin.f32 %v362, 6.0
  %v371 = vmin.f32 %v363, 6.0
  %v372 = vmin.f32 %v364, 6.0
  %v373 = vmin.f32 %v365, 6.0
  %v374 = vmin.f32 %v366, 6.0
  %v375 = vmin.f32 %v367, 6.0
  %v384 = vrot.slane %v368, 7
  %v385 = vrot.slane %v369, 7
  %v386 = vrot.slane %v370, 7
  %v387 = vrot.slane %v371, 7
  %v388 = vrot.slane %v372, 7
  %v389 = vrot.slane %v373, 7
  %v390 = vrot.slane %v374, 7
  %v391 = vrot.slane %v375, 7
  %s400 = scalar_lea.vmem [#allocation2], 640
  %401 = vst [vmem:[%s400] sm:$0xfe] %v384
  %402 = vst [vmem:[%s400 + $0x8] sm:$0xfe] %v385
  %403 = vst [vmem:[%s400 + $0x10] sm:$0xfe] %v386
  %404 = vst [vmem:[%s400 + $0x18] sm:$0xfe] %v387
  %405 = vst [vmem:[%s400 + $0x20] sm:$0xfe] %v388
  %406 = vst [vmem:[%s400 + $0x28] sm:$0xfe] %v389
  %407 = vst [vmem:[%s400 + $0x30] sm:$0xfe] %v390
  %408 = vst.msk [vmem:[%s400 + $0x38] sm:$0xfe] %vm117, %v391
  %s409 = scalar_lea.vmem %s0, 384
  %v410 = vld [vmem:[%s409] sm:$0x7f]
  %v411 = vld [vmem:[%s409 + $0x8] sm:$0x7f]
  %v412 = vld [vmem:[%s409 + $0x10] sm:$0x7f]
  %v413 = vld [vmem:[%s409 + $0x18] sm:$0x7f]
  %v414 = vld [vmem:[%s409 + $0x20] sm:$0x7f]
  %v415 = vld [vmem:[%s409 + $0x28] sm:$0x7f]
  %v416 = vld [vmem:[%s409 + $0x30] sm:$0x7f]
  %v417 = vld [vmem:[%s409 + $0x38] sm:$0x7f]
  %v418 = vmax.f32 %v410, 0.0
  %v419 = vmax.f32 %v411, 0.0
  %v420 = vmax.f32 %v412, 0.0
  %v421 = vmax.f32 %v413, 0.0
  %v422 = vmax.f32 %v414, 0.0
  %v423 = vmax.f32 %v415, 0.0
  %v424 = vmax.f32 %v416, 0.0
  %v425 = vmax.f32 %v417, 0.0
  %v426 = vmin.f32 %v418, 6.0
  %v427 = vmin.f32 %v419, 6.0
  %v428 = vmin.f32 %v420, 6.0
  %v429 = vmin.f32 %v421, 6.0
  %v430 = vmin.f32 %v422, 6.0
  %v431 = vmin.f32 %v423, 6.0
  %v432 = vmin.f32 %v424, 6.0
  %v433 = vmin.f32 %v425, 6.0
  %v442 = vrot.slane %v426, 7
  %v443 = vrot.slane %v427, 7
  %v444 = vrot.slane %v428, 7
  %v445 = vrot.slane %v429, 7
  %v446 = vrot.slane %v430, 7
  %v447 = vrot.slane %v431, 7
  %v448 = vrot.slane %v432, 7
  %v449 = vrot.slane %v433, 7
  %s458 = scalar_lea.vmem [#allocation2], 768
  %459 = vst [vmem:[%s458] sm:$0xfe] %v442
  %460 = vst [vmem:[%s458 + $0x8] sm:$0xfe] %v443
  %461 = vst [vmem:[%s458 + $0x10] sm:$0xfe] %v444
  %462 = vst [vmem:[%s458 + $0x18] sm:$0xfe] %v445
  %463 = vst [vmem:[%s458 + $0x20] sm:$0xfe] %v446
  %464 = vst [vmem:[%s458 + $0x28] sm:$0xfe] %v447
  %465 = vst [vmem:[%s458 + $0x30] sm:$0xfe] %v448
  %466 = vst.msk [vmem:[%s458 + $0x38] sm:$0xfe] %vm117, %v449
  %s467 = scalar_lea.vmem %s1, 32
  %v468 = vld [vmem:[%s467] ss:$4 sm:$0xff]
  %v469 = vld [vmem:[#allocation2] sm:$0x7f]
  %v470 = vld [vmem:[#allocation2 + $0x8] sm:$0x7f]
  %v471 = vld [vmem:[#allocation2 + $0x10] sm:$0x7f]
  %v472 = vld [vmem:[#allocation2 + $0x18] sm:$0x7f]
  %v473 = vld [vmem:[#allocation2 + $0x20] sm:$0x7f]
  %v474 = vld [vmem:[#allocation2 + $0x28] sm:$0x7f]
  %v475 = vld [vmem:[#allocation2 + $0x30] sm:$0x7f]
  %v476 = vld [vmem:[#allocation2 + $0x38] sm:$0x7f]
  %v478 = vlaneseq
  %v479 = vshrl.u32 %v478, 7
  %v480 = vsub.s32 0, %v479
  %v481 = vrot.slane %v468, %v480
  %v482 = vlaneseq
  %v483 = vshrl.u32 %v482, 7
  %v484 = vsub.s32 1, %v483
  %v485 = vrot.slane %v468, %v484
  %v486 = vlaneseq
  %v487 = vshrl.u32 %v486, 7
  %v488 = vsub.s32 2, %v487
  %v489 = vrot.slane %v468, %v488
  %v490 = vlaneseq
  %v491 = vshrl.u32 %v490, 7
  %v492 = vsub.s32 3, %v491
  %v493 = vrot.slane %v468, %v492
  %v494 = vlaneseq
  %v495 = vshrl.u32 %v494, 7
  %v496 = vsub.s32 4, %v495
  %v497 = vrot.slane %v468, %v496
  %v498 = vlaneseq
  %v499 = vshrl.u32 %v498, 7
  %v500 = vsub.s32 5, %v499
  %v501 = vrot.slane %v468, %v500
  %v502 = vlaneseq
  %v503 = vshrl.u32 %v502, 7
  %v504 = vsub.s32 6, %v503
  %v505 = vrot.slane %v468, %v504
  %v506 = vlaneseq
  %v507 = vshrl.u32 %v506, 7
  %v508 = vsub.s32 7, %v507
  %v509 = vrot.slane %v468, %v508
  %v518 = vmul.f32 %v469, %v481
  %v519 = vmul.f32 %v470, %v485
  %v520 = vmul.f32 %v471, %v489
  %v521 = vmul.f32 %v472, %v493
  %v522 = vmul.f32 %v473, %v497
  %v523 = vmul.f32 %v474, %v501
  %v524 = vmul.f32 %v475, %v505
  %v525 = vmul.f32 %v476, %v509
  %s526 = scalar_lea.vmem %s467, 1
  %v527 = vld [vmem:[%s526] ss:$4 sm:$0xff]
  %v528 = vld [vmem:[#allocation2] sm:$0xfe]
  %v529 = vld [vmem:[#allocation2 + $0x8] sm:$0xfe]
  %v530 = vld [vmem:[#allocation2 + $0x10] sm:$0xfe]
  %v531 = vld [vmem:[#allocation2 + $0x18] sm:$0xfe]
  %v532 = vld [vmem:[#allocation2 + $0x20] sm:$0xfe]
  %v533 = vld [vmem:[#allocation2 + $0x28] sm:$0xfe]
  %v534 = vld [vmem:[#allocation2 + $0x30] sm:$0xfe]
  %v535 = vld [vmem:[#allocation2 + $0x38] sm:$0xfe]
  %v537 = vlaneseq
  %v538 = vshrl.u32 %v537, 7
  %v539 = vsub.s32 0, %v538
  %v540 = vrot.slane %v527, %v539
  %v541 = vlaneseq
  %v542 = vshrl.u32 %v541, 7
  %v543 = vsub.s32 1, %v542
  %v544 = vrot.slane %v527, %v543
  %v545 = vlaneseq
  %v546 = vshrl.u32 %v545, 7
  %v547 = vsub.s32 2, %v546
  %v548 = vrot.slane %v527, %v547
  %v549 = vlaneseq
  %v550 = vshrl.u32 %v549, 7
  %v551 = vsub.s32 3, %v550
  %v552 = vrot.slane %v527, %v551
  %v553 = vlaneseq
  %v554 = vshrl.u32 %v553, 7
  %v555 = vsub.s32 4, %v554
  %v556 = vrot.slane %v527, %v555
  %v557 = vlaneseq
  %v558 = vshrl.u32 %v557, 7
  %v559 = vsub.s32 5, %v558
  %v560 = vrot.slane %v527, %v559
  %v561 = vlaneseq
  %v562 = vshrl.u32 %v561, 7
  %v563 = vsub.s32 6, %v562
  %v564 = vrot.slane %v527, %v563
  %v565 = vlaneseq
  %v566 = vshrl.u32 %v565, 7
  %v567 = vsub.s32 7, %v566
  %v568 = vrot.slane %v527, %v567
  %v577 = vmul.f32 %v528, %v540
  %v578 = vmul.f32 %v529, %v544
  %v579 = vmul.f32 %v530, %v548
  %v580 = vmul.f32 %v531, %v552
  %v581 = vmul.f32 %v532, %v556
  %v582 = vmul.f32 %v533, %v560
  %v583 = vmul.f32 %v534, %v564
  %v584 = vmul.f32 %v535, %v568
  %v593 = vrot.slane %v577, 1
  %v594 = vrot.slane %v578, 1
  %v595 = vrot.slane %v579, 1
  %v596 = vrot.slane %v580, 1
  %v597 = vrot.slane %v581, 1
  %v598 = vrot.slane %v582, 1
  %v599 = vrot.slane %v583, 1
  %v600 = vrot.slane %v584, 1
  %v609 = vadd.f32 %v518, %v593
  %v610 = vadd.f32 %v519, %v594
  %v611 = vadd.f32 %v520, %v595
  %v612 = vadd.f32 %v521, %v596
  %v613 = vadd.f32 %v522, %v597
  %v614 = vadd.f32 %v523, %v598
  %v615 = vadd.f32 %v524, %v599
  %v616 = vadd.f32 %v525, %v600
  %s617 = scalar_lea.vmem %s467, 2
  %v618 = vld [vmem:[%s617] ss:$4 sm:$0xff]
  %v619 = vld [vmem:[#allocation2] sm:$0xfc]
  %v620 = vld [vmem:[#allocation2 + $0x8] sm:$0xfc]
  %v621 = vld [vmem:[#allocation2 + $0x10] sm:$0xfc]
  %v622 = vld [vmem:[#allocation2 + $0x18] sm:$0xfc]
  %v623 = vld [vmem:[#allocation2 + $0x20] sm:$0xfc]
  %v624 = vld [vmem:[#allocation2 + $0x28] sm:$0xfc]
  %v625 = vld [vmem:[#allocation2 + $0x30] sm:$0xfc]
  %v626 = vld [vmem:[#allocation2 + $0x38] sm:$0xfc]
  %v627 = vld [vmem:[#allocation2 + $0x40] sm:$0x1]
  %v628 = vld [vmem:[#allocation2 + $0x48] sm:$0x1]
  %v629 = vld [vmem:[#allocation2 + $0x50] sm:$0x1]
  %v630 = vld [vmem:[#allocation2 + $0x58] sm:$0x1]
  %v631 = vld [vmem:[#allocation2 + $0x60] sm:$0x1]
  %v632 = vld [vmem:[#allocation2 + $0x68] sm:$0x1]
  %v633 = vld [vmem:[#allocation2 + $0x70] sm:$0x1]
  %v634 = vld [vmem:[#allocation2 + $0x78] sm:$0x1]
  %v636 = vlaneseq
  %v637 = vshrl.u32 %v636, 7
  %v638 = vsub.s32 0, %v637
  %v639 = vrot.slane %v618, %v638
  %v640 = vlaneseq
  %v641 = vshrl.u32 %v640, 7
  %v642 = vsub.s32 1, %v641
  %v643 = vrot.slane %v618, %v642
  %v644 = vlaneseq
  %v645 = vshrl.u32 %v644, 7
  %v646 = vsub.s32 2, %v645
  %v647 = vrot.slane %v618, %v646
  %v648 = vlaneseq
  %v649 = vshrl.u32 %v648, 7
  %v650 = vsub.s32 3, %v649
  %v651 = vrot.slane %v618, %v650
  %v652 = vlaneseq
  %v653 = vshrl.u32 %v652, 7
  %v654 = vsub.s32 4, %v653
  %v655 = vrot.slane %v618, %v654
  %v656 = vlaneseq
  %v657 = vshrl.u32 %v656, 7
  %v658 = vsub.s32 5, %v657
  %v659 = vrot.slane %v618, %v658
  %v660 = vlaneseq
  %v661 = vshrl.u32 %v660, 7
  %v662 = vsub.s32 6, %v661
  %v663 = vrot.slane %v618, %v662
  %v664 = vlaneseq
  %v665 = vshrl.u32 %v664, 7
  %v666 = vsub.s32 7, %v665
  %v667 = vrot.slane %v618, %v666
  %v676 = vmul.f32 %v619, %v639
  %v677 = vmul.f32 %v620, %v643
  %v678 = vmul.f32 %v621, %v647
  %v679 = vmul.f32 %v622, %v651
  %v680 = vmul.f32 %v623, %v655
  %v681 = vmul.f32 %v624, %v659
  %v682 = vmul.f32 %v625, %v663
  %v683 = vmul.f32 %v626, %v667
  %v684 = vmul.f32 %v627, %v639
  %v685 = vmul.f32 %v628, %v643
  %v686 = vmul.f32 %v629, %v647
  %v687 = vmul.f32 %v630, %v651
  %v688 = vmul.f32 %v631, %v655
  %v689 = vmul.f32 %v632, %v659
  %v690 = vmul.f32 %v633, %v663
  %v691 = vmul.f32 %v634, %v667
  %vm708 = vcmask 1045504
  %v709 = vrot.slane %v676, 2
  %v710 = vrot.slane %v684, 2
  %v711 = vsel %vm708, %v709, %v710
  %v712 = vrot.slane %v677, 2
  %v713 = vrot.slane %v685, 2
  %v714 = vsel %vm708, %v712, %v713
  %v715 = vrot.slane %v678, 2
  %v716 = vrot.slane %v686, 2
  %v717 = vsel %vm708, %v715, %v716
  %v718 = vrot.slane %v679, 2
  %v719 = vrot.slane %v687, 2
  %v720 = vsel %vm708, %v718, %v719
  %v721 = vrot.slane %v680, 2
  %v722 = vrot.slane %v688, 2
  %v723 = vsel %vm708, %v721, %v722
  %v724 = vrot.slane %v681, 2
  %v725 = vrot.slane %v689, 2
  %v726 = vsel %vm708, %v724, %v725
  %v727 = vrot.slane %v682, 2
  %v728 = vrot.slane %v690, 2
  %v729 = vsel %vm708, %v727, %v728
  %v730 = vrot.slane %v683, 2
  %v731 = vrot.slane %v691, 2
  %v732 = vsel %vm708, %v730, %v731
  %v741 = vadd.f32 %v609, %v711
  %v742 = vadd.f32 %v610, %v714
  %v743 = vadd.f32 %v611, %v717
  %v744 = vadd.f32 %v612, %v720
  %v745 = vadd.f32 %v613, %v723
  %v746 = vadd.f32 %v614, %v726
  %v747 = vadd.f32 %v615, %v729
  %v748 = vadd.f32 %v616, %v732
  %s749 = scalar_lea.vmem %s1, 64
  %v750 = vld [vmem:[%s749] ss:$4 sm:$0xff]
  %v751 = vld [vmem:[%s168] sm:$0x7f]
  %v752 = vld [vmem:[%s168 + $0x8] sm:$0x7f]
  %v753 = vld [vmem:[%s168 + $0x10] sm:$0x7f]
  %v754 = vld [vmem:[%s168 + $0x18] sm:$0x7f]
  %v755 = vld [vmem:[%s168 + $0x20] sm:$0x7f]
  %v756 = vld [vmem:[%s168 + $0x28] sm:$0x7f]
  %v757 = vld [vmem:[%s168 + $0x30] sm:$0x7f]
  %v758 = vld [vmem:[%s168 + $0x38] sm:$0x7f]
  %v760 = vlaneseq
  %v761 = vshrl.u32 %v760, 7
  %v762 = vsub.s32 0, %v761
  %v763 = vrot.slane %v750, %v762
  %v764 = vlaneseq
  %v765 = vshrl.u32 %v764, 7
  %v766 = vsub.s32 1, %v765
  %v767 = vrot.slane %v750, %v766
  %v768 = vlaneseq
  %v769 = vshrl.u32 %v768, 7
  %v770 = vsub.s32 2, %v769
  %v771 = vrot.slane %v750, %v770
  %v772 = vlaneseq
  %v773 = vshrl.u32 %v772, 7
  %v774 = vsub.s32 3, %v773
  %v775 = vrot.slane %v750, %v774
  %v776 = vlaneseq
  %v777 = vshrl.u32 %v776, 7
  %v778 = vsub.s32 4, %v777
  %v779 = vrot.slane %v750, %v778
  %v780 = vlaneseq
  %v781 = vshrl.u32 %v780, 7
  %v782 = vsub.s32 5, %v781
  %v783 = vrot.slane %v750, %v782
  %v784 = vlaneseq
  %v785 = vshrl.u32 %v784, 7
  %v786 = vsub.s32 6, %v785
  %v787 = vrot.slane %v750, %v786
  %v788 = vlaneseq
  %v789 = vshrl.u32 %v788, 7
  %v790 = vsub.s32 7, %v789
  %v791 = vrot.slane %v750, %v790
  %v800 = vmul.f32 %v751, %v763
  %v801 = vmul.f32 %v752, %v767
  %v802 = vmul.f32 %v753, %v771
  %v803 = vmul.f32 %v754, %v775
  %v804 = vmul.f32 %v755, %v779
  %v805 = vmul.f32 %v756, %v783
  %v806 = vmul.f32 %v757, %v787
  %v807 = vmul.f32 %v758, %v791
  %v808 = vadd.f32 %v741, %v800
  %v809 = vadd.f32 %v742, %v801
  %v810 = vadd.f32 %v743, %v802
  %v811 = vadd.f32 %v744, %v803
  %v812 = vadd.f32 %v745, %v804
  %v813 = vadd.f32 %v746, %v805
  %v814 = vadd.f32 %v747, %v806
  %v815 = vadd.f32 %v748, %v807
  %s816 = scalar_lea.vmem %s749, 1
  %v817 = vld [vmem:[%s816] ss:$4 sm:$0xff]
  %v818 = vld [vmem:[%s168] sm:$0xfe]
  %v819 = vld [vmem:[%s168 + $0x8] sm:$0xfe]
  %v820 = vld [vmem:[%s168 + $0x10] sm:$0xfe]
  %v821 = vld [vmem:[%s168 + $0x18] sm:$0xfe]
  %v822 = vld [vmem:[%s168 + $0x20] sm:$0xfe]
  %v823 = vld [vmem:[%s168 + $0x28] sm:$0xfe]
  %v824 = vld [vmem:[%s168 + $0x30] sm:$0xfe]
  %v825 = vld [vmem:[%s168 + $0x38] sm:$0xfe]
  %v827 = vlaneseq
  %v828 = vshrl.u32 %v827, 7
  %v829 = vsub.s32 0, %v828
  %v830 = vrot.slane %v817, %v829
  %v831 = vlaneseq
  %v832 = vshrl.u32 %v831, 7
  %v833 = vsub.s32 1, %v832
  %v834 = vrot.slane %v817, %v833
  %v835 = vlaneseq
  %v836 = vshrl.u32 %v835, 7
  %v837 = vsub.s32 2, %v836
  %v838 = vrot.slane %v817, %v837
  %v839 = vlaneseq
  %v840 = vshrl.u32 %v839, 7
  %v841 = vsub.s32 3, %v840
  %v842 = vrot.slane %v817, %v841
  %v843 = vlaneseq
  %v844 = vshrl.u32 %v843, 7
  %v845 = vsub.s32 4, %v844
  %v846 = vrot.slane %v817, %v845
  %v847 = vlaneseq
  %v848 = vshrl.u32 %v847, 7
  %v849 = vsub.s32 5, %v848
  %v850 = vrot.slane %v817, %v849
  %v851 = vlaneseq
  %v852 = vshrl.u32 %v851, 7
  %v853 = vsub.s32 6, %v852
  %v854 = vrot.slane %v817, %v853
  %v855 = vlaneseq
  %v856 = vshrl.u32 %v855, 7
  %v857 = vsub.s32 7, %v856
  %v858 = vrot.slane %v817, %v857
  %v867 = vmul.f32 %v818, %v830
  %v868 = vmul.f32 %v819, %v834
  %v869 = vmul.f32 %v820, %v838
  %v870 = vmul.f32 %v821, %v842
  %v871 = vmul.f32 %v822, %v846
  %v872 = vmul.f32 %v823, %v850
  %v873 = vmul.f32 %v824, %v854
  %v874 = vmul.f32 %v825, %v858
  %v883 = vrot.slane %v867, 1
  %v884 = vrot.slane %v868, 1
  %v885 = vrot.slane %v869, 1
  %v886 = vrot.slane %v870, 1
  %v887 = vrot.slane %v871, 1
  %v888 = vrot.slane %v872, 1
  %v889 = vrot.slane %v873, 1
  %v890 = vrot.slane %v874, 1
  %v899 = vadd.f32 %v808, %v883
  %v900 = vadd.f32 %v809, %v884
  %v901 = vadd.f32 %v810, %v885
  %v902 = vadd.f32 %v811, %v886
  %v903 = vadd.f32 %v812, %v887
  %v904 = vadd.f32 %v813, %v888
  %v905 = vadd.f32 %v814, %v889
  %v906 = vadd.f32 %v815, %v890
  %s907 = scalar_lea.vmem %s749, 2
  %v908 = vld [vmem:[%s907] ss:$4 sm:$0xff]
  %v909 = vld [vmem:[%s168] sm:$0xfc]
  %v910 = vld [vmem:[%s168 + $0x8] sm:$0xfc]
  %v911 = vld [vmem:[%s168 + $0x10] sm:$0xfc]
  %v912 = vld [vmem:[%s168 + $0x18] sm:$0xfc]
  %v913 = vld [vmem:[%s168 + $0x20] sm:$0xfc]
  %v914 = vld [vmem:[%s168 + $0x28] sm:$0xfc]
  %v915 = vld [vmem:[%s168 + $0x30] sm:$0xfc]
  %v916 = vld [vmem:[%s168 + $0x38] sm:$0xfc]
  %v917 = vld [vmem:[%s168 + $0x40] sm:$0x1]
  %v918 = vld [vmem:[%s168 + $0x48] sm:$0x1]
  %v919 = vld [vmem:[%s168 + $0x50] sm:$0x1]
  %v920 = vld [vmem:[%s168 + $0x58] sm:$0x1]
  %v921 = vld [vmem:[%s168 + $0x60] sm:$0x1]
  %v922 = vld [vmem:[%s168 + $0x68] sm:$0x1]
  %v923 = vld [vmem:[%s168 + $0x70] sm:$0x1]
  %v924 = vld [vmem:[%s168 + $0x78] sm:$0x1]
  %v926 = vlaneseq
  %v927 = vshrl.u32 %v926, 7
  %v928 = vsub.s32 0, %v927
  %v929 = vrot.slane %v908, %v928
  %v930 = vlaneseq
  %v931 = vshrl.u32 %v930, 7
  %v932 = vsub.s32 1, %v931
  %v933 = vrot.slane %v908, %v932
  %v934 = vlaneseq
  %v935 = vshrl.u32 %v934, 7
  %v936 = vsub.s32 2, %v935
  %v937 = vrot.slane %v908, %v936
  %v938 = vlaneseq
  %v939 = vshrl.u32 %v938, 7
  %v940 = vsub.s32 3, %v939
  %v941 = vrot.slane %v908, %v940
  %v942 = vlaneseq
  %v943 = vshrl.u32 %v942, 7
  %v944 = vsub.s32 4, %v943
  %v945 = vrot.slane %v908, %v944
  %v946 = vlaneseq
  %v947 = vshrl.u32 %v946, 7
  %v948 = vsub.s32 5, %v947
  %v949 = vrot.slane %v908, %v948
  %v950 = vlaneseq
  %v951 = vshrl.u32 %v950, 7
  %v952 = vsub.s32 6, %v951
  %v953 = vrot.slane %v908, %v952
  %v954 = vlaneseq
  %v955 = vshrl.u32 %v954, 7
  %v956 = vsub.s32 7, %v955
  %v957 = vrot.slane %v908, %v956
  %v966 = vmul.f32 %v909, %v929
  %v967 = vmul.f32 %v910, %v933
  %v968 = vmul.f32 %v911, %v937
  %v969 = vmul.f32 %v912, %v941
  %v970 = vmul.f32 %v913, %v945
  %v971 = vmul.f32 %v914, %v949
  %v972 = vmul.f32 %v915, %v953
  %v973 = vmul.f32 %v916, %v957
  %v974 = vmul.f32 %v917, %v929
  %v975 = vmul.f32 %v918, %v933
  %v976 = vmul.f32 %v919, %v937
  %v977 = vmul.f32 %v920, %v941
  %v978 = vmul.f32 %v921, %v945
  %v979 = vmul.f32 %v922, %v949
  %v980 = vmul.f32 %v923, %v953
  %v981 = vmul.f32 %v924, %v957
  %v998 = vrot.slane %v966, 2
  %v999 = vrot.slane %v974, 2
  %v1000 = vsel %vm708, %v998, %v999
  %v1001 = vrot.slane %v967, 2
  %v1002 = vrot.slane %v975, 2
  %v1003 = vsel %vm708, %v1001, %v1002
  %v1004 = vrot.slane %v968, 2
  %v1005 = vrot.slane %v976, 2
  %v1006 = vsel %vm708, %v1004, %v1005
  %v1007 = vrot.slane %v969, 2
  %v1008 = vrot.slane %v977, 2
  %v1009 = vsel %vm708, %v1007, %v1008
  %v1010 = vrot.slane %v970, 2
  %v1011 = vrot.slane %v978, 2
  %v1012 = vsel %vm708, %v1010, %v1011
  %v1013 = vrot.slane %v971, 2
  %v1014 = vrot.slane %v979, 2
  %v1015 = vsel %vm708, %v1013, %v1014
  %v1016 = vrot.slane %v972, 2
  %v1017 = vrot.slane %v980, 2
  %v1018 = vsel %vm708, %v1016, %v1017
  %v1019 = vrot.slane %v973, 2
  %v1020 = vrot.slane %v981, 2
  %v1021 = vsel %vm708, %v1019, %v1020
  %v1030 = vadd.f32 %v899, %v1000
  %v1031 = vadd.f32 %v900, %v1003
  %v1032 = vadd.f32 %v901, %v1006
  %v1033 = vadd.f32 %v902, %v1009
  %v1034 = vadd.f32 %v903, %v1012
  %v1035 = vadd.f32 %v904, %v1015
  %v1036 = vadd.f32 %v905, %v1018
  %v1037 = vadd.f32 %v906, %v1021
  %1038 = vst [vmem:[%s4] sm:$0x7f] %v1030
  %1039 = vst [vmem:[%s4 + $0x8] sm:$0x7f] %v1031
  %1040 = vst [vmem:[%s4 + $0x10] sm:$0x7f] %v1032
  %1041 = vst [vmem:[%s4 + $0x18] sm:$0x7f] %v1033
  %1042 = vst [vmem:[%s4 + $0x20] sm:$0x7f] %v1034
  %1043 = vst [vmem:[%s4 + $0x28] sm:$0x7f] %v1035
  %1044 = vst [vmem:[%s4 + $0x30] sm:$0x7f] %v1036
  %vm1045 = vcmask 522240
  %1046 = vst.msk [vmem:[%s4 + $0x38] sm:$0x7f] %vm1045, %v1037
  %vm1047 = vcmask 1046528
  %v1048 = vsel %vm1047, %v1030, 0.0
  %v1049 = vrot.slane %v1048, 4
  %v1050 = vadd.f32 %v1048, %v1049
  %v1051 = vrot.slane %v1050, 2
  %v1052 = vadd.f32 %v1050, %v1051
  %v1053 = vrot.slane %v1052, 1
  %v1054 = vadd.f32 %v1052, %v1053
  %v1055 = vsel %vm1047, %v1031, 0.0
  %v1056 = vrot.slane %v1055, 4
  %v1057 = vadd.f32 %v1055, %v1056
  %v1058 = vrot.slane %v1057, 2
  %v1059 = vadd.f32 %v1057, %v1058
  %v1060 = vrot.slane %v1059, 1
  %v1061 = vadd.f32 %v1059, %v1060
  %v1062 = vsel %vm1047, %v1032, 0.0
  %v1063 = vrot.slane %v1062, 4
  %v1064 = vadd.f32 %v1062, %v1063
  %v1065 = vrot.slane %v1064, 2
  %v1066 = vadd.f32 %v1064, %v1065
  %v1067 = vrot.slane %v1066, 1
  %v1068 = vadd.f32 %v1066, %v1067
  %v1069 = vsel %vm1047, %v1033, 0.0
  %v1070 = vrot.slane %v1069, 4
  %v1071 = vadd.f32 %v1069, %v1070
  %v1072 = vrot.slane %v1071, 2
  %v1073 = vadd.f32 %v1071, %v1072
  %v1074 = vrot.slane %v1073, 1
  %v1075 = vadd.f32 %v1073, %v1074
  %v1076 = vsel %vm1047, %v1034, 0.0
  %v1077 = vrot.slane %v1076, 4
  %v1078 = vadd.f32 %v1076, %v1077
  %v1079 = vrot.slane %v1078, 2
  %v1080 = vadd.f32 %v1078, %v1079
  %v1081 = vrot.slane %v1080, 1
  %v1082 = vadd.f32 %v1080, %v1081
  %v1083 = vsel %vm1047, %v1035, 0.0
  %v1084 = vrot.slane %v1083, 4
  %v1085 = vadd.f32 %v1083, %v1084
  %v1086 = vrot.slane %v1085, 2
  %v1087 = vadd.f32 %v1085, %v1086
  %v1088 = vrot.slane %v1087, 1
  %v1089 = vadd.f32 %v1087, %v1088
  %v1090 = vsel %vm1047, %v1036, 0.0
  %v1091 = vrot.slane %v1090, 4
  %v1092 = vadd.f32 %v1090, %v1091
  %v1093 = vrot.slane %v1092, 2
  %v1094 = vadd.f32 %v1092, %v1093
  %v1095 = vrot.slane %v1094, 1
  %v1096 = vadd.f32 %v1094, %v1095
  %v1097 = vsel %vm1045, %v1037, 0.0
  %v1098 = vrot.slane %v1097, 4
  %v1099 = vadd.f32 %v1097, %v1098
  %v1100 = vrot.slane %v1099, 2
  %v1101 = vadd.f32 %v1099, %v1100
  %v1102 = vrot.slane %v1101, 1
  %v1103 = vadd.f32 %v1101, %v1102
  %v1104 = vadd.f32 %v1054, 0.0
  %v1105 = vadd.f32 %v1061, 0.0
  %v1106 = vadd.f32 %v1068, 0.0
  %v1107 = vadd.f32 %v1075, 0.0
  %v1108 = vadd.f32 %v1082, 0.0
  %v1109 = vadd.f32 %v1089, 0.0
  %v1110 = vadd.f32 %v1096, 0.0
  %v1111 = vadd.f32 %v1103, 0.0
  %v1112 = vld [vmem:[%s1] ss:$4 sm:$0xff]
  %v1113 = vld [vmem:[#allocation2] sm:$0x7f]
  %v1114 = vld [vmem:[#allocation2 + $0x8] sm:$0x7f]
  %v1115 = vld [vmem:[#allocation2 + $0x10] sm:$0x7f]
  %v1116 = vld [vmem:[#allocation2 + $0x18] sm:$0x7f]
  %v1117 = vld [vmem:[#allocation2 + $0x20] sm:$0x7f]
  %v1118 = vld [vmem:[#allocation2 + $0x28] sm:$0x7f]
  %v1119 = vld [vmem:[#allocation2 + $0x30] sm:$0x7f]
  %v1120 = vld [vmem:[#allocation2 + $0x38] sm:$0x7f]
  %v1122 = vlaneseq
  %v1123 = vshrl.u32 %v1122, 7
  %v1124 = vsub.s32 0, %v1123
  %v1125 = vrot.slane %v1112, %v1124
  %v1126 = vlaneseq
  %v1127 = vshrl.u32 %v1126, 7
  %v1128 = vsub.s32 1, %v1127
  %v1129 = vrot.slane %v1112, %v1128
  %v1130 = vlaneseq
  %v1131 = vshrl.u32 %v1130, 7
  %v1132 = vsub.s32 2, %v1131
  %v1133 = vrot.slane %v1112, %v1132
  %v1134 = vlaneseq
  %v1135 = vshrl.u32 %v1134, 7
  %v1136 = vsub.s32 3, %v1135
  %v1137 = vrot.slane %v1112, %v1136
  %v1138 = vlaneseq
  %v1139 = vshrl.u32 %v1138, 7
  %v1140 = vsub.s32 4, %v1139
  %v1141 = vrot.slane %v1112, %v1140
  %v1142 = vlaneseq
  %v1143 = vshrl.u32 %v1142, 7
  %v1144 = vsub.s32 5, %v1143
  %v1145 = vrot.slane %v1112, %v1144
  %v1146 = vlaneseq
  %v1147 = vshrl.u32 %v1146, 7
  %v1148 = vsub.s32 6, %v1147
  %v1149 = vrot.slane %v1112, %v1148
  %v1150 = vlaneseq
  %v1151 = vshrl.u32 %v1150, 7
  %v1152 = vsub.s32 7, %v1151
  %v1153 = vrot.slane %v1112, %v1152
  %v1162 = vmul.f32 %v1113, %v1125
  %v1163 = vmul.f32 %v1114, %v1129
  %v1164 = vmul.f32 %v1115, %v1133
  %v1165 = vmul.f32 %v1116, %v1137
  %v1166 = vmul.f32 %v1117, %v1141
  %v1167 = vmul.f32 %v1118, %v1145
  %v1168 = vmul.f32 %v1119, %v1149
  %v1169 = vmul.f32 %v1120, %v1153
  %s1170 = scalar_lea.vmem %s1, 1
  %v1171 = vld [vmem:[%s1170] ss:$4 sm:$0xff]
  %v1172 = vld [vmem:[#allocation2] sm:$0xfe]
  %v1173 = vld [vmem:[#allocation2 + $0x8] sm:$0xfe]
  %v1174 = vld [vmem:[#allocation2 + $0x10] sm:$0xfe]
  %v1175 = vld [vmem:[#allocation2 + $0x18] sm:$0xfe]
  %v1176 = vld [vmem:[#allocation2 + $0x20] sm:$0xfe]
  %v1177 = vld [vmem:[#allocation2 + $0x28] sm:$0xfe]
  %v1178 = vld [vmem:[#allocation2 + $0x30] sm:$0xfe]
  %v1179 = vld [vmem:[#allocation2 + $0x38] sm:$0xfe]
  %v1181 = vlaneseq
  %v1182 = vshrl.u32 %v1181, 7
  %v1183 = vsub.s32 0, %v1182
  %v1184 = vrot.slane %v1171, %v1183
  %v1185 = vlaneseq
  %v1186 = vshrl.u32 %v1185, 7
  %v1187 = vsub.s32 1, %v1186
  %v1188 = vrot.slane %v1171, %v1187
  %v1189 = vlaneseq
  %v1190 = vshrl.u32 %v1189, 7
  %v1191 = vsub.s32 2, %v1190
  %v1192 = vrot.slane %v1171, %v1191
  %v1193 = vlaneseq
  %v1194 = vshrl.u32 %v1193, 7
  %v1195 = vsub.s32 3, %v1194
  %v1196 = vrot.slane %v1171, %v1195
  %v1197 = vlaneseq
  %v1198 = vshrl.u32 %v1197, 7
  %v1199 = vsub.s32 4, %v1198
  %v1200 = vrot.slane %v1171, %v1199
  %v1201 = vlaneseq
  %v1202 = vshrl.u32 %v1201, 7
  %v1203 = vsub.s32 5, %v1202
  %v1204 = vrot.slane %v1171, %v1203
  %v1205 = vlaneseq
  %v1206 = vshrl.u32 %v1205, 7
  %v1207 = vsub.s32 6, %v1206
  %v1208 = vrot.slane %v1171, %v1207
  %v1209 = vlaneseq
  %v1210 = vshrl.u32 %v1209, 7
  %v1211 = vsub.s32 7, %v1210
  %v1212 = vrot.slane %v1171, %v1211
  %v1221 = vmul.f32 %v1172, %v1184
  %v1222 = vmul.f32 %v1173, %v1188
  %v1223 = vmul.f32 %v1174, %v1192
  %v1224 = vmul.f32 %v1175, %v1196
  %v1225 = vmul.f32 %v1176, %v1200
  %v1226 = vmul.f32 %v1177, %v1204
  %v1227 = vmul.f32 %v1178, %v1208
  %v1228 = vmul.f32 %v1179, %v1212
  %v1237 = vrot.slane %v1221, 1
  %v1238 = vrot.slane %v1222, 1
  %v1239 = vrot.slane %v1223, 1
  %v1240 = vrot.slane %v1224, 1
  %v1241 = vrot.slane %v1225, 1
  %v1242 = vrot.slane %v1226, 1
  %v1243 = vrot.slane %v1227, 1
  %v1244 = vrot.slane %v1228, 1
  %v1253 = vadd.f32 %v1162, %v1237
  %v1254 = vadd.f32 %v1163, %v1238
  %v1255 = vadd.f32 %v1164, %v1239
  %v1256 = vadd.f32 %v1165, %v1240
  %v1257 = vadd.f32 %v1166, %v1241
  %v1258 = vadd.f32 %v1167, %v1242
  %v1259 = vadd.f32 %v1168, %v1243
  %v1260 = vadd.f32 %v1169, %v1244
  %s1261 = scalar_lea.vmem %s1, 2
  %v1262 = vld [vmem:[%s1261] ss:$4 sm:$0xff]
  %v1263 = vld [vmem:[#allocation2] sm:$0xfc]
  %v1264 = vld [vmem:[#allocation2 + $0x8] sm:$0xfc]
  %v1265 = vld [vmem:[#allocation2 + $0x10] sm:$0xfc]
  %v1266 = vld [vmem:[#allocation2 + $0x18] sm:$0xfc]
  %v1267 = vld [vmem:[#allocation2 + $0x20] sm:$0xfc]
  %v1268 = vld [vmem:[#allocation2 + $0x28] sm:$0xfc]
  %v1269 = vld [vmem:[#allocation2 + $0x30] sm:$0xfc]
  %v1270 = vld [vmem:[#allocation2 + $0x38] sm:$0xfc]
  %v1271 = vld [vmem:[#allocation2 + $0x40] sm:$0x1]
  %v1272 = vld [vmem:[#allocation2 + $0x48] sm:$0x1]
  %v1273 = vld [vmem:[#allocation2 + $0x50] sm:$0x1]
  %v1274 = vld [vmem:[#allocation2 + $0x58] sm:$0x1]
  %v1275 = vld [vmem:[#allocation2 + $0x60] sm:$0x1]
  %v1276 = vld [vmem:[#allocation2 + $0x68] sm:$0x1]
  %v1277 = vld [vmem:[#allocation2 + $0x70] sm:$0x1]
  %v1278 = vld [vmem:[#allocation2 + $0x78] sm:$0x1]
  %v1280 = vlaneseq
  %v1281 = vshrl.u32 %v1280, 7
  %v1282 = vsub.s32 0, %v1281
  %v1283 = vrot.slane %v1262, %v1282
  %v1284 = vlaneseq
  %v1285 = vshrl.u32 %v1284, 7
  %v1286 = vsub.s32 1, %v1285
  %v1287 = vrot.slane %v1262, %v1286
  %v1288 = vlaneseq
  %v1289 = vshrl.u32 %v1288, 7
  %v1290 = vsub.s32 2, %v1289
  %v1291 = vrot.slane %v1262, %v1290
  %v1292 = vlaneseq
  %v1293 = vshrl.u32 %v1292, 7
  %v1294 = vsub.s32 3, %v1293
  %v1295 = vrot.slane %v1262, %v1294
  %v1296 = vlaneseq
  %v1297 = vshrl.u32 %v1296, 7
  %v1298 = vsub.s32 4, %v1297
  %v1299 = vrot.slane %v1262, %v1298
  %v1300 = vlaneseq
  %v1301 = vshrl.u32 %v1300, 7
  %v1302 = vsub.s32 5, %v1301
  %v1303 = vrot.slane %v1262, %v1302
  %v1304 = vlaneseq
  %v1305 = vshrl.u32 %v1304, 7
  %v1306 = vsub.s32 6, %v1305
  %v1307 = vrot.slane %v1262, %v1306
  %v1308 = vlaneseq
  %v1309 = vshrl.u32 %v1308, 7
  %v1310 = vsub.s32 7, %v1309
  %v1311 = vrot.slane %v1262, %v1310
  %v1320 = vmul.f32 %v1263, %v1283
  %v1321 = vmul.f32 %v1264, %v1287
  %v1322 = vmul.f32 %v1265, %v1291
  %v1323 = vmul.f32 %v1266, %v1295
  %v1324 = vmul.f32 %v1267, %v1299
  %v1325 = vmul.f32 %v1268, %v1303
  %v1326 = vmul.f32 %v1269, %v1307
  %v1327 = vmul.f32 %v1270, %v1311
  %v1328 = vmul.f32 %v1271, %v1283
  %v1329 = vmul.f32 %v1272, %v1287
  %v1330 = vmul.f32 %v1273, %v1291
  %v1331 = vmul.f32 %v1274, %v1295
  %v1332 = vmul.f32 %v1275, %v1299
  %v1333 = vmul.f32 %v1276, %v1303
  %v1334 = vmul.f32 %v1277, %v1307
  %v1335 = vmul.f32 %v1278, %v1311
  %v1352 = vrot.slane %v1320, 2
  %v1353 = vrot.slane %v1328, 2
  %v1354 = vsel %vm708, %v1352, %v1353
  %v1355 = vrot.slane %v1321, 2
  %v1356 = vrot.slane %v1329, 2
  %v1357 = vsel %vm708, %v1355, %v1356
  %v1358 = vrot.slane %v1322, 2
  %v1359 = vrot.slane %v1330, 2
  %v1360 = vsel %vm708, %v1358, %v1359
  %v1361 = vrot.slane %v1323, 2
  %v1362 = vrot.slane %v1331, 2
  %v1363 = vsel %vm708, %v1361, %v1362
  %v1364 = vrot.slane %v1324, 2
  %v1365 = vrot.slane %v1332, 2
  %v1366 = vsel %vm708, %v1364, %v1365
  %v1367 = vrot.slane %v1325, 2
  %v1368 = vrot.slane %v1333, 2
  %v1369 = vsel %vm708, %v1367, %v1368
  %v1370 = vrot.slane %v1326, 2
  %v1371 = vrot.slane %v1334, 2
  %v1372 = vsel %vm708, %v1370, %v1371
  %v1373 = vrot.slane %v1327, 2
  %v1374 = vrot.slane %v1335, 2
  %v1375 = vsel %vm708, %v1373, %v1374
  %v1384 = vadd.f32 %v1253, %v1354
  %v1385 = vadd.f32 %v1254, %v1357
  %v1386 = vadd.f32 %v1255, %v1360
  %v1387 = vadd.f32 %v1256, %v1363
  %v1388 = vadd.f32 %v1257, %v1366
  %v1389 = vadd.f32 %v1258, %v1369
  %v1390 = vadd.f32 %v1259, %v1372
  %v1391 = vadd.f32 %v1260, %v1375
  %v1392 = vld [vmem:[%s467] ss:$4 sm:$0xff]
  %v1393 = vld [vmem:[%s168] sm:$0x7f]
  %v1394 = vld [vmem:[%s168 + $0x8] sm:$0x7f]
  %v1395 = vld [vmem:[%s168 + $0x10] sm:$0x7f]
  %v1396 = vld [vmem:[%s168 + $0x18] sm:$0x7f]
  %v1397 = vld [vmem:[%s168 + $0x20] sm:$0x7f]
  %v1398 = vld [vmem:[%s168 + $0x28] sm:$0x7f]
  %v1399 = vld [vmem:[%s168 + $0x30] sm:$0x7f]
  %v1400 = vld [vmem:[%s168 + $0x38] sm:$0x7f]
  %v1402 = vlaneseq
  %v1403 = vshrl.u32 %v1402, 7
  %v1404 = vsub.s32 0, %v1403
  %v1405 = vrot.slane %v1392, %v1404
  %v1406 = vlaneseq
  %v1407 = vshrl.u32 %v1406, 7
  %v1408 = vsub.s32 1, %v1407
  %v1409 = vrot.slane %v1392, %v1408
  %v1410 = vlaneseq
  %v1411 = vshrl.u32 %v1410, 7
  %v1412 = vsub.s32 2, %v1411
  %v1413 = vrot.slane %v1392, %v1412
  %v1414 = vlaneseq
  %v1415 = vshrl.u32 %v1414, 7
  %v1416 = vsub.s32 3, %v1415
  %v1417 = vrot.slane %v1392, %v1416
  %v1418 = vlaneseq
  %v1419 = vshrl.u32 %v1418, 7
  %v1420 = vsub.s32 4, %v1419
  %v1421 = vrot.slane %v1392, %v1420
  %v1422 = vlaneseq
  %v1423 = vshrl.u32 %v1422, 7
  %v1424 = vsub.s32 5, %v1423
  %v1425 = vrot.slane %v1392, %v1424
  %v1426 = vlaneseq
  %v1427 = vshrl.u32 %v1426, 7
  %v1428 = vsub.s32 6, %v1427
  %v1429 = vrot.slane %v1392, %v1428
  %v1430 = vlaneseq
  %v1431 = vshrl.u32 %v1430, 7
  %v1432 = vsub.s32 7, %v1431
  %v1433 = vrot.slane %v1392, %v1432
  %v1442 = vmul.f32 %v1393, %v1405
  %v1443 = vmul.f32 %v1394, %v1409
  %v1444 = vmul.f32 %v1395, %v1413
  %v1445 = vmul.f32 %v1396, %v1417
  %v1446 = vmul.f32 %v1397, %v1421
  %v1447 = vmul.f32 %v1398, %v1425
  %v1448 = vmul.f32 %v1399, %v1429
  %v1449 = vmul.f32 %v1400, %v1433
  %v1450 = vadd.f32 %v1384, %v1442
  %v1451 = vadd.f32 %v1385, %v1443
  %v1452 = vadd.f32 %v1386, %v1444
  %v1453 = vadd.f32 %v1387, %v1445
  %v1454 = vadd.f32 %v1388, %v1446
  %v1455 = vadd.f32 %v1389, %v1447
  %v1456 = vadd.f32 %v1390, %v1448
  %v1457 = vadd.f32 %v1391, %v1449
  %v1458 = vld [vmem:[%s526] ss:$4 sm:$0xff]
  %v1459 = vld [vmem:[%s168] sm:$0xfe]
  %v1460 = vld [vmem:[%s168 + $0x8] sm:$0xfe]
  %v1461 = vld [vmem:[%s168 + $0x10] sm:$0xfe]
  %v1462 = vld [vmem:[%s168 + $0x18] sm:$0xfe]
  %v1463 = vld [vmem:[%s168 + $0x20] sm:$0xfe]
  %v1464 = vld [vmem:[%s168 + $0x28] sm:$0xfe]
  %v1465 = vld [vmem:[%s168 + $0x30] sm:$0xfe]
  %v1466 = vld [vmem:[%s168 + $0x38] sm:$0xfe]
  %v1468 = vlaneseq
  %v1469 = vshrl.u32 %v1468, 7
  %v1470 = vsub.s32 0, %v1469
  %v1471 = vrot.slane %v1458, %v1470
  %v1472 = vlaneseq
  %v1473 = vshrl.u32 %v1472, 7
  %v1474 = vsub.s32 1, %v1473
  %v1475 = vrot.slane %v1458, %v1474
  %v1476 = vlaneseq
  %v1477 = vshrl.u32 %v1476, 7
  %v1478 = vsub.s32 2, %v1477
  %v1479 = vrot.slane %v1458, %v1478
  %v1480 = vlaneseq
  %v1481 = vshrl.u32 %v1480, 7
  %v1482 = vsub.s32 3, %v1481
  %v1483 = vrot.slane %v1458, %v1482
  %v1484 = vlaneseq
  %v1485 = vshrl.u32 %v1484, 7
  %v1486 = vsub.s32 4, %v1485
  %v1487 = vrot.slane %v1458, %v1486
  %v1488 = vlaneseq
  %v1489 = vshrl.u32 %v1488, 7
  %v1490 = vsub.s32 5, %v1489
  %v1491 = vrot.slane %v1458, %v1490
  %v1492 = vlaneseq
  %v1493 = vshrl.u32 %v1492, 7
  %v1494 = vsub.s32 6, %v1493
  %v1495 = vrot.slane %v1458, %v1494
  %v1496 = vlaneseq
  %v1497 = vshrl.u32 %v1496, 7
  %v1498 = vsub.s32 7, %v1497
  %v1499 = vrot.slane %v1458, %v1498
  %v1508 = vmul.f32 %v1459, %v1471
  %v1509 = vmul.f32 %v1460, %v1475
  %v1510 = vmul.f32 %v1461, %v1479
  %v1511 = vmul.f32 %v1462, %v1483
  %v1512 = vmul.f32 %v1463, %v1487
  %v1513 = vmul.f32 %v1464, %v1491
  %v1514 = vmul.f32 %v1465, %v1495
  %v1515 = vmul.f32 %v1466, %v1499
  %v1524 = vrot.slane %v1508, 1
  %v1525 = vrot.slane %v1509, 1
  %v1526 = vrot.slane %v1510, 1
  %v1527 = vrot.slane %v1511, 1
  %v1528 = vrot.slane %v1512, 1
  %v1529 = vrot.slane %v1513, 1
  %v1530 = vrot.slane %v1514, 1
  %v1531 = vrot.slane %v1515, 1
  %v1540 = vadd.f32 %v1450, %v1524
  %v1541 = vadd.f32 %v1451, %v1525
  %v1542 = vadd.f32 %v1452, %v1526
  %v1543 = vadd.f32 %v1453, %v1527
  %v1544 = vadd.f32 %v1454, %v1528
  %v1545 = vadd.f32 %v1455, %v1529
  %v1546 = vadd.f32 %v1456, %v1530
  %v1547 = vadd.f32 %v1457, %v1531
  %v1548 = vld [vmem:[%s617] ss:$4 sm:$0xff]
  %v1549 = vld [vmem:[%s168] sm:$0xfc]
  %v1550 = vld [vmem:[%s168 + $0x8] sm:$0xfc]
  %v1551 = vld [vmem:[%s168 + $0x10] sm:$0xfc]
  %v1552 = vld [vmem:[%s168 + $0x18] sm:$0xfc]
  %v1553 = vld [vmem:[%s168 + $0x20] sm:$0xfc]
  %v1554 = vld [vmem:[%s168 + $0x28] sm:$0xfc]
  %v1555 = vld [vmem:[%s168 + $0x30] sm:$0xfc]
  %v1556 = vld [vmem:[%s168 + $0x38] sm:$0xfc]
  %v1557 = vld [vmem:[%s168 + $0x40] sm:$0x1]
  %v1558 = vld [vmem:[%s168 + $0x48] sm:$0x1]
  %v1559 = vld [vmem:[%s168 + $0x50] sm:$0x1]
  %v1560 = vld [vmem:[%s168 + $0x58] sm:$0x1]
  %v1561 = vld [vmem:[%s168 + $0x60] sm:$0x1]
  %v1562 = vld [vmem:[%s168 + $0x68] sm:$0x1]
  %v1563 = vld [vmem:[%s168 + $0x70] sm:$0x1]
  %v1564 = vld [vmem:[%s168 + $0x78] sm:$0x1]
  %v1566 = vlaneseq
  %v1567 = vshrl.u32 %v1566, 7
  %v1568 = vsub.s32 0, %v1567
  %v1569 = vrot.slane %v1548, %v1568
  %v1570 = vlaneseq
  %v1571 = vshrl.u32 %v1570, 7
  %v1572 = vsub.s32 1, %v1571
  %v1573 = vrot.slane %v1548, %v1572
  %v1574 = vlaneseq
  %v1575 = vshrl.u32 %v1574, 7
  %v1576 = vsub.s32 2, %v1575
  %v1577 = vrot.slane %v1548, %v1576
  %v1578 = vlaneseq
  %v1579 = vshrl.u32 %v1578, 7
  %v1580 = vsub.s32 3, %v1579
  %v1581 = vrot.slane %v1548, %v1580
  %v1582 = vlaneseq
  %v1583 = vshrl.u32 %v1582, 7
  %v1584 = vsub.s32 4, %v1583
  %v1585 = vrot.slane %v1548, %v1584
  %v1586 = vlaneseq
  %v1587 = vshrl.u32 %v1586, 7
  %v1588 = vsub.s32 5, %v1587
  %v1589 = vrot.slane %v1548, %v1588
  %v1590 = vlaneseq
  %v1591 = vshrl.u32 %v1590, 7
  %v1592 = vsub.s32 6, %v1591
  %v1593 = vrot.slane %v1548, %v1592
  %v1594 = vlaneseq
  %v1595 = vshrl.u32 %v1594, 7
  %v1596 = vsub.s32 7, %v1595
  %v1597 = vrot.slane %v1548, %v1596
  %v1606 = vmul.f32 %v1549, %v1569
  %v1607 = vmul.f32 %v1550, %v1573
  %v1608 = vmul.f32 %v1551, %v1577
  %v1609 = vmul.f32 %v1552, %v1581
  %v1610 = vmul.f32 %v1553, %v1585
  %v1611 = vmul.f32 %v1554, %v1589
  %v1612 = vmul.f32 %v1555, %v1593
  %v1613 = vmul.f32 %v1556, %v1597
  %v1614 = vmul.f32 %v1557, %v1569
  %v1615 = vmul.f32 %v1558, %v1573
  %v1616 = vmul.f32 %v1559, %v1577
  %v1617 = vmul.f32 %v1560, %v1581
  %v1618 = vmul.f32 %v1561, %v1585
  %v1619 = vmul.f32 %v1562, %v1589
  %v1620 = vmul.f32 %v1563, %v1593
  %v1621 = vmul.f32 %v1564, %v1597
  %v1638 = vrot.slane %v1606, 2
  %v1639 = vrot.slane %v1614, 2
  %v1640 = vsel %vm708, %v1638, %v1639
  %v1641 = vrot.slane %v1607, 2
  %v1642 = vrot.slane %v1615, 2
  %v1643 = vsel %vm708, %v1641, %v1642
  %v1644 = vrot.slane %v1608, 2
  %v1645 = vrot.slane %v1616, 2
  %v1646 = vsel %vm708, %v1644, %v1645
  %v1647 = vrot.slane %v1609, 2
  %v1648 = vrot.slane %v1617, 2
  %v1649 = vsel %vm708, %v1647, %v1648
  %v1650 = vrot.slane %v1610, 2
  %v1651 = vrot.slane %v1618, 2
  %v1652 = vsel %vm708, %v1650, %v1651
  %v1653 = vrot.slane %v1611, 2
  %v1654 = vrot.slane %v1619, 2
  %v1655 = vsel %vm708, %v1653, %v1654
  %v1656 = vrot.slane %v1612, 2
  %v1657 = vrot.slane %v1620, 2
  %v1658 = vsel %vm708, %v1656, %v1657
  %v1659 = vrot.slane %v1613, 2
  %v1660 = vrot.slane %v1621, 2
  %v1661 = vsel %vm708, %v1659, %v1660
  %v1670 = vadd.f32 %v1540, %v1640
  %v1671 = vadd.f32 %v1541, %v1643
  %v1672 = vadd.f32 %v1542, %v1646
  %v1673 = vadd.f32 %v1543, %v1649
  %v1674 = vadd.f32 %v1544, %v1652
  %v1675 = vadd.f32 %v1545, %v1655
  %v1676 = vadd.f32 %v1546, %v1658
  %v1677 = vadd.f32 %v1547, %v1661
  %v1678 = vld [vmem:[%s749] ss:$4 sm:$0xff]
  %v1679 = vld [vmem:[%s226] sm:$0x7f]
  %v1680 = vld [vmem:[%s226 + $0x8] sm:$0x7f]
  %v1681 = vld [vmem:[%s226 + $0x10] sm:$0x7f]
  %v1682 = vld [vmem:[%s226 + $0x18] sm:$0x7f]
  %v1683 = vld [vmem:[%s226 + $0x20] sm:$0x7f]
  %v1684 = vld [vmem:[%s226 + $0x28] sm:$0x7f]
  %v1685 = vld [vmem:[%s226 + $0x30] sm:$0x7f]
  %v1686 = vld [vmem:[%s226 + $0x38] sm:$0x7f]
  %v1688 = vlaneseq
  %v1689 = vshrl.u32 %v1688, 7
  %v1690 = vsub.s32 0, %v1689
  %v1691 = vrot.slane %v1678, %v1690
  %v1692 = vlaneseq
  %v1693 = vshrl.u32 %v1692, 7
  %v1694 = vsub.s32 1, %v1693
  %v1695 = vrot.slane %v1678, %v1694
  %v1696 = vlaneseq
  %v1697 = vshrl.u32 %v1696, 7
  %v1698 = vsub.s32 2, %v1697
  %v1699 = vrot.slane %v1678, %v1698
  %v1700 = vlaneseq
  %v1701 = vshrl.u32 %v1700, 7
  %v1702 = vsub.s32 3, %v1701
  %v1703 = vrot.slane %v1678, %v1702
  %v1704 = vlaneseq
  %v1705 = vshrl.u32 %v1704, 7
  %v1706 = vsub.s32 4, %v1705
  %v1707 = vrot.slane %v1678, %v1706
  %v1708 = vlaneseq
  %v1709 = vshrl.u32 %v1708, 7
  %v1710 = vsub.s32 5, %v1709
  %v1711 = vrot.slane %v1678, %v1710
  %v1712 = vlaneseq
  %v1713 = vshrl.u32 %v1712, 7
  %v1714 = vsub.s32 6, %v1713
  %v1715 = vrot.slane %v1678, %v1714
  %v1716 = vlaneseq
  %v1717 = vshrl.u32 %v1716, 7
  %v1718 = vsub.s32 7, %v1717
  %v1719 = vrot.slane %v1678, %v1718
  %v1728 = vmul.f32 %v1679, %v1691
  %v1729 = vmul.f32 %v1680, %v1695
  %v1730 = vmul.f32 %v1681, %v1699
  %v1731 = vmul.f32 %v1682, %v1703
  %v1732 = vmul.f32 %v1683, %v1707
  %v1733 = vmul.f32 %v1684, %v1711
  %v1734 = vmul.f32 %v1685, %v1715
  %v1735 = vmul.f32 %v1686, %v1719
  %v1736 = vadd.f32 %v1670, %v1728
  %v1737 = vadd.f32 %v1671, %v1729
  %v1738 = vadd.f32 %v1672, %v1730
  %v1739 = vadd.f32 %v1673, %v1731
  %v1740 = vadd.f32 %v1674, %v1732
  %v1741 = vadd.f32 %v1675, %v1733
  %v1742 = vadd.f32 %v1676, %v1734
  %v1743 = vadd.f32 %v1677, %v1735
  %v1744 = vld [vmem:[%s816] ss:$4 sm:$0xff]
  %v1745 = vld [vmem:[%s226] sm:$0xfe]
  %v1746 = vld [vmem:[%s226 + $0x8] sm:$0xfe]
  %v1747 = vld [vmem:[%s226 + $0x10] sm:$0xfe]
  %v1748 = vld [vmem:[%s226 + $0x18] sm:$0xfe]
  %v1749 = vld [vmem:[%s226 + $0x20] sm:$0xfe]
  %v1750 = vld [vmem:[%s226 + $0x28] sm:$0xfe]
  %v1751 = vld [vmem:[%s226 + $0x30] sm:$0xfe]
  %v1752 = vld [vmem:[%s226 + $0x38] sm:$0xfe]
  %v1754 = vlaneseq
  %v1755 = vshrl.u32 %v1754, 7
  %v1756 = vsub.s32 0, %v1755
  %v1757 = vrot.slane %v1744, %v1756
  %v1758 = vlaneseq
  %v1759 = vshrl.u32 %v1758, 7
  %v1760 = vsub.s32 1, %v1759
  %v1761 = vrot.slane %v1744, %v1760
  %v1762 = vlaneseq
  %v1763 = vshrl.u32 %v1762, 7
  %v1764 = vsub.s32 2, %v1763
  %v1765 = vrot.slane %v1744, %v1764
  %v1766 = vlaneseq
  %v1767 = vshrl.u32 %v1766, 7
  %v1768 = vsub.s32 3, %v1767
  %v1769 = vrot.slane %v1744, %v1768
  %v1770 = vlaneseq
  %v1771 = vshrl.u32 %v1770, 7
  %v1772 = vsub.s32 4, %v1771
  %v1773 = vrot.slane %v1744, %v1772
  %v1774 = vlaneseq
  %v1775 = vshrl.u32 %v1774, 7
  %v1776 = vsub.s32 5, %v1775
  %v1777 = vrot.slane %v1744, %v1776
  %v1778 = vlaneseq
  %v1779 = vshrl.u32 %v1778, 7
  %v1780 = vsub.s32 6, %v1779
  %v1781 = vrot.slane %v1744, %v1780
  %v1782 = vlaneseq
  %v1783 = vshrl.u32 %v1782, 7
  %v1784 = vsub.s32 7, %v1783
  %v1785 = vrot.slane %v1744, %v1784
  %v1794 = vmul.f32 %v1745, %v1757
  %v1795 = vmul.f32 %v1746, %v1761
  %v1796 = vmul.f32 %v1747, %v1765
  %v1797 = vmul.f32 %v1748, %v1769
  %v1798 = vmul.f32 %v1749, %v1773
  %v1799 = vmul.f32 %v1750, %v1777
  %v1800 = vmul.f32 %v1751, %v1781
  %v1801 = vmul.f32 %v1752, %v1785
  %v1810 = vrot.slane %v1794, 1
  %v1811 = vrot.slane %v1795, 1
  %v1812 = vrot.slane %v1796, 1
  %v1813 = vrot.slane %v1797, 1
  %v1814 = vrot.slane %v1798, 1
  %v1815 = vrot.slane %v1799, 1
  %v1816 = vrot.slane %v1800, 1
  %v1817 = vrot.slane %v1801, 1
  %v1826 = vadd.f32 %v1736, %v1810
  %v1827 = vadd.f32 %v1737, %v1811
  %v1828 = vadd.f32 %v1738, %v1812
  %v1829 = vadd.f32 %v1739, %v1813
  %v1830 = vadd.f32 %v1740, %v1814
  %v1831 = vadd.f32 %v1741, %v1815
  %v1832 = vadd.f32 %v1742, %v1816
  %v1833 = vadd.f32 %v1743, %v1817
  %v1834 = vld [vmem:[%s907] ss:$4 sm:$0xff]
  %v1835 = vld [vmem:[%s226] sm:$0xfc]
  %v1836 = vld [vmem:[%s226 + $0x8] sm:$0xfc]
  %v1837 = vld [vmem:[%s226 + $0x10] sm:$0xfc]
  %v1838 = vld [vmem:[%s226 + $0x18] sm:$0xfc]
  %v1839 = vld [vmem:[%s226 + $0x20] sm:$0xfc]
  %v1840 = vld [vmem:[%s226 + $0x28] sm:$0xfc]
  %v1841 = vld [vmem:[%s226 + $0x30] sm:$0xfc]
  %v1842 = vld [vmem:[%s226 + $0x38] sm:$0xfc]
  %v1843 = vld [vmem:[%s226 + $0x40] sm:$0x1]
  %v1844 = vld [vmem:[%s226 + $0x48] sm:$0x1]
  %v1845 = vld [vmem:[%s226 + $0x50] sm:$0x1]
  %v1846 = vld [vmem:[%s226 + $0x58] sm:$0x1]
  %v1847 = vld [vmem:[%s226 + $0x60] sm:$0x1]
  %v1848 = vld [vmem:[%s226 + $0x68] sm:$0x1]
  %v1849 = vld [vmem:[%s226 + $0x70] sm:$0x1]
  %v1850 = vld [vmem:[%s226 + $0x78] sm:$0x1]
  %v1852 = vlaneseq
  %v1853 = vshrl.u32 %v1852, 7
  %v1854 = vsub.s32 0, %v1853
  %v1855 = vrot.slane %v1834, %v1854
  %v1856 = vlaneseq
  %v1857 = vshrl.u32 %v1856, 7
  %v1858 = vsub.s32 1, %v1857
  %v1859 = vrot.slane %v1834, %v1858
  %v1860 = vlaneseq
  %v1861 = vshrl.u32 %v1860, 7
  %v1862 = vsub.s32 2, %v1861
  %v1863 = vrot.slane %v1834, %v1862
  %v1864 = vlaneseq
  %v1865 = vshrl.u32 %v1864, 7
  %v1866 = vsub.s32 3, %v1865
  %v1867 = vrot.slane %v1834, %v1866
  %v1868 = vlaneseq
  %v1869 = vshrl.u32 %v1868, 7
  %v1870 = vsub.s32 4, %v1869
  %v1871 = vrot.slane %v1834, %v1870
  %v1872 = vlaneseq
  %v1873 = vshrl.u32 %v1872, 7
  %v1874 = vsub.s32 5, %v1873
  %v1875 = vrot.slane %v1834, %v1874
  %v1876 = vlaneseq
  %v1877 = vshrl.u32 %v1876, 7
  %v1878 = vsub.s32 6, %v1877
  %v1879 = vrot.slane %v1834, %v1878
  %v1880 = vlaneseq
  %v1881 = vshrl.u32 %v1880, 7
  %v1882 = vsub.s32 7, %v1881
  %v1883 = vrot.slane %v1834, %v1882
  %v1892 = vmul.f32 %v1835, %v1855
  %v1893 = vmul.f32 %v1836, %v1859
  %v1894 = vmul.f32 %v1837, %v1863
  %v1895 = vmul.f32 %v1838, %v1867
  %v1896 = vmul.f32 %v1839, %v1871
  %v1897 = vmul.f32 %v1840, %v1875
  %v1898 = vmul.f32 %v1841, %v1879
  %v1899 = vmul.f32 %v1842, %v1883
  %v1900 = vmul.f32 %v1843, %v1855
  %v1901 = vmul.f32 %v1844, %v1859
  %v1902 = vmul.f32 %v1845, %v1863
  %v1903 = vmul.f32 %v1846, %v1867
  %v1904 = vmul.f32 %v1847, %v1871
  %v1905 = vmul.f32 %v1848, %v1875
  %v1906 = vmul.f32 %v1849, %v1879
  %v1907 = vmul.f32 %v1850, %v1883
  %v1924 = vrot.slane %v1892, 2
  %v1925 = vrot.slane %v1900, 2
  %v1926 = vsel %vm708, %v1924, %v1925
  %v1927 = vrot.slane %v1893, 2
  %v1928 = vrot.slane %v1901, 2
  %v1929 = vsel %vm708, %v1927, %v1928
  %v1930 = vrot.slane %v1894, 2
  %v1931 = vrot.slane %v1902, 2
  %v1932 = vsel %vm708, %v1930, %v1931
  %v1933 = vrot.slane %v1895, 2
  %v1934 = vrot.slane %v1903, 2
  %v1935 = vsel %vm708, %v1933, %v1934
  %v1936 = vrot.slane %v1896, 2
  %v1937 = vrot.slane %v1904, 2
  %v1938 = vsel %vm708, %v1936, %v1937
  %v1939 = vrot.slane %v1897, 2
  %v1940 = vrot.slane %v1905, 2
  %v1941 = vsel %vm708, %v1939, %v1940
  %v1942 = vrot.slane %v1898, 2
  %v1943 = vrot.slane %v1906, 2
  %v1944 = vsel %vm708, %v1942, %v1943
  %v1945 = vrot.slane %v1899, 2
  %v1946 = vrot.slane %v1907, 2
  %v1947 = vsel %vm708, %v1945, %v1946
  %v1956 = vadd.f32 %v1826, %v1926
  %v1957 = vadd.f32 %v1827, %v1929
  %v1958 = vadd.f32 %v1828, %v1932
  %v1959 = vadd.f32 %v1829, %v1935
  %v1960 = vadd.f32 %v1830, %v1938
  %v1961 = vadd.f32 %v1831, %v1941
  %v1962 = vadd.f32 %v1832, %v1944
  %v1963 = vadd.f32 %v1833, %v1947
  %s1964 = scalar_lea.vmem %s4, 64
  %1965 = vst [vmem:[%s1964] sm:$0x7f] %v1956
  %1966 = vst [vmem:[%s1964 + $0x8] sm:$0x7f] %v1957
  %1967 = vst [vmem:[%s1964 + $0x10] sm:$0x7f] %v1958
  %1968 = vst [vmem:[%s1964 + $0x18] sm:$0x7f] %v1959
  %1969 = vst [vmem:[%s1964 + $0x20] sm:$0x7f] %v1960
  %1970 = vst [vmem:[%s1964 + $0x28] sm:$0x7f] %v1961
  %1971 = vst [vmem:[%s1964 + $0x30] sm:$0x7f] %v1962
  %1972 = vst.msk [vmem:[%s1964 + $0x38] sm:$0x7f] %vm1045, %v1963
  %v1973 = vsel %vm1047, %v1956, 0.0
  %v1974 = vrot.slane %v1973, 4
  %v1975 = vadd.f32 %v1973, %v1974
  %v1976 = vrot.slane %v1975, 2
  %v1977 = vadd.f32 %v1975, %v1976
  %v1978 = vrot.slane %v1977, 1
  %v1979 = vadd.f32 %v1977, %v1978
  %v1980 = vsel %vm1047, %v1957, 0.0
  %v1981 = vrot.slane %v1980, 4
  %v1982 = vadd.f32 %v1980, %v1981
  %v1983 = vrot.slane %v1982, 2
  %v1984 = vadd.f32 %v1982, %v1983
  %v1985 = vrot.slane %v1984, 1
  %v1986 = vadd.f32 %v1984, %v1985
  %v1987 = vsel %vm1047, %v1958, 0.0
  %v1988 = vrot.slane %v1987, 4
  %v1989 = vadd.f32 %v1987, %v1988
  %v1990 = vrot.slane %v1989, 2
  %v1991 = vadd.f32 %v1989, %v1990
  %v1992 = vrot.slane %v1991, 1
  %v1993 = vadd.f32 %v1991, %v1992
  %v1994 = vsel %vm1047, %v1959, 0.0
  %v1995 = vrot.slane %v1994, 4
  %v1996 = vadd.f32 %v1994, %v1995
  %v1997 = vrot.slane %v1996, 2
  %v1998 = vadd.f32 %v1996, %v1997
  %v1999 = vrot.slane %v1998, 1
  %v2000 = vadd.f32 %v1998, %v1999
  %v2001 = vsel %vm1047, %v1960, 0.0
  %v2002 = vrot.slane %v2001, 4
  %v2003 = vadd.f32 %v2001, %v2002
  %v2004 = vrot.slane %v2003, 2
  %v2005 = vadd.f32 %v2003, %v2004
  %v2006 = vrot.slane %v2005, 1
  %v2007 = vadd.f32 %v2005, %v2006
  %v2008 = vsel %vm1047, %v1961, 0.0
  %v2009 = vrot.slane %v2008, 4
  %v2010 = vadd.f32 %v2008, %v2009
  %v2011 = vrot.slane %v2010, 2
  %v2012 = vadd.f32 %v2010, %v2011
  %v2013 = vrot.slane %v2012, 1
  %v2014 = vadd.f32 %v2012, %v2013
  %v2015 = vsel %vm1047, %v1962, 0.0
  %v2016 = vrot.slane %v2015, 4
  %v2017 = vadd.f32 %v2015, %v2016
  %v2018 = vrot.slane %v2017, 2
  %v2019 = vadd.f32 %v2017, %v2018
  %v2020 = vrot.slane %v2019, 1
  %v2021 = vadd.f32 %v2019, %v2020
  %v2022 = vsel %vm1045, %v1963, 0.0
  %v2023 = vrot.slane %v2022, 4
  %v2024 = vadd.f32 %v2022, %v2023
  %v2025 = vrot.slane %v2024, 2
  %v2026 = vadd.f32 %v2024, %v2025
  %v2027 = vrot.slane %v2026, 1
  %v2028 = vadd.f32 %v2026, %v2027
  %v2029 = vadd.f32 %v1104, %v1979
  %v2030 = vadd.f32 %v1105, %v1986
  %v2031 = vadd.f32 %v1106, %v1993
  %v2032 = vadd.f32 %v1107, %v2000
  %v2033 = vadd.f32 %v1108, %v2007
  %v2034 = vadd.f32 %v1109, %v2014
  %v2035 = vadd.f32 %v1110, %v2021
  %v2036 = vadd.f32 %v1111, %v2028
  %v2037 = vld [vmem:[%s1] ss:$4 sm:$0xff]
  %v2038 = vld [vmem:[%s168] sm:$0x7f]
  %v2039 = vld [vmem:[%s168 + $0x8] sm:$0x7f]
  %v2040 = vld [vmem:[%s168 + $0x10] sm:$0x7f]
  %v2041 = vld [vmem:[%s168 + $0x18] sm:$0x7f]
  %v2042 = vld [vmem:[%s168 + $0x20] sm:$0x7f]
  %v2043 = vld [vmem:[%s168 + $0x28] sm:$0x7f]
  %v2044 = vld [vmem:[%s168 + $0x30] sm:$0x7f]
  %v2045 = vld [vmem:[%s168 + $0x38] sm:$0x7f]
  %v2047 = vlaneseq
  %v2048 = vshrl.u32 %v2047, 7
  %v2049 = vsub.s32 0, %v2048
  %v2050 = vrot.slane %v2037, %v2049
  %v2051 = vlaneseq
  %v2052 = vshrl.u32 %v2051, 7
  %v2053 = vsub.s32 1, %v2052
  %v2054 = vrot.slane %v2037, %v2053
  %v2055 = vlaneseq
  %v2056 = vshrl.u32 %v2055, 7
  %v2057 = vsub.s32 2, %v2056
  %v2058 = vrot.slane %v2037, %v2057
  %v2059 = vlaneseq
  %v2060 = vshrl.u32 %v2059, 7
  %v2061 = vsub.s32 3, %v2060
  %v2062 = vrot.slane %v2037, %v2061
  %v2063 = vlaneseq
  %v2064 = vshrl.u32 %v2063, 7
  %v2065 = vsub.s32 4, %v2064
  %v2066 = vrot.slane %v2037, %v2065
  %v2067 = vlaneseq
  %v2068 = vshrl.u32 %v2067, 7
  %v2069 = vsub.s32 5, %v2068
  %v2070 = vrot.slane %v2037, %v2069
  %v2071 = vlaneseq
  %v2072 = vshrl.u32 %v2071, 7
  %v2073 = vsub.s32 6, %v2072
  %v2074 = vrot.slane %v2037, %v2073
  %v2075 = vlaneseq
  %v2076 = vshrl.u32 %v2075, 7
  %v2077 = vsub.s32 7, %v2076
  %v2078 = vrot.slane %v2037, %v2077
  %v2087 = vmul.f32 %v2038, %v2050
  %v2088 = vmul.f32 %v2039, %v2054
  %v2089 = vmul.f32 %v2040, %v2058
  %v2090 = vmul.f32 %v2041, %v2062
  %v2091 = vmul.f32 %v2042, %v2066
  %v2092 = vmul.f32 %v2043, %v2070
  %v2093 = vmul.f32 %v2044, %v2074
  %v2094 = vmul.f32 %v2045, %v2078
  %v2095 = vld [vmem:[%s1170] ss:$4 sm:$0xff]
  %v2096 = vld [vmem:[%s168] sm:$0xfe]
  %v2097 = vld [vmem:[%s168 + $0x8] sm:$0xfe]
  %v2098 = vld [vmem:[%s168 + $0x10] sm:$0xfe]
  %v2099 = vld [vmem:[%s168 + $0x18] sm:$0xfe]
  %v2100 = vld [vmem:[%s168 + $0x20] sm:$0xfe]
  %v2101 = vld [vmem:[%s168 + $0x28] sm:$0xfe]
  %v2102 = vld [vmem:[%s168 + $0x30] sm:$0xfe]
  %v2103 = vld [vmem:[%s168 + $0x38] sm:$0xfe]
  %v2105 = vlaneseq
  %v2106 = vshrl.u32 %v2105, 7
  %v2107 = vsub.s32 0, %v2106
  %v2108 = vrot.slane %v2095, %v2107
  %v2109 = vlaneseq
  %v2110 = vshrl.u32 %v2109, 7
  %v2111 = vsub.s32 1, %v2110
  %v2112 = vrot.slane %v2095, %v2111
  %v2113 = vlaneseq
  %v2114 = vshrl.u32 %v2113, 7
  %v2115 = vsub.s32 2, %v2114
  %v2116 = vrot.slane %v2095, %v2115
  %v2117 = vlaneseq
  %v2118 = vshrl.u32 %v2117, 7
  %v2119 = vsub.s32 3, %v2118
  %v2120 = vrot.slane %v2095, %v2119
  %v2121 = vlaneseq
  %v2122 = vshrl.u32 %v2121, 7
  %v2123 = vsub.s32 4, %v2122
  %v2124 = vrot.slane %v2095, %v2123
  %v2125 = vlaneseq
  %v2126 = vshrl.u32 %v2125, 7
  %v2127 = vsub.s32 5, %v2126
  %v2128 = vrot.slane %v2095, %v2127
  %v2129 = vlaneseq
  %v2130 = vshrl.u32 %v2129, 7
  %v2131 = vsub.s32 6, %v2130
  %v2132 = vrot.slane %v2095, %v2131
  %v2133 = vlaneseq
  %v2134 = vshrl.u32 %v2133, 7
  %v2135 = vsub.s32 7, %v2134
  %v2136 = vrot.slane %v2095, %v2135
  %v2145 = vmul.f32 %v2096, %v2108
  %v2146 = vmul.f32 %v2097, %v2112
  %v2147 = vmul.f32 %v2098, %v2116
  %v2148 = vmul.f32 %v2099, %v2120
  %v2149 = vmul.f32 %v2100, %v2124
  %v2150 = vmul.f32 %v2101, %v2128
  %v2151 = vmul.f32 %v2102, %v2132
  %v2152 = vmul.f32 %v2103, %v2136
  %v2161 = vrot.slane %v2145, 1
  %v2162 = vrot.slane %v2146, 1
  %v2163 = vrot.slane %v2147, 1
  %v2164 = vrot.slane %v2148, 1
  %v2165 = vrot.slane %v2149, 1
  %v2166 = vrot.slane %v2150, 1
  %v2167 = vrot.slane %v2151, 1
  %v2168 = vrot.slane %v2152, 1
  %v2177 = vadd.f32 %v2087, %v2161
  %v2178 = vadd.f32 %v2088, %v2162
  %v2179 = vadd.f32 %v2089, %v2163
  %v2180 = vadd.f32 %v2090, %v2164
  %v2181 = vadd.f32 %v2091, %v2165
  %v2182 = vadd.f32 %v2092, %v2166
  %v2183 = vadd.f32 %v2093, %v2167
  %v2184 = vadd.f32 %v2094, %v2168
  %v2185 = vld [vmem:[%s1261] ss:$4 sm:$0xff]
  %v2186 = vld [vmem:[%s168] sm:$0xfc]
  %v2187 = vld [vmem:[%s168 + $0x8] sm:$0xfc]
  %v2188 = vld [vmem:[%s168 + $0x10] sm:$0xfc]
  %v2189 = vld [vmem:[%s168 + $0x18] sm:$0xfc]
  %v2190 = vld [vmem:[%s168 + $0x20] sm:$0xfc]
  %v2191 = vld [vmem:[%s168 + $0x28] sm:$0xfc]
  %v2192 = vld [vmem:[%s168 + $0x30] sm:$0xfc]
  %v2193 = vld [vmem:[%s168 + $0x38] sm:$0xfc]
  %v2194 = vld [vmem:[%s168 + $0x40] sm:$0x1]
  %v2195 = vld [vmem:[%s168 + $0x48] sm:$0x1]
  %v2196 = vld [vmem:[%s168 + $0x50] sm:$0x1]
  %v2197 = vld [vmem:[%s168 + $0x58] sm:$0x1]
  %v2198 = vld [vmem:[%s168 + $0x60] sm:$0x1]
  %v2199 = vld [vmem:[%s168 + $0x68] sm:$0x1]
  %v2200 = vld [vmem:[%s168 + $0x70] sm:$0x1]
  %v2201 = vld [vmem:[%s168 + $0x78] sm:$0x1]
  %v2203 = vlaneseq
  %v2204 = vshrl.u32 %v2203, 7
  %v2205 = vsub.s32 0, %v2204
  %v2206 = vrot.slane %v2185, %v2205
  %v2207 = vlaneseq
  %v2208 = vshrl.u32 %v2207, 7
  %v2209 = vsub.s32 1, %v2208
  %v2210 = vrot.slane %v2185, %v2209
  %v2211 = vlaneseq
  %v2212 = vshrl.u32 %v2211, 7
  %v2213 = vsub.s32 2, %v2212
  %v2214 = vrot.slane %v2185, %v2213
  %v2215 = vlaneseq
  %v2216 = vshrl.u32 %v2215, 7
  %v2217 = vsub.s32 3, %v2216
  %v2218 = vrot.slane %v2185, %v2217
  %v2219 = vlaneseq
  %v2220 = vshrl.u32 %v2219, 7
  %v2221 = vsub.s32 4, %v2220
  %v2222 = vrot.slane %v2185, %v2221
  %v2223 = vlaneseq
  %v2224 = vshrl.u32 %v2223, 7
  %v2225 = vsub.s32 5, %v2224
  %v2226 = vrot.slane %v2185, %v2225
  %v2227 = vlaneseq
  %v2228 = vshrl.u32 %v2227, 7
  %v2229 = vsub.s32 6, %v2228
  %v2230 = vrot.slane %v2185, %v2229
  %v2231 = vlaneseq
  %v2232 = vshrl.u32 %v2231, 7
  %v2233 = vsub.s32 7, %v2232
  %v2234 = vrot.slane %v2185, %v2233
  %v2243 = vmul.f32 %v2186, %v2206
  %v2244 = vmul.f32 %v2187, %v2210
  %v2245 = vmul.f32 %v2188, %v2214
  %v2246 = vmul.f32 %v2189, %v2218
  %v2247 = vmul.f32 %v2190, %v2222
  %v2248 = vmul.f32 %v2191, %v2226
  %v2249 = vmul.f32 %v2192, %v2230
  %v2250 = vmul.f32 %v2193, %v2234
  %v2251 = vmul.f32 %v2194, %v2206
  %v2252 = vmul.f32 %v2195, %v2210
  %v2253 = vmul.f32 %v2196, %v2214
  %v2254 = vmul.f32 %v2197, %v2218
  %v2255 = vmul.f32 %v2198, %v2222
  %v2256 = vmul.f32 %v2199, %v2226
  %v2257 = vmul.f32 %v2200, %v2230
  %v2258 = vmul.f32 %v2201, %v2234
  %v2275 = vrot.slane %v2243, 2
  %v2276 = vrot.slane %v2251, 2
  %v2277 = vsel %vm708, %v2275, %v2276
  %v2278 = vrot.slane %v2244, 2
  %v2279 = vrot.slane %v2252, 2
  %v2280 = vsel %vm708, %v2278, %v2279
  %v2281 = vrot.slane %v2245, 2
  %v2282 = vrot.slane %v2253, 2
  %v2283 = vsel %vm708, %v2281, %v2282
  %v2284 = vrot.slane %v2246, 2
  %v2285 = vrot.slane %v2254, 2
  %v2286 = vsel %vm708, %v2284, %v2285
  %v2287 = vrot.slane %v2247, 2
  %v2288 = vrot.slane %v2255, 2
  %v2289 = vsel %vm708, %v2287, %v2288
  %v2290 = vrot.slane %v2248, 2
  %v2291 = vrot.slane %v2256, 2
  %v2292 = vsel %vm708, %v2290, %v2291
  %v2293 = vrot.slane %v2249, 2
  %v2294 = vrot.slane %v2257, 2
  %v2295 = vsel %vm708, %v2293, %v2294
  %v2296 = vrot.slane %v2250, 2
  %v2297 = vrot.slane %v2258, 2
  %v2298 = vsel %vm708, %v2296, %v2297
  %v2307 = vadd.f32 %v2177, %v2277
  %v2308 = vadd.f32 %v2178, %v2280
  %v2309 = vadd.f32 %v2179, %v2283
  %v2310 = vadd.f32 %v2180, %v2286
  %v2311 = vadd.f32 %v2181, %v2289
  %v2312 = vadd.f32 %v2182, %v2292
  %v2313 = vadd.f32 %v2183, %v2295
  %v2314 = vadd.f32 %v2184, %v2298
  %v2315 = vld [vmem:[%s467] ss:$4 sm:$0xff]
  %v2316 = vld [vmem:[%s226] sm:$0x7f]
  %v2317 = vld [vmem:[%s226 + $0x8] sm:$0x7f]
  %v2318 = vld [vmem:[%s226 + $0x10] sm:$0x7f]
  %v2319 = vld [vmem:[%s226 + $0x18] sm:$0x7f]
  %v2320 = vld [vmem:[%s226 + $0x20] sm:$0x7f]
  %v2321 = vld [vmem:[%s226 + $0x28] sm:$0x7f]
  %v2322 = vld [vmem:[%s226 + $0x30] sm:$0x7f]
  %v2323 = vld [vmem:[%s226 + $0x38] sm:$0x7f]
  %v2325 = vlaneseq
  %v2326 = vshrl.u32 %v2325, 7
  %v2327 = vsub.s32 0, %v2326
  %v2328 = vrot.slane %v2315, %v2327
  %v2329 = vlaneseq
  %v2330 = vshrl.u32 %v2329, 7
  %v2331 = vsub.s32 1, %v2330
  %v2332 = vrot.slane %v2315, %v2331
  %v2333 = vlaneseq
  %v2334 = vshrl.u32 %v2333, 7
  %v2335 = vsub.s32 2, %v2334
  %v2336 = vrot.slane %v2315, %v2335
  %v2337 = vlaneseq
  %v2338 = vshrl.u32 %v2337, 7
  %v2339 = vsub.s32 3, %v2338
  %v2340 = vrot.slane %v2315, %v2339
  %v2341 = vlaneseq
  %v2342 = vshrl.u32 %v2341, 7
  %v2343 = vsub.s32 4, %v2342
  %v2344 = vrot.slane %v2315, %v2343
  %v2345 = vlaneseq
  %v2346 = vshrl.u32 %v2345, 7
  %v2347 = vsub.s32 5, %v2346
  %v2348 = vrot.slane %v2315, %v2347
  %v2349 = vlaneseq
  %v2350 = vshrl.u32 %v2349, 7
  %v2351 = vsub.s32 6, %v2350
  %v2352 = vrot.slane %v2315, %v2351
  %v2353 = vlaneseq
  %v2354 = vshrl.u32 %v2353, 7
  %v2355 = vsub.s32 7, %v2354
  %v2356 = vrot.slane %v2315, %v2355
  %v2365 = vmul.f32 %v2316, %v2328
  %v2366 = vmul.f32 %v2317, %v2332
  %v2367 = vmul.f32 %v2318, %v2336
  %v2368 = vmul.f32 %v2319, %v2340
  %v2369 = vmul.f32 %v2320, %v2344
  %v2370 = vmul.f32 %v2321, %v2348
  %v2371 = vmul.f32 %v2322, %v2352
  %v2372 = vmul.f32 %v2323, %v2356
  %v2373 = vadd.f32 %v2307, %v2365
  %v2374 = vadd.f32 %v2308, %v2366
  %v2375 = vadd.f32 %v2309, %v2367
  %v2376 = vadd.f32 %v2310, %v2368
  %v2377 = vadd.f32 %v2311, %v2369
  %v2378 = vadd.f32 %v2312, %v2370
  %v2379 = vadd.f32 %v2313, %v2371
  %v2380 = vadd.f32 %v2314, %v2372
  %v2381 = vld [vmem:[%s526] ss:$4 sm:$0xff]
  %v2382 = vld [vmem:[%s226] sm:$0xfe]
  %v2383 = vld [vmem:[%s226 + $0x8] sm:$0xfe]
  %v2384 = vld [vmem:[%s226 + $0x10] sm:$0xfe]
  %v2385 = vld [vmem:[%s226 + $0x18] sm:$0xfe]
  %v2386 = vld [vmem:[%s226 + $0x20] sm:$0xfe]
  %v2387 = vld [vmem:[%s226 + $0x28] sm:$0xfe]
  %v2388 = vld [vmem:[%s226 + $0x30] sm:$0xfe]
  %v2389 = vld [vmem:[%s226 + $0x38] sm:$0xfe]
  %v2391 = vlaneseq
  %v2392 = vshrl.u32 %v2391, 7
  %v2393 = vsub.s32 0, %v2392
  %v2394 = vrot.slane %v2381, %v2393
  %v2395 = vlaneseq
  %v2396 = vshrl.u32 %v2395, 7
  %v2397 = vsub.s32 1, %v2396
  %v2398 = vrot.slane %v2381, %v2397
  %v2399 = vlaneseq
  %v2400 = vshrl.u32 %v2399, 7
  %v2401 = vsub.s32 2, %v2400
  %v2402 = vrot.slane %v2381, %v2401
  %v2403 = vlaneseq
  %v2404 = vshrl.u32 %v2403, 7
  %v2405 = vsub.s32 3, %v2404
  %v2406 = vrot.slane %v2381, %v2405
  %v2407 = vlaneseq
  %v2408 = vshrl.u32 %v2407, 7
  %v2409 = vsub.s32 4, %v2408
  %v2410 = vrot.slane %v2381, %v2409
  %v2411 = vlaneseq
  %v2412 = vshrl.u32 %v2411, 7
  %v2413 = vsub.s32 5, %v2412
  %v2414 = vrot.slane %v2381, %v2413
  %v2415 = vlaneseq
  %v2416 = vshrl.u32 %v2415, 7
  %v2417 = vsub.s32 6, %v2416
  %v2418 = vrot.slane %v2381, %v2417
  %v2419 = vlaneseq
  %v2420 = vshrl.u32 %v2419, 7
  %v2421 = vsub.s32 7, %v2420
  %v2422 = vrot.slane %v2381, %v2421
  %v2431 = vmul.f32 %v2382, %v2394
  %v2432 = vmul.f32 %v2383, %v2398
  %v2433 = vmul.f32 %v2384, %v2402
  %v2434 = vmul.f32 %v2385, %v2406
  %v2435 = vmul.f32 %v2386, %v2410
  %v2436 = vmul.f32 %v2387, %v2414
  %v2437 = vmul.f32 %v2388, %v2418
  %v2438 = vmul.f32 %v2389, %v2422
  %v2447 = vrot.slane %v2431, 1
  %v2448 = vrot.slane %v2432, 1
  %v2449 = vrot.slane %v2433, 1
  %v2450 = vrot.slane %v2434, 1
  %v2451 = vrot.slane %v2435, 1
  %v2452 = vrot.slane %v2436, 1
  %v2453 = vrot.slane %v2437, 1
  %v2454 = vrot.slane %v2438, 1
  %v2463 = vadd.f32 %v2373, %v2447
  %v2464 = vadd.f32 %v2374, %v2448
  %v2465 = vadd.f32 %v2375, %v2449
  %v2466 = vadd.f32 %v2376, %v2450
  %v2467 = vadd.f32 %v2377, %v2451
  %v2468 = vadd.f32 %v2378, %v2452
  %v2469 = vadd.f32 %v2379, %v2453
  %v2470 = vadd.f32 %v2380, %v2454
  %v2471 = vld [vmem:[%s617] ss:$4 sm:$0xff]
  %v2472 = vld [vmem:[%s226] sm:$0xfc]
  %v2473 = vld [vmem:[%s226 + $0x8] sm:$0xfc]
  %v2474 = vld [vmem:[%s226 + $0x10] sm:$0xfc]
  %v2475 = vld [vmem:[%s226 + $0x18] sm:$0xfc]
  %v2476 = vld [vmem:[%s226 + $0x20] sm:$0xfc]
  %v2477 = vld [vmem:[%s226 + $0x28] sm:$0xfc]
  %v2478 = vld [vmem:[%s226 + $0x30] sm:$0xfc]
  %v2479 = vld [vmem:[%s226 + $0x38] sm:$0xfc]
  %v2480 = vld [vmem:[%s226 + $0x40] sm:$0x1]
  %v2481 = vld [vmem:[%s226 + $0x48] sm:$0x1]
  %v2482 = vld [vmem:[%s226 + $0x50] sm:$0x1]
  %v2483 = vld [vmem:[%s226 + $0x58] sm:$0x1]
  %v2484 = vld [vmem:[%s226 + $0x60] sm:$0x1]
  %v2485 = vld [vmem:[%s226 + $0x68] sm:$0x1]
  %v2486 = vld [vmem:[%s226 + $0x70] sm:$0x1]
  %v2487 = vld [vmem:[%s226 + $0x78] sm:$0x1]
  %v2489 = vlaneseq
  %v2490 = vshrl.u32 %v2489, 7
  %v2491 = vsub.s32 0, %v2490
  %v2492 = vrot.slane %v2471, %v2491
  %v2493 = vlaneseq
  %v2494 = vshrl.u32 %v2493, 7
  %v2495 = vsub.s32 1, %v2494
  %v2496 = vrot.slane %v2471, %v2495
  %v2497 = vlaneseq
  %v2498 = vshrl.u32 %v2497, 7
  %v2499 = vsub.s32 2, %v2498
  %v2500 = vrot.slane %v2471, %v2499
  %v2501 = vlaneseq
  %v2502 = vshrl.u32 %v2501, 7
  %v2503 = vsub.s32 3, %v2502
  %v2504 = vrot.slane %v2471, %v2503
  %v2505 = vlaneseq
  %v2506 = vshrl.u32 %v2505, 7
  %v2507 = vsub.s32 4, %v2506
  %v2508 = vrot.slane %v2471, %v2507
  %v2509 = vlaneseq
  %v2510 = vshrl.u32 %v2509, 7
  %v2511 = vsub.s32 5, %v2510
  %v2512 = vrot.slane %v2471, %v2511
  %v2513 = vlaneseq
  %v2514 = vshrl.u32 %v2513, 7
  %v2515 = vsub.s32 6, %v2514
  %v2516 = vrot.slane %v2471, %v2515
  %v2517 = vlaneseq
  %v2518 = vshrl.u32 %v2517, 7
  %v2519 = vsub.s32 7, %v2518
  %v2520 = vrot.slane %v2471, %v2519
  %v2529 = vmul.f32 %v2472, %v2492
  %v2530 = vmul.f32 %v2473, %v2496
  %v2531 = vmul.f32 %v2474, %v2500
  %v2532 = vmul.f32 %v2475, %v2504
  %v2533 = vmul.f32 %v2476, %v2508
  %v2534 = vmul.f32 %v2477, %v2512
  %v2535 = vmul.f32 %v2478, %v2516
  %v2536 = vmul.f32 %v2479, %v2520
  %v2537 = vmul.f32 %v2480, %v2492
  %v2538 = vmul.f32 %v2481, %v2496
  %v2539 = vmul.f32 %v2482, %v2500
  %v2540 = vmul.f32 %v2483, %v2504
  %v2541 = vmul.f32 %v2484, %v2508
  %v2542 = vmul.f32 %v2485, %v2512
  %v2543 = vmul.f32 %v2486, %v2516
  %v2544 = vmul.f32 %v2487, %v2520
  %v2561 = vrot.slane %v2529, 2
  %v2562 = vrot.slane %v2537, 2
  %v2563 = vsel %vm708, %v2561, %v2562
  %v2564 = vrot.slane %v2530, 2
  %v2565 = vrot.slane %v2538, 2
  %v2566 = vsel %vm708, %v2564, %v2565
  %v2567 = vrot.slane %v2531, 2
  %v2568 = vrot.slane %v2539, 2
  %v2569 = vsel %vm708, %v2567, %v2568
  %v2570 = vrot.slane %v2532, 2
  %v2571 = vrot.slane %v2540, 2
  %v2572 = vsel %vm708, %v2570, %v2571
  %v2573 = vrot.slane %v2533, 2
  %v2574 = vrot.slane %v2541, 2
  %v2575 = vsel %vm708, %v2573, %v2574
  %v2576 = vrot.slane %v2534, 2
  %v2577 = vrot.slane %v2542, 2
  %v2578 = vsel %vm708, %v2576, %v2577
  %v2579 = vrot.slane %v2535, 2
  %v2580 = vrot.slane %v2543, 2
  %v2581 = vsel %vm708, %v2579, %v2580
  %v2582 = vrot.slane %v2536, 2
  %v2583 = vrot.slane %v2544, 2
  %v2584 = vsel %vm708, %v2582, %v2583
  %v2593 = vadd.f32 %v2463, %v2563
  %v2594 = vadd.f32 %v2464, %v2566
  %v2595 = vadd.f32 %v2465, %v2569
  %v2596 = vadd.f32 %v2466, %v2572
  %v2597 = vadd.f32 %v2467, %v2575
  %v2598 = vadd.f32 %v2468, %v2578
  %v2599 = vadd.f32 %v2469, %v2581
  %v2600 = vadd.f32 %v2470, %v2584
  %v2601 = vld [vmem:[%s749] ss:$4 sm:$0xff]
  %v2602 = vld [vmem:[%s284] sm:$0x7f]
  %v2603 = vld [vmem:[%s284 + $0x8] sm:$0x7f]
  %v2604 = vld [vmem:[%s284 + $0x10] sm:$0x7f]
  %v2605 = vld [vmem:[%s284 + $0x18] sm:$0x7f]
  %v2606 = vld [vmem:[%s284 + $0x20] sm:$0x7f]
  %v2607 = vld [vmem:[%s284 + $0x28] sm:$0x7f]
  %v2608 = vld [vmem:[%s284 + $0x30] sm:$0x7f]
  %v2609 = vld [vmem:[%s284 + $0x38] sm:$0x7f]
  %v2611 = vlaneseq
  %v2612 = vshrl.u32 %v2611, 7
  %v2613 = vsub.s32 0, %v2612
  %v2614 = vrot.slane %v2601, %v2613
  %v2615 = vlaneseq
  %v2616 = vshrl.u32 %v2615, 7
  %v2617 = vsub.s32 1, %v2616
  %v2618 = vrot.slane %v2601, %v2617
  %v2619 = vlaneseq
  %v2620 = vshrl.u32 %v2619, 7
  %v2621 = vsub.s32 2, %v2620
  %v2622 = vrot.slane %v2601, %v2621
  %v2623 = vlaneseq
  %v2624 = vshrl.u32 %v2623, 7
  %v2625 = vsub.s32 3, %v2624
  %v2626 = vrot.slane %v2601, %v2625
  %v2627 = vlaneseq
  %v2628 = vshrl.u32 %v2627, 7
  %v2629 = vsub.s32 4, %v2628
  %v2630 = vrot.slane %v2601, %v2629
  %v2631 = vlaneseq
  %v2632 = vshrl.u32 %v2631, 7
  %v2633 = vsub.s32 5, %v2632
  %v2634 = vrot.slane %v2601, %v2633
  %v2635 = vlaneseq
  %v2636 = vshrl.u32 %v2635, 7
  %v2637 = vsub.s32 6, %v2636
  %v2638 = vrot.slane %v2601, %v2637
  %v2639 = vlaneseq
  %v2640 = vshrl.u32 %v2639, 7
  %v2641 = vsub.s32 7, %v2640
  %v2642 = vrot.slane %v2601, %v2641
  %v2651 = vmul.f32 %v2602, %v2614
  %v2652 = vmul.f32 %v2603, %v2618
  %v2653 = vmul.f32 %v2604, %v2622
  %v2654 = vmul.f32 %v2605, %v2626
  %v2655 = vmul.f32 %v2606, %v2630
  %v2656 = vmul.f32 %v2607, %v2634
  %v2657 = vmul.f32 %v2608, %v2638
  %v2658 = vmul.f32 %v2609, %v2642
  %v2659 = vadd.f32 %v2593, %v2651
  %v2660 = vadd.f32 %v2594, %v2652
  %v2661 = vadd.f32 %v2595, %v2653
  %v2662 = vadd.f32 %v2596, %v2654
  %v2663 = vadd.f32 %v2597, %v2655
  %v2664 = vadd.f32 %v2598, %v2656
  %v2665 = vadd.f32 %v2599, %v2657
  %v2666 = vadd.f32 %v2600, %v2658
  %v2667 = vld [vmem:[%s816] ss:$4 sm:$0xff]
  %v2668 = vld [vmem:[%s284] sm:$0xfe]
  %v2669 = vld [vmem:[%s284 + $0x8] sm:$0xfe]
  %v2670 = vld [vmem:[%s284 + $0x10] sm:$0xfe]
  %v2671 = vld [vmem:[%s284 + $0x18] sm:$0xfe]
  %v2672 = vld [vmem:[%s284 + $0x20] sm:$0xfe]
  %v2673 = vld [vmem:[%s284 + $0x28] sm:$0xfe]
  %v2674 = vld [vmem:[%s284 + $0x30] sm:$0xfe]
  %v2675 = vld [vmem:[%s284 + $0x38] sm:$0xfe]
  %v2677 = vlaneseq
  %v2678 = vshrl.u32 %v2677, 7
  %v2679 = vsub.s32 0, %v2678
  %v2680 = vrot.slane %v2667, %v2679
  %v2681 = vlaneseq
  %v2682 = vshrl.u32 %v2681, 7
  %v2683 = vsub.s32 1, %v2682
  %v2684 = vrot.slane %v2667, %v2683
  %v2685 = vlaneseq
  %v2686 = vshrl.u32 %v2685, 7
  %v2687 = vsub.s32 2, %v2686
  %v2688 = vrot.slane %v2667, %v2687
  %v2689 = vlaneseq
  %v2690 = vshrl.u32 %v2689, 7
  %v2691 = vsub.s32 3, %v2690
  %v2692 = vrot.slane %v2667, %v2691
  %v2693 = vlaneseq
  %v2694 = vshrl.u32 %v2693, 7
  %v2695 = vsub.s32 4, %v2694
  %v2696 = vrot.slane %v2667, %v2695
  %v2697 = vlaneseq
  %v2698 = vshrl.u32 %v2697, 7
  %v2699 = vsub.s32 5, %v2698
  %v2700 = vrot.slane %v2667, %v2699
  %v2701 = vlaneseq
  %v2702 = vshrl.u32 %v2701, 7
  %v2703 = vsub.s32 6, %v2702
  %v2704 = vrot.slane %v2667, %v2703
  %v2705 = vlaneseq
  %v2706 = vshrl.u32 %v2705, 7
  %v2707 = vsub.s32 7, %v2706
  %v2708 = vrot.slane %v2667, %v2707
  %v2717 = vmul.f32 %v2668, %v2680
  %v2718 = vmul.f32 %v2669, %v2684
  %v2719 = vmul.f32 %v2670, %v2688
  %v2720 = vmul.f32 %v2671, %v2692
  %v2721 = vmul.f32 %v2672, %v2696
  %v2722 = vmul.f32 %v2673, %v2700
  %v2723 = vmul.f32 %v2674, %v2704
  %v2724 = vmul.f32 %v2675, %v2708
  %v2733 = vrot.slane %v2717, 1
  %v2734 = vrot.slane %v2718, 1
  %v2735 = vrot.slane %v2719, 1
  %v2736 = vrot.slane %v2720, 1
  %v2737 = vrot.slane %v2721, 1
  %v2738 = vrot.slane %v2722, 1
  %v2739 = vrot.slane %v2723, 1
  %v2740 = vrot.slane %v2724, 1
  %v2749 = vadd.f32 %v2659, %v2733
  %v2750 = vadd.f32 %v2660, %v2734
  %v2751 = vadd.f32 %v2661, %v2735
  %v2752 = vadd.f32 %v2662, %v2736
  %v2753 = vadd.f32 %v2663, %v2737
  %v2754 = vadd.f32 %v2664, %v2738
  %v2755 = vadd.f32 %v2665, %v2739
  %v2756 = vadd.f32 %v2666, %v2740
  %v2757 = vld [vmem:[%s907] ss:$4 sm:$0xff]
  %v2758 = vld [vmem:[%s284] sm:$0xfc]
  %v2759 = vld [vmem:[%s284 + $0x8] sm:$0xfc]
  %v2760 = vld [vmem:[%s284 + $0x10] sm:$0xfc]
  %v2761 = vld [vmem:[%s284 + $0x18] sm:$0xfc]
  %v2762 = vld [vmem:[%s284 + $0x20] sm:$0xfc]
  %v2763 = vld [vmem:[%s284 + $0x28] sm:$0xfc]
  %v2764 = vld [vmem:[%s284 + $0x30] sm:$0xfc]
  %v2765 = vld [vmem:[%s284 + $0x38] sm:$0xfc]
  %v2766 = vld [vmem:[%s284 + $0x40] sm:$0x1]
  %v2767 = vld [vmem:[%s284 + $0x48] sm:$0x1]
  %v2768 = vld [vmem:[%s284 + $0x50] sm:$0x1]
  %v2769 = vld [vmem:[%s284 + $0x58] sm:$0x1]
  %v2770 = vld [vmem:[%s284 + $0x60] sm:$0x1]
  %v2771 = vld [vmem:[%s284 + $0x68] sm:$0x1]
  %v2772 = vld [vmem:[%s284 + $0x70] sm:$0x1]
  %v2773 = vld [vmem:[%s284 + $0x78] sm:$0x1]
  %v2775 = vlaneseq
  %v2776 = vshrl.u32 %v2775, 7
  %v2777 = vsub.s32 0, %v2776
  %v2778 = vrot.slane %v2757, %v2777
  %v2779 = vlaneseq
  %v2780 = vshrl.u32 %v2779, 7
  %v2781 = vsub.s32 1, %v2780
  %v2782 = vrot.slane %v2757, %v2781
  %v2783 = vlaneseq
  %v2784 = vshrl.u32 %v2783, 7
  %v2785 = vsub.s32 2, %v2784
  %v2786 = vrot.slane %v2757, %v2785
  %v2787 = vlaneseq
  %v2788 = vshrl.u32 %v2787, 7
  %v2789 = vsub.s32 3, %v2788
  %v2790 = vrot.slane %v2757, %v2789
  %v2791 = vlaneseq
  %v2792 = vshrl.u32 %v2791, 7
  %v2793 = vsub.s32 4, %v2792
  %v2794 = vrot.slane %v2757, %v2793
  %v2795 = vlaneseq
  %v2796 = vshrl.u32 %v2795, 7
  %v2797 = vsub.s32 5, %v2796
  %v2798 = vrot.slane %v2757, %v2797
  %v2799 = vlaneseq
  %v2800 = vshrl.u32 %v2799, 7
  %v2801 = vsub.s32 6, %v2800
  %v2802 = vrot.slane %v2757, %v2801
  %v2803 = vlaneseq
  %v2804 = vshrl.u32 %v2803, 7
  %v2805 = vsub.s32 7, %v2804
  %v2806 = vrot.slane %v2757, %v2805
  %v2815 = vmul.f32 %v2758, %v2778
  %v2816 = vmul.f32 %v2759, %v2782
  %v2817 = vmul.f32 %v2760, %v2786
  %v2818 = vmul.f32 %v2761, %v2790
  %v2819 = vmul.f32 %v2762, %v2794
  %v2820 = vmul.f32 %v2763, %v2798
  %v2821 = vmul.f32 %v2764, %v2802
  %v2822 = vmul.f32 %v2765, %v2806
  %v2823 = vmul.f32 %v2766, %v2778
  %v2824 = vmul.f32 %v2767, %v2782
  %v2825 = vmul.f32 %v2768, %v2786
  %v2826 = vmul.f32 %v2769, %v2790
  %v2827 = vmul.f32 %v2770, %v2794
  %v2828 = vmul.f32 %v2771, %v2798
  %v2829 = vmul.f32 %v2772, %v2802
  %v2830 = vmul.f32 %v2773, %v2806
  %v2847 = vrot.slane %v2815, 2
  %v2848 = vrot.slane %v2823, 2
  %v2849 = vsel %vm708, %v2847, %v2848
  %v2850 = vrot.slane %v2816, 2
  %v2851 = vrot.slane %v2824, 2
  %v2852 = vsel %vm708, %v2850, %v2851
  %v2853 = vrot.slane %v2817, 2
  %v2854 = vrot.slane %v2825, 2
  %v2855 = vsel %vm708, %v2853, %v2854
  %v2856 = vrot.slane %v2818, 2
  %v2857 = vrot.slane %v2826, 2
  %v2858 = vsel %vm708, %v2856, %v2857
  %v2859 = vrot.slane %v2819, 2
  %v2860 = vrot.slane %v2827, 2
  %v2861 = vsel %vm708, %v2859, %v2860
  %v2862 = vrot.slane %v2820, 2
  %v2863 = vrot.slane %v2828, 2
  %v2864 = vsel %vm708, %v2862, %v2863
  %v2865 = vrot.slane %v2821, 2
  %v2866 = vrot.slane %v2829, 2
  %v2867 = vsel %vm708, %v2865, %v2866
  %v2868 = vrot.slane %v2822, 2
  %v2869 = vrot.slane %v2830, 2
  %v2870 = vsel %vm708, %v2868, %v2869
  %v2879 = vadd.f32 %v2749, %v2849
  %v2880 = vadd.f32 %v2750, %v2852
  %v2881 = vadd.f32 %v2751, %v2855
  %v2882 = vadd.f32 %v2752, %v2858
  %v2883 = vadd.f32 %v2753, %v2861
  %v2884 = vadd.f32 %v2754, %v2864
  %v2885 = vadd.f32 %v2755, %v2867
  %v2886 = vadd.f32 %v2756, %v2870
  %s2887 = scalar_lea.vmem %s4, 128
  %2888 = vst [vmem:[%s2887] sm:$0x7f] %v2879
  %2889 = vst [vmem:[%s2887 + $0x8] sm:$0x7f] %v2880
  %2890 = vst [vmem:[%s2887 + $0x10] sm:$0x7f] %v2881
  %2891 = vst [vmem:[%s2887 + $0x18] sm:$0x7f] %v2882
  %2892 = vst [vmem:[%s2887 + $0x20] sm:$0x7f] %v2883
  %2893 = vst [vmem:[%s2887 + $0x28] sm:$0x7f] %v2884
  %2894 = vst [vmem:[%s2887 + $0x30] sm:$0x7f] %v2885
  %2895 = vst.msk [vmem:[%s2887 + $0x38] sm:$0x7f] %vm1045, %v2886
  %v2896 = vsel %vm1047, %v2879, 0.0
  %v2897 = vrot.slane %v2896, 4
  %v2898 = vadd.f32 %v2896, %v2897
  %v2899 = vrot.slane %v2898, 2
  %v2900 = vadd.f32 %v2898, %v2899
  %v2901 = vrot.slane %v2900, 1
  %v2902 = vadd.f32 %v2900, %v2901
  %v2903 = vsel %vm1047, %v2880, 0.0
  %v2904 = vrot.slane %v2903, 4
  %v2905 = vadd.f32 %v2903, %v2904
  %v2906 = vrot.slane %v2905, 2
  %v2907 = vadd.f32 %v2905, %v2906
  %v2908 = vrot.slane %v2907, 1
  %v2909 = vadd.f32 %v2907, %v2908
  %v2910 = vsel %vm1047, %v2881, 0.0
  %v2911 = vrot.slane %v2910, 4
  %v2912 = vadd.f32 %v2910, %v2911
  %v2913 = vrot.slane %v2912, 2
  %v2914 = vadd.f32 %v2912, %v2913
  %v2915 = vrot.slane %v2914, 1
  %v2916 = vadd.f32 %v2914, %v2915
  %v2917 = vsel %vm1047, %v2882, 0.0
  %v2918 = vrot.slane %v2917, 4
  %v2919 = vadd.f32 %v2917, %v2918
  %v2920 = vrot.slane %v2919, 2
  %v2921 = vadd.f32 %v2919, %v2920
  %v2922 = vrot.slane %v2921, 1
  %v2923 = vadd.f32 %v2921, %v2922
  %v2924 = vsel %vm1047, %v2883, 0.0
  %v2925 = vrot.slane %v2924, 4
  %v2926 = vadd.f32 %v2924, %v2925
  %v2927 = vrot.slane %v2926, 2
  %v2928 = vadd.f32 %v2926, %v2927
  %v2929 = vrot.slane %v2928, 1
  %v2930 = vadd.f32 %v2928, %v2929
  %v2931 = vsel %vm1047, %v2884, 0.0
  %v2932 = vrot.slane %v2931, 4
  %v2933 = vadd.f32 %v2931, %v2932
  %v2934 = vrot.slane %v2933, 2
  %v2935 = vadd.f32 %v2933, %v2934
  %v2936 = vrot.slane %v2935, 1
  %v2937 = vadd.f32 %v2935, %v2936
  %v2938 = vsel %vm1047, %v2885, 0.0
  %v2939 = vrot.slane %v2938, 4
  %v2940 = vadd.f32 %v2938, %v2939
  %v2941 = vrot.slane %v2940, 2
  %v2942 = vadd.f32 %v2940, %v2941
  %v2943 = vrot.slane %v2942, 1
  %v2944 = vadd.f32 %v2942, %v2943
  %v2945 = vsel %vm1045, %v2886, 0.0
  %v2946 = vrot.slane %v2945, 4
  %v2947 = vadd.f32 %v2945, %v2946
  %v2948 = vrot.slane %v2947, 2
  %v2949 = vadd.f32 %v2947, %v2948
  %v2950 = vrot.slane %v2949, 1
  %v2951 = vadd.f32 %v2949, %v2950
  %v2952 = vadd.f32 %v2029, %v2902
  %v2953 = vadd.f32 %v2030, %v2909
  %v2954 = vadd.f32 %v2031, %v2916
  %v2955 = vadd.f32 %v2032, %v2923
  %v2956 = vadd.f32 %v2033, %v2930
  %v2957 = vadd.f32 %v2034, %v2937
  %v2958 = vadd.f32 %v2035, %v2944
  %v2959 = vadd.f32 %v2036, %v2951
  %v2960 = vld [vmem:[%s1] ss:$4 sm:$0xff]
  %v2961 = vld [vmem:[%s226] sm:$0x7f]
  %v2962 = vld [vmem:[%s226 + $0x8] sm:$0x7f]
  %v2963 = vld [vmem:[%s226 + $0x10] sm:$0x7f]
  %v2964 = vld [vmem:[%s226 + $0x18] sm:$0x7f]
  %v2965 = vld [vmem:[%s226 + $0x20] sm:$0x7f]
  %v2966 = vld [vmem:[%s226 + $0x28] sm:$0x7f]
  %v2967 = vld [vmem:[%s226 + $0x30] sm:$0x7f]
  %v2968 = vld [vmem:[%s226 + $0x38] sm:$0x7f]
  %v2970 = vlaneseq
  %v2971 = vshrl.u32 %v2970, 7
  %v2972 = vsub.s32 0, %v2971
  %v2973 = vrot.slane %v2960, %v2972
  %v2974 = vlaneseq
  %v2975 = vshrl.u32 %v2974, 7
  %v2976 = vsub.s32 1, %v2975
  %v2977 = vrot.slane %v2960, %v2976
  %v2978 = vlaneseq
  %v2979 = vshrl.u32 %v2978, 7
  %v2980 = vsub.s32 2, %v2979
  %v2981 = vrot.slane %v2960, %v2980
  %v2982 = vlaneseq
  %v2983 = vshrl.u32 %v2982, 7
  %v2984 = vsub.s32 3, %v2983
  %v2985 = vrot.slane %v2960, %v2984
  %v2986 = vlaneseq
  %v2987 = vshrl.u32 %v2986, 7
  %v2988 = vsub.s32 4, %v2987
  %v2989 = vrot.slane %v2960, %v2988
  %v2990 = vlaneseq
  %v2991 = vshrl.u32 %v2990, 7
  %v2992 = vsub.s32 5, %v2991
  %v2993 = vrot.slane %v2960, %v2992
  %v2994 = vlaneseq
  %v2995 = vshrl.u32 %v2994, 7
  %v2996 = vsub.s32 6, %v2995
  %v2997 = vrot.slane %v2960, %v2996
  %v2998 = vlaneseq
  %v2999 = vshrl.u32 %v2998, 7
  %v3000 = vsub.s32 7, %v2999
  %v3001 = vrot.slane %v2960, %v3000
  %v3010 = vmul.f32 %v2961, %v2973
  %v3011 = vmul.f32 %v2962, %v2977
  %v3012 = vmul.f32 %v2963, %v2981
  %v3013 = vmul.f32 %v2964, %v2985
  %v3014 = vmul.f32 %v2965, %v2989
  %v3015 = vmul.f32 %v2966, %v2993
  %v3016 = vmul.f32 %v2967, %v2997
  %v3017 = vmul.f32 %v2968, %v3001
  %v3018 = vld [vmem:[%s1170] ss:$4 sm:$0xff]
  %v3019 = vld [vmem:[%s226] sm:$0xfe]
  %v3020 = vld [vmem:[%s226 + $0x8] sm:$0xfe]
  %v3021 = vld [vmem:[%s226 + $0x10] sm:$0xfe]
  %v3022 = vld [vmem:[%s226 + $0x18] sm:$0xfe]
  %v3023 = vld [vmem:[%s226 + $0x20] sm:$0xfe]
  %v3024 = vld [vmem:[%s226 + $0x28] sm:$0xfe]
  %v3025 = vld [vmem:[%s226 + $0x30] sm:$0xfe]
  %v3026 = vld [vmem:[%s226 + $0x38] sm:$0xfe]
  %v3028 = vlaneseq
  %v3029 = vshrl.u32 %v3028, 7
  %v3030 = vsub.s32 0, %v3029
  %v3031 = vrot.slane %v3018, %v3030
  %v3032 = vlaneseq
  %v3033 = vshrl.u32 %v3032, 7
  %v3034 = vsub.s32 1, %v3033
  %v3035 = vrot.slane %v3018, %v3034
  %v3036 = vlaneseq
  %v3037 = vshrl.u32 %v3036, 7
  %v3038 = vsub.s32 2, %v3037
  %v3039 = vrot.slane %v3018, %v3038
  %v3040 = vlaneseq
  %v3041 = vshrl.u32 %v3040, 7
  %v3042 = vsub.s32 3, %v3041
  %v3043 = vrot.slane %v3018, %v3042
  %v3044 = vlaneseq
  %v3045 = vshrl.u32 %v3044, 7
  %v3046 = vsub.s32 4, %v3045
  %v3047 = vrot.slane %v3018, %v3046
  %v3048 = vlaneseq
  %v3049 = vshrl.u32 %v3048, 7
  %v3050 = vsub.s32 5, %v3049
  %v3051 = vrot.slane %v3018, %v3050
  %v3052 = vlaneseq
  %v3053 = vshrl.u32 %v3052, 7
  %v3054 = vsub.s32 6, %v3053
  %v3055 = vrot.slane %v3018, %v3054
  %v3056 = vlaneseq
  %v3057 = vshrl.u32 %v3056, 7
  %v3058 = vsub.s32 7, %v3057
  %v3059 = vrot.slane %v3018, %v3058
  %v3068 = vmul.f32 %v3019, %v3031
  %v3069 = vmul.f32 %v3020, %v3035
  %v3070 = vmul.f32 %v3021, %v3039
  %v3071 = vmul.f32 %v3022, %v3043
  %v3072 = vmul.f32 %v3023, %v3047
  %v3073 = vmul.f32 %v3024, %v3051
  %v3074 = vmul.f32 %v3025, %v3055
  %v3075 = vmul.f32 %v3026, %v3059
  %v3084 = vrot.slane %v3068, 1
  %v3085 = vrot.slane %v3069, 1
  %v3086 = vrot.slane %v3070, 1
  %v3087 = vrot.slane %v3071, 1
  %v3088 = vrot.slane %v3072, 1
  %v3089 = vrot.slane %v3073, 1
  %v3090 = vrot.slane %v3074, 1
  %v3091 = vrot.slane %v3075, 1
  %v3100 = vadd.f32 %v3010, %v3084
  %v3101 = vadd.f32 %v3011, %v3085
  %v3102 = vadd.f32 %v3012, %v3086
  %v3103 = vadd.f32 %v3013, %v3087
  %v3104 = vadd.f32 %v3014, %v3088
  %v3105 = vadd.f32 %v3015, %v3089
  %v3106 = vadd.f32 %v3016, %v3090
  %v3107 = vadd.f32 %v3017, %v3091
  %v3108 = vld [vmem:[%s1261] ss:$4 sm:$0xff]
  %v3109 = vld [vmem:[%s226] sm:$0xfc]
  %v3110 = vld [vmem:[%s226 + $0x8] sm:$0xfc]
  %v3111 = vld [vmem:[%s226 + $0x10] sm:$0xfc]
  %v3112 = vld [vmem:[%s226 + $0x18] sm:$0xfc]
  %v3113 = vld [vmem:[%s226 + $0x20] sm:$0xfc]
  %v3114 = vld [vmem:[%s226 + $0x28] sm:$0xfc]
  %v3115 = vld [vmem:[%s226 + $0x30] sm:$0xfc]
  %v3116 = vld [vmem:[%s226 + $0x38] sm:$0xfc]
  %v3117 = vld [vmem:[%s226 + $0x40] sm:$0x1]
  %v3118 = vld [vmem:[%s226 + $0x48] sm:$0x1]
  %v3119 = vld [vmem:[%s226 + $0x50] sm:$0x1]
  %v3120 = vld [vmem:[%s226 + $0x58] sm:$0x1]
  %v3121 = vld [vmem:[%s226 + $0x60] sm:$0x1]
  %v3122 = vld [vmem:[%s226 + $0x68] sm:$0x1]
  %v3123 = vld [vmem:[%s226 + $0x70] sm:$0x1]
  %v3124 = vld [vmem:[%s226 + $0x78] sm:$0x1]
  %v3126 = vlaneseq
  %v3127 = vshrl.u32 %v3126, 7
  %v3128 = vsub.s32 0, %v3127
  %v3129 = vrot.slane %v3108, %v3128
  %v3130 = vlaneseq
  %v3131 = vshrl.u32 %v3130, 7
  %v3132 = vsub.s32 1, %v3131
  %v3133 = vrot.slane %v3108, %v3132
  %v3134 = vlaneseq
  %v3135 = vshrl.u32 %v3134, 7
  %v3136 = vsub.s32 2, %v3135
  %v3137 = vrot.slane %v3108, %v3136
  %v3138 = vlaneseq
  %v3139 = vshrl.u32 %v3138, 7
  %v3140 = vsub.s32 3, %v3139
  %v3141 = vrot.slane %v3108, %v3140
  %v3142 = vlaneseq
  %v3143 = vshrl.u32 %v3142, 7
  %v3144 = vsub.s32 4, %v3143
  %v3145 = vrot.slane %v3108, %v3144
  %v3146 = vlaneseq
  %v3147 = vshrl.u32 %v3146, 7
  %v3148 = vsub.s32 5, %v3147
  %v3149 = vrot.slane %v3108, %v3148
  %v3150 = vlaneseq
  %v3151 = vshrl.u32 %v3150, 7
  %v3152 = vsub.s32 6, %v3151
  %v3153 = vrot.slane %v3108, %v3152
  %v3154 = vlaneseq
  %v3155 = vshrl.u32 %v3154, 7
  %v3156 = vsub.s32 7, %v3155
  %v3157 = vrot.slane %v3108, %v3156
  %v3166 = vmul.f32 %v3109, %v3129
  %v3167 = vmul.f32 %v3110, %v3133
  %v3168 = vmul.f32 %v3111, %v3137
  %v3169 = vmul.f32 %v3112, %v3141
  %v3170 = vmul.f32 %v3113, %v3145
  %v3171 = vmul.f32 %v3114, %v3149
  %v3172 = vmul.f32 %v3115, %v3153
  %v3173 = vmul.f32 %v3116, %v3157
  %v3174 = vmul.f32 %v3117, %v3129
  %v3175 = vmul.f32 %v3118, %v3133
  %v3176 = vmul.f32 %v3119, %v3137
  %v3177 = vmul.f32 %v3120, %v3141
  %v3178 = vmul.f32 %v3121, %v3145
  %v3179 = vmul.f32 %v3122, %v3149
  %v3180 = vmul.f32 %v3123, %v3153
  %v3181 = vmul.f32 %v3124, %v3157
  %v3198 = vrot.slane %v3166, 2
  %v3199 = vrot.slane %v3174, 2
  %v3200 = vsel %vm708, %v3198, %v3199
  %v3201 = vrot.slane %v3167, 2
  %v3202 = vrot.slane %v3175, 2
  %v3203 = vsel %vm708, %v3201, %v3202
  %v3204 = vrot.slane %v3168, 2
  %v3205 = vrot.slane %v3176, 2
  %v3206 = vsel %vm708, %v3204, %v3205
  %v3207 = vrot.slane %v3169, 2
  %v3208 = vrot.slane %v3177, 2
  %v3209 = vsel %vm708, %v3207, %v3208
  %v3210 = vrot.slane %v3170, 2
  %v3211 = vrot.slane %v3178, 2
  %v3212 = vsel %vm708, %v3210, %v3211
  %v3213 = vrot.slane %v3171, 2
  %v3214 = vrot.slane %v3179, 2
  %v3215 = vsel %vm708, %v3213, %v3214
  %v3216 = vrot.slane %v3172, 2
  %v3217 = vrot.slane %v3180, 2
  %v3218 = vsel %vm708, %v3216, %v3217
  %v3219 = vrot.slane %v3173, 2
  %v3220 = vrot.slane %v3181, 2
  %v3221 = vsel %vm708, %v3219, %v3220
  %v3230 = vadd.f32 %v3100, %v3200
  %v3231 = vadd.f32 %v3101, %v3203
  %v3232 = vadd.f32 %v3102, %v3206
  %v3233 = vadd.f32 %v3103, %v3209
  %v3234 = vadd.f32 %v3104, %v3212
  %v3235 = vadd.f32 %v3105, %v3215
  %v3236 = vadd.f32 %v3106, %v3218
  %v3237 = vadd.f32 %v3107, %v3221
  %v3238 = vld [vmem:[%s467] ss:$4 sm:$0xff]
  %v3239 = vld [vmem:[%s284] sm:$0x7f]
  %v3240 = vld [vmem:[%s284 + $0x8] sm:$0x7f]
  %v3241 = vld [vmem:[%s284 + $0x10] sm:$0x7f]
  %v3242 = vld [vmem:[%s284 + $0x18] sm:$0x7f]
  %v3243 = vld [vmem:[%s284 + $0x20] sm:$0x7f]
  %v3244 = vld [vmem:[%s284 + $0x28] sm:$0x7f]
  %v3245 = vld [vmem:[%s284 + $0x30] sm:$0x7f]
  %v3246 = vld [vmem:[%s284 + $0x38] sm:$0x7f]
  %v3248 = vlaneseq
  %v3249 = vshrl.u32 %v3248, 7
  %v3250 = vsub.s32 0, %v3249
  %v3251 = vrot.slane %v3238, %v3250
  %v3252 = vlaneseq
  %v3253 = vshrl.u32 %v3252, 7
  %v3254 = vsub.s32 1, %v3253
  %v3255 = vrot.slane %v3238, %v3254
  %v3256 = vlaneseq
  %v3257 = vshrl.u32 %v3256, 7
  %v3258 = vsub.s32 2, %v3257
  %v3259 = vrot.slane %v3238, %v3258
  %v3260 = vlaneseq
  %v3261 = vshrl.u32 %v3260, 7
  %v3262 = vsub.s32 3, %v3261
  %v3263 = vrot.slane %v3238, %v3262
  %v3264 = vlaneseq
  %v3265 = vshrl.u32 %v3264, 7
  %v3266 = vsub.s32 4, %v3265
  %v3267 = vrot.slane %v3238, %v3266
  %v3268 = vlaneseq
  %v3269 = vshrl.u32 %v3268, 7
  %v3270 = vsub.s32 5, %v3269
  %v3271 = vrot.slane %v3238, %v3270
  %v3272 = vlaneseq
  %v3273 = vshrl.u32 %v3272, 7
  %v3274 = vsub.s32 6, %v3273
  %v3275 = vrot.slane %v3238, %v3274
  %v3276 = vlaneseq
  %v3277 = vshrl.u32 %v3276, 7
  %v3278 = vsub.s32 7, %v3277
  %v3279 = vrot.slane %v3238, %v3278
  %v3288 = vmul.f32 %v3239, %v3251
  %v3289 = vmul.f32 %v3240, %v3255
  %v3290 = vmul.f32 %v3241, %v3259
  %v3291 = vmul.f32 %v3242, %v3263
  %v3292 = vmul.f32 %v3243, %v3267
  %v3293 = vmul.f32 %v3244, %v3271
  %v3294 = vmul.f32 %v3245, %v3275
  %v3295 = vmul.f32 %v3246, %v3279
  %v3296 = vadd.f32 %v3230, %v3288
  %v3297 = vadd.f32 %v3231, %v3289
  %v3298 = vadd.f32 %v3232, %v3290
  %v3299 = vadd.f32 %v3233, %v3291
  %v3300 = vadd.f32 %v3234, %v3292
  %v3301 = vadd.f32 %v3235, %v3293
  %v3302 = vadd.f32 %v3236, %v3294
  %v3303 = vadd.f32 %v3237, %v3295
  %v3304 = vld [vmem:[%s526] ss:$4 sm:$0xff]
  %v3305 = vld [vmem:[%s284] sm:$0xfe]
  %v3306 = vld [vmem:[%s284 + $0x8] sm:$0xfe]
  %v3307 = vld [vmem:[%s284 + $0x10] sm:$0xfe]
  %v3308 = vld [vmem:[%s284 + $0x18] sm:$0xfe]
  %v3309 = vld [vmem:[%s284 + $0x20] sm:$0xfe]
  %v3310 = vld [vmem:[%s284 + $0x28] sm:$0xfe]
  %v3311 = vld [vmem:[%s284 + $0x30] sm:$0xfe]
  %v3312 = vld [vmem:[%s284 + $0x38] sm:$0xfe]
  %v3314 = vlaneseq
  %v3315 = vshrl.u32 %v3314, 7
  %v3316 = vsub.s32 0, %v3315
  %v3317 = vrot.slane %v3304, %v3316
  %v3318 = vlaneseq
  %v3319 = vshrl.u32 %v3318, 7
  %v3320 = vsub.s32 1, %v3319
  %v3321 = vrot.slane %v3304, %v3320
  %v3322 = vlaneseq
  %v3323 = vshrl.u32 %v3322, 7
  %v3324 = vsub.s32 2, %v3323
  %v3325 = vrot.slane %v3304, %v3324
  %v3326 = vlaneseq
  %v3327 = vshrl.u32 %v3326, 7
  %v3328 = vsub.s32 3, %v3327
  %v3329 = vrot.slane %v3304, %v3328
  %v3330 = vlaneseq
  %v3331 = vshrl.u32 %v3330, 7
  %v3332 = vsub.s32 4, %v3331
  %v3333 = vrot.slane %v3304, %v3332
  %v3334 = vlaneseq
  %v3335 = vshrl.u32 %v3334, 7
  %v3336 = vsub.s32 5, %v3335
  %v3337 = vrot.slane %v3304, %v3336
  %v3338 = vlaneseq
  %v3339 = vshrl.u32 %v3338, 7
  %v3340 = vsub.s32 6, %v3339
  %v3341 = vrot.slane %v3304, %v3340
  %v3342 = vlaneseq
  %v3343 = vshrl.u32 %v3342, 7
  %v3344 = vsub.s32 7, %v3343
  %v3345 = vrot.slane %v3304, %v3344
  %v3354 = vmul.f32 %v3305, %v3317
  %v3355 = vmul.f32 %v3306, %v3321
  %v3356 = vmul.f32 %v3307, %v3325
  %v3357 = vmul.f32 %v3308, %v3329
  %v3358 = vmul.f32 %v3309, %v3333
  %v3359 = vmul.f32 %v3310, %v3337
  %v3360 = vmul.f32 %v3311, %v3341
  %v3361 = vmul.f32 %v3312, %v3345
  %v3370 = vrot.slane %v3354, 1
  %v3371 = vrot.slane %v3355, 1
  %v3372 = vrot.slane %v3356, 1
  %v3373 = vrot.slane %v3357, 1
  %v3374 = vrot.slane %v3358, 1
  %v3375 = vrot.slane %v3359, 1
  %v3376 = vrot.slane %v3360, 1
  %v3377 = vrot.slane %v3361, 1
  %v3386 = vadd.f32 %v3296, %v3370
  %v3387 = vadd.f32 %v3297, %v3371
  %v3388 = vadd.f32 %v3298, %v3372
  %v3389 = vadd.f32 %v3299, %v3373
  %v3390 = vadd.f32 %v3300, %v3374
  %v3391 = vadd.f32 %v3301, %v3375
  %v3392 = vadd.f32 %v3302, %v3376
  %v3393 = vadd.f32 %v3303, %v3377
  %v3394 = vld [vmem:[%s617] ss:$4 sm:$0xff]
  %v3395 = vld [vmem:[%s284] sm:$0xfc]
  %v3396 = vld [vmem:[%s284 + $0x8] sm:$0xfc]
  %v3397 = vld [vmem:[%s284 + $0x10] sm:$0xfc]
  %v3398 = vld [vmem:[%s284 + $0x18] sm:$0xfc]
  %v3399 = vld [vmem:[%s284 + $0x20] sm:$0xfc]
  %v3400 = vld [vmem:[%s284 + $0x28] sm:$0xfc]
  %v3401 = vld [vmem:[%s284 + $0x30] sm:$0xfc]
  %v3402 = vld [vmem:[%s284 + $0x38] sm:$0xfc]
  %v3403 = vld [vmem:[%s284 + $0x40] sm:$0x1]
  %v3404 = vld [vmem:[%s284 + $0x48] sm:$0x1]
  %v3405 = vld [vmem:[%s284 + $0x50] sm:$0x1]
  %v3406 = vld [vmem:[%s284 + $0x58] sm:$0x1]
  %v3407 = vld [vmem:[%s284 + $0x60] sm:$0x1]
  %v3408 = vld [vmem:[%s284 + $0x68] sm:$0x1]
  %v3409 = vld [vmem:[%s284 + $0x70] sm:$0x1]
  %v3410 = vld [vmem:[%s284 + $0x78] sm:$0x1]
  %v3412 = vlaneseq
  %v3413 = vshrl.u32 %v3412, 7
  %v3414 = vsub.s32 0, %v3413
  %v3415 = vrot.slane %v3394, %v3414
  %v3416 = vlaneseq
  %v3417 = vshrl.u32 %v3416, 7
  %v3418 = vsub.s32 1, %v3417
  %v3419 = vrot.slane %v3394, %v3418
  %v3420 = vlaneseq
  %v3421 = vshrl.u32 %v3420, 7
  %v3422 = vsub.s32 2, %v3421
  %v3423 = vrot.slane %v3394, %v3422
  %v3424 = vlaneseq
  %v3425 = vshrl.u32 %v3424, 7
  %v3426 = vsub.s32 3, %v3425
  %v3427 = vrot.slane %v3394, %v3426
  %v3428 = vlaneseq
  %v3429 = vshrl.u32 %v3428, 7
  %v3430 = vsub.s32 4, %v3429
  %v3431 = vrot.slane %v3394, %v3430
  %v3432 = vlaneseq
  %v3433 = vshrl.u32 %v3432, 7
  %v3434 = vsub.s32 5, %v3433
  %v3435 = vrot.slane %v3394, %v3434
  %v3436 = vlaneseq
  %v3437 = vshrl.u32 %v3436, 7
  %v3438 = vsub.s32 6, %v3437
  %v3439 = vrot.slane %v3394, %v3438
  %v3440 = vlaneseq
  %v3441 = vshrl.u32 %v3440, 7
  %v3442 = vsub.s32 7, %v3441
  %v3443 = vrot.slane %v3394, %v3442
  %v3452 = vmul.f32 %v3395, %v3415
  %v3453 = vmul.f32 %v3396, %v3419
  %v3454 = vmul.f32 %v3397, %v3423
  %v3455 = vmul.f32 %v3398, %v3427
  %v3456 = vmul.f32 %v3399, %v3431
  %v3457 = vmul.f32 %v3400, %v3435
  %v3458 = vmul.f32 %v3401, %v3439
  %v3459 = vmul.f32 %v3402, %v3443
  %v3460 = vmul.f32 %v3403, %v3415
  %v3461 = vmul.f32 %v3404, %v3419
  %v3462 = vmul.f32 %v3405, %v3423
  %v3463 = vmul.f32 %v3406, %v3427
  %v3464 = vmul.f32 %v3407, %v3431
  %v3465 = vmul.f32 %v3408, %v3435
  %v3466 = vmul.f32 %v3409, %v3439
  %v3467 = vmul.f32 %v3410, %v3443
  %v3484 = vrot.slane %v3452, 2
  %v3485 = vrot.slane %v3460, 2
  %v3486 = vsel %vm708, %v3484, %v3485
  %v3487 = vrot.slane %v3453, 2
  %v3488 = vrot.slane %v3461, 2
  %v3489 = vsel %vm708, %v3487, %v3488
  %v3490 = vrot.slane %v3454, 2
  %v3491 = vrot.slane %v3462, 2
  %v3492 = vsel %vm708, %v3490, %v3491
  %v3493 = vrot.slane %v3455, 2
  %v3494 = vrot.slane %v3463, 2
  %v3495 = vsel %vm708, %v3493, %v3494
  %v3496 = vrot.slane %v3456, 2
  %v3497 = vrot.slane %v3464, 2
  %v3498 = vsel %vm708, %v3496, %v3497
  %v3499 = vrot.slane %v3457, 2
  %v3500 = vrot.slane %v3465, 2
  %v3501 = vsel %vm708, %v3499, %v3500
  %v3502 = vrot.slane %v3458, 2
  %v3503 = vrot.slane %v3466, 2
  %v3504 = vsel %vm708, %v3502, %v3503
  %v3505 = vrot.slane %v3459, 2
  %v3506 = vrot.slane %v3467, 2
  %v3507 = vsel %vm708, %v3505, %v3506
  %v3516 = vadd.f32 %v3386, %v3486
  %v3517 = vadd.f32 %v3387, %v3489
  %v3518 = vadd.f32 %v3388, %v3492
  %v3519 = vadd.f32 %v3389, %v3495
  %v3520 = vadd.f32 %v3390, %v3498
  %v3521 = vadd.f32 %v3391, %v3501
  %v3522 = vadd.f32 %v3392, %v3504
  %v3523 = vadd.f32 %v3393, %v3507
  %v3524 = vld [vmem:[%s749] ss:$4 sm:$0xff]
  %v3525 = vld [vmem:[%s342] sm:$0x7f]
  %v3526 = vld [vmem:[%s342 + $0x8] sm:$0x7f]
  %v3527 = vld [vmem:[%s342 + $0x10] sm:$0x7f]
  %v3528 = vld [vmem:[%s342 + $0x18] sm:$0x7f]
  %v3529 = vld [vmem:[%s342 + $0x20] sm:$0x7f]
  %v3530 = vld [vmem:[%s342 + $0x28] sm:$0x7f]
  %v3531 = vld [vmem:[%s342 + $0x30] sm:$0x7f]
  %v3532 = vld [vmem:[%s342 + $0x38] sm:$0x7f]
  %v3534 = vlaneseq
  %v3535 = vshrl.u32 %v3534, 7
  %v3536 = vsub.s32 0, %v3535
  %v3537 = vrot.slane %v3524, %v3536
  %v3538 = vlaneseq
  %v3539 = vshrl.u32 %v3538, 7
  %v3540 = vsub.s32 1, %v3539
  %v3541 = vrot.slane %v3524, %v3540
  %v3542 = vlaneseq
  %v3543 = vshrl.u32 %v3542, 7
  %v3544 = vsub.s32 2, %v3543
  %v3545 = vrot.slane %v3524, %v3544
  %v3546 = vlaneseq
  %v3547 = vshrl.u32 %v3546, 7
  %v3548 = vsub.s32 3, %v3547
  %v3549 = vrot.slane %v3524, %v3548
  %v3550 = vlaneseq
  %v3551 = vshrl.u32 %v3550, 7
  %v3552 = vsub.s32 4, %v3551
  %v3553 = vrot.slane %v3524, %v3552
  %v3554 = vlaneseq
  %v3555 = vshrl.u32 %v3554, 7
  %v3556 = vsub.s32 5, %v3555
  %v3557 = vrot.slane %v3524, %v3556
  %v3558 = vlaneseq
  %v3559 = vshrl.u32 %v3558, 7
  %v3560 = vsub.s32 6, %v3559
  %v3561 = vrot.slane %v3524, %v3560
  %v3562 = vlaneseq
  %v3563 = vshrl.u32 %v3562, 7
  %v3564 = vsub.s32 7, %v3563
  %v3565 = vrot.slane %v3524, %v3564
  %v3574 = vmul.f32 %v3525, %v3537
  %v3575 = vmul.f32 %v3526, %v3541
  %v3576 = vmul.f32 %v3527, %v3545
  %v3577 = vmul.f32 %v3528, %v3549
  %v3578 = vmul.f32 %v3529, %v3553
  %v3579 = vmul.f32 %v3530, %v3557
  %v3580 = vmul.f32 %v3531, %v3561
  %v3581 = vmul.f32 %v3532, %v3565
  %v3582 = vadd.f32 %v3516, %v3574
  %v3583 = vadd.f32 %v3517, %v3575
  %v3584 = vadd.f32 %v3518, %v3576
  %v3585 = vadd.f32 %v3519, %v3577
  %v3586 = vadd.f32 %v3520, %v3578
  %v3587 = vadd.f32 %v3521, %v3579
  %v3588 = vadd.f32 %v3522, %v3580
  %v3589 = vadd.f32 %v3523, %v3581
  %v3590 = vld [vmem:[%s816] ss:$4 sm:$0xff]
  %v3591 = vld [vmem:[%s342] sm:$0xfe]
  %v3592 = vld [vmem:[%s342 + $0x8] sm:$0xfe]
  %v3593 = vld [vmem:[%s342 + $0x10] sm:$0xfe]
  %v3594 = vld [vmem:[%s342 + $0x18] sm:$0xfe]
  %v3595 = vld [vmem:[%s342 + $0x20] sm:$0xfe]
  %v3596 = vld [vmem:[%s342 + $0x28] sm:$0xfe]
  %v3597 = vld [vmem:[%s342 + $0x30] sm:$0xfe]
  %v3598 = vld [vmem:[%s342 + $0x38] sm:$0xfe]
  %v3600 = vlaneseq
  %v3601 = vshrl.u32 %v3600, 7
  %v3602 = vsub.s32 0, %v3601
  %v3603 = vrot.slane %v3590, %v3602
  %v3604 = vlaneseq
  %v3605 = vshrl.u32 %v3604, 7
  %v3606 = vsub.s32 1, %v3605
  %v3607 = vrot.slane %v3590, %v3606
  %v3608 = vlaneseq
  %v3609 = vshrl.u32 %v3608, 7
  %v3610 = vsub.s32 2, %v3609
  %v3611 = vrot.slane %v3590, %v3610
  %v3612 = vlaneseq
  %v3613 = vshrl.u32 %v3612, 7
  %v3614 = vsub.s32 3, %v3613
  %v3615 = vrot.slane %v3590, %v3614
  %v3616 = vlaneseq
  %v3617 = vshrl.u32 %v3616, 7
  %v3618 = vsub.s32 4, %v3617
  %v3619 = vrot.slane %v3590, %v3618
  %v3620 = vlaneseq
  %v3621 = vshrl.u32 %v3620, 7
  %v3622 = vsub.s32 5, %v3621
  %v3623 = vrot.slane %v3590, %v3622
  %v3624 = vlaneseq
  %v3625 = vshrl.u32 %v3624, 7
  %v3626 = vsub.s32 6, %v3625
  %v3627 = vrot.slane %v3590, %v3626
  %v3628 = vlaneseq
  %v3629 = vshrl.u32 %v3628, 7
  %v3630 = vsub.s32 7, %v3629
  %v3631 = vrot.slane %v3590, %v3630
  %v3640 = vmul.f32 %v3591, %v3603
  %v3641 = vmul.f32 %v3592, %v3607
  %v3642 = vmul.f32 %v3593, %v3611
  %v3643 = vmul.f32 %v3594, %v3615
  %v3644 = vmul.f32 %v3595, %v3619
  %v3645 = vmul.f32 %v3596, %v3623
  %v3646 = vmul.f32 %v3597, %v3627
  %v3647 = vmul.f32 %v3598, %v3631
  %v3656 = vrot.slane %v3640, 1
  %v3657 = vrot.slane %v3641, 1
  %v3658 = vrot.slane %v3642, 1
  %v3659 = vrot.slane %v3643, 1
  %v3660 = vrot.slane %v3644, 1
  %v3661 = vrot.slane %v3645, 1
  %v3662 = vrot.slane %v3646, 1
  %v3663 = vrot.slane %v3647, 1
  %v3672 = vadd.f32 %v3582, %v3656
  %v3673 = vadd.f32 %v3583, %v3657
  %v3674 = vadd.f32 %v3584, %v3658
  %v3675 = vadd.f32 %v3585, %v3659
  %v3676 = vadd.f32 %v3586, %v3660
  %v3677 = vadd.f32 %v3587, %v3661
  %v3678 = vadd.f32 %v3588, %v3662
  %v3679 = vadd.f32 %v3589, %v3663
  %v3680 = vld [vmem:[%s907] ss:$4 sm:$0xff]
  %v3681 = vld [vmem:[%s342] sm:$0xfc]
  %v3682 = vld [vmem:[%s342 + $0x8] sm:$0xfc]
  %v3683 = vld [vmem:[%s342 + $0x10] sm:$0xfc]
  %v3684 = vld [vmem:[%s342 + $0x18] sm:$0xfc]
  %v3685 = vld [vmem:[%s342 + $0x20] sm:$0xfc]
  %v3686 = vld [vmem:[%s342 + $0x28] sm:$0xfc]
  %v3687 = vld [vmem:[%s342 + $0x30] sm:$0xfc]
  %v3688 = vld [vmem:[%s342 + $0x38] sm:$0xfc]
  %v3689 = vld [vmem:[%s342 + $0x40] sm:$0x1]
  %v3690 = vld [vmem:[%s342 + $0x48] sm:$0x1]
  %v3691 = vld [vmem:[%s342 + $0x50] sm:$0x1]
  %v3692 = vld [vmem:[%s342 + $0x58] sm:$0x1]
  %v3693 = vld [vmem:[%s342 + $0x60] sm:$0x1]
  %v3694 = vld [vmem:[%s342 + $0x68] sm:$0x1]
  %v3695 = vld [vmem:[%s342 + $0x70] sm:$0x1]
  %v3696 = vld [vmem:[%s342 + $0x78] sm:$0x1]
  %v3698 = vlaneseq
  %v3699 = vshrl.u32 %v3698, 7
  %v3700 = vsub.s32 0, %v3699
  %v3701 = vrot.slane %v3680, %v3700
  %v3702 = vlaneseq
  %v3703 = vshrl.u32 %v3702, 7
  %v3704 = vsub.s32 1, %v3703
  %v3705 = vrot.slane %v3680, %v3704
  %v3706 = vlaneseq
  %v3707 = vshrl.u32 %v3706, 7
  %v3708 = vsub.s32 2, %v3707
  %v3709 = vrot.slane %v3680, %v3708
  %v3710 = vlaneseq
  %v3711 = vshrl.u32 %v3710, 7
  %v3712 = vsub.s32 3, %v3711
  %v3713 = vrot.slane %v3680, %v3712
  %v3714 = vlaneseq
  %v3715 = vshrl.u32 %v3714, 7
  %v3716 = vsub.s32 4, %v3715
  %v3717 = vrot.slane %v3680, %v3716
  %v3718 = vlaneseq
  %v3719 = vshrl.u32 %v3718, 7
  %v3720 = vsub.s32 5, %v3719
  %v3721 = vrot.slane %v3680, %v3720
  %v3722 = vlaneseq
  %v3723 = vshrl.u32 %v3722, 7
  %v3724 = vsub.s32 6, %v3723
  %v3725 = vrot.slane %v3680, %v3724
  %v3726 = vlaneseq
  %v3727 = vshrl.u32 %v3726, 7
  %v3728 = vsub.s32 7, %v3727
  %v3729 = vrot.slane %v3680, %v3728
  %v3738 = vmul.f32 %v3681, %v3701
  %v3739 = vmul.f32 %v3682, %v3705
  %v3740 = vmul.f32 %v3683, %v3709
  %v3741 = vmul.f32 %v3684, %v3713
  %v3742 = vmul.f32 %v3685, %v3717
  %v3743 = vmul.f32 %v3686, %v3721
  %v3744 = vmul.f32 %v3687, %v3725
  %v3745 = vmul.f32 %v3688, %v3729
  %v3746 = vmul.f32 %v3689, %v3701
  %v3747 = vmul.f32 %v3690, %v3705
  %v3748 = vmul.f32 %v3691, %v3709
  %v3749 = vmul.f32 %v3692, %v3713
  %v3750 = vmul.f32 %v3693, %v3717
  %v3751 = vmul.f32 %v3694, %v3721
  %v3752 = vmul.f32 %v3695, %v3725
  %v3753 = vmul.f32 %v3696, %v3729
  %v3770 = vrot.slane %v3738, 2
  %v3771 = vrot.slane %v3746, 2
  %v3772 = vsel %vm708, %v3770, %v3771
  %v3773 = vrot.slane %v3739, 2
  %v3774 = vrot.slane %v3747, 2
  %v3775 = vsel %vm708, %v3773, %v3774
  %v3776 = vrot.slane %v3740, 2
  %v3777 = vrot.slane %v3748, 2
  %v3778 = vsel %vm708, %v3776, %v3777
  %v3779 = vrot.slane %v3741, 2
  %v3780 = vrot.slane %v3749, 2
  %v3781 = vsel %vm708, %v3779, %v3780
  %v3782 = vrot.slane %v3742, 2
  %v3783 = vrot.slane %v3750, 2
  %v3784 = vsel %vm708, %v3782, %v3783
  %v3785 = vrot.slane %v3743, 2
  %v3786 = vrot.slane %v3751, 2
  %v3787 = vsel %vm708, %v3785, %v3786
  %v3788 = vrot.slane %v3744, 2
  %v3789 = vrot.slane %v3752, 2
  %v3790 = vsel %vm708, %v3788, %v3789
  %v3791 = vrot.slane %v3745, 2
  %v3792 = vrot.slane %v3753, 2
  %v3793 = vsel %vm708, %v3791, %v3792
  %v3802 = vadd.f32 %v3672, %v3772
  %v3803 = vadd.f32 %v3673, %v3775
  %v3804 = vadd.f32 %v3674, %v3778
  %v3805 = vadd.f32 %v3675, %v3781
  %v3806 = vadd.f32 %v3676, %v3784
  %v3807 = vadd.f32 %v3677, %v3787
  %v3808 = vadd.f32 %v3678, %v3790
  %v3809 = vadd.f32 %v3679, %v3793
  %s3810 = scalar_lea.vmem %s4, 192
  %3811 = vst [vmem:[%s3810] sm:$0x7f] %v3802
  %3812 = vst [vmem:[%s3810 + $0x8] sm:$0x7f] %v3803
  %3813 = vst [vmem:[%s3810 + $0x10] sm:$0x7f] %v3804
  %3814 = vst [vmem:[%s3810 + $0x18] sm:$0x7f] %v3805
  %3815 = vst [vmem:[%s3810 + $0x20] sm:$0x7f] %v3806
  %3816 = vst [vmem:[%s3810 + $0x28] sm:$0x7f] %v3807
  %3817 = vst [vmem:[%s3810 + $0x30] sm:$0x7f] %v3808
  %3818 = vst.msk [vmem:[%s3810 + $0x38] sm:$0x7f] %vm1045, %v3809
  %v3819 = vsel %vm1047, %v3802, 0.0
  %v3820 = vrot.slane %v3819, 4
  %v3821 = vadd.f32 %v3819, %v3820
  %v3822 = vrot.slane %v3821, 2
  %v3823 = vadd.f32 %v3821, %v3822
  %v3824 = vrot.slane %v3823, 1
  %v3825 = vadd.f32 %v3823, %v3824
  %v3826 = vsel %vm1047, %v3803, 0.0
  %v3827 = vrot.slane %v3826, 4
  %v3828 = vadd.f32 %v3826, %v3827
  %v3829 = vrot.slane %v3828, 2
  %v3830 = vadd.f32 %v3828, %v3829
  %v3831 = vrot.slane %v3830, 1
  %v3832 = vadd.f32 %v3830, %v3831
  %v3833 = vsel %vm1047, %v3804, 0.0
  %v3834 = vrot.slane %v3833, 4
  %v3835 = vadd.f32 %v3833, %v3834
  %v3836 = vrot.slane %v3835, 2
  %v3837 = vadd.f32 %v3835, %v3836
  %v3838 = vrot.slane %v3837, 1
  %v3839 = vadd.f32 %v3837, %v3838
  %v3840 = vsel %vm1047, %v3805, 0.0
  %v3841 = vrot.slane %v3840, 4
  %v3842 = vadd.f32 %v3840, %v3841
  %v3843 = vrot.slane %v3842, 2
  %v3844 = vadd.f32 %v3842, %v3843
  %v3845 = vrot.slane %v3844, 1
  %v3846 = vadd.f32 %v3844, %v3845
  %v3847 = vsel %vm1047, %v3806, 0.0
  %v3848 = vrot.slane %v3847, 4
  %v3849 = vadd.f32 %v3847, %v3848
  %v3850 = vrot.slane %v3849, 2
  %v3851 = vadd.f32 %v3849, %v3850
  %v3852 = vrot.slane %v3851, 1
  %v3853 = vadd.f32 %v3851, %v3852
  %v3854 = vsel %vm1047, %v3807, 0.0
  %v3855 = vrot.slane %v3854, 4
  %v3856 = vadd.f32 %v3854, %v3855
  %v3857 = vrot.slane %v3856, 2
  %v3858 = vadd.f32 %v3856, %v3857
  %v3859 = vrot.slane %v3858, 1
  %v3860 = vadd.f32 %v3858, %v3859
  %v3861 = vsel %vm1047, %v3808, 0.0
  %v3862 = vrot.slane %v3861, 4
  %v3863 = vadd.f32 %v3861, %v3862
  %v3864 = vrot.slane %v3863, 2
  %v3865 = vadd.f32 %v3863, %v3864
  %v3866 = vrot.slane %v3865, 1
  %v3867 = vadd.f32 %v3865, %v3866
  %v3868 = vsel %vm1045, %v3809, 0.0
  %v3869 = vrot.slane %v3868, 4
  %v3870 = vadd.f32 %v3868, %v3869
  %v3871 = vrot.slane %v3870, 2
  %v3872 = vadd.f32 %v3870, %v3871
  %v3873 = vrot.slane %v3872, 1
  %v3874 = vadd.f32 %v3872, %v3873
  %v3875 = vadd.f32 %v2952, %v3825
  %v3876 = vadd.f32 %v2953, %v3832
  %v3877 = vadd.f32 %v2954, %v3839
  %v3878 = vadd.f32 %v2955, %v3846
  %v3879 = vadd.f32 %v2956, %v3853
  %v3880 = vadd.f32 %v2957, %v3860
  %v3881 = vadd.f32 %v2958, %v3867
  %v3882 = vadd.f32 %v2959, %v3874
  %v3883 = vld [vmem:[%s1] ss:$4 sm:$0xff]
  %v3884 = vld [vmem:[%s284] sm:$0x7f]
  %v3885 = vld [vmem:[%s284 + $0x8] sm:$0x7f]
  %v3886 = vld [vmem:[%s284 + $0x10] sm:$0x7f]
  %v3887 = vld [vmem:[%s284 + $0x18] sm:$0x7f]
  %v3888 = vld [vmem:[%s284 + $0x20] sm:$0x7f]
  %v3889 = vld [vmem:[%s284 + $0x28] sm:$0x7f]
  %v3890 = vld [vmem:[%s284 + $0x30] sm:$0x7f]
  %v3891 = vld [vmem:[%s284 + $0x38] sm:$0x7f]
  %v3893 = vlaneseq
  %v3894 = vshrl.u32 %v3893, 7
  %v3895 = vsub.s32 0, %v3894
  %v3896 = vrot.slane %v3883, %v3895
  %v3897 = vlaneseq
  %v3898 = vshrl.u32 %v3897, 7
  %v3899 = vsub.s32 1, %v3898
  %v3900 = vrot.slane %v3883, %v3899
  %v3901 = vlaneseq
  %v3902 = vshrl.u32 %v3901, 7
  %v3903 = vsub.s32 2, %v3902
  %v3904 = vrot.slane %v3883, %v3903
  %v3905 = vlaneseq
  %v3906 = vshrl.u32 %v3905, 7
  %v3907 = vsub.s32 3, %v3906
  %v3908 = vrot.slane %v3883, %v3907
  %v3909 = vlaneseq
  %v3910 = vshrl.u32 %v3909, 7
  %v3911 = vsub.s32 4, %v3910
  %v3912 = vrot.slane %v3883, %v3911
  %v3913 = vlaneseq
  %v3914 = vshrl.u32 %v3913, 7
  %v3915 = vsub.s32 5, %v3914
  %v3916 = vrot.slane %v3883, %v3915
  %v3917 = vlaneseq
  %v3918 = vshrl.u32 %v3917, 7
  %v3919 = vsub.s32 6, %v3918
  %v3920 = vrot.slane %v3883, %v3919
  %v3921 = vlaneseq
  %v3922 = vshrl.u32 %v3921, 7
  %v3923 = vsub.s32 7, %v3922
  %v3924 = vrot.slane %v3883, %v3923
  %v3933 = vmul.f32 %v3884, %v3896
  %v3934 = vmul.f32 %v3885, %v3900
  %v3935 = vmul.f32 %v3886, %v3904
  %v3936 = vmul.f32 %v3887, %v3908
  %v3937 = vmul.f32 %v3888, %v3912
  %v3938 = vmul.f32 %v3889, %v3916
  %v3939 = vmul.f32 %v3890, %v3920
  %v3940 = vmul.f32 %v3891, %v3924
  %v3941 = vld [vmem:[%s1170] ss:$4 sm:$0xff]
  %v3942 = vld [vmem:[%s284] sm:$0xfe]
  %v3943 = vld [vmem:[%s284 + $0x8] sm:$0xfe]
  %v3944 = vld [vmem:[%s284 + $0x10] sm:$0xfe]
  %v3945 = vld [vmem:[%s284 + $0x18] sm:$0xfe]
  %v3946 = vld [vmem:[%s284 + $0x20] sm:$0xfe]
  %v3947 = vld [vmem:[%s284 + $0x28] sm:$0xfe]
  %v3948 = vld [vmem:[%s284 + $0x30] sm:$0xfe]
  %v3949 = vld [vmem:[%s284 + $0x38] sm:$0xfe]
  %v3951 = vlaneseq
  %v3952 = vshrl.u32 %v3951, 7
  %v3953 = vsub.s32 0, %v3952
  %v3954 = vrot.slane %v3941, %v3953
  %v3955 = vlaneseq
  %v3956 = vshrl.u32 %v3955, 7
  %v3957 = vsub.s32 1, %v3956
  %v3958 = vrot.slane %v3941, %v3957
  %v3959 = vlaneseq
  %v3960 = vshrl.u32 %v3959, 7
  %v3961 = vsub.s32 2, %v3960
  %v3962 = vrot.slane %v3941, %v3961
  %v3963 = vlaneseq
  %v3964 = vshrl.u32 %v3963, 7
  %v3965 = vsub.s32 3, %v3964
  %v3966 = vrot.slane %v3941, %v3965
  %v3967 = vlaneseq
  %v3968 = vshrl.u32 %v3967, 7
  %v3969 = vsub.s32 4, %v3968
  %v3970 = vrot.slane %v3941, %v3969
  %v3971 = vlaneseq
  %v3972 = vshrl.u32 %v3971, 7
  %v3973 = vsub.s32 5, %v3972
  %v3974 = vrot.slane %v3941, %v3973
  %v3975 = vlaneseq
  %v3976 = vshrl.u32 %v3975, 7
  %v3977 = vsub.s32 6, %v3976
  %v3978 = vrot.slane %v3941, %v3977
  %v3979 = vlaneseq
  %v3980 = vshrl.u32 %v3979, 7
  %v3981 = vsub.s32 7, %v3980
  %v3982 = vrot.slane %v3941, %v3981
  %v3991 = vmul.f32 %v3942, %v3954
  %v3992 = vmul.f32 %v3943, %v3958
  %v3993 = vmul.f32 %v3944, %v3962
  %v3994 = vmul.f32 %v3945, %v3966
  %v3995 = vmul.f32 %v3946, %v3970
  %v3996 = vmul.f32 %v3947, %v3974
  %v3997 = vmul.f32 %v3948, %v3978
  %v3998 = vmul.f32 %v3949, %v3982
  %v4007 = vrot.slane %v3991, 1
  %v4008 = vrot.slane %v3992, 1
  %v4009 = vrot.slane %v3993, 1
  %v4010 = vrot.slane %v3994, 1
  %v4011 = vrot.slane %v3995, 1
  %v4012 = vrot.slane %v3996, 1
  %v4013 = vrot.slane %v3997, 1
  %v4014 = vrot.slane %v3998, 1
  %v4023 = vadd.f32 %v3933, %v4007
  %v4024 = vadd.f32 %v3934, %v4008
  %v4025 = vadd.f32 %v3935, %v4009
  %v4026 = vadd.f32 %v3936, %v4010
  %v4027 = vadd.f32 %v3937, %v4011
  %v4028 = vadd.f32 %v3938, %v4012
  %v4029 = vadd.f32 %v3939, %v4013
  %v4030 = vadd.f32 %v3940, %v4014
  %v4031 = vld [vmem:[%s1261] ss:$4 sm:$0xff]
  %v4032 = vld [vmem:[%s284] sm:$0xfc]
  %v4033 = vld [vmem:[%s284 + $0x8] sm:$0xfc]
  %v4034 = vld [vmem:[%s284 + $0x10] sm:$0xfc]
  %v4035 = vld [vmem:[%s284 + $0x18] sm:$0xfc]
  %v4036 = vld [vmem:[%s284 + $0x20] sm:$0xfc]
  %v4037 = vld [vmem:[%s284 + $0x28] sm:$0xfc]
  %v4038 = vld [vmem:[%s284 + $0x30] sm:$0xfc]
  %v4039 = vld [vmem:[%s284 + $0x38] sm:$0xfc]
  %v4040 = vld [vmem:[%s284 + $0x40] sm:$0x1]
  %v4041 = vld [vmem:[%s284 + $0x48] sm:$0x1]
  %v4042 = vld [vmem:[%s284 + $0x50] sm:$0x1]
  %v4043 = vld [vmem:[%s284 + $0x58] sm:$0x1]
  %v4044 = vld [vmem:[%s284 + $0x60] sm:$0x1]
  %v4045 = vld [vmem:[%s284 + $0x68] sm:$0x1]
  %v4046 = vld [vmem:[%s284 + $0x70] sm:$0x1]
  %v4047 = vld [vmem:[%s284 + $0x78] sm:$0x1]
  %v4049 = vlaneseq
  %v4050 = vshrl.u32 %v4049, 7
  %v4051 = vsub.s32 0, %v4050
  %v4052 = vrot.slane %v4031, %v4051
  %v4053 = vlaneseq
  %v4054 = vshrl.u32 %v4053, 7
  %v4055 = vsub.s32 1, %v4054
  %v4056 = vrot.slane %v4031, %v4055
  %v4057 = vlaneseq
  %v4058 = vshrl.u32 %v4057, 7
  %v4059 = vsub.s32 2, %v4058
  %v4060 = vrot.slane %v4031, %v4059
  %v4061 = vlaneseq
  %v4062 = vshrl.u32 %v4061, 7
  %v4063 = vsub.s32 3, %v4062
  %v4064 = vrot.slane %v4031, %v4063
  %v4065 = vlaneseq
  %v4066 = vshrl.u32 %v4065, 7
  %v4067 = vsub.s32 4, %v4066
  %v4068 = vrot.slane %v4031, %v4067
  %v4069 = vlaneseq
  %v4070 = vshrl.u32 %v4069, 7
  %v4071 = vsub.s32 5, %v4070
  %v4072 = vrot.slane %v4031, %v4071
  %v4073 = vlaneseq
  %v4074 = vshrl.u32 %v4073, 7
  %v4075 = vsub.s32 6, %v4074
  %v4076 = vrot.slane %v4031, %v4075
  %v4077 = vlaneseq
  %v4078 = vshrl.u32 %v4077, 7
  %v4079 = vsub.s32 7, %v4078
  %v4080 = vrot.slane %v4031, %v4079
  %v4089 = vmul.f32 %v4032, %v4052
  %v4090 = vmul.f32 %v4033, %v4056
  %v4091 = vmul.f32 %v4034, %v4060
  %v4092 = vmul.f32 %v4035, %v4064
  %v4093 = vmul.f32 %v4036, %v4068
  %v4094 = vmul.f32 %v4037, %v4072
  %v4095 = vmul.f32 %v4038, %v4076
  %v4096 = vmul.f32 %v4039, %v4080
  %v4097 = vmul.f32 %v4040, %v4052
  %v4098 = vmul.f32 %v4041, %v4056
  %v4099 = vmul.f32 %v4042, %v4060
  %v4100 = vmul.f32 %v4043, %v4064
  %v4101 = vmul.f32 %v4044, %v4068
  %v4102 = vmul.f32 %v4045, %v4072
  %v4103 = vmul.f32 %v4046, %v4076
  %v4104 = vmul.f32 %v4047, %v4080
  %v4121 = vrot.slane %v4089, 2
  %v4122 = vrot.slane %v4097, 2
  %v4123 = vsel %vm708, %v4121, %v4122
  %v4124 = vrot.slane %v4090, 2
  %v4125 = vrot.slane %v4098, 2
  %v4126 = vsel %vm708, %v4124, %v4125
  %v4127 = vrot.slane %v4091, 2
  %v4128 = vrot.slane %v4099, 2
  %v4129 = vsel %vm708, %v4127, %v4128
  %v4130 = vrot.slane %v4092, 2
  %v4131 = vrot.slane %v4100, 2
  %v4132 = vsel %vm708, %v4130, %v4131
  %v4133 = vrot.slane %v4093, 2
  %v4134 = vrot.slane %v4101, 2
  %v4135 = vsel %vm708, %v4133, %v4134
  %v4136 = vrot.slane %v4094, 2
  %v4137 = vrot.slane %v4102, 2
  %v4138 = vsel %vm708, %v4136, %v4137
  %v4139 = vrot.slane %v4095, 2
  %v4140 = vrot.slane %v4103, 2
  %v4141 = vsel %vm708, %v4139, %v4140
  %v4142 = vrot.slane %v4096, 2
  %v4143 = vrot.slane %v4104, 2
  %v4144 = vsel %vm708, %v4142, %v4143
  %v4153 = vadd.f32 %v4023, %v4123
  %v4154 = vadd.f32 %v4024, %v4126
  %v4155 = vadd.f32 %v4025, %v4129
  %v4156 = vadd.f32 %v4026, %v4132
  %v4157 = vadd.f32 %v4027, %v4135
  %v4158 = vadd.f32 %v4028, %v4138
  %v4159 = vadd.f32 %v4029, %v4141
  %v4160 = vadd.f32 %v4030, %v4144
  %v4161 = vld [vmem:[%s467] ss:$4 sm:$0xff]
  %v4162 = vld [vmem:[%s342] sm:$0x7f]
  %v4163 = vld [vmem:[%s342 + $0x8] sm:$0x7f]
  %v4164 = vld [vmem:[%s342 + $0x10] sm:$0x7f]
  %v4165 = vld [vmem:[%s342 + $0x18] sm:$0x7f]
  %v4166 = vld [vmem:[%s342 + $0x20] sm:$0x7f]
  %v4167 = vld [vmem:[%s342 + $0x28] sm:$0x7f]
  %v4168 = vld [vmem:[%s342 + $0x30] sm:$0x7f]
  %v4169 = vld [vmem:[%s342 + $0x38] sm:$0x7f]
  %v4171 = vlaneseq
  %v4172 = vshrl.u32 %v4171, 7
  %v4173 = vsub.s32 0, %v4172
  %v4174 = vrot.slane %v4161, %v4173
  %v4175 = vlaneseq
  %v4176 = vshrl.u32 %v4175, 7
  %v4177 = vsub.s32 1, %v4176
  %v4178 = vrot.slane %v4161, %v4177
  %v4179 = vlaneseq
  %v4180 = vshrl.u32 %v4179, 7
  %v4181 = vsub.s32 2, %v4180
  %v4182 = vrot.slane %v4161, %v4181
  %v4183 = vlaneseq
  %v4184 = vshrl.u32 %v4183, 7
  %v4185 = vsub.s32 3, %v4184
  %v4186 = vrot.slane %v4161, %v4185
  %v4187 = vlaneseq
  %v4188 = vshrl.u32 %v4187, 7
  %v4189 = vsub.s32 4, %v4188
  %v4190 = vrot.slane %v4161, %v4189
  %v4191 = vlaneseq
  %v4192 = vshrl.u32 %v4191, 7
  %v4193 = vsub.s32 5, %v4192
  %v4194 = vrot.slane %v4161, %v4193
  %v4195 = vlaneseq
  %v4196 = vshrl.u32 %v4195, 7
  %v4197 = vsub.s32 6, %v4196
  %v4198 = vrot.slane %v4161, %v4197
  %v4199 = vlaneseq
  %v4200 = vshrl.u32 %v4199, 7
  %v4201 = vsub.s32 7, %v4200
  %v4202 = vrot.slane %v4161, %v4201
  %v4211 = vmul.f32 %v4162, %v4174
  %v4212 = vmul.f32 %v4163, %v4178
  %v4213 = vmul.f32 %v4164, %v4182
  %v4214 = vmul.f32 %v4165, %v4186
  %v4215 = vmul.f32 %v4166, %v4190
  %v4216 = vmul.f32 %v4167, %v4194
  %v4217 = vmul.f32 %v4168, %v4198
  %v4218 = vmul.f32 %v4169, %v4202
  %v4219 = vadd.f32 %v4153, %v4211
  %v4220 = vadd.f32 %v4154, %v4212
  %v4221 = vadd.f32 %v4155, %v4213
  %v4222 = vadd.f32 %v4156, %v4214
  %v4223 = vadd.f32 %v4157, %v4215
  %v4224 = vadd.f32 %v4158, %v4216
  %v4225 = vadd.f32 %v4159, %v4217
  %v4226 = vadd.f32 %v4160, %v4218
  %v4227 = vld [vmem:[%s526] ss:$4 sm:$0xff]
  %v4228 = vld [vmem:[%s342] sm:$0xfe]
  %v4229 = vld [vmem:[%s342 + $0x8] sm:$0xfe]
  %v4230 = vld [vmem:[%s342 + $0x10] sm:$0xfe]
  %v4231 = vld [vmem:[%s342 + $0x18] sm:$0xfe]
  %v4232 = vld [vmem:[%s342 + $0x20] sm:$0xfe]
  %v4233 = vld [vmem:[%s342 + $0x28] sm:$0xfe]
  %v4234 = vld [vmem:[%s342 + $0x30] sm:$0xfe]
  %v4235 = vld [vmem:[%s342 + $0x38] sm:$0xfe]
  %v4237 = vlaneseq
  %v4238 = vshrl.u32 %v4237, 7
  %v4239 = vsub.s32 0, %v4238
  %v4240 = vrot.slane %v4227, %v4239
  %v4241 = vlaneseq
  %v4242 = vshrl.u32 %v4241, 7
  %v4243 = vsub.s32 1, %v4242
  %v4244 = vrot.slane %v4227, %v4243
  %v4245 = vlaneseq
  %v4246 = vshrl.u32 %v4245, 7
  %v4247 = vsub.s32 2, %v4246
  %v4248 = vrot.slane %v4227, %v4247
  %v4249 = vlaneseq
  %v4250 = vshrl.u32 %v4249, 7
  %v4251 = vsub.s32 3, %v4250
  %v4252 = vrot.slane %v4227, %v4251
  %v4253 = vlaneseq
  %v4254 = vshrl.u32 %v4253, 7
  %v4255 = vsub.s32 4, %v4254
  %v4256 = vrot.slane %v4227, %v4255
  %v4257 = vlaneseq
  %v4258 = vshrl.u32 %v4257, 7
  %v4259 = vsub.s32 5, %v4258
  %v4260 = vrot.slane %v4227, %v4259
  %v4261 = vlaneseq
  %v4262 = vshrl.u32 %v4261, 7
  %v4263 = vsub.s32 6, %v4262
  %v4264 = vrot.slane %v4227, %v4263
  %v4265 = vlaneseq
  %v4266 = vshrl.u32 %v4265, 7
  %v4267 = vsub.s32 7, %v4266
  %v4268 = vrot.slane %v4227, %v4267
  %v4277 = vmul.f32 %v4228, %v4240
  %v4278 = vmul.f32 %v4229, %v4244
  %v4279 = vmul.f32 %v4230, %v4248
  %v4280 = vmul.f32 %v4231, %v4252
  %v4281 = vmul.f32 %v4232, %v4256
  %v4282 = vmul.f32 %v4233, %v4260
  %v4283 = vmul.f32 %v4234, %v4264
  %v4284 = vmul.f32 %v4235, %v4268
  %v4293 = vrot.slane %v4277, 1
  %v4294 = vrot.slane %v4278, 1
  %v4295 = vrot.slane %v4279, 1
  %v4296 = vrot.slane %v4280, 1
  %v4297 = vrot.slane %v4281, 1
  %v4298 = vrot.slane %v4282, 1
  %v4299 = vrot.slane %v4283, 1
  %v4300 = vrot.slane %v4284, 1
  %v4309 = vadd.f32 %v4219, %v4293
  %v4310 = vadd.f32 %v4220, %v4294
  %v4311 = vadd.f32 %v4221, %v4295
  %v4312 = vadd.f32 %v4222, %v4296
  %v4313 = vadd.f32 %v4223, %v4297
  %v4314 = vadd.f32 %v4224, %v4298
  %v4315 = vadd.f32 %v4225, %v4299
  %v4316 = vadd.f32 %v4226, %v4300
  %v4317 = vld [vmem:[%s617] ss:$4 sm:$0xff]
  %v4318 = vld [vmem:[%s342] sm:$0xfc]
  %v4319 = vld [vmem:[%s342 + $0x8] sm:$0xfc]
  %v4320 = vld [vmem:[%s342 + $0x10] sm:$0xfc]
  %v4321 = vld [vmem:[%s342 + $0x18] sm:$0xfc]
  %v4322 = vld [vmem:[%s342 + $0x20] sm:$0xfc]
  %v4323 = vld [vmem:[%s342 + $0x28] sm:$0xfc]
  %v4324 = vld [vmem:[%s342 + $0x30] sm:$0xfc]
  %v4325 = vld [vmem:[%s342 + $0x38] sm:$0xfc]
  %v4326 = vld [vmem:[%s342 + $0x40] sm:$0x1]
  %v4327 = vld [vmem:[%s342 + $0x48] sm:$0x1]
  %v4328 = vld [vmem:[%s342 + $0x50] sm:$0x1]
  %v4329 = vld [vmem:[%s342 + $0x58] sm:$0x1]
  %v4330 = vld [vmem:[%s342 + $0x60] sm:$0x1]
  %v4331 = vld [vmem:[%s342 + $0x68] sm:$0x1]
  %v4332 = vld [vmem:[%s342 + $0x70] sm:$0x1]
  %v4333 = vld [vmem:[%s342 + $0x78] sm:$0x1]
  %v4335 = vlaneseq
  %v4336 = vshrl.u32 %v4335, 7
  %v4337 = vsub.s32 0, %v4336
  %v4338 = vrot.slane %v4317, %v4337
  %v4339 = vlaneseq
  %v4340 = vshrl.u32 %v4339, 7
  %v4341 = vsub.s32 1, %v4340
  %v4342 = vrot.slane %v4317, %v4341
  %v4343 = vlaneseq
  %v4344 = vshrl.u32 %v4343, 7
  %v4345 = vsub.s32 2, %v4344
  %v4346 = vrot.slane %v4317, %v4345
  %v4347 = vlaneseq
  %v4348 = vshrl.u32 %v4347, 7
  %v4349 = vsub.s32 3, %v4348
  %v4350 = vrot.slane %v4317, %v4349
  %v4351 = vlaneseq
  %v4352 = vshrl.u32 %v4351, 7
  %v4353 = vsub.s32 4, %v4352
  %v4354 = vrot.slane %v4317, %v4353
  %v4355 = vlaneseq
  %v4356 = vshrl.u32 %v4355, 7
  %v4357 = vsub.s32 5, %v4356
  %v4358 = vrot.slane %v4317, %v4357
  %v4359 = vlaneseq
  %v4360 = vshrl.u32 %v4359, 7
  %v4361 = vsub.s32 6, %v4360
  %v4362 = vrot.slane %v4317, %v4361
  %v4363 = vlaneseq
  %v4364 = vshrl.u32 %v4363, 7
  %v4365 = vsub.s32 7, %v4364
  %v4366 = vrot.slane %v4317, %v4365
  %v4375 = vmul.f32 %v4318, %v4338
  %v4376 = vmul.f32 %v4319, %v4342
  %v4377 = vmul.f32 %v4320, %v4346
  %v4378 = vmul.f32 %v4321, %v4350
  %v4379 = vmul.f32 %v4322, %v4354
  %v4380 = vmul.f32 %v4323, %v4358
  %v4381 = vmul.f32 %v4324, %v4362
  %v4382 = vmul.f32 %v4325, %v4366
  %v4383 = vmul.f32 %v4326, %v4338
  %v4384 = vmul.f32 %v4327, %v4342
  %v4385 = vmul.f32 %v4328, %v4346
  %v4386 = vmul.f32 %v4329, %v4350
  %v4387 = vmul.f32 %v4330, %v4354
  %v4388 = vmul.f32 %v4331, %v4358
  %v4389 = vmul.f32 %v4332, %v4362
  %v4390 = vmul.f32 %v4333, %v4366
  %v4407 = vrot.slane %v4375, 2
  %v4408 = vrot.slane %v4383, 2
  %v4409 = vsel %vm708, %v4407, %v4408
  %v4410 = vrot.slane %v4376, 2
  %v4411 = vrot.slane %v4384, 2
  %v4412 = vsel %vm708, %v4410, %v4411
  %v4413 = vrot.slane %v4377, 2
  %v4414 = vrot.slane %v4385, 2
  %v4415 = vsel %vm708, %v4413, %v4414
  %v4416 = vrot.slane %v4378, 2
  %v4417 = vrot.slane %v4386, 2
  %v4418 = vsel %vm708, %v4416, %v4417
  %v4419 = vrot.slane %v4379, 2
  %v4420 = vrot.slane %v4387, 2
  %v4421 = vsel %vm708, %v4419, %v4420
  %v4422 = vrot.slane %v4380, 2
  %v4423 = vrot.slane %v4388, 2
  %v4424 = vsel %vm708, %v4422, %v4423
  %v4425 = vrot.slane %v4381, 2
  %v4426 = vrot.slane %v4389, 2
  %v4427 = vsel %vm708, %v4425, %v4426
  %v4428 = vrot.slane %v4382, 2
  %v4429 = vrot.slane %v4390, 2
  %v4430 = vsel %vm708, %v4428, %v4429
  %v4439 = vadd.f32 %v4309, %v4409
  %v4440 = vadd.f32 %v4310, %v4412
  %v4441 = vadd.f32 %v4311, %v4415
  %v4442 = vadd.f32 %v4312, %v4418
  %v4443 = vadd.f32 %v4313, %v4421
  %v4444 = vadd.f32 %v4314, %v4424
  %v4445 = vadd.f32 %v4315, %v4427
  %v4446 = vadd.f32 %v4316, %v4430
  %v4447 = vld [vmem:[%s749] ss:$4 sm:$0xff]
  %v4448 = vld [vmem:[%s400] sm:$0x7f]
  %v4449 = vld [vmem:[%s400 + $0x8] sm:$0x7f]
  %v4450 = vld [vmem:[%s400 + $0x10] sm:$0x7f]
  %v4451 = vld [vmem:[%s400 + $0x18] sm:$0x7f]
  %v4452 = vld [vmem:[%s400 + $0x20] sm:$0x7f]
  %v4453 = vld [vmem:[%s400 + $0x28] sm:$0x7f]
  %v4454 = vld [vmem:[%s400 + $0x30] sm:$0x7f]
  %v4455 = vld [vmem:[%s400 + $0x38] sm:$0x7f]
  %v4457 = vlaneseq
  %v4458 = vshrl.u32 %v4457, 7
  %v4459 = vsub.s32 0, %v4458
  %v4460 = vrot.slane %v4447, %v4459
  %v4461 = vlaneseq
  %v4462 = vshrl.u32 %v4461, 7
  %v4463 = vsub.s32 1, %v4462
  %v4464 = vrot.slane %v4447, %v4463
  %v4465 = vlaneseq
  %v4466 = vshrl.u32 %v4465, 7
  %v4467 = vsub.s32 2, %v4466
  %v4468 = vrot.slane %v4447, %v4467
  %v4469 = vlaneseq
  %v4470 = vshrl.u32 %v4469, 7
  %v4471 = vsub.s32 3, %v4470
  %v4472 = vrot.slane %v4447, %v4471
  %v4473 = vlaneseq
  %v4474 = vshrl.u32 %v4473, 7
  %v4475 = vsub.s32 4, %v4474
  %v4476 = vrot.slane %v4447, %v4475
  %v4477 = vlaneseq
  %v4478 = vshrl.u32 %v4477, 7
  %v4479 = vsub.s32 5, %v4478
  %v4480 = vrot.slane %v4447, %v4479
  %v4481 = vlaneseq
  %v4482 = vshrl.u32 %v4481, 7
  %v4483 = vsub.s32 6, %v4482
  %v4484 = vrot.slane %v4447, %v4483
  %v4485 = vlaneseq
  %v4486 = vshrl.u32 %v4485, 7
  %v4487 = vsub.s32 7, %v4486
  %v4488 = vrot.slane %v4447, %v4487
  %v4497 = vmul.f32 %v4448, %v4460
  %v4498 = vmul.f32 %v4449, %v4464
  %v4499 = vmul.f32 %v4450, %v4468
  %v4500 = vmul.f32 %v4451, %v4472
  %v4501 = vmul.f32 %v4452, %v4476
  %v4502 = vmul.f32 %v4453, %v4480
  %v4503 = vmul.f32 %v4454, %v4484
  %v4504 = vmul.f32 %v4455, %v4488
  %v4505 = vadd.f32 %v4439, %v4497
  %v4506 = vadd.f32 %v4440, %v4498
  %v4507 = vadd.f32 %v4441, %v4499
  %v4508 = vadd.f32 %v4442, %v4500
  %v4509 = vadd.f32 %v4443, %v4501
  %v4510 = vadd.f32 %v4444, %v4502
  %v4511 = vadd.f32 %v4445, %v4503
  %v4512 = vadd.f32 %v4446, %v4504
  %v4513 = vld [vmem:[%s816] ss:$4 sm:$0xff]
  %v4514 = vld [vmem:[%s400] sm:$0xfe]
  %v4515 = vld [vmem:[%s400 + $0x8] sm:$0xfe]
  %v4516 = vld [vmem:[%s400 + $0x10] sm:$0xfe]
  %v4517 = vld [vmem:[%s400 + $0x18] sm:$0xfe]
  %v4518 = vld [vmem:[%s400 + $0x20] sm:$0xfe]
  %v4519 = vld [vmem:[%s400 + $0x28] sm:$0xfe]
  %v4520 = vld [vmem:[%s400 + $0x30] sm:$0xfe]
  %v4521 = vld [vmem:[%s400 + $0x38] sm:$0xfe]
  %v4523 = vlaneseq
  %v4524 = vshrl.u32 %v4523, 7
  %v4525 = vsub.s32 0, %v4524
  %v4526 = vrot.slane %v4513, %v4525
  %v4527 = vlaneseq
  %v4528 = vshrl.u32 %v4527, 7
  %v4529 = vsub.s32 1, %v4528
  %v4530 = vrot.slane %v4513, %v4529
  %v4531 = vlaneseq
  %v4532 = vshrl.u32 %v4531, 7
  %v4533 = vsub.s32 2, %v4532
  %v4534 = vrot.slane %v4513, %v4533
  %v4535 = vlaneseq
  %v4536 = vshrl.u32 %v4535, 7
  %v4537 = vsub.s32 3, %v4536
  %v4538 = vrot.slane %v4513, %v4537
  %v4539 = vlaneseq
  %v4540 = vshrl.u32 %v4539, 7
  %v4541 = vsub.s32 4, %v4540
  %v4542 = vrot.slane %v4513, %v4541
  %v4543 = vlaneseq
  %v4544 = vshrl.u32 %v4543, 7
  %v4545 = vsub.s32 5, %v4544
  %v4546 = vrot.slane %v4513, %v4545
  %v4547 = vlaneseq
  %v4548 = vshrl.u32 %v4547, 7
  %v4549 = vsub.s32 6, %v4548
  %v4550 = vrot.slane %v4513, %v4549
  %v4551 = vlaneseq
  %v4552 = vshrl.u32 %v4551, 7
  %v4553 = vsub.s32 7, %v4552
  %v4554 = vrot.slane %v4513, %v4553
  %v4563 = vmul.f32 %v4514, %v4526
  %v4564 = vmul.f32 %v4515, %v4530
  %v4565 = vmul.f32 %v4516, %v4534
  %v4566 = vmul.f32 %v4517, %v4538
  %v4567 = vmul.f32 %v4518, %v4542
  %v4568 = vmul.f32 %v4519, %v4546
  %v4569 = vmul.f32 %v4520, %v4550
  %v4570 = vmul.f32 %v4521, %v4554
  %v4579 = vrot.slane %v4563, 1
  %v4580 = vrot.slane %v4564, 1
  %v4581 = vrot.slane %v4565, 1
  %v4582 = vrot.slane %v4566, 1
  %v4583 = vrot.slane %v4567, 1
  %v4584 = vrot.slane %v4568, 1
  %v4585 = vrot.slane %v4569, 1
  %v4586 = vrot.slane %v4570, 1
  %v4595 = vadd.f32 %v4505, %v4579
  %v4596 = vadd.f32 %v4506, %v4580
  %v4597 = vadd.f32 %v4507, %v4581
  %v4598 = vadd.f32 %v4508, %v4582
  %v4599 = vadd.f32 %v4509, %v4583
  %v4600 = vadd.f32 %v4510, %v4584
  %v4601 = vadd.f32 %v4511, %v4585
  %v4602 = vadd.f32 %v4512, %v4586
  %v4603 = vld [vmem:[%s907] ss:$4 sm:$0xff]
  %v4604 = vld [vmem:[%s400] sm:$0xfc]
  %v4605 = vld [vmem:[%s400 + $0x8] sm:$0xfc]
  %v4606 = vld [vmem:[%s400 + $0x10] sm:$0xfc]
  %v4607 = vld [vmem:[%s400 + $0x18] sm:$0xfc]
  %v4608 = vld [vmem:[%s400 + $0x20] sm:$0xfc]
  %v4609 = vld [vmem:[%s400 + $0x28] sm:$0xfc]
  %v4610 = vld [vmem:[%s400 + $0x30] sm:$0xfc]
  %v4611 = vld [vmem:[%s400 + $0x38] sm:$0xfc]
  %v4612 = vld [vmem:[%s400 + $0x40] sm:$0x1]
  %v4613 = vld [vmem:[%s400 + $0x48] sm:$0x1]
  %v4614 = vld [vmem:[%s400 + $0x50] sm:$0x1]
  %v4615 = vld [vmem:[%s400 + $0x58] sm:$0x1]
  %v4616 = vld [vmem:[%s400 + $0x60] sm:$0x1]
  %v4617 = vld [vmem:[%s400 + $0x68] sm:$0x1]
  %v4618 = vld [vmem:[%s400 + $0x70] sm:$0x1]
  %v4619 = vld [vmem:[%s400 + $0x78] sm:$0x1]
  %v4621 = vlaneseq
  %v4622 = vshrl.u32 %v4621, 7
  %v4623 = vsub.s32 0, %v4622
  %v4624 = vrot.slane %v4603, %v4623
  %v4625 = vlaneseq
  %v4626 = vshrl.u32 %v4625, 7
  %v4627 = vsub.s32 1, %v4626
  %v4628 = vrot.slane %v4603, %v4627
  %v4629 = vlaneseq
  %v4630 = vshrl.u32 %v4629, 7
  %v4631 = vsub.s32 2, %v4630
  %v4632 = vrot.slane %v4603, %v4631
  %v4633 = vlaneseq
  %v4634 = vshrl.u32 %v4633, 7
  %v4635 = vsub.s32 3, %v4634
  %v4636 = vrot.slane %v4603, %v4635
  %v4637 = vlaneseq
  %v4638 = vshrl.u32 %v4637, 7
  %v4639 = vsub.s32 4, %v4638
  %v4640 = vrot.slane %v4603, %v4639
  %v4641 = vlaneseq
  %v4642 = vshrl.u32 %v4641, 7
  %v4643 = vsub.s32 5, %v4642
  %v4644 = vrot.slane %v4603, %v4643
  %v4645 = vlaneseq
  %v4646 = vshrl.u32 %v4645, 7
  %v4647 = vsub.s32 6, %v4646
  %v4648 = vrot.slane %v4603, %v4647
  %v4649 = vlaneseq
  %v4650 = vshrl.u32 %v4649, 7
  %v4651 = vsub.s32 7, %v4650
  %v4652 = vrot.slane %v4603, %v4651
  %v4661 = vmul.f32 %v4604, %v4624
  %v4662 = vmul.f32 %v4605, %v4628
  %v4663 = vmul.f32 %v4606, %v4632
  %v4664 = vmul.f32 %v4607, %v4636
  %v4665 = vmul.f32 %v4608, %v4640
  %v4666 = vmul.f32 %v4609, %v4644
  %v4667 = vmul.f32 %v4610, %v4648
  %v4668 = vmul.f32 %v4611, %v4652
  %v4669 = vmul.f32 %v4612, %v4624
  %v4670 = vmul.f32 %v4613, %v4628
  %v4671 = vmul.f32 %v4614, %v4632
  %v4672 = vmul.f32 %v4615, %v4636
  %v4673 = vmul.f32 %v4616, %v4640
  %v4674 = vmul.f32 %v4617, %v4644
  %v4675 = vmul.f32 %v4618, %v4648
  %v4676 = vmul.f32 %v4619, %v4652
  %v4693 = vrot.slane %v4661, 2
  %v4694 = vrot.slane %v4669, 2
  %v4695 = vsel %vm708, %v4693, %v4694
  %v4696 = vrot.slane %v4662, 2
  %v4697 = vrot.slane %v4670, 2
  %v4698 = vsel %vm708, %v4696, %v4697
  %v4699 = vrot.slane %v4663, 2
  %v4700 = vrot.slane %v4671, 2
  %v4701 = vsel %vm708, %v4699, %v4700
  %v4702 = vrot.slane %v4664, 2
  %v4703 = vrot.slane %v4672, 2
  %v4704 = vsel %vm708, %v4702, %v4703
  %v4705 = vrot.slane %v4665, 2
  %v4706 = vrot.slane %v4673, 2
  %v4707 = vsel %vm708, %v4705, %v4706
  %v4708 = vrot.slane %v4666, 2
  %v4709 = vrot.slane %v4674, 2
  %v4710 = vsel %vm708, %v4708, %v4709
  %v4711 = vrot.slane %v4667, 2
  %v4712 = vrot.slane %v4675, 2
  %v4713 = vsel %vm708, %v4711, %v4712
  %v4714 = vrot.slane %v4668, 2
  %v4715 = vrot.slane %v4676, 2
  %v4716 = vsel %vm708, %v4714, %v4715
  %v4725 = vadd.f32 %v4595, %v4695
  %v4726 = vadd.f32 %v4596, %v4698
  %v4727 = vadd.f32 %v4597, %v4701
  %v4728 = vadd.f32 %v4598, %v4704
  %v4729 = vadd.f32 %v4599, %v4707
  %v4730 = vadd.f32 %v4600, %v4710
  %v4731 = vadd.f32 %v4601, %v4713
  %v4732 = vadd.f32 %v4602, %v4716
  %s4733 = scalar_lea.vmem %s4, 256
  %4734 = vst [vmem:[%s4733] sm:$0x7f] %v4725
  %4735 = vst [vmem:[%s4733 + $0x8] sm:$0x7f] %v4726
  %4736 = vst [vmem:[%s4733 + $0x10] sm:$0x7f] %v4727
  %4737 = vst [vmem:[%s4733 + $0x18] sm:$0x7f] %v4728
  %4738 = vst [vmem:[%s4733 + $0x20] sm:$0x7f] %v4729
  %4739 = vst [vmem:[%s4733 + $0x28] sm:$0x7f] %v4730
  %4740 = vst [vmem:[%s4733 + $0x30] sm:$0x7f] %v4731
  %4741 = vst.msk [vmem:[%s4733 + $0x38] sm:$0x7f] %vm1045, %v4732
  %v4742 = vsel %vm1047, %v4725, 0.0
  %v4743 = vrot.slane %v4742, 4
  %v4744 = vadd.f32 %v4742, %v4743
  %v4745 = vrot.slane %v4744, 2
  %v4746 = vadd.f32 %v4744, %v4745
  %v4747 = vrot.slane %v4746, 1
  %v4748 = vadd.f32 %v4746, %v4747
  %v4749 = vsel %vm1047, %v4726, 0.0
  %v4750 = vrot.slane %v4749, 4
  %v4751 = vadd.f32 %v4749, %v4750
  %v4752 = vrot.slane %v4751, 2
  %v4753 = vadd.f32 %v4751, %v4752
  %v4754 = vrot.slane %v4753, 1
  %v4755 = vadd.f32 %v4753, %v4754
  %v4756 = vsel %vm1047, %v4727, 0.0
  %v4757 = vrot.slane %v4756, 4
  %v4758 = vadd.f32 %v4756, %v4757
  %v4759 = vrot.slane %v4758, 2
  %v4760 = vadd.f32 %v4758, %v4759
  %v4761 = vrot.slane %v4760, 1
  %v4762 = vadd.f32 %v4760, %v4761
  %v4763 = vsel %vm1047, %v4728, 0.0
  %v4764 = vrot.slane %v4763, 4
  %v4765 = vadd.f32 %v4763, %v4764
  %v4766 = vrot.slane %v4765, 2
  %v4767 = vadd.f32 %v4765, %v4766
  %v4768 = vrot.slane %v4767, 1
  %v4769 = vadd.f32 %v4767, %v4768
  %v4770 = vsel %vm1047, %v4729, 0.0
  %v4771 = vrot.slane %v4770, 4
  %v4772 = vadd.f32 %v4770, %v4771
  %v4773 = vrot.slane %v4772, 2
  %v4774 = vadd.f32 %v4772, %v4773
  %v4775 = vrot.slane %v4774, 1
  %v4776 = vadd.f32 %v4774, %v4775
  %v4777 = vsel %vm1047, %v4730, 0.0
  %v4778 = vrot.slane %v4777, 4
  %v4779 = vadd.f32 %v4777, %v4778
  %v4780 = vrot.slane %v4779, 2
  %v4781 = vadd.f32 %v4779, %v4780
  %v4782 = vrot.slane %v4781, 1
  %v4783 = vadd.f32 %v4781, %v4782
  %v4784 = vsel %vm1047, %v4731, 0.0
  %v4785 = vrot.slane %v4784, 4
  %v4786 = vadd.f32 %v4784, %v4785
  %v4787 = vrot.slane %v4786, 2
  %v4788 = vadd.f32 %v4786, %v4787
  %v4789 = vrot.slane %v4788, 1
  %v4790 = vadd.f32 %v4788, %v4789
  %v4791 = vsel %vm1045, %v4732, 0.0
  %v4792 = vrot.slane %v4791, 4
  %v4793 = vadd.f32 %v4791, %v4792
  %v4794 = vrot.slane %v4793, 2
  %v4795 = vadd.f32 %v4793, %v4794
  %v4796 = vrot.slane %v4795, 1
  %v4797 = vadd.f32 %v4795, %v4796
  %v4798 = vadd.f32 %v3875, %v4748
  %v4799 = vadd.f32 %v3876, %v4755
  %v4800 = vadd.f32 %v3877, %v4762
  %v4801 = vadd.f32 %v3878, %v4769
  %v4802 = vadd.f32 %v3879, %v4776
  %v4803 = vadd.f32 %v3880, %v4783
  %v4804 = vadd.f32 %v3881, %v4790
  %v4805 = vadd.f32 %v3882, %v4797
  %v4806 = vld [vmem:[%s1] ss:$4 sm:$0xff]
  %v4807 = vld [vmem:[%s342] sm:$0x7f]
  %v4808 = vld [vmem:[%s342 + $0x8] sm:$0x7f]
  %v4809 = vld [vmem:[%s342 + $0x10] sm:$0x7f]
  %v4810 = vld [vmem:[%s342 + $0x18] sm:$0x7f]
  %v4811 = vld [vmem:[%s342 + $0x20] sm:$0x7f]
  %v4812 = vld [vmem:[%s342 + $0x28] sm:$0x7f]
  %v4813 = vld [vmem:[%s342 + $0x30] sm:$0x7f]
  %v4814 = vld [vmem:[%s342 + $0x38] sm:$0x7f]
  %v4816 = vlaneseq
  %v4817 = vshrl.u32 %v4816, 7
  %v4818 = vsub.s32 0, %v4817
  %v4819 = vrot.slane %v4806, %v4818
  %v4820 = vlaneseq
  %v4821 = vshrl.u32 %v4820, 7
  %v4822 = vsub.s32 1, %v4821
  %v4823 = vrot.slane %v4806, %v4822
  %v4824 = vlaneseq
  %v4825 = vshrl.u32 %v4824, 7
  %v4826 = vsub.s32 2, %v4825
  %v4827 = vrot.slane %v4806, %v4826
  %v4828 = vlaneseq
  %v4829 = vshrl.u32 %v4828, 7
  %v4830 = vsub.s32 3, %v4829
  %v4831 = vrot.slane %v4806, %v4830
  %v4832 = vlaneseq
  %v4833 = vshrl.u32 %v4832, 7
  %v4834 = vsub.s32 4, %v4833
  %v4835 = vrot.slane %v4806, %v4834
  %v4836 = vlaneseq
  %v4837 = vshrl.u32 %v4836, 7
  %v4838 = vsub.s32 5, %v4837
  %v4839 = vrot.slane %v4806, %v4838
  %v4840 = vlaneseq
  %v4841 = vshrl.u32 %v4840, 7
  %v4842 = vsub.s32 6, %v4841
  %v4843 = vrot.slane %v4806, %v4842
  %v4844 = vlaneseq
  %v4845 = vshrl.u32 %v4844, 7
  %v4846 = vsub.s32 7, %v4845
  %v4847 = vrot.slane %v4806, %v4846
  %v4856 = vmul.f32 %v4807, %v4819
  %v4857 = vmul.f32 %v4808, %v4823
  %v4858 = vmul.f32 %v4809, %v4827
  %v4859 = vmul.f32 %v4810, %v4831
  %v4860 = vmul.f32 %v4811, %v4835
  %v4861 = vmul.f32 %v4812, %v4839
  %v4862 = vmul.f32 %v4813, %v4843
  %v4863 = vmul.f32 %v4814, %v4847
  %v4864 = vld [vmem:[%s1170] ss:$4 sm:$0xff]
  %v4865 = vld [vmem:[%s342] sm:$0xfe]
  %v4866 = vld [vmem:[%s342 + $0x8] sm:$0xfe]
  %v4867 = vld [vmem:[%s342 + $0x10] sm:$0xfe]
  %v4868 = vld [vmem:[%s342 + $0x18] sm:$0xfe]
  %v4869 = vld [vmem:[%s342 + $0x20] sm:$0xfe]
  %v4870 = vld [vmem:[%s342 + $0x28] sm:$0xfe]
  %v4871 = vld [vmem:[%s342 + $0x30] sm:$0xfe]
  %v4872 = vld [vmem:[%s342 + $0x38] sm:$0xfe]
  %v4874 = vlaneseq
  %v4875 = vshrl.u32 %v4874, 7
  %v4876 = vsub.s32 0, %v4875
  %v4877 = vrot.slane %v4864, %v4876
  %v4878 = vlaneseq
  %v4879 = vshrl.u32 %v4878, 7
  %v4880 = vsub.s32 1, %v4879
  %v4881 = vrot.slane %v4864, %v4880
  %v4882 = vlaneseq
  %v4883 = vshrl.u32 %v4882, 7
  %v4884 = vsub.s32 2, %v4883
  %v4885 = vrot.slane %v4864, %v4884
  %v4886 = vlaneseq
  %v4887 = vshrl.u32 %v4886, 7
  %v4888 = vsub.s32 3, %v4887
  %v4889 = vrot.slane %v4864, %v4888
  %v4890 = vlaneseq
  %v4891 = vshrl.u32 %v4890, 7
  %v4892 = vsub.s32 4, %v4891
  %v4893 = vrot.slane %v4864, %v4892
  %v4894 = vlaneseq
  %v4895 = vshrl.u32 %v4894, 7
  %v4896 = vsub.s32 5, %v4895
  %v4897 = vrot.slane %v4864, %v4896
  %v4898 = vlaneseq
  %v4899 = vshrl.u32 %v4898, 7
  %v4900 = vsub.s32 6, %v4899
  %v4901 = vrot.slane %v4864, %v4900
  %v4902 = vlaneseq
  %v4903 = vshrl.u32 %v4902, 7
  %v4904 = vsub.s32 7, %v4903
  %v4905 = vrot.slane %v4864, %v4904
  %v4914 = vmul.f32 %v4865, %v4877
  %v4915 = vmul.f32 %v4866, %v4881
  %v4916 = vmul.f32 %v4867, %v4885
  %v4917 = vmul.f32 %v4868, %v4889
  %v4918 = vmul.f32 %v4869, %v4893
  %v4919 = vmul.f32 %v4870, %v4897
  %v4920 = vmul.f32 %v4871, %v4901
  %v4921 = vmul.f32 %v4872, %v4905
  %v4930 = vrot.slane %v4914, 1
  %v4931 = vrot.slane %v4915, 1
  %v4932 = vrot.slane %v4916, 1
  %v4933 = vrot.slane %v4917, 1
  %v4934 = vrot.slane %v4918, 1
  %v4935 = vrot.slane %v4919, 1
  %v4936 = vrot.slane %v4920, 1
  %v4937 = vrot.slane %v4921, 1
  %v4946 = vadd.f32 %v4856, %v4930
  %v4947 = vadd.f32 %v4857, %v4931
  %v4948 = vadd.f32 %v4858, %v4932
  %v4949 = vadd.f32 %v4859, %v4933
  %v4950 = vadd.f32 %v4860, %v4934
  %v4951 = vadd.f32 %v4861, %v4935
  %v4952 = vadd.f32 %v4862, %v4936
  %v4953 = vadd.f32 %v4863, %v4937
  %v4954 = vld [vmem:[%s1261] ss:$4 sm:$0xff]
  %v4955 = vld [vmem:[%s342] sm:$0xfc]
  %v4956 = vld [vmem:[%s342 + $0x8] sm:$0xfc]
  %v4957 = vld [vmem:[%s342 + $0x10] sm:$0xfc]
  %v4958 = vld [vmem:[%s342 + $0x18] sm:$0xfc]
  %v4959 = vld [vmem:[%s342 + $0x20] sm:$0xfc]
  %v4960 = vld [vmem:[%s342 + $0x28] sm:$0xfc]
  %v4961 = vld [vmem:[%s342 + $0x30] sm:$0xfc]
  %v4962 = vld [vmem:[%s342 + $0x38] sm:$0xfc]
  %v4963 = vld [vmem:[%s342 + $0x40] sm:$0x1]
  %v4964 = vld [vmem:[%s342 + $0x48] sm:$0x1]
  %v4965 = vld [vmem:[%s342 + $0x50] sm:$0x1]
  %v4966 = vld [vmem:[%s342 + $0x58] sm:$0x1]
  %v4967 = vld [vmem:[%s342 + $0x60] sm:$0x1]
  %v4968 = vld [vmem:[%s342 + $0x68] sm:$0x1]
  %v4969 = vld [vmem:[%s342 + $0x70] sm:$0x1]
  %v4970 = vld [vmem:[%s342 + $0x78] sm:$0x1]
  %v4972 = vlaneseq
  %v4973 = vshrl.u32 %v4972, 7
  %v4974 = vsub.s32 0, %v4973
  %v4975 = vrot.slane %v4954, %v4974
  %v4976 = vlaneseq
  %v4977 = vshrl.u32 %v4976, 7
  %v4978 = vsub.s32 1, %v4977
  %v4979 = vrot.slane %v4954, %v4978
  %v4980 = vlaneseq
  %v4981 = vshrl.u32 %v4980, 7
  %v4982 = vsub.s32 2, %v4981
  %v4983 = vrot.slane %v4954, %v4982
  %v4984 = vlaneseq
  %v4985 = vshrl.u32 %v4984, 7
  %v4986 = vsub.s32 3, %v4985
  %v4987 = vrot.slane %v4954, %v4986
  %v4988 = vlaneseq
  %v4989 = vshrl.u32 %v4988, 7
  %v4990 = vsub.s32 4, %v4989
  %v4991 = vrot.slane %v4954, %v4990
  %v4992 = vlaneseq
  %v4993 = vshrl.u32 %v4992, 7
  %v4994 = vsub.s32 5, %v4993
  %v4995 = vrot.slane %v4954, %v4994
  %v4996 = vlaneseq
  %v4997 = vshrl.u32 %v4996, 7
  %v4998 = vsub.s32 6, %v4997
  %v4999 = vrot.slane %v4954, %v4998
  %v5000 = vlaneseq
  %v5001 = vshrl.u32 %v5000, 7
  %v5002 = vsub.s32 7, %v5001
  %v5003 = vrot.slane %v4954, %v5002
  %v5012 = vmul.f32 %v4955, %v4975
  %v5013 = vmul.f32 %v4956, %v4979
  %v5014 = vmul.f32 %v4957, %v4983
  %v5015 = vmul.f32 %v4958, %v4987
  %v5016 = vmul.f32 %v4959, %v4991
  %v5017 = vmul.f32 %v4960, %v4995
  %v5018 = vmul.f32 %v4961, %v4999
  %v5019 = vmul.f32 %v4962, %v5003
  %v5020 = vmul.f32 %v4963, %v4975
  %v5021 = vmul.f32 %v4964, %v4979
  %v5022 = vmul.f32 %v4965, %v4983
  %v5023 = vmul.f32 %v4966, %v4987
  %v5024 = vmul.f32 %v4967, %v4991
  %v5025 = vmul.f32 %v4968, %v4995
  %v5026 = vmul.f32 %v4969, %v4999
  %v5027 = vmul.f32 %v4970, %v5003
  %v5044 = vrot.slane %v5012, 2
  %v5045 = vrot.slane %v5020, 2
  %v5046 = vsel %vm708, %v5044, %v5045
  %v5047 = vrot.slane %v5013, 2
  %v5048 = vrot.slane %v5021, 2
  %v5049 = vsel %vm708, %v5047, %v5048
  %v5050 = vrot.slane %v5014, 2
  %v5051 = vrot.slane %v5022, 2
  %v5052 = vsel %vm708, %v5050, %v5051
  %v5053 = vrot.slane %v5015, 2
  %v5054 = vrot.slane %v5023, 2
  %v5055 = vsel %vm708, %v5053, %v5054
  %v5056 = vrot.slane %v5016, 2
  %v5057 = vrot.slane %v5024, 2
  %v5058 = vsel %vm708, %v5056, %v5057
  %v5059 = vrot.slane %v5017, 2
  %v5060 = vrot.slane %v5025, 2
  %v5061 = vsel %vm708, %v5059, %v5060
  %v5062 = vrot.slane %v5018, 2
  %v5063 = vrot.slane %v5026, 2
  %v5064 = vsel %vm708, %v5062, %v5063
  %v5065 = vrot.slane %v5019, 2
  %v5066 = vrot.slane %v5027, 2
  %v5067 = vsel %vm708, %v5065, %v5066
  %v5076 = vadd.f32 %v4946, %v5046
  %v5077 = vadd.f32 %v4947, %v5049
  %v5078 = vadd.f32 %v4948, %v5052
  %v5079 = vadd.f32 %v4949, %v5055
  %v5080 = vadd.f32 %v4950, %v5058
  %v5081 = vadd.f32 %v4951, %v5061
  %v5082 = vadd.f32 %v4952, %v5064
  %v5083 = vadd.f32 %v4953, %v5067
  %v5084 = vld [vmem:[%s467] ss:$4 sm:$0xff]
  %v5085 = vld [vmem:[%s400] sm:$0x7f]
  %v5086 = vld [vmem:[%s400 + $0x8] sm:$0x7f]
  %v5087 = vld [vmem:[%s400 + $0x10] sm:$0x7f]
  %v5088 = vld [vmem:[%s400 + $0x18] sm:$0x7f]
  %v5089 = vld [vmem:[%s400 + $0x20] sm:$0x7f]
  %v5090 = vld [vmem:[%s400 + $0x28] sm:$0x7f]
  %v5091 = vld [vmem:[%s400 + $0x30] sm:$0x7f]
  %v5092 = vld [vmem:[%s400 + $0x38] sm:$0x7f]
  %v5094 = vlaneseq
  %v5095 = vshrl.u32 %v5094, 7
  %v5096 = vsub.s32 0, %v5095
  %v5097 = vrot.slane %v5084, %v5096
  %v5098 = vlaneseq
  %v5099 = vshrl.u32 %v5098, 7
  %v5100 = vsub.s32 1, %v5099
  %v5101 = vrot.slane %v5084, %v5100
  %v5102 = vlaneseq
  %v5103 = vshrl.u32 %v5102, 7
  %v5104 = vsub.s32 2, %v5103
  %v5105 = vrot.slane %v5084, %v5104
  %v5106 = vlaneseq
  %v5107 = vshrl.u32 %v5106, 7
  %v5108 = vsub.s32 3, %v5107
  %v5109 = vrot.slane %v5084, %v5108
  %v5110 = vlaneseq
  %v5111 = vshrl.u32 %v5110, 7
  %v5112 = vsub.s32 4, %v5111
  %v5113 = vrot.slane %v5084, %v5112
  %v5114 = vlaneseq
  %v5115 = vshrl.u32 %v5114, 7
  %v5116 = vsub.s32 5, %v5115
  %v5117 = vrot.slane %v5084, %v5116
  %v5118 = vlaneseq
  %v5119 = vshrl.u32 %v5118, 7
  %v5120 = vsub.s32 6, %v5119
  %v5121 = vrot.slane %v5084, %v5120
  %v5122 = vlaneseq
  %v5123 = vshrl.u32 %v5122, 7
  %v5124 = vsub.s32 7, %v5123
  %v5125 = vrot.slane %v5084, %v5124
  %v5134 = vmul.f32 %v5085, %v5097
  %v5135 = vmul.f32 %v5086, %v5101
  %v5136 = vmul.f32 %v5087, %v5105
  %v5137 = vmul.f32 %v5088, %v5109
  %v5138 = vmul.f32 %v5089, %v5113
  %v5139 = vmul.f32 %v5090, %v5117
  %v5140 = vmul.f32 %v5091, %v5121
  %v5141 = vmul.f32 %v5092, %v5125
  %v5142 = vadd.f32 %v5076, %v5134
  %v5143 = vadd.f32 %v5077, %v5135
  %v5144 = vadd.f32 %v5078, %v5136
  %v5145 = vadd.f32 %v5079, %v5137
  %v5146 = vadd.f32 %v5080, %v5138
  %v5147 = vadd.f32 %v5081, %v5139
  %v5148 = vadd.f32 %v5082, %v5140
  %v5149 = vadd.f32 %v5083, %v5141
  %v5150 = vld [vmem:[%s526] ss:$4 sm:$0xff]
  %v5151 = vld [vmem:[%s400] sm:$0xfe]
  %v5152 = vld [vmem:[%s400 + $0x8] sm:$0xfe]
  %v5153 = vld [vmem:[%s400 + $0x10] sm:$0xfe]
  %v5154 = vld [vmem:[%s400 + $0x18] sm:$0xfe]
  %v5155 = vld [vmem:[%s400 + $0x20] sm:$0xfe]
  %v5156 = vld [vmem:[%s400 + $0x28] sm:$0xfe]
  %v5157 = vld [vmem:[%s400 + $0x30] sm:$0xfe]
  %v5158 = vld [vmem:[%s400 + $0x38] sm:$0xfe]
  %v5160 = vlaneseq
  %v5161 = vshrl.u32 %v5160, 7
  %v5162 = vsub.s32 0, %v5161
  %v5163 = vrot.slane %v5150, %v5162
  %v5164 = vlaneseq
  %v5165 = vshrl.u32 %v5164, 7
  %v5166 = vsub.s32 1, %v5165
  %v5167 = vrot.slane %v5150, %v5166
  %v5168 = vlaneseq
  %v5169 = vshrl.u32 %v5168, 7
  %v5170 = vsub.s32 2, %v5169
  %v5171 = vrot.slane %v5150, %v5170
  %v5172 = vlaneseq
  %v5173 = vshrl.u32 %v5172, 7
  %v5174 = vsub.s32 3, %v5173
  %v5175 = vrot.slane %v5150, %v5174
  %v5176 = vlaneseq
  %v5177 = vshrl.u32 %v5176, 7
  %v5178 = vsub.s32 4, %v5177
  %v5179 = vrot.slane %v5150, %v5178
  %v5180 = vlaneseq
  %v5181 = vshrl.u32 %v5180, 7
  %v5182 = vsub.s32 5, %v5181
  %v5183 = vrot.slane %v5150, %v5182
  %v5184 = vlaneseq
  %v5185 = vshrl.u32 %v5184, 7
  %v5186 = vsub.s32 6, %v5185
  %v5187 = vrot.slane %v5150, %v5186
  %v5188 = vlaneseq
  %v5189 = vshrl.u32 %v5188, 7
  %v5190 = vsub.s32 7, %v5189
  %v5191 = vrot.slane %v5150, %v5190
  %v5200 = vmul.f32 %v5151, %v5163
  %v5201 = vmul.f32 %v5152, %v5167
  %v5202 = vmul.f32 %v5153, %v5171
  %v5203 = vmul.f32 %v5154, %v5175
  %v5204 = vmul.f32 %v5155, %v5179
  %v5205 = vmul.f32 %v5156, %v5183
  %v5206 = vmul.f32 %v5157, %v5187
  %v5207 = vmul.f32 %v5158, %v5191
  %v5216 = vrot.slane %v5200, 1
  %v5217 = vrot.slane %v5201, 1
  %v5218 = vrot.slane %v5202, 1
  %v5219 = vrot.slane %v5203, 1
  %v5220 = vrot.slane %v5204, 1
  %v5221 = vrot.slane %v5205, 1
  %v5222 = vrot.slane %v5206, 1
  %v5223 = vrot.slane %v5207, 1
  %v5232 = vadd.f32 %v5142, %v5216
  %v5233 = vadd.f32 %v5143, %v5217
  %v5234 = vadd.f32 %v5144, %v5218
  %v5235 = vadd.f32 %v5145, %v5219
  %v5236 = vadd.f32 %v5146, %v5220
  %v5237 = vadd.f32 %v5147, %v5221
  %v5238 = vadd.f32 %v5148, %v5222
  %v5239 = vadd.f32 %v5149, %v5223
  %v5240 = vld [vmem:[%s617] ss:$4 sm:$0xff]
  %v5241 = vld [vmem:[%s400] sm:$0xfc]
  %v5242 = vld [vmem:[%s400 + $0x8] sm:$0xfc]
  %v5243 = vld [vmem:[%s400 + $0x10] sm:$0xfc]
  %v5244 = vld [vmem:[%s400 + $0x18] sm:$0xfc]
  %v5245 = vld [vmem:[%s400 + $0x20] sm:$0xfc]
  %v5246 = vld [vmem:[%s400 + $0x28] sm:$0xfc]
  %v5247 = vld [vmem:[%s400 + $0x30] sm:$0xfc]
  %v5248 = vld [vmem:[%s400 + $0x38] sm:$0xfc]
  %v5249 = vld [vmem:[%s400 + $0x40] sm:$0x1]
  %v5250 = vld [vmem:[%s400 + $0x48] sm:$0x1]
  %v5251 = vld [vmem:[%s400 + $0x50] sm:$0x1]
  %v5252 = vld [vmem:[%s400 + $0x58] sm:$0x1]
  %v5253 = vld [vmem:[%s400 + $0x60] sm:$0x1]
  %v5254 = vld [vmem:[%s400 + $0x68] sm:$0x1]
  %v5255 = vld [vmem:[%s400 + $0x70] sm:$0x1]
  %v5256 = vld [vmem:[%s400 + $0x78] sm:$0x1]
  %v5258 = vlaneseq
  %v5259 = vshrl.u32 %v5258, 7
  %v5260 = vsub.s32 0, %v5259
  %v5261 = vrot.slane %v5240, %v5260
  %v5262 = vlaneseq
  %v5263 = vshrl.u32 %v5262, 7
  %v5264 = vsub.s32 1, %v5263
  %v5265 = vrot.slane %v5240, %v5264
  %v5266 = vlaneseq
  %v5267 = vshrl.u32 %v5266, 7
  %v5268 = vsub.s32 2, %v5267
  %v5269 = vrot.slane %v5240, %v5268
  %v5270 = vlaneseq
  %v5271 = vshrl.u32 %v5270, 7
  %v5272 = vsub.s32 3, %v5271
  %v5273 = vrot.slane %v5240, %v5272
  %v5274 = vlaneseq
  %v5275 = vshrl.u32 %v5274, 7
  %v5276 = vsub.s32 4, %v5275
  %v5277 = vrot.slane %v5240, %v5276
  %v5278 = vlaneseq
  %v5279 = vshrl.u32 %v5278, 7
  %v5280 = vsub.s32 5, %v5279
  %v5281 = vrot.slane %v5240, %v5280
  %v5282 = vlaneseq
  %v5283 = vshrl.u32 %v5282, 7
  %v5284 = vsub.s32 6, %v5283
  %v5285 = vrot.slane %v5240, %v5284
  %v5286 = vlaneseq
  %v5287 = vshrl.u32 %v5286, 7
  %v5288 = vsub.s32 7, %v5287
  %v5289 = vrot.slane %v5240, %v5288
  %v5298 = vmul.f32 %v5241, %v5261
  %v5299 = vmul.f32 %v5242, %v5265
  %v5300 = vmul.f32 %v5243, %v5269
  %v5301 = vmul.f32 %v5244, %v5273
  %v5302 = vmul.f32 %v5245, %v5277
  %v5303 = vmul.f32 %v5246, %v5281
  %v5304 = vmul.f32 %v5247, %v5285
  %v5305 = vmul.f32 %v5248, %v5289
  %v5306 = vmul.f32 %v5249, %v5261
  %v5307 = vmul.f32 %v5250, %v5265
  %v5308 = vmul.f32 %v5251, %v5269
  %v5309 = vmul.f32 %v5252, %v5273
  %v5310 = vmul.f32 %v5253, %v5277
  %v5311 = vmul.f32 %v5254, %v5281
  %v5312 = vmul.f32 %v5255, %v5285
  %v5313 = vmul.f32 %v5256, %v5289
  %v5330 = vrot.slane %v5298, 2
  %v5331 = vrot.slane %v5306, 2
  %v5332 = vsel %vm708, %v5330, %v5331
  %v5333 = vrot.slane %v5299, 2
  %v5334 = vrot.slane %v5307, 2
  %v5335 = vsel %vm708, %v5333, %v5334
  %v5336 = vrot.slane %v5300, 2
  %v5337 = vrot.slane %v5308, 2
  %v5338 = vsel %vm708, %v5336, %v5337
  %v5339 = vrot.slane %v5301, 2
  %v5340 = vrot.slane %v5309, 2
  %v5341 = vsel %vm708, %v5339, %v5340
  %v5342 = vrot.slane %v5302, 2
  %v5343 = vrot.slane %v5310, 2
  %v5344 = vsel %vm708, %v5342, %v5343
  %v5345 = vrot.slane %v5303, 2
  %v5346 = vrot.slane %v5311, 2
  %v5347 = vsel %vm708, %v5345, %v5346
  %v5348 = vrot.slane %v5304, 2
  %v5349 = vrot.slane %v5312, 2
  %v5350 = vsel %vm708, %v5348, %v5349
  %v5351 = vrot.slane %v5305, 2
  %v5352 = vrot.slane %v5313, 2
  %v5353 = vsel %vm708, %v5351, %v5352
  %v5362 = vadd.f32 %v5232, %v5332
  %v5363 = vadd.f32 %v5233, %v5335
  %v5364 = vadd.f32 %v5234, %v5338
  %v5365 = vadd.f32 %v5235, %v5341
  %v5366 = vadd.f32 %v5236, %v5344
  %v5367 = vadd.f32 %v5237, %v5347
  %v5368 = vadd.f32 %v5238, %v5350
  %v5369 = vadd.f32 %v5239, %v5353
  %v5370 = vld [vmem:[%s749] ss:$4 sm:$0xff]
  %v5371 = vld [vmem:[%s458] sm:$0x7f]
  %v5372 = vld [vmem:[%s458 + $0x8] sm:$0x7f]
  %v5373 = vld [vmem:[%s458 + $0x10] sm:$0x7f]
  %v5374 = vld [vmem:[%s458 + $0x18] sm:$0x7f]
  %v5375 = vld [vmem:[%s458 + $0x20] sm:$0x7f]
  %v5376 = vld [vmem:[%s458 + $0x28] sm:$0x7f]
  %v5377 = vld [vmem:[%s458 + $0x30] sm:$0x7f]
  %v5378 = vld [vmem:[%s458 + $0x38] sm:$0x7f]
  %v5380 = vlaneseq
  %v5381 = vshrl.u32 %v5380, 7
  %v5382 = vsub.s32 0, %v5381
  %v5383 = vrot.slane %v5370, %v5382
  %v5384 = vlaneseq
  %v5385 = vshrl.u32 %v5384, 7
  %v5386 = vsub.s32 1, %v5385
  %v5387 = vrot.slane %v5370, %v5386
  %v5388 = vlaneseq
  %v5389 = vshrl.u32 %v5388, 7
  %v5390 = vsub.s32 2, %v5389
  %v5391 = vrot.slane %v5370, %v5390
  %v5392 = vlaneseq
  %v5393 = vshrl.u32 %v5392, 7
  %v5394 = vsub.s32 3, %v5393
  %v5395 = vrot.slane %v5370, %v5394
  %v5396 = vlaneseq
  %v5397 = vshrl.u32 %v5396, 7
  %v5398 = vsub.s32 4, %v5397
  %v5399 = vrot.slane %v5370, %v5398
  %v5400 = vlaneseq
  %v5401 = vshrl.u32 %v5400, 7
  %v5402 = vsub.s32 5, %v5401
  %v5403 = vrot.slane %v5370, %v5402
  %v5404 = vlaneseq
  %v5405 = vshrl.u32 %v5404, 7
  %v5406 = vsub.s32 6, %v5405
  %v5407 = vrot.slane %v5370, %v5406
  %v5408 = vlaneseq
  %v5409 = vshrl.u32 %v5408, 7
  %v5410 = vsub.s32 7, %v5409
  %v5411 = vrot.slane %v5370, %v5410
  %v5420 = vmul.f32 %v5371, %v5383
  %v5421 = vmul.f32 %v5372, %v5387
  %v5422 = vmul.f32 %v5373, %v5391
  %v5423 = vmul.f32 %v5374, %v5395
  %v5424 = vmul.f32 %v5375, %v5399
  %v5425 = vmul.f32 %v5376, %v5403
  %v5426 = vmul.f32 %v5377, %v5407
  %v5427 = vmul.f32 %v5378, %v5411
  %v5428 = vadd.f32 %v5362, %v5420
  %v5429 = vadd.f32 %v5363, %v5421
  %v5430 = vadd.f32 %v5364, %v5422
  %v5431 = vadd.f32 %v5365, %v5423
  %v5432 = vadd.f32 %v5366, %v5424
  %v5433 = vadd.f32 %v5367, %v5425
  %v5434 = vadd.f32 %v5368, %v5426
  %v5435 = vadd.f32 %v5369, %v5427
  %v5436 = vld [vmem:[%s816] ss:$4 sm:$0xff]
  %v5437 = vld [vmem:[%s458] sm:$0xfe]
  %v5438 = vld [vmem:[%s458 + $0x8] sm:$0xfe]
  %v5439 = vld [vmem:[%s458 + $0x10] sm:$0xfe]
  %v5440 = vld [vmem:[%s458 + $0x18] sm:$0xfe]
  %v5441 = vld [vmem:[%s458 + $0x20] sm:$0xfe]
  %v5442 = vld [vmem:[%s458 + $0x28] sm:$0xfe]
  %v5443 = vld [vmem:[%s458 + $0x30] sm:$0xfe]
  %v5444 = vld [vmem:[%s458 + $0x38] sm:$0xfe]
  %v5446 = vlaneseq
  %v5447 = vshrl.u32 %v5446, 7
  %v5448 = vsub.s32 0, %v5447
  %v5449 = vrot.slane %v5436, %v5448
  %v5450 = vlaneseq
  %v5451 = vshrl.u32 %v5450, 7
  %v5452 = vsub.s32 1, %v5451
  %v5453 = vrot.slane %v5436, %v5452
  %v5454 = vlaneseq
  %v5455 = vshrl.u32 %v5454, 7
  %v5456 = vsub.s32 2, %v5455
  %v5457 = vrot.slane %v5436, %v5456
  %v5458 = vlaneseq
  %v5459 = vshrl.u32 %v5458, 7
  %v5460 = vsub.s32 3, %v5459
  %v5461 = vrot.slane %v5436, %v5460
  %v5462 = vlaneseq
  %v5463 = vshrl.u32 %v5462, 7
  %v5464 = vsub.s32 4, %v5463
  %v5465 = vrot.slane %v5436, %v5464
  %v5466 = vlaneseq
  %v5467 = vshrl.u32 %v5466, 7
  %v5468 = vsub.s32 5, %v5467
  %v5469 = vrot.slane %v5436, %v5468
  %v5470 = vlaneseq
  %v5471 = vshrl.u32 %v5470, 7
  %v5472 = vsub.s32 6, %v5471
  %v5473 = vrot.slane %v5436, %v5472
  %v5474 = vlaneseq
  %v5475 = vshrl.u32 %v5474, 7
  %v5476 = vsub.s32 7, %v5475
  %v5477 = vrot.slane %v5436, %v5476
  %v5486 = vmul.f32 %v5437, %v5449
  %v5487 = vmul.f32 %v5438, %v5453
  %v5488 = vmul.f32 %v5439, %v5457
  %v5489 = vmul.f32 %v5440, %v5461
  %v5490 = vmul.f32 %v5441, %v5465
  %v5491 = vmul.f32 %v5442, %v5469
  %v5492 = vmul.f32 %v5443, %v5473
  %v5493 = vmul.f32 %v5444, %v5477
  %v5502 = vrot.slane %v5486, 1
  %v5503 = vrot.slane %v5487, 1
  %v5504 = vrot.slane %v5488, 1
  %v5505 = vrot.slane %v5489, 1
  %v5506 = vrot.slane %v5490, 1
  %v5507 = vrot.slane %v5491, 1
  %v5508 = vrot.slane %v5492, 1
  %v5509 = vrot.slane %v5493, 1
  %v5518 = vadd.f32 %v5428, %v5502
  %v5519 = vadd.f32 %v5429, %v5503
  %v5520 = vadd.f32 %v5430, %v5504
  %v5521 = vadd.f32 %v5431, %v5505
  %v5522 = vadd.f32 %v5432, %v5506
  %v5523 = vadd.f32 %v5433, %v5507
  %v5524 = vadd.f32 %v5434, %v5508
  %v5525 = vadd.f32 %v5435, %v5509
  %v5526 = vld [vmem:[%s907] ss:$4 sm:$0xff]
  %v5527 = vld [vmem:[%s458] sm:$0xfc]
  %v5528 = vld [vmem:[%s458 + $0x8] sm:$0xfc]
  %v5529 = vld [vmem:[%s458 + $0x10] sm:$0xfc]
  %v5530 = vld [vmem:[%s458 + $0x18] sm:$0xfc]
  %v5531 = vld [vmem:[%s458 + $0x20] sm:$0xfc]
  %v5532 = vld [vmem:[%s458 + $0x28] sm:$0xfc]
  %v5533 = vld [vmem:[%s458 + $0x30] sm:$0xfc]
  %v5534 = vld [vmem:[%s458 + $0x38] sm:$0xfc]
  %v5535 = vld [vmem:[%s458 + $0x40] sm:$0x1]
  %v5536 = vld [vmem:[%s458 + $0x48] sm:$0x1]
  %v5537 = vld [vmem:[%s458 + $0x50] sm:$0x1]
  %v5538 = vld [vmem:[%s458 + $0x58] sm:$0x1]
  %v5539 = vld [vmem:[%s458 + $0x60] sm:$0x1]
  %v5540 = vld [vmem:[%s458 + $0x68] sm:$0x1]
  %v5541 = vld [vmem:[%s458 + $0x70] sm:$0x1]
  %v5542 = vld [vmem:[%s458 + $0x78] sm:$0x1]
  %v5544 = vlaneseq
  %v5545 = vshrl.u32 %v5544, 7
  %v5546 = vsub.s32 0, %v5545
  %v5547 = vrot.slane %v5526, %v5546
  %v5548 = vlaneseq
  %v5549 = vshrl.u32 %v5548, 7
  %v5550 = vsub.s32 1, %v5549
  %v5551 = vrot.slane %v5526, %v5550
  %v5552 = vlaneseq
  %v5553 = vshrl.u32 %v5552, 7
  %v5554 = vsub.s32 2, %v5553
  %v5555 = vrot.slane %v5526, %v5554
  %v5556 = vlaneseq
  %v5557 = vshrl.u32 %v5556, 7
  %v5558 = vsub.s32 3, %v5557
  %v5559 = vrot.slane %v5526, %v5558
  %v5560 = vlaneseq
  %v5561 = vshrl.u32 %v5560, 7
  %v5562 = vsub.s32 4, %v5561
  %v5563 = vrot.slane %v5526, %v5562
  %v5564 = vlaneseq
  %v5565 = vshrl.u32 %v5564, 7
  %v5566 = vsub.s32 5, %v5565
  %v5567 = vrot.slane %v5526, %v5566
  %v5568 = vlaneseq
  %v5569 = vshrl.u32 %v5568, 7
  %v5570 = vsub.s32 6, %v5569
  %v5571 = vrot.slane %v5526, %v5570
  %v5572 = vlaneseq
  %v5573 = vshrl.u32 %v5572, 7
  %v5574 = vsub.s32 7, %v5573
  %v5575 = vrot.slane %v5526, %v5574
  %v5584 = vmul.f32 %v5527, %v5547
  %v5585 = vmul.f32 %v5528, %v5551
  %v5586 = vmul.f32 %v5529, %v5555
  %v5587 = vmul.f32 %v5530, %v5559
  %v5588 = vmul.f32 %v5531, %v5563
  %v5589 = vmul.f32 %v5532, %v5567
  %v5590 = vmul.f32 %v5533, %v5571
  %v5591 = vmul.f32 %v5534, %v5575
  %v5592 = vmul.f32 %v5535, %v5547
  %v5593 = vmul.f32 %v5536, %v5551
  %v5594 = vmul.f32 %v5537, %v5555
  %v5595 = vmul.f32 %v5538, %v5559
  %v5596 = vmul.f32 %v5539, %v5563
  %v5597 = vmul.f32 %v5540, %v5567
  %v5598 = vmul.f32 %v5541, %v5571
  %v5599 = vmul.f32 %v5542, %v5575
  %v5616 = vrot.slane %v5584, 2
  %v5617 = vrot.slane %v5592, 2
  %v5618 = vsel %vm708, %v5616, %v5617
  %v5619 = vrot.slane %v5585, 2
  %v5620 = vrot.slane %v5593, 2
  %v5621 = vsel %vm708, %v5619, %v5620
  %v5622 = vrot.slane %v5586, 2
  %v5623 = vrot.slane %v5594, 2
  %v5624 = vsel %vm708, %v5622, %v5623
  %v5625 = vrot.slane %v5587, 2
  %v5626 = vrot.slane %v5595, 2
  %v5627 = vsel %vm708, %v5625, %v5626
  %v5628 = vrot.slane %v5588, 2
  %v5629 = vrot.slane %v5596, 2
  %v5630 = vsel %vm708, %v5628, %v5629
  %v5631 = vrot.slane %v5589, 2
  %v5632 = vrot.slane %v5597, 2
  %v5633 = vsel %vm708, %v5631, %v5632
  %v5634 = vrot.slane %v5590, 2
  %v5635 = vrot.slane %v5598, 2
  %v5636 = vsel %vm708, %v5634, %v5635
  %v5637 = vrot.slane %v5591, 2
  %v5638 = vrot.slane %v5599, 2
  %v5639 = vsel %vm708, %v5637, %v5638
  %v5648 = vadd.f32 %v5518, %v5618
  %v5649 = vadd.f32 %v5519, %v5621
  %v5650 = vadd.f32 %v5520, %v5624
  %v5651 = vadd.f32 %v5521, %v5627
  %v5652 = vadd.f32 %v5522, %v5630
  %v5653 = vadd.f32 %v5523, %v5633
  %v5654 = vadd.f32 %v5524, %v5636
  %v5655 = vadd.f32 %v5525, %v5639
  %s5656 = scalar_lea.vmem %s4, 320
  %5657 = vst [vmem:[%s5656] sm:$0x7f] %v5648
  %5658 = vst [vmem:[%s5656 + $0x8] sm:$0x7f] %v5649
  %5659 = vst [vmem:[%s5656 + $0x10] sm:$0x7f] %v5650
  %5660 = vst [vmem:[%s5656 + $0x18] sm:$0x7f] %v5651
  %5661 = vst [vmem:[%s5656 + $0x20] sm:$0x7f] %v5652
  %5662 = vst [vmem:[%s5656 + $0x28] sm:$0x7f] %v5653
  %5663 = vst [vmem:[%s5656 + $0x30] sm:$0x7f] %v5654
  %5664 = vst.msk [vmem:[%s5656 + $0x38] sm:$0x7f] %vm1045, %v5655
  %v5665 = vsel %vm1047, %v5648, 0.0
  %v5666 = vrot.slane %v5665, 4
  %v5667 = vadd.f32 %v5665, %v5666
  %v5668 = vrot.slane %v5667, 2
  %v5669 = vadd.f32 %v5667, %v5668
  %v5670 = vrot.slane %v5669, 1
  %v5671 = vadd.f32 %v5669, %v5670
  %v5672 = vsel %vm1047, %v5649, 0.0
  %v5673 = vrot.slane %v5672, 4
  %v5674 = vadd.f32 %v5672, %v5673
  %v5675 = vrot.slane %v5674, 2
  %v5676 = vadd.f32 %v5674, %v5675
  %v5677 = vrot.slane %v5676, 1
  %v5678 = vadd.f32 %v5676, %v5677
  %v5679 = vsel %vm1047, %v5650, 0.0
  %v5680 = vrot.slane %v5679, 4
  %v5681 = vadd.f32 %v5679, %v5680
  %v5682 = vrot.slane %v5681, 2
  %v5683 = vadd.f32 %v5681, %v5682
  %v5684 = vrot.slane %v5683, 1
  %v5685 = vadd.f32 %v5683, %v5684
  %v5686 = vsel %vm1047, %v5651, 0.0
  %v5687 = vrot.slane %v5686, 4
  %v5688 = vadd.f32 %v5686, %v5687
  %v5689 = vrot.slane %v5688, 2
  %v5690 = vadd.f32 %v5688, %v5689
  %v5691 = vrot.slane %v5690, 1
  %v5692 = vadd.f32 %v5690, %v5691
  %v5693 = vsel %vm1047, %v5652, 0.0
  %v5694 = vrot.slane %v5693, 4
  %v5695 = vadd.f32 %v5693, %v5694
  %v5696 = vrot.slane %v5695, 2
  %v5697 = vadd.f32 %v5695, %v5696
  %v5698 = vrot.slane %v5697, 1
  %v5699 = vadd.f32 %v5697, %v5698
  %v5700 = vsel %vm1047, %v5653, 0.0
  %v5701 = vrot.slane %v5700, 4
  %v5702 = vadd.f32 %v5700, %v5701
  %v5703 = vrot.slane %v5702, 2
  %v5704 = vadd.f32 %v5702, %v5703
  %v5705 = vrot.slane %v5704, 1
  %v5706 = vadd.f32 %v5704, %v5705
  %v5707 = vsel %vm1047, %v5654, 0.0
  %v5708 = vrot.slane %v5707, 4
  %v5709 = vadd.f32 %v5707, %v5708
  %v5710 = vrot.slane %v5709, 2
  %v5711 = vadd.f32 %v5709, %v5710
  %v5712 = vrot.slane %v5711, 1
  %v5713 = vadd.f32 %v5711, %v5712
  %v5714 = vsel %vm1045, %v5655, 0.0
  %v5715 = vrot.slane %v5714, 4
  %v5716 = vadd.f32 %v5714, %v5715
  %v5717 = vrot.slane %v5716, 2
  %v5718 = vadd.f32 %v5716, %v5717
  %v5719 = vrot.slane %v5718, 1
  %v5720 = vadd.f32 %v5718, %v5719
  %v5721 = vadd.f32 %v4798, %v5671
  %v5722 = vadd.f32 %v4799, %v5678
  %v5723 = vadd.f32 %v4800, %v5685
  %v5724 = vadd.f32 %v4801, %v5692
  %v5725 = vadd.f32 %v4802, %v5699
  %v5726 = vadd.f32 %v4803, %v5706
  %v5727 = vadd.f32 %v4804, %v5713
  %v5728 = vadd.f32 %v4805, %v5720
  %v5729 = vld [vmem:[%s1] ss:$4 sm:$0xff]
  %v5730 = vld [vmem:[%s400] sm:$0x7f]
  %v5731 = vld [vmem:[%s400 + $0x8] sm:$0x7f]
  %v5732 = vld [vmem:[%s400 + $0x10] sm:$0x7f]
  %v5733 = vld [vmem:[%s400 + $0x18] sm:$0x7f]
  %v5734 = vld [vmem:[%s400 + $0x20] sm:$0x7f]
  %v5735 = vld [vmem:[%s400 + $0x28] sm:$0x7f]
  %v5736 = vld [vmem:[%s400 + $0x30] sm:$0x7f]
  %v5737 = vld [vmem:[%s400 + $0x38] sm:$0x7f]
  %v5739 = vlaneseq
  %v5740 = vshrl.u32 %v5739, 7
  %v5741 = vsub.s32 0, %v5740
  %v5742 = vrot.slane %v5729, %v5741
  %v5743 = vlaneseq
  %v5744 = vshrl.u32 %v5743, 7
  %v5745 = vsub.s32 1, %v5744
  %v5746 = vrot.slane %v5729, %v5745
  %v5747 = vlaneseq
  %v5748 = vshrl.u32 %v5747, 7
  %v5749 = vsub.s32 2, %v5748
  %v5750 = vrot.slane %v5729, %v5749
  %v5751 = vlaneseq
  %v5752 = vshrl.u32 %v5751, 7
  %v5753 = vsub.s32 3, %v5752
  %v5754 = vrot.slane %v5729, %v5753
  %v5755 = vlaneseq
  %v5756 = vshrl.u32 %v5755, 7
  %v5757 = vsub.s32 4, %v5756
  %v5758 = vrot.slane %v5729, %v5757
  %v5759 = vlaneseq
  %v5760 = vshrl.u32 %v5759, 7
  %v5761 = vsub.s32 5, %v5760
  %v5762 = vrot.slane %v5729, %v5761
  %v5763 = vlaneseq
  %v5764 = vshrl.u32 %v5763, 7
  %v5765 = vsub.s32 6, %v5764
  %v5766 = vrot.slane %v5729, %v5765
  %v5767 = vlaneseq
  %v5768 = vshrl.u32 %v5767, 7
  %v5769 = vsub.s32 7, %v5768
  %v5770 = vrot.slane %v5729, %v5769
  %v5779 = vmul.f32 %v5730, %v5742
  %v5780 = vmul.f32 %v5731, %v5746
  %v5781 = vmul.f32 %v5732, %v5750
  %v5782 = vmul.f32 %v5733, %v5754
  %v5783 = vmul.f32 %v5734, %v5758
  %v5784 = vmul.f32 %v5735, %v5762
  %v5785 = vmul.f32 %v5736, %v5766
  %v5786 = vmul.f32 %v5737, %v5770
  %v5787 = vld [vmem:[%s1170] ss:$4 sm:$0xff]
  %v5788 = vld [vmem:[%s400] sm:$0xfe]
  %v5789 = vld [vmem:[%s400 + $0x8] sm:$0xfe]
  %v5790 = vld [vmem:[%s400 + $0x10] sm:$0xfe]
  %v5791 = vld [vmem:[%s400 + $0x18] sm:$0xfe]
  %v5792 = vld [vmem:[%s400 + $0x20] sm:$0xfe]
  %v5793 = vld [vmem:[%s400 + $0x28] sm:$0xfe]
  %v5794 = vld [vmem:[%s400 + $0x30] sm:$0xfe]
  %v5795 = vld [vmem:[%s400 + $0x38] sm:$0xfe]
  %v5797 = vlaneseq
  %v5798 = vshrl.u32 %v5797, 7
  %v5799 = vsub.s32 0, %v5798
  %v5800 = vrot.slane %v5787, %v5799
  %v5801 = vlaneseq
  %v5802 = vshrl.u32 %v5801, 7
  %v5803 = vsub.s32 1, %v5802
  %v5804 = vrot.slane %v5787, %v5803
  %v5805 = vlaneseq
  %v5806 = vshrl.u32 %v5805, 7
  %v5807 = vsub.s32 2, %v5806
  %v5808 = vrot.slane %v5787, %v5807
  %v5809 = vlaneseq
  %v5810 = vshrl.u32 %v5809, 7
  %v5811 = vsub.s32 3, %v5810
  %v5812 = vrot.slane %v5787, %v5811
  %v5813 = vlaneseq
  %v5814 = vshrl.u32 %v5813, 7
  %v5815 = vsub.s32 4, %v5814
  %v5816 = vrot.slane %v5787, %v5815
  %v5817 = vlaneseq
  %v5818 = vshrl.u32 %v5817, 7
  %v5819 = vsub.s32 5, %v5818
  %v5820 = vrot.slane %v5787, %v5819
  %v5821 = vlaneseq
  %v5822 = vshrl.u32 %v5821, 7
  %v5823 = vsub.s32 6, %v5822
  %v5824 = vrot.slane %v5787, %v5823
  %v5825 = vlaneseq
  %v5826 = vshrl.u32 %v5825, 7
  %v5827 = vsub.s32 7, %v5826
  %v5828 = vrot.slane %v5787, %v5827
  %v5837 = vmul.f32 %v5788, %v5800
  %v5838 = vmul.f32 %v5789, %v5804
  %v5839 = vmul.f32 %v5790, %v5808
  %v5840 = vmul.f32 %v5791, %v5812
  %v5841 = vmul.f32 %v5792, %v5816
  %v5842 = vmul.f32 %v5793, %v5820
  %v5843 = vmul.f32 %v5794, %v5824
  %v5844 = vmul.f32 %v5795, %v5828
  %v5853 = vrot.slane %v5837, 1
  %v5854 = vrot.slane %v5838, 1
  %v5855 = vrot.slane %v5839, 1
  %v5856 = vrot.slane %v5840, 1
  %v5857 = vrot.slane %v5841, 1
  %v5858 = vrot.slane %v5842, 1
  %v5859 = vrot.slane %v5843, 1
  %v5860 = vrot.slane %v5844, 1
  %v5869 = vadd.f32 %v5779, %v5853
  %v5870 = vadd.f32 %v5780, %v5854
  %v5871 = vadd.f32 %v5781, %v5855
  %v5872 = vadd.f32 %v5782, %v5856
  %v5873 = vadd.f32 %v5783, %v5857
  %v5874 = vadd.f32 %v5784, %v5858
  %v5875 = vadd.f32 %v5785, %v5859
  %v5876 = vadd.f32 %v5786, %v5860
  %v5877 = vld [vmem:[%s1261] ss:$4 sm:$0xff]
  %v5878 = vld [vmem:[%s400] sm:$0xfc]
  %v5879 = vld [vmem:[%s400 + $0x8] sm:$0xfc]
  %v5880 = vld [vmem:[%s400 + $0x10] sm:$0xfc]
  %v5881 = vld [vmem:[%s400 + $0x18] sm:$0xfc]
  %v5882 = vld [vmem:[%s400 + $0x20] sm:$0xfc]
  %v5883 = vld [vmem:[%s400 + $0x28] sm:$0xfc]
  %v5884 = vld [vmem:[%s400 + $0x30] sm:$0xfc]
  %v5885 = vld [vmem:[%s400 + $0x38] sm:$0xfc]
  %v5886 = vld [vmem:[%s400 + $0x40] sm:$0x1]
  %v5887 = vld [vmem:[%s400 + $0x48] sm:$0x1]
  %v5888 = vld [vmem:[%s400 + $0x50] sm:$0x1]
  %v5889 = vld [vmem:[%s400 + $0x58] sm:$0x1]
  %v5890 = vld [vmem:[%s400 + $0x60] sm:$0x1]
  %v5891 = vld [vmem:[%s400 + $0x68] sm:$0x1]
  %v5892 = vld [vmem:[%s400 + $0x70] sm:$0x1]
  %v5893 = vld [vmem:[%s400 + $0x78] sm:$0x1]
  %v5895 = vlaneseq
  %v5896 = vshrl.u32 %v5895, 7
  %v5897 = vsub.s32 0, %v5896
  %v5898 = vrot.slane %v5877, %v5897
  %v5899 = vlaneseq
  %v5900 = vshrl.u32 %v5899, 7
  %v5901 = vsub.s32 1, %v5900
  %v5902 = vrot.slane %v5877, %v5901
  %v5903 = vlaneseq
  %v5904 = vshrl.u32 %v5903, 7
  %v5905 = vsub.s32 2, %v5904
  %v5906 = vrot.slane %v5877, %v5905
  %v5907 = vlaneseq
  %v5908 = vshrl.u32 %v5907, 7
  %v5909 = vsub.s32 3, %v5908
  %v5910 = vrot.slane %v5877, %v5909
  %v5911 = vlaneseq
  %v5912 = vshrl.u32 %v5911, 7
  %v5913 = vsub.s32 4, %v5912
  %v5914 = vrot.slane %v5877, %v5913
  %v5915 = vlaneseq
  %v5916 = vshrl.u32 %v5915, 7
  %v5917 = vsub.s32 5, %v5916
  %v5918 = vrot.slane %v5877, %v5917
  %v5919 = vlaneseq
  %v5920 = vshrl.u32 %v5919, 7
  %v5921 = vsub.s32 6, %v5920
  %v5922 = vrot.slane %v5877, %v5921
  %v5923 = vlaneseq
  %v5924 = vshrl.u32 %v5923, 7
  %v5925 = vsub.s32 7, %v5924
  %v5926 = vrot.slane %v5877, %v5925
  %v5935 = vmul.f32 %v5878, %v5898
  %v5936 = vmul.f32 %v5879, %v5902
  %v5937 = vmul.f32 %v5880, %v5906
  %v5938 = vmul.f32 %v5881, %v5910
  %v5939 = vmul.f32 %v5882, %v5914
  %v5940 = vmul.f32 %v5883, %v5918
  %v5941 = vmul.f32 %v5884, %v5922
  %v5942 = vmul.f32 %v5885, %v5926
  %v5943 = vmul.f32 %v5886, %v5898
  %v5944 = vmul.f32 %v5887, %v5902
  %v5945 = vmul.f32 %v5888, %v5906
  %v5946 = vmul.f32 %v5889, %v5910
  %v5947 = vmul.f32 %v5890, %v5914
  %v5948 = vmul.f32 %v5891, %v5918
  %v5949 = vmul.f32 %v5892, %v5922
  %v5950 = vmul.f32 %v5893, %v5926
  %v5967 = vrot.slane %v5935, 2
  %v5968 = vrot.slane %v5943, 2
  %v5969 = vsel %vm708, %v5967, %v5968
  %v5970 = vrot.slane %v5936, 2
  %v5971 = vrot.slane %v5944, 2
  %v5972 = vsel %vm708, %v5970, %v5971
  %v5973 = vrot.slane %v5937, 2
  %v5974 = vrot.slane %v5945, 2
  %v5975 = vsel %vm708, %v5973, %v5974
  %v5976 = vrot.slane %v5938, 2
  %v5977 = vrot.slane %v5946, 2
  %v5978 = vsel %vm708, %v5976, %v5977
  %v5979 = vrot.slane %v5939, 2
  %v5980 = vrot.slane %v5947, 2
  %v5981 = vsel %vm708, %v5979, %v5980
  %v5982 = vrot.slane %v5940, 2
  %v5983 = vrot.slane %v5948, 2
  %v5984 = vsel %vm708, %v5982, %v5983
  %v5985 = vrot.slane %v5941, 2
  %v5986 = vrot.slane %v5949, 2
  %v5987 = vsel %vm708, %v5985, %v5986
  %v5988 = vrot.slane %v5942, 2
  %v5989 = vrot.slane %v5950, 2
  %v5990 = vsel %vm708, %v5988, %v5989
  %v5999 = vadd.f32 %v5869, %v5969
  %v6000 = vadd.f32 %v5870, %v5972
  %v6001 = vadd.f32 %v5871, %v5975
  %v6002 = vadd.f32 %v5872, %v5978
  %v6003 = vadd.f32 %v5873, %v5981
  %v6004 = vadd.f32 %v5874, %v5984
  %v6005 = vadd.f32 %v5875, %v5987
  %v6006 = vadd.f32 %v5876, %v5990
  %v6007 = vld [vmem:[%s467] ss:$4 sm:$0xff]
  %v6008 = vld [vmem:[%s458] sm:$0x7f]
  %v6009 = vld [vmem:[%s458 + $0x8] sm:$0x7f]
  %v6010 = vld [vmem:[%s458 + $0x10] sm:$0x7f]
  %v6011 = vld [vmem:[%s458 + $0x18] sm:$0x7f]
  %v6012 = vld [vmem:[%s458 + $0x20] sm:$0x7f]
  %v6013 = vld [vmem:[%s458 + $0x28] sm:$0x7f]
  %v6014 = vld [vmem:[%s458 + $0x30] sm:$0x7f]
  %v6015 = vld [vmem:[%s458 + $0x38] sm:$0x7f]
  %v6017 = vlaneseq
  %v6018 = vshrl.u32 %v6017, 7
  %v6019 = vsub.s32 0, %v6018
  %v6020 = vrot.slane %v6007, %v6019
  %v6021 = vlaneseq
  %v6022 = vshrl.u32 %v6021, 7
  %v6023 = vsub.s32 1, %v6022
  %v6024 = vrot.slane %v6007, %v6023
  %v6025 = vlaneseq
  %v6026 = vshrl.u32 %v6025, 7
  %v6027 = vsub.s32 2, %v6026
  %v6028 = vrot.slane %v6007, %v6027
  %v6029 = vlaneseq
  %v6030 = vshrl.u32 %v6029, 7
  %v6031 = vsub.s32 3, %v6030
  %v6032 = vrot.slane %v6007, %v6031
  %v6033 = vlaneseq
  %v6034 = vshrl.u32 %v6033, 7
  %v6035 = vsub.s32 4, %v6034
  %v6036 = vrot.slane %v6007, %v6035
  %v6037 = vlaneseq
  %v6038 = vshrl.u32 %v6037, 7
  %v6039 = vsub.s32 5, %v6038
  %v6040 = vrot.slane %v6007, %v6039
  %v6041 = vlaneseq
  %v6042 = vshrl.u32 %v6041, 7
  %v6043 = vsub.s32 6, %v6042
  %v6044 = vrot.slane %v6007, %v6043
  %v6045 = vlaneseq
  %v6046 = vshrl.u32 %v6045, 7
  %v6047 = vsub.s32 7, %v6046
  %v6048 = vrot.slane %v6007, %v6047
  %v6057 = vmul.f32 %v6008, %v6020
  %v6058 = vmul.f32 %v6009, %v6024
  %v6059 = vmul.f32 %v6010, %v6028
  %v6060 = vmul.f32 %v6011, %v6032
  %v6061 = vmul.f32 %v6012, %v6036
  %v6062 = vmul.f32 %v6013, %v6040
  %v6063 = vmul.f32 %v6014, %v6044
  %v6064 = vmul.f32 %v6015, %v6048
  %v6065 = vadd.f32 %v5999, %v6057
  %v6066 = vadd.f32 %v6000, %v6058
  %v6067 = vadd.f32 %v6001, %v6059
  %v6068 = vadd.f32 %v6002, %v6060
  %v6069 = vadd.f32 %v6003, %v6061
  %v6070 = vadd.f32 %v6004, %v6062
  %v6071 = vadd.f32 %v6005, %v6063
  %v6072 = vadd.f32 %v6006, %v6064
  %v6073 = vld [vmem:[%s526] ss:$4 sm:$0xff]
  %v6074 = vld [vmem:[%s458] sm:$0xfe]
  %v6075 = vld [vmem:[%s458 + $0x8] sm:$0xfe]
  %v6076 = vld [vmem:[%s458 + $0x10] sm:$0xfe]
  %v6077 = vld [vmem:[%s458 + $0x18] sm:$0xfe]
  %v6078 = vld [vmem:[%s458 + $0x20] sm:$0xfe]
  %v6079 = vld [vmem:[%s458 + $0x28] sm:$0xfe]
  %v6080 = vld [vmem:[%s458 + $0x30] sm:$0xfe]
  %v6081 = vld [vmem:[%s458 + $0x38] sm:$0xfe]
  %v6083 = vlaneseq
  %v6084 = vshrl.u32 %v6083, 7
  %v6085 = vsub.s32 0, %v6084
  %v6086 = vrot.slane %v6073, %v6085
  %v6087 = vlaneseq
  %v6088 = vshrl.u32 %v6087, 7
  %v6089 = vsub.s32 1, %v6088
  %v6090 = vrot.slane %v6073, %v6089
  %v6091 = vlaneseq
  %v6092 = vshrl.u32 %v6091, 7
  %v6093 = vsub.s32 2, %v6092
  %v6094 = vrot.slane %v6073, %v6093
  %v6095 = vlaneseq
  %v6096 = vshrl.u32 %v6095, 7
  %v6097 = vsub.s32 3, %v6096
  %v6098 = vrot.slane %v6073, %v6097
  %v6099 = vlaneseq
  %v6100 = vshrl.u32 %v6099, 7
  %v6101 = vsub.s32 4, %v6100
  %v6102 = vrot.slane %v6073, %v6101
  %v6103 = vlaneseq
  %v6104 = vshrl.u32 %v6103, 7
  %v6105 = vsub.s32 5, %v6104
  %v6106 = vrot.slane %v6073, %v6105
  %v6107 = vlaneseq
  %v6108 = vshrl.u32 %v6107, 7
  %v6109 = vsub.s32 6, %v6108
  %v6110 = vrot.slane %v6073, %v6109
  %v6111 = vlaneseq
  %v6112 = vshrl.u32 %v6111, 7
  %v6113 = vsub.s32 7, %v6112
  %v6114 = vrot.slane %v6073, %v6113
  %v6123 = vmul.f32 %v6074, %v6086
  %v6124 = vmul.f32 %v6075, %v6090
  %v6125 = vmul.f32 %v6076, %v6094
  %v6126 = vmul.f32 %v6077, %v6098
  %v6127 = vmul.f32 %v6078, %v6102
  %v6128 = vmul.f32 %v6079, %v6106
  %v6129 = vmul.f32 %v6080, %v6110
  %v6130 = vmul.f32 %v6081, %v6114
  %v6139 = vrot.slane %v6123, 1
  %v6140 = vrot.slane %v6124, 1
  %v6141 = vrot.slane %v6125, 1
  %v6142 = vrot.slane %v6126, 1
  %v6143 = vrot.slane %v6127, 1
  %v6144 = vrot.slane %v6128, 1
  %v6145 = vrot.slane %v6129, 1
  %v6146 = vrot.slane %v6130, 1
  %v6155 = vadd.f32 %v6065, %v6139
  %v6156 = vadd.f32 %v6066, %v6140
  %v6157 = vadd.f32 %v6067, %v6141
  %v6158 = vadd.f32 %v6068, %v6142
  %v6159 = vadd.f32 %v6069, %v6143
  %v6160 = vadd.f32 %v6070, %v6144
  %v6161 = vadd.f32 %v6071, %v6145
  %v6162 = vadd.f32 %v6072, %v6146
  %v6163 = vld [vmem:[%s617] ss:$4 sm:$0xff]
  %v6164 = vld [vmem:[%s458] sm:$0xfc]
  %v6165 = vld [vmem:[%s458 + $0x8] sm:$0xfc]
  %v6166 = vld [vmem:[%s458 + $0x10] sm:$0xfc]
  %v6167 = vld [vmem:[%s458 + $0x18] sm:$0xfc]
  %v6168 = vld [vmem:[%s458 + $0x20] sm:$0xfc]
  %v6169 = vld [vmem:[%s458 + $0x28] sm:$0xfc]
  %v6170 = vld [vmem:[%s458 + $0x30] sm:$0xfc]
  %v6171 = vld [vmem:[%s458 + $0x38] sm:$0xfc]
  %v6172 = vld [vmem:[%s458 + $0x40] sm:$0x1]
  %v6173 = vld [vmem:[%s458 + $0x48] sm:$0x1]
  %v6174 = vld [vmem:[%s458 + $0x50] sm:$0x1]
  %v6175 = vld [vmem:[%s458 + $0x58] sm:$0x1]
  %v6176 = vld [vmem:[%s458 + $0x60] sm:$0x1]
  %v6177 = vld [vmem:[%s458 + $0x68] sm:$0x1]
  %v6178 = vld [vmem:[%s458 + $0x70] sm:$0x1]
  %v6179 = vld [vmem:[%s458 + $0x78] sm:$0x1]
  %v6181 = vlaneseq
  %v6182 = vshrl.u32 %v6181, 7
  %v6183 = vsub.s32 0, %v6182
  %v6184 = vrot.slane %v6163, %v6183
  %v6185 = vlaneseq
  %v6186 = vshrl.u32 %v6185, 7
  %v6187 = vsub.s32 1, %v6186
  %v6188 = vrot.slane %v6163, %v6187
  %v6189 = vlaneseq
  %v6190 = vshrl.u32 %v6189, 7
  %v6191 = vsub.s32 2, %v6190
  %v6192 = vrot.slane %v6163, %v6191
  %v6193 = vlaneseq
  %v6194 = vshrl.u32 %v6193, 7
  %v6195 = vsub.s32 3, %v6194
  %v6196 = vrot.slane %v6163, %v6195
  %v6197 = vlaneseq
  %v6198 = vshrl.u32 %v6197, 7
  %v6199 = vsub.s32 4, %v6198
  %v6200 = vrot.slane %v6163, %v6199
  %v6201 = vlaneseq
  %v6202 = vshrl.u32 %v6201, 7
  %v6203 = vsub.s32 5, %v6202
  %v6204 = vrot.slane %v6163, %v6203
  %v6205 = vlaneseq
  %v6206 = vshrl.u32 %v6205, 7
  %v6207 = vsub.s32 6, %v6206
  %v6208 = vrot.slane %v6163, %v6207
  %v6209 = vlaneseq
  %v6210 = vshrl.u32 %v6209, 7
  %v6211 = vsub.s32 7, %v6210
  %v6212 = vrot.slane %v6163, %v6211
  %v6221 = vmul.f32 %v6164, %v6184
  %v6222 = vmul.f32 %v6165, %v6188
  %v6223 = vmul.f32 %v6166, %v6192
  %v6224 = vmul.f32 %v6167, %v6196
  %v6225 = vmul.f32 %v6168, %v6200
  %v6226 = vmul.f32 %v6169, %v6204
  %v6227 = vmul.f32 %v6170, %v6208
  %v6228 = vmul.f32 %v6171, %v6212
  %v6229 = vmul.f32 %v6172, %v6184
  %v6230 = vmul.f32 %v6173, %v6188
  %v6231 = vmul.f32 %v6174, %v6192
  %v6232 = vmul.f32 %v6175, %v6196
  %v6233 = vmul.f32 %v6176, %v6200
  %v6234 = vmul.f32 %v6177, %v6204
  %v6235 = vmul.f32 %v6178, %v6208
  %v6236 = vmul.f32 %v6179, %v6212
  %v6253 = vrot.slane %v6221, 2
  %v6254 = vrot.slane %v6229, 2
  %v6255 = vsel %vm708, %v6253, %v6254
  %v6256 = vrot.slane %v6222, 2
  %v6257 = vrot.slane %v6230, 2
  %v6258 = vsel %vm708, %v6256, %v6257
  %v6259 = vrot.slane %v6223, 2
  %v6260 = vrot.slane %v6231, 2
  %v6261 = vsel %vm708, %v6259, %v6260
  %v6262 = vrot.slane %v6224, 2
  %v6263 = vrot.slane %v6232, 2
  %v6264 = vsel %vm708, %v6262, %v6263
  %v6265 = vrot.slane %v6225, 2
  %v6266 = vrot.slane %v6233, 2
  %v6267 = vsel %vm708, %v6265, %v6266
  %v6268 = vrot.slane %v6226, 2
  %v6269 = vrot.slane %v6234, 2
  %v6270 = vsel %vm708, %v6268, %v6269
  %v6271 = vrot.slane %v6227, 2
  %v6272 = vrot.slane %v6235, 2
  %v6273 = vsel %vm708, %v6271, %v6272
  %v6274 = vrot.slane %v6228, 2
  %v6275 = vrot.slane %v6236, 2
  %v6276 = vsel %vm708, %v6274, %v6275
  %v6285 = vadd.f32 %v6155, %v6255
  %v6286 = vadd.f32 %v6156, %v6258
  %v6287 = vadd.f32 %v6157, %v6261
  %v6288 = vadd.f32 %v6158, %v6264
  %v6289 = vadd.f32 %v6159, %v6267
  %v6290 = vadd.f32 %v6160, %v6270
  %v6291 = vadd.f32 %v6161, %v6273
  %v6292 = vadd.f32 %v6162, %v6276
  %s6293 = scalar_lea.vmem %s4, 384
  %6294 = vst [vmem:[%s6293] sm:$0x7f] %v6285
  %6295 = vst [vmem:[%s6293 + $0x8] sm:$0x7f] %v6286
  %6296 = vst [vmem:[%s6293 + $0x10] sm:$0x7f] %v6287
  %6297 = vst [vmem:[%s6293 + $0x18] sm:$0x7f] %v6288
  %6298 = vst [vmem:[%s6293 + $0x20] sm:$0x7f] %v6289
  %6299 = vst [vmem:[%s6293 + $0x28] sm:$0x7f] %v6290
  %6300 = vst [vmem:[%s6293 + $0x30] sm:$0x7f] %v6291
  %6301 = vst.msk [vmem:[%s6293 + $0x38] sm:$0x7f] %vm1045, %v6292
  %v6302 = vsel %vm1047, %v6285, 0.0
  %v6303 = vrot.slane %v6302, 4
  %v6304 = vadd.f32 %v6302, %v6303
  %v6305 = vrot.slane %v6304, 2
  %v6306 = vadd.f32 %v6304, %v6305
  %v6307 = vrot.slane %v6306, 1
  %v6308 = vadd.f32 %v6306, %v6307
  %v6309 = vsel %vm1047, %v6286, 0.0
  %v6310 = vrot.slane %v6309, 4
  %v6311 = vadd.f32 %v6309, %v6310
  %v6312 = vrot.slane %v6311, 2
  %v6313 = vadd.f32 %v6311, %v6312
  %v6314 = vrot.slane %v6313, 1
  %v6315 = vadd.f32 %v6313, %v6314
  %v6316 = vsel %vm1047, %v6287, 0.0
  %v6317 = vrot.slane %v6316, 4
  %v6318 = vadd.f32 %v6316, %v6317
  %v6319 = vrot.slane %v6318, 2
  %v6320 = vadd.f32 %v6318, %v6319
  %v6321 = vrot.slane %v6320, 1
  %v6322 = vadd.f32 %v6320, %v6321
  %v6323 = vsel %vm1047, %v6288, 0.0
  %v6324 = vrot.slane %v6323, 4
  %v6325 = vadd.f32 %v6323, %v6324
  %v6326 = vrot.slane %v6325, 2
  %v6327 = vadd.f32 %v6325, %v6326
  %v6328 = vrot.slane %v6327, 1
  %v6329 = vadd.f32 %v6327, %v6328
  %v6330 = vsel %vm1047, %v6289, 0.0
  %v6331 = vrot.slane %v6330, 4
  %v6332 = vadd.f32 %v6330, %v6331
  %v6333 = vrot.slane %v6332, 2
  %v6334 = vadd.f32 %v6332, %v6333
  %v6335 = vrot.slane %v6334, 1
  %v6336 = vadd.f32 %v6334, %v6335
  %v6337 = vsel %vm1047, %v6290, 0.0
  %v6338 = vrot.slane %v6337, 4
  %v6339 = vadd.f32 %v6337, %v6338
  %v6340 = vrot.slane %v6339, 2
  %v6341 = vadd.f32 %v6339, %v6340
  %v6342 = vrot.slane %v6341, 1
  %v6343 = vadd.f32 %v6341, %v6342
  %v6344 = vsel %vm1047, %v6291, 0.0
  %v6345 = vrot.slane %v6344, 4
  %v6346 = vadd.f32 %v6344, %v6345
  %v6347 = vrot.slane %v6346, 2
  %v6348 = vadd.f32 %v6346, %v6347
  %v6349 = vrot.slane %v6348, 1
  %v6350 = vadd.f32 %v6348, %v6349
  %v6351 = vsel %vm1045, %v6292, 0.0
  %v6352 = vrot.slane %v6351, 4
  %v6353 = vadd.f32 %v6351, %v6352
  %v6354 = vrot.slane %v6353, 2
  %v6355 = vadd.f32 %v6353, %v6354
  %v6356 = vrot.slane %v6355, 1
  %v6357 = vadd.f32 %v6355, %v6356
  %v6358 = vadd.f32 %v5721, %v6308
  %v6359 = vadd.f32 %v5722, %v6315
  %v6360 = vadd.f32 %v5723, %v6322
  %v6361 = vadd.f32 %v5724, %v6329
  %v6362 = vadd.f32 %v5725, %v6336
  %v6363 = vadd.f32 %v5726, %v6343
  %v6364 = vadd.f32 %v5727, %v6350
  %v6365 = vadd.f32 %v5728, %v6357
  %v6366 = vmul.f32 %v6358, 0.020408163
  %v6367 = vmul.f32 %v6359, 0.020408163
  %v6368 = vmul.f32 %v6360, 0.020408163
  %v6369 = vmul.f32 %v6361, 0.020408163
  %v6370 = vmul.f32 %v6362, 0.020408163
  %v6371 = vmul.f32 %v6363, 0.020408163
  %v6372 = vmul.f32 %v6364, 0.020408163
  %v6373 = vmul.f32 %v6365, 0.020408163
  %v6374 = vld [vmem:[%s4] sm:$0x7f]
  %v6375 = vld [vmem:[%s4 + $0x8] sm:$0x7f]
  %v6376 = vld [vmem:[%s4 + $0x10] sm:$0x7f]
  %v6377 = vld [vmem:[%s4 + $0x18] sm:$0x7f]
  %v6378 = vld [vmem:[%s4 + $0x20] sm:$0x7f]
  %v6379 = vld [vmem:[%s4 + $0x28] sm:$0x7f]
  %v6380 = vld [vmem:[%s4 + $0x30] sm:$0x7f]
  %v6381 = vld [vmem:[%s4 + $0x38] sm:$0x7f]
  %v6382 = vsub.f32 %v6374, %v6366
  %v6383 = vsub.f32 %v6375, %v6367
  %v6384 = vsub.f32 %v6376, %v6368
  %v6385 = vsub.f32 %v6377, %v6369
  %v6386 = vsub.f32 %v6378, %v6370
  %v6387 = vsub.f32 %v6379, %v6371
  %v6388 = vsub.f32 %v6380, %v6372
  %v6389 = vsub.f32 %v6381, %v6373
  %v6390 = vmul.f32 %v6382, %v6382
  %v6391 = vmul.f32 %v6383, %v6383
  %v6392 = vmul.f32 %v6384, %v6384
  %v6393 = vmul.f32 %v6385, %v6385
  %v6394 = vmul.f32 %v6386, %v6386
  %v6395 = vmul.f32 %v6387, %v6387
  %v6396 = vmul.f32 %v6388, %v6388
  %v6397 = vmul.f32 %v6389, %v6389
  %v6398 = vsel %vm1047, %v6390, 0.0
  %v6399 = vrot.slane %v6398, 4
  %v6400 = vadd.f32 %v6398, %v6399
  %v6401 = vrot.slane %v6400, 2
  %v6402 = vadd.f32 %v6400, %v6401
  %v6403 = vrot.slane %v6402, 1
  %v6404 = vadd.f32 %v6402, %v6403
  %v6405 = vsel %vm1047, %v6391, 0.0
  %v6406 = vrot.slane %v6405, 4
  %v6407 = vadd.f32 %v6405, %v6406
  %v6408 = vrot.slane %v6407, 2
  %v6409 = vadd.f32 %v6407, %v6408
  %v6410 = vrot.slane %v6409, 1
  %v6411 = vadd.f32 %v6409, %v6410
  %v6412 = vsel %vm1047, %v6392, 0.0
  %v6413 = vrot.slane %v6412, 4
  %v6414 = vadd.f32 %v6412, %v6413
  %v6415 = vrot.slane %v6414, 2
  %v6416 = vadd.f32 %v6414, %v6415
  %v6417 = vrot.slane %v6416, 1
  %v6418 = vadd.f32 %v6416, %v6417
  %v6419 = vsel %vm1047, %v6393, 0.0
  %v6420 = vrot.slane %v6419, 4
  %v6421 = vadd.f32 %v6419, %v6420
  %v6422 = vrot.slane %v6421, 2
  %v6423 = vadd.f32 %v6421, %v6422
  %v6424 = vrot.slane %v6423, 1
  %v6425 = vadd.f32 %v6423, %v6424
  %v6426 = vsel %vm1047, %v6394, 0.0
  %v6427 = vrot.slane %v6426, 4
  %v6428 = vadd.f32 %v6426, %v6427
  %v6429 = vrot.slane %v6428, 2
  %v6430 = vadd.f32 %v6428, %v6429
  %v6431 = vrot.slane %v6430, 1
  %v6432 = vadd.f32 %v6430, %v6431
  %v6433 = vsel %vm1047, %v6395, 0.0
  %v6434 = vrot.slane %v6433, 4
  %v6435 = vadd.f32 %v6433, %v6434
  %v6436 = vrot.slane %v6435, 2
  %v6437 = vadd.f32 %v6435, %v6436
  %v6438 = vrot.slane %v6437, 1
  %v6439 = vadd.f32 %v6437, %v6438
  %v6440 = vsel %vm1047, %v6396, 0.0
  %v6441 = vrot.slane %v6440, 4
  %v6442 = vadd.f32 %v6440, %v6441
  %v6443 = vrot.slane %v6442, 2
  %v6444 = vadd.f32 %v6442, %v6443
  %v6445 = vrot.slane %v6444, 1
  %v6446 = vadd.f32 %v6444, %v6445
  %v6447 = vsel %vm1045, %v6397, 0.0
  %v6448 = vrot.slane %v6447, 4
  %v6449 = vadd.f32 %v6447, %v6448
  %v6450 = vrot.slane %v6449, 2
  %v6451 = vadd.f32 %v6449, %v6450
  %v6452 = vrot.slane %v6451, 1
  %v6453 = vadd.f32 %v6451, %v6452
  %v6454 = vadd.f32 %v6404, 0.0
  %v6455 = vadd.f32 %v6411, 0.0
  %v6456 = vadd.f32 %v6418, 0.0
  %v6457 = vadd.f32 %v6425, 0.0
  %v6458 = vadd.f32 %v6432, 0.0
  %v6459 = vadd.f32 %v6439, 0.0
  %v6460 = vadd.f32 %v6446, 0.0
  %v6461 = vadd.f32 %v6453, 0.0
  %v6462 = vld [vmem:[%s1964] sm:$0x7f]
  %v6463 = vld [vmem:[%s1964 + $0x8] sm:$0x7f]
  %v6464 = vld [vmem:[%s1964 + $0x10] sm:$0x7f]
  %v6465 = vld [vmem:[%s1964 + $0x18] sm:$0x7f]
  %v6466 = vld [vmem:[%s1964 + $0x20] sm:$0x7f]
  %v6467 = vld [vmem:[%s1964 + $0x28] sm:$0x7f]
  %v6468 = vld [vmem:[%s1964 + $0x30] sm:$0x7f]
  %v6469 = vld [vmem:[%s1964 + $0x38] sm:$0x7f]
  %v6470 = vsub.f32 %v6462, %v6366
  %v6471 = vsub.f32 %v6463, %v6367
  %v6472 = vsub.f32 %v6464, %v6368
  %v6473 = vsub.f32 %v6465, %v6369
  %v6474 = vsub.f32 %v6466, %v6370
  %v6475 = vsub.f32 %v6467, %v6371
  %v6476 = vsub.f32 %v6468, %v6372
  %v6477 = vsub.f32 %v6469, %v6373
  %v6478 = vmul.f32 %v6470, %v6470
  %v6479 = vmul.f32 %v6471, %v6471
  %v6480 = vmul.f32 %v6472, %v6472
  %v6481 = vmul.f32 %v6473, %v6473
  %v6482 = vmul.f32 %v6474, %v6474
  %v6483 = vmul.f32 %v6475, %v6475
  %v6484 = vmul.f32 %v6476, %v6476
  %v6485 = vmul.f32 %v6477, %v6477
  %v6486 = vsel %vm1047, %v6478, 0.0
  %v6487 = vrot.slane %v6486, 4
  %v6488 = vadd.f32 %v6486, %v6487
  %v6489 = vrot.slane %v6488, 2
  %v6490 = vadd.f32 %v6488, %v6489
  %v6491 = vrot.slane %v6490, 1
  %v6492 = vadd.f32 %v6490, %v6491
  %v6493 = vsel %vm1047, %v6479, 0.0
  %v6494 = vrot.slane %v6493, 4
  %v6495 = vadd.f32 %v6493, %v6494
  %v6496 = vrot.slane %v6495, 2
  %v6497 = vadd.f32 %v6495, %v6496
  %v6498 = vrot.slane %v6497, 1
  %v6499 = vadd.f32 %v6497, %v6498
  %v6500 = vsel %vm1047, %v6480, 0.0
  %v6501 = vrot.slane %v6500, 4
  %v6502 = vadd.f32 %v6500, %v6501
  %v6503 = vrot.slane %v6502, 2
  %v6504 = vadd.f32 %v6502, %v6503
  %v6505 = vrot.slane %v6504, 1
  %v6506 = vadd.f32 %v6504, %v6505
  %v6507 = vsel %vm1047, %v6481, 0.0
  %v6508 = vrot.slane %v6507, 4
  %v6509 = vadd.f32 %v6507, %v6508
  %v6510 = vrot.slane %v6509, 2
  %v6511 = vadd.f32 %v6509, %v6510
  %v6512 = vrot.slane %v6511, 1
  %v6513 = vadd.f32 %v6511, %v6512
  %v6514 = vsel %vm1047, %v6482, 0.0
  %v6515 = vrot.slane %v6514, 4
  %v6516 = vadd.f32 %v6514, %v6515
  %v6517 = vrot.slane %v6516, 2
  %v6518 = vadd.f32 %v6516, %v6517
  %v6519 = vrot.slane %v6518, 1
  %v6520 = vadd.f32 %v6518, %v6519
  %v6521 = vsel %vm1047, %v6483, 0.0
  %v6522 = vrot.slane %v6521, 4
  %v6523 = vadd.f32 %v6521, %v6522
  %v6524 = vrot.slane %v6523, 2
  %v6525 = vadd.f32 %v6523, %v6524
  %v6526 = vrot.slane %v6525, 1
  %v6527 = vadd.f32 %v6525, %v6526
  %v6528 = vsel %vm1047, %v6484, 0.0
  %v6529 = vrot.slane %v6528, 4
  %v6530 = vadd.f32 %v6528, %v6529
  %v6531 = vrot.slane %v6530, 2
  %v6532 = vadd.f32 %v6530, %v6531
  %v6533 = vrot.slane %v6532, 1
  %v6534 = vadd.f32 %v6532, %v6533
  %v6535 = vsel %vm1045, %v6485, 0.0
  %v6536 = vrot.slane %v6535, 4
  %v6537 = vadd.f32 %v6535, %v6536
  %v6538 = vrot.slane %v6537, 2
  %v6539 = vadd.f32 %v6537, %v6538
  %v6540 = vrot.slane %v6539, 1
  %v6541 = vadd.f32 %v6539, %v6540
  %v6542 = vadd.f32 %v6454, %v6492
  %v6543 = vadd.f32 %v6455, %v6499
  %v6544 = vadd.f32 %v6456, %v6506
  %v6545 = vadd.f32 %v6457, %v6513
  %v6546 = vadd.f32 %v6458, %v6520
  %v6547 = vadd.f32 %v6459, %v6527
  %v6548 = vadd.f32 %v6460, %v6534
  %v6549 = vadd.f32 %v6461, %v6541
  %v6550 = vld [vmem:[%s2887] sm:$0x7f]
  %v6551 = vld [vmem:[%s2887 + $0x8] sm:$0x7f]
  %v6552 = vld [vmem:[%s2887 + $0x10] sm:$0x7f]
  %v6553 = vld [vmem:[%s2887 + $0x18] sm:$0x7f]
  %v6554 = vld [vmem:[%s2887 + $0x20] sm:$0x7f]
  %v6555 = vld [vmem:[%s2887 + $0x28] sm:$0x7f]
  %v6556 = vld [vmem:[%s2887 + $0x30] sm:$0x7f]
  %v6557 = vld [vmem:[%s2887 + $0x38] sm:$0x7f]
  %v6558 = vsub.f32 %v6550, %v6366
  %v6559 = vsub.f32 %v6551, %v6367
  %v6560 = vsub.f32 %v6552, %v6368
  %v6561 = vsub.f32 %v6553, %v6369
  %v6562 = vsub.f32 %v6554, %v6370
  %v6563 = vsub.f32 %v6555, %v6371
  %v6564 = vsub.f32 %v6556, %v6372
  %v6565 = vsub.f32 %v6557, %v6373
  %v6566 = vmul.f32 %v6558, %v6558
  %v6567 = vmul.f32 %v6559, %v6559
  %v6568 = vmul.f32 %v6560, %v6560
  %v6569 = vmul.f32 %v6561, %v6561
  %v6570 = vmul.f32 %v6562, %v6562
  %v6571 = vmul.f32 %v6563, %v6563
  %v6572 = vmul.f32 %v6564, %v6564
  %v6573 = vmul.f32 %v6565, %v6565
  %v6574 = vsel %vm1047, %v6566, 0.0
  %v6575 = vrot.slane %v6574, 4
  %v6576 = vadd.f32 %v6574, %v6575
  %v6577 = vrot.slane %v6576, 2
  %v6578 = vadd.f32 %v6576, %v6577
  %v6579 = vrot.slane %v6578, 1
  %v6580 = vadd.f32 %v6578, %v6579
  %v6581 = vsel %vm1047, %v6567, 0.0
  %v6582 = vrot.slane %v6581, 4
  %v6583 = vadd.f32 %v6581, %v6582
  %v6584 = vrot.slane %v6583, 2
  %v6585 = vadd.f32 %v6583, %v6584
  %v6586 = vrot.slane %v6585, 1
  %v6587 = vadd.f32 %v6585, %v6586
  %v6588 = vsel %vm1047, %v6568, 0.0
  %v6589 = vrot.slane %v6588, 4
  %v6590 = vadd.f32 %v6588, %v6589
  %v6591 = vrot.slane %v6590, 2
  %v6592 = vadd.f32 %v6590, %v6591
  %v6593 = vrot.slane %v6592, 1
  %v6594 = vadd.f32 %v6592, %v6593
  %v6595 = vsel %vm1047, %v6569, 0.0
  %v6596 = vrot.slane %v6595, 4
  %v6597 = vadd.f32 %v6595, %v6596
  %v6598 = vrot.slane %v6597, 2
  %v6599 = vadd.f32 %v6597, %v6598
  %v6600 = vrot.slane %v6599, 1
  %v6601 = vadd.f32 %v6599, %v6600
  %v6602 = vsel %vm1047, %v6570, 0.0
  %v6603 = vrot.slane %v6602, 4
  %v6604 = vadd.f32 %v6602, %v6603
  %v6605 = vrot.slane %v6604, 2
  %v6606 = vadd.f32 %v6604, %v6605
  %v6607 = vrot.slane %v6606, 1
  %v6608 = vadd.f32 %v6606, %v6607
  %v6609 = vsel %vm1047, %v6571, 0.0
  %v6610 = vrot.slane %v6609, 4
  %v6611 = vadd.f32 %v6609, %v6610
  %v6612 = vrot.slane %v6611, 2
  %v6613 = vadd.f32 %v6611, %v6612
  %v6614 = vrot.slane %v6613, 1
  %v6615 = vadd.f32 %v6613, %v6614
  %v6616 = vsel %vm1047, %v6572, 0.0
  %v6617 = vrot.slane %v6616, 4
  %v6618 = vadd.f32 %v6616, %v6617
  %v6619 = vrot.slane %v6618, 2
  %v6620 = vadd.f32 %v6618, %v6619
  %v6621 = vrot.slane %v6620, 1
  %v6622 = vadd.f32 %v6620, %v6621
  %v6623 = vsel %vm1045, %v6573, 0.0
  %v6624 = vrot.slane %v6623, 4
  %v6625 = vadd.f32 %v6623, %v6624
  %v6626 = vrot.slane %v6625, 2
  %v6627 = vadd.f32 %v6625, %v6626
  %v6628 = vrot.slane %v6627, 1
  %v6629 = vadd.f32 %v6627, %v6628
  %v6630 = vadd.f32 %v6542, %v6580
  %v6631 = vadd.f32 %v6543, %v6587
  %v6632 = vadd.f32 %v6544, %v6594
  %v6633 = vadd.f32 %v6545, %v6601
  %v6634 = vadd.f32 %v6546, %v6608
  %v6635 = vadd.f32 %v6547, %v6615
  %v6636 = vadd.f32 %v6548, %v6622
  %v6637 = vadd.f32 %v6549, %v6629
  %v6638 = vld [vmem:[%s3810] sm:$0x7f]
  %v6639 = vld [vmem:[%s3810 + $0x8] sm:$0x7f]
  %v6640 = vld [vmem:[%s3810 + $0x10] sm:$0x7f]
  %v6641 = vld [vmem:[%s3810 + $0x18] sm:$0x7f]
  %v6642 = vld [vmem:[%s3810 + $0x20] sm:$0x7f]
  %v6643 = vld [vmem:[%s3810 + $0x28] sm:$0x7f]
  %v6644 = vld [vmem:[%s3810 + $0x30] sm:$0x7f]
  %v6645 = vld [vmem:[%s3810 + $0x38] sm:$0x7f]
  %v6646 = vsub.f32 %v6638, %v6366
  %v6647 = vsub.f32 %v6639, %v6367
  %v6648 = vsub.f32 %v6640, %v6368
  %v6649 = vsub.f32 %v6641, %v6369
  %v6650 = vsub.f32 %v6642, %v6370
  %v6651 = vsub.f32 %v6643, %v6371
  %v6652 = vsub.f32 %v6644, %v6372
  %v6653 = vsub.f32 %v6645, %v6373
  %v6654 = vmul.f32 %v6646, %v6646
  %v6655 = vmul.f32 %v6647, %v6647
  %v6656 = vmul.f32 %v6648, %v6648
  %v6657 = vmul.f32 %v6649, %v6649
  %v6658 = vmul.f32 %v6650, %v6650
  %v6659 = vmul.f32 %v6651, %v6651
  %v6660 = vmul.f32 %v6652, %v6652
  %v6661 = vmul.f32 %v6653, %v6653
  %v6662 = vsel %vm1047, %v6654, 0.0
  %v6663 = vrot.slane %v6662, 4
  %v6664 = vadd.f32 %v6662, %v6663
  %v6665 = vrot.slane %v6664, 2
  %v6666 = vadd.f32 %v6664, %v6665
  %v6667 = vrot.slane %v6666, 1
  %v6668 = vadd.f32 %v6666, %v6667
  %v6669 = vsel %vm1047, %v6655, 0.0
  %v6670 = vrot.slane %v6669, 4
  %v6671 = vadd.f32 %v6669, %v6670
  %v6672 = vrot.slane %v6671, 2
  %v6673 = vadd.f32 %v6671, %v6672
  %v6674 = vrot.slane %v6673, 1
  %v6675 = vadd.f32 %v6673, %v6674
  %v6676 = vsel %vm1047, %v6656, 0.0
  %v6677 = vrot.slane %v6676, 4
  %v6678 = vadd.f32 %v6676, %v6677
  %v6679 = vrot.slane %v6678, 2
  %v6680 = vadd.f32 %v6678, %v6679
  %v6681 = vrot.slane %v6680, 1
  %v6682 = vadd.f32 %v6680, %v6681
  %v6683 = vsel %vm1047, %v6657, 0.0
  %v6684 = vrot.slane %v6683, 4
  %v6685 = vadd.f32 %v6683, %v6684
  %v6686 = vrot.slane %v6685, 2
  %v6687 = vadd.f32 %v6685, %v6686
  %v6688 = vrot.slane %v6687, 1
  %v6689 = vadd.f32 %v6687, %v6688
  %v6690 = vsel %vm1047, %v6658, 0.0
  %v6691 = vrot.slane %v6690, 4
  %v6692 = vadd.f32 %v6690, %v6691
  %v6693 = vrot.slane %v6692, 2
  %v6694 = vadd.f32 %v6692, %v6693
  %v6695 = vrot.slane %v6694, 1
  %v6696 = vadd.f32 %v6694, %v6695
  %v6697 = vsel %vm1047, %v6659, 0.0
  %v6698 = vrot.slane %v6697, 4
  %v6699 = vadd.f32 %v6697, %v6698
  %v6700 = vrot.slane %v6699, 2
  %v6701 = vadd.f32 %v6699, %v6700
  %v6702 = vrot.slane %v6701, 1
  %v6703 = vadd.f32 %v6701, %v6702
  %v6704 = vsel %vm1047, %v6660, 0.0
  %v6705 = vrot.slane %v6704, 4
  %v6706 = vadd.f32 %v6704, %v6705
  %v6707 = vrot.slane %v6706, 2
  %v6708 = vadd.f32 %v6706, %v6707
  %v6709 = vrot.slane %v6708, 1
  %v6710 = vadd.f32 %v6708, %v6709
  %v6711 = vsel %vm1045, %v6661, 0.0
  %v6712 = vrot.slane %v6711, 4
  %v6713 = vadd.f32 %v6711, %v6712
  %v6714 = vrot.slane %v6713, 2
  %v6715 = vadd.f32 %v6713, %v6714
  %v6716 = vrot.slane %v6715, 1
  %v6717 = vadd.f32 %v6715, %v6716
  %v6718 = vadd.f32 %v6630, %v6668
  %v6719 = vadd.f32 %v6631, %v6675
  %v6720 = vadd.f32 %v6632, %v6682
  %v6721 = vadd.f32 %v6633, %v6689
  %v6722 = vadd.f32 %v6634, %v6696
  %v6723 = vadd.f32 %v6635, %v6703
  %v6724 = vadd.f32 %v6636, %v6710
  %v6725 = vadd.f32 %v6637, %v6717
  %v6726 = vld [vmem:[%s4733] sm:$0x7f]
  %v6727 = vld [vmem:[%s4733 + $0x8] sm:$0x7f]
  %v6728 = vld [vmem:[%s4733 + $0x10] sm:$0x7f]
  %v6729 = vld [vmem:[%s4733 + $0x18] sm:$0x7f]
  %v6730 = vld [vmem:[%s4733 + $0x20] sm:$0x7f]
  %v6731 = vld [vmem:[%s4733 + $0x28] sm:$0x7f]
  %v6732 = vld [vmem:[%s4733 + $0x30] sm:$0x7f]
  %v6733 = vld [vmem:[%s4733 + $0x38] sm:$0x7f]
  %v6734 = vsub.f32 %v6726, %v6366
  %v6735 = vsub.f32 %v6727, %v6367
  %v6736 = vsub.f32 %v6728, %v6368
  %v6737 = vsub.f32 %v6729, %v6369
  %v6738 = vsub.f32 %v6730, %v6370
  %v6739 = vsub.f32 %v6731, %v6371
  %v6740 = vsub.f32 %v6732, %v6372
  %v6741 = vsub.f32 %v6733, %v6373
  %v6742 = vmul.f32 %v6734, %v6734
  %v6743 = vmul.f32 %v6735, %v6735
  %v6744 = vmul.f32 %v6736, %v6736
  %v6745 = vmul.f32 %v6737, %v6737
  %v6746 = vmul.f32 %v6738, %v6738
  %v6747 = vmul.f32 %v6739, %v6739
  %v6748 = vmul.f32 %v6740, %v6740
  %v6749 = vmul.f32 %v6741, %v6741
  %v6750 = vsel %vm1047, %v6742, 0.0
  %v6751 = vrot.slane %v6750, 4
  %v6752 = vadd.f32 %v6750, %v6751
  %v6753 = vrot.slane %v6752, 2
  %v6754 = vadd.f32 %v6752, %v6753
  %v6755 = vrot.slane %v6754, 1
  %v6756 = vadd.f32 %v6754, %v6755
  %v6757 = vsel %vm1047, %v6743, 0.0
  %v6758 = vrot.slane %v6757, 4
  %v6759 = vadd.f32 %v6757, %v6758
  %v6760 = vrot.slane %v6759, 2
  %v6761 = vadd.f32 %v6759, %v6760
  %v6762 = vrot.slane %v6761, 1
  %v6763 = vadd.f32 %v6761, %v6762
  %v6764 = vsel %vm1047, %v6744, 0.0
  %v6765 = vrot.slane %v6764, 4
  %v6766 = vadd.f32 %v6764, %v6765
  %v6767 = vrot.slane %v6766, 2
  %v6768 = vadd.f32 %v6766, %v6767
  %v6769 = vrot.slane %v6768, 1
  %v6770 = vadd.f32 %v6768, %v6769
  %v6771 = vsel %vm1047, %v6745, 0.0
  %v6772 = vrot.slane %v6771, 4
  %v6773 = vadd.f32 %v6771, %v6772
  %v6774 = vrot.slane %v6773, 2
  %v6775 = vadd.f32 %v6773, %v6774
  %v6776 = vrot.slane %v6775, 1
  %v6777 = vadd.f32 %v6775, %v6776
  %v6778 = vsel %vm1047, %v6746, 0.0
  %v6779 = vrot.slane %v6778, 4
  %v6780 = vadd.f32 %v6778, %v6779
  %v6781 = vrot.slane %v6780, 2
  %v6782 = vadd.f32 %v6780, %v6781
  %v6783 = vrot.slane %v6782, 1
  %v6784 = vadd.f32 %v6782, %v6783
  %v6785 = vsel %vm1047, %v6747, 0.0
  %v6786 = vrot.slane %v6785, 4
  %v6787 = vadd.f32 %v6785, %v6786
  %v6788 = vrot.slane %v6787, 2
  %v6789 = vadd.f32 %v6787, %v6788
  %v6790 = vrot.slane %v6789, 1
  %v6791 = vadd.f32 %v6789, %v6790
  %v6792 = vsel %vm1047, %v6748, 0.0
  %v6793 = vrot.slane %v6792, 4
  %v6794 = vadd.f32 %v6792, %v6793
  %v6795 = vrot.slane %v6794, 2
  %v6796 = vadd.f32 %v6794, %v6795
  %v6797 = vrot.slane %v6796, 1
  %v6798 = vadd.f32 %v6796, %v6797
  %v6799 = vsel %vm1045, %v6749, 0.0
  %v6800 = vrot.slane %v6799, 4
  %v6801 = vadd.f32 %v6799, %v6800
  %v6802 = vrot.slane %v6801, 2
  %v6803 = vadd.f32 %v6801, %v6802
  %v6804 = vrot.slane %v6803, 1
  %v6805 = vadd.f32 %v6803, %v6804
  %v6806 = vadd.f32 %v6718, %v6756
  %v6807 = vadd.f32 %v6719, %v6763
  %v6808 = vadd.f32 %v6720, %v6770
  %v6809 = vadd.f32 %v6721, %v6777
  %v6810 = vadd.f32 %v6722, %v6784
  %v6811 = vadd.f32 %v6723, %v6791
  %v6812 = vadd.f32 %v6724, %v6798
  %v6813 = vadd.f32 %v6725, %v6805
  %v6814 = vld [vmem:[%s5656] sm:$0x7f]
  %v6815 = vld [vmem:[%s5656 + $0x8] sm:$0x7f]
  %v6816 = vld [vmem:[%s5656 + $0x10] sm:$0x7f]
  %v6817 = vld [vmem:[%s5656 + $0x18] sm:$0x7f]
  %v6818 = vld [vmem:[%s5656 + $0x20] sm:$0x7f]
  %v6819 = vld [vmem:[%s5656 + $0x28] sm:$0x7f]
  %v6820 = vld [vmem:[%s5656 + $0x30] sm:$0x7f]
  %v6821 = vld [vmem:[%s5656 + $0x38] sm:$0x7f]
  %v6822 = vsub.f32 %v6814, %v6366
  %v6823 = vsub.f32 %v6815, %v6367
  %v6824 = vsub.f32 %v6816, %v6368
  %v6825 = vsub.f32 %v6817, %v6369
  %v6826 = vsub.f32 %v6818, %v6370
  %v6827 = vsub.f32 %v6819, %v6371
  %v6828 = vsub.f32 %v6820, %v6372
  %v6829 = vsub.f32 %v6821, %v6373
  %v6830 = vmul.f32 %v6822, %v6822
  %v6831 = vmul.f32 %v6823, %v6823
  %v6832 = vmul.f32 %v6824, %v6824
  %v6833 = vmul.f32 %v6825, %v6825
  %v6834 = vmul.f32 %v6826, %v6826
  %v6835 = vmul.f32 %v6827, %v6827
  %v6836 = vmul.f32 %v6828, %v6828
  %v6837 = vmul.f32 %v6829, %v6829
  %v6838 = vsel %vm1047, %v6830, 0.0
  %v6839 = vrot.slane %v6838, 4
  %v6840 = vadd.f32 %v6838, %v6839
  %v6841 = vrot.slane %v6840, 2
  %v6842 = vadd.f32 %v6840, %v6841
  %v6843 = vrot.slane %v6842, 1
  %v6844 = vadd.f32 %v6842, %v6843
  %v6845 = vsel %vm1047, %v6831, 0.0
  %v6846 = vrot.slane %v6845, 4
  %v6847 = vadd.f32 %v6845, %v6846
  %v6848 = vrot.slane %v6847, 2
  %v6849 = vadd.f32 %v6847, %v6848
  %v6850 = vrot.slane %v6849, 1
  %v6851 = vadd.f32 %v6849, %v6850
  %v6852 = vsel %vm1047, %v6832, 0.0
  %v6853 = vrot.slane %v6852, 4
  %v6854 = vadd.f32 %v6852, %v6853
  %v6855 = vrot.slane %v6854, 2
  %v6856 = vadd.f32 %v6854, %v6855
  %v6857 = vrot.slane %v6856, 1
  %v6858 = vadd.f32 %v6856, %v6857
  %v6859 = vsel %vm1047, %v6833, 0.0
  %v6860 = vrot.slane %v6859, 4
  %v6861 = vadd.f32 %v6859, %v6860
  %v6862 = vrot.slane %v6861, 2
  %v6863 = vadd.f32 %v6861, %v6862
  %v6864 = vrot.slane %v6863, 1
  %v6865 = vadd.f32 %v6863, %v6864
  %v6866 = vsel %vm1047, %v6834, 0.0
  %v6867 = vrot.slane %v6866, 4
  %v6868 = vadd.f32 %v6866, %v6867
  %v6869 = vrot.slane %v6868, 2
  %v6870 = vadd.f32 %v6868, %v6869
  %v6871 = vrot.slane %v6870, 1
  %v6872 = vadd.f32 %v6870, %v6871
  %v6873 = vsel %vm1047, %v6835, 0.0
  %v6874 = vrot.slane %v6873, 4
  %v6875 = vadd.f32 %v6873, %v6874
  %v6876 = vrot.slane %v6875, 2
  %v6877 = vadd.f32 %v6875, %v6876
  %v6878 = vrot.slane %v6877, 1
  %v6879 = vadd.f32 %v6877, %v6878
  %v6880 = vsel %vm1047, %v6836, 0.0
  %v6881 = vrot.slane %v6880, 4
  %v6882 = vadd.f32 %v6880, %v6881
  %v6883 = vrot.slane %v6882, 2
  %v6884 = vadd.f32 %v6882, %v6883
  %v6885 = vrot.slane %v6884, 1
  %v6886 = vadd.f32 %v6884, %v6885
  %v6887 = vsel %vm1045, %v6837, 0.0
  %v6888 = vrot.slane %v6887, 4
  %v6889 = vadd.f32 %v6887, %v6888
  %v6890 = vrot.slane %v6889, 2
  %v6891 = vadd.f32 %v6889, %v6890
  %v6892 = vrot.slane %v6891, 1
  %v6893 = vadd.f32 %v6891, %v6892
  %v6894 = vadd.f32 %v6806, %v6844
  %v6895 = vadd.f32 %v6807, %v6851
  %v6896 = vadd.f32 %v6808, %v6858
  %v6897 = vadd.f32 %v6809, %v6865
  %v6898 = vadd.f32 %v6810, %v6872
  %v6899 = vadd.f32 %v6811, %v6879
  %v6900 = vadd.f32 %v6812, %v6886
  %v6901 = vadd.f32 %v6813, %v6893
  %v6902 = vld [vmem:[%s6293] sm:$0x7f]
  %v6903 = vld [vmem:[%s6293 + $0x8] sm:$0x7f]
  %v6904 = vld [vmem:[%s6293 + $0x10] sm:$0x7f]
  %v6905 = vld [vmem:[%s6293 + $0x18] sm:$0x7f]
  %v6906 = vld [vmem:[%s6293 + $0x20] sm:$0x7f]
  %v6907 = vld [vmem:[%s6293 + $0x28] sm:$0x7f]
  %v6908 = vld [vmem:[%s6293 + $0x30] sm:$0x7f]
  %v6909 = vld [vmem:[%s6293 + $0x38] sm:$0x7f]
  %v6910 = vsub.f32 %v6902, %v6366
  %v6911 = vsub.f32 %v6903, %v6367
  %v6912 = vsub.f32 %v6904, %v6368
  %v6913 = vsub.f32 %v6905, %v6369
  %v6914 = vsub.f32 %v6906, %v6370
  %v6915 = vsub.f32 %v6907, %v6371
  %v6916 = vsub.f32 %v6908, %v6372
  %v6917 = vsub.f32 %v6909, %v6373
  %v6918 = vmul.f32 %v6910, %v6910
  %v6919 = vmul.f32 %v6911, %v6911
  %v6920 = vmul.f32 %v6912, %v6912
  %v6921 = vmul.f32 %v6913, %v6913
  %v6922 = vmul.f32 %v6914, %v6914
  %v6923 = vmul.f32 %v6915, %v6915
  %v6924 = vmul.f32 %v6916, %v6916
  %v6925 = vmul.f32 %v6917, %v6917
  %v6926 = vsel %vm1047, %v6918, 0.0
  %v6927 = vrot.slane %v6926, 4
  %v6928 = vadd.f32 %v6926, %v6927
  %v6929 = vrot.slane %v6928, 2
  %v6930 = vadd.f32 %v6928, %v6929
  %v6931 = vrot.slane %v6930, 1
  %v6932 = vadd.f32 %v6930, %v6931
  %v6933 = vsel %vm1047, %v6919, 0.0
  %v6934 = vrot.slane %v6933, 4
  %v6935 = vadd.f32 %v6933, %v6934
  %v6936 = vrot.slane %v6935, 2
  %v6937 = vadd.f32 %v6935, %v6936
  %v6938 = vrot.slane %v6937, 1
  %v6939 = vadd.f32 %v6937, %v6938
  %v6940 = vsel %vm1047, %v6920, 0.0
  %v6941 = vrot.slane %v6940, 4
  %v6942 = vadd.f32 %v6940, %v6941
  %v6943 = vrot.slane %v6942, 2
  %v6944 = vadd.f32 %v6942, %v6943
  %v6945 = vrot.slane %v6944, 1
  %v6946 = vadd.f32 %v6944, %v6945
  %v6947 = vsel %vm1047, %v6921, 0.0
  %v6948 = vrot.slane %v6947, 4
  %v6949 = vadd.f32 %v6947, %v6948
  %v6950 = vrot.slane %v6949, 2
  %v6951 = vadd.f32 %v6949, %v6950
  %v6952 = vrot.slane %v6951, 1
  %v6953 = vadd.f32 %v6951, %v6952
  %v6954 = vsel %vm1047, %v6922, 0.0
  %v6955 = vrot.slane %v6954, 4
  %v6956 = vadd.f32 %v6954, %v6955
  %v6957 = vrot.slane %v6956, 2
  %v6958 = vadd.f32 %v6956, %v6957
  %v6959 = vrot.slane %v6958, 1
  %v6960 = vadd.f32 %v6958, %v6959
  %v6961 = vsel %vm1047, %v6923, 0.0
  %v6962 = vrot.slane %v6961, 4
  %v6963 = vadd.f32 %v6961, %v6962
  %v6964 = vrot.slane %v6963, 2
  %v6965 = vadd.f32 %v6963, %v6964
  %v6966 = vrot.slane %v6965, 1
  %v6967 = vadd.f32 %v6965, %v6966
  %v6968 = vsel %vm1047, %v6924, 0.0
  %v6969 = vrot.slane %v6968, 4
  %v6970 = vadd.f32 %v6968, %v6969
  %v6971 = vrot.slane %v6970, 2
  %v6972 = vadd.f32 %v6970, %v6971
  %v6973 = vrot.slane %v6972, 1
  %v6974 = vadd.f32 %v6972, %v6973
  %v6975 = vsel %vm1045, %v6925, 0.0
  %v6976 = vrot.slane %v6975, 4
  %v6977 = vadd.f32 %v6975, %v6976
  %v6978 = vrot.slane %v6977, 2
  %v6979 = vadd.f32 %v6977, %v6978
  %v6980 = vrot.slane %v6979, 1
  %v6981 = vadd.f32 %v6979, %v6980
  %v6982 = vadd.f32 %v6894, %v6932
  %v6983 = vadd.f32 %v6895, %v6939
  %v6984 = vadd.f32 %v6896, %v6946
  %v6985 = vadd.f32 %v6897, %v6953
  %v6986 = vadd.f32 %v6898, %v6960
  %v6987 = vadd.f32 %v6899, %v6967
  %v6988 = vadd.f32 %v6900, %v6974
  %v6989 = vadd.f32 %v6901, %v6981
  %v6990 = vmul.f32 %v6982, 0.020408163
  %v6991 = vmul.f32 %v6983, 0.020408163
  %v6992 = vmul.f32 %v6984, 0.020408163
  %v6993 = vmul.f32 %v6985, 0.020408163
  %v6994 = vmul.f32 %v6986, 0.020408163
  %v6995 = vmul.f32 %v6987, 0.020408163
  %v6996 = vmul.f32 %v6988, 0.020408163
  %v6997 = vmul.f32 %v6989, 0.020408163
  %v6998 = vadd.f32 %v6990, 1e-05
  %v6999 = vadd.f32 %v6991, 1e-05
  %v7000 = vadd.f32 %v6992, 1e-05
  %v7001 = vadd.f32 %v6993, 1e-05
  %v7002 = vadd.f32 %v6994, 1e-05
  %v7003 = vadd.f32 %v6995, 1e-05
  %v7004 = vadd.f32 %v6996, 1e-05
  %v7005 = vadd.f32 %v6997, 1e-05
  %v7006 = vrsqrt.pop %v6998
  %v7007 = vrsqrt.pop %v6999
  %v7008 = vrsqrt.pop %v7000
  %v7009 = vrsqrt.pop %v7001
  %v7010 = vrsqrt.pop %v7002
  %v7011 = vrsqrt.pop %v7003
  %v7012 = vrsqrt.pop %v7004
  %v7013 = vrsqrt.pop %v7005
  %v7014 = vld [vmem:[%s2] sm:$0xff]
  %v7023 = vcombine.low %v7006, %v7007
  %v7024 = vcombine.low %v7008, %v7009
  %v7025 = vcombine.low %v7010, %v7011
  %v7026 = vcombine.low %v7012, %v7013
  %v7028 = vunpack.c.l.s4 1966171168
  %v7029 = vunpack.c.0.s8 %v7028
  %v7030 = vlaneseq
  %v7031 = vshrl.u32 %v7030, 7
  %v7032 = vsub.s32 %v7029, %v7031
  %v7033 = vrot.slane %v7023, %v7032
  %v7035 = vunpack.c.l.s4 1966171168
  %v7036 = vunpack.c.0.s8 %v7035
  %v7037 = vlaneseq
  %v7038 = vshrl.u32 %v7037, 7
  %v7039 = vsub.s32 %v7036, %v7038
  %v7040 = vrot.slane %v7024, %v7039
  %v7042 = vunpack.c.l.s4 1966171168
  %v7043 = vunpack.c.0.s8 %v7042
  %v7044 = vlaneseq
  %v7045 = vshrl.u32 %v7044, 7
  %v7046 = vsub.s32 %v7043, %v7045
  %v7047 = vrot.slane %v7025, %v7046
  %v7049 = vunpack.c.l.s4 1966171168
  %v7050 = vunpack.c.0.s8 %v7049
  %v7051 = vlaneseq
  %v7052 = vshrl.u32 %v7051, 7
  %v7053 = vsub.s32 %v7050, %v7052
  %v7054 = vrot.slane %v7026, %v7053
  %v7055 = vcombine.low %v7033, %v7040
  %v7056 = vcombine.low %v7047, %v7054
  %v7058 = vunpack.c.l.s4 1966171168
  %v7059 = vunpack.c.0.s8 %v7058
  %v7060 = vlaneseq
  %v7061 = vshrl.u32 %v7060, 7
  %v7062 = vsub.s32 %v7059, %v7061
  %v7063 = vrot.slane %v7055, %v7062
  %v7065 = vunpack.c.l.s4 1966171168
  %v7066 = vunpack.c.0.s8 %v7065
  %v7067 = vlaneseq
  %v7068 = vshrl.u32 %v7067, 7
  %v7069 = vsub.s32 %v7066, %v7068
  %v7070 = vrot.slane %v7056, %v7069
  %v7071 = vcombine.low %v7063, %v7070
  %v7073 = vmul.f32 %v7014, %v7071
  %v7074 = vld [vmem:[%s3] sm:$0xff]
  %v7076 = vlaneseq
  %v7077 = vshrl.u32 %v7076, 7
  %v7078 = vsub.s32 0, %v7077
  %v7079 = vrot.slane %v7073, %v7078
  %v7080 = vlaneseq
  %v7081 = vshrl.u32 %v7080, 7
  %v7082 = vsub.s32 1, %v7081
  %v7083 = vrot.slane %v7073, %v7082
  %v7084 = vlaneseq
  %v7085 = vshrl.u32 %v7084, 7
  %v7086 = vsub.s32 2, %v7085
  %v7087 = vrot.slane %v7073, %v7086
  %v7088 = vlaneseq
  %v7089 = vshrl.u32 %v7088, 7
  %v7090 = vsub.s32 3, %v7089
  %v7091 = vrot.slane %v7073, %v7090
  %v7092 = vlaneseq
  %v7093 = vshrl.u32 %v7092, 7
  %v7094 = vsub.s32 4, %v7093
  %v7095 = vrot.slane %v7073, %v7094
  %v7096 = vlaneseq
  %v7097 = vshrl.u32 %v7096, 7
  %v7098 = vsub.s32 5, %v7097
  %v7099 = vrot.slane %v7073, %v7098
  %v7100 = vlaneseq
  %v7101 = vshrl.u32 %v7100, 7
  %v7102 = vsub.s32 6, %v7101
  %v7103 = vrot.slane %v7073, %v7102
  %v7104 = vlaneseq
  %v7105 = vshrl.u32 %v7104, 7
  %v7106 = vsub.s32 7, %v7105
  %v7107 = vrot.slane %v7073, %v7106
  %v7116 = vmul.f32 %v6366, %v7079
  %v7117 = vmul.f32 %v6367, %v7083
  %v7118 = vmul.f32 %v6368, %v7087
  %v7119 = vmul.f32 %v6369, %v7091
  %v7120 = vmul.f32 %v6370, %v7095
  %v7121 = vmul.f32 %v6371, %v7099
  %v7122 = vmul.f32 %v6372, %v7103
  %v7123 = vmul.f32 %v6373, %v7107
  %v7132 = vcombine.low %v7116, %v7117
  %v7133 = vcombine.low %v7118, %v7119
  %v7134 = vcombine.low %v7120, %v7121
  %v7135 = vcombine.low %v7122, %v7123
  %v7137 = vunpack.c.l.s4 1966171168
  %v7138 = vunpack.c.0.s8 %v7137
  %v7139 = vlaneseq
  %v7140 = vshrl.u32 %v7139, 7
  %v7141 = vsub.s32 %v7138, %v7140
  %v7142 = vrot.slane %v7132, %v7141
  %v7144 = vunpack.c.l.s4 1966171168
  %v7145 = vunpack.c.0.s8 %v7144
  %v7146 = vlaneseq
  %v7147 = vshrl.u32 %v7146, 7
  %v7148 = vsub.s32 %v7145, %v7147
  %v7149 = vrot.slane %v7133, %v7148
  %v7151 = vunpack.c.l.s4 1966171168
  %v7152 = vunpack.c.0.s8 %v7151
  %v7153 = vlaneseq
  %v7154 = vshrl.u32 %v7153, 7
  %v7155 = vsub.s32 %v7152, %v7154
  %v7156 = vrot.slane %v7134, %v7155
  %v7158 = vunpack.c.l.s4 1966171168
  %v7159 = vunpack.c.0.s8 %v7158
  %v7160 = vlaneseq
  %v7161 = vshrl.u32 %v7160, 7
  %v7162 = vsub.s32 %v7159, %v7161
  %v7163 = vrot.slane %v7135, %v7162
  %v7164 = vcombine.low %v7142, %v7149
  %v7165 = vcombine.low %v7156, %v7163
  %v7167 = vunpack.c.l.s4 1966171168
  %v7168 = vunpack.c.0.s8 %v7167
  %v7169 = vlaneseq
  %v7170 = vshrl.u32 %v7169, 7
  %v7171 = vsub.s32 %v7168, %v7170
  %v7172 = vrot.slane %v7164, %v7171
  %v7174 = vunpack.c.l.s4 1966171168
  %v7175 = vunpack.c.0.s8 %v7174
  %v7176 = vlaneseq
  %v7177 = vshrl.u32 %v7176, 7
  %v7178 = vsub.s32 %v7175, %v7177
  %v7179 = vrot.slane %v7165, %v7178
  %v7180 = vcombine.low %v7172, %v7179
  %v7182 = vsub.f32 %v7074, %v7180
  %v7183 = vmul.f32 %v6374, %v7079
  %v7184 = vmul.f32 %v6375, %v7083
  %v7185 = vmul.f32 %v6376, %v7087
  %v7186 = vmul.f32 %v6377, %v7091
  %v7187 = vmul.f32 %v6378, %v7095
  %v7188 = vmul.f32 %v6379, %v7099
  %v7189 = vmul.f32 %v6380, %v7103
  %v7190 = vmul.f32 %v6381, %v7107
  %v7192 = vlaneseq
  %v7193 = vshrl.u32 %v7192, 7
  %v7194 = vsub.s32 0, %v7193
  %v7195 = vrot.slane %v7182, %v7194
  %v7196 = vlaneseq
  %v7197 = vshrl.u32 %v7196, 7
  %v7198 = vsub.s32 1, %v7197
  %v7199 = vrot.slane %v7182, %v7198
  %v7200 = vlaneseq
  %v7201 = vshrl.u32 %v7200, 7
  %v7202 = vsub.s32 2, %v7201
  %v7203 = vrot.slane %v7182, %v7202
  %v7204 = vlaneseq
  %v7205 = vshrl.u32 %v7204, 7
  %v7206 = vsub.s32 3, %v7205
  %v7207 = vrot.slane %v7182, %v7206
  %v7208 = vlaneseq
  %v7209 = vshrl.u32 %v7208, 7
  %v7210 = vsub.s32 4, %v7209
  %v7211 = vrot.slane %v7182, %v7210
  %v7212 = vlaneseq
  %v7213 = vshrl.u32 %v7212, 7
  %v7214 = vsub.s32 5, %v7213
  %v7215 = vrot.slane %v7182, %v7214
  %v7216 = vlaneseq
  %v7217 = vshrl.u32 %v7216, 7
  %v7218 = vsub.s32 6, %v7217
  %v7219 = vrot.slane %v7182, %v7218
  %v7220 = vlaneseq
  %v7221 = vshrl.u32 %v7220, 7
  %v7222 = vsub.s32 7, %v7221
  %v7223 = vrot.slane %v7182, %v7222
  %v7232 = vadd.f32 %v7183, %v7195
  %v7233 = vadd.f32 %v7184, %v7199
  %v7234 = vadd.f32 %v7185, %v7203
  %v7235 = vadd.f32 %v7186, %v7207
  %v7236 = vadd.f32 %v7187, %v7211
  %v7237 = vadd.f32 %v7188, %v7215
  %v7238 = vadd.f32 %v7189, %v7219
  %v7239 = vadd.f32 %v7190, %v7223
  %v7240 = vmax.f32 %v7232, 0.0
  %v7241 = vmax.f32 %v7233, 0.0
  %v7242 = vmax.f32 %v7234, 0.0
  %v7243 = vmax.f32 %v7235, 0.0
  %v7244 = vmax.f32 %v7236, 0.0
  %v7245 = vmax.f32 %v7237, 0.0
  %v7246 = vmax.f32 %v7238, 0.0
  %v7247 = vmax.f32 %v7239, 0.0
  %v7248 = vmin.f32 %v7240, 6.0
  %v7249 = vmin.f32 %v7241, 6.0
  %v7250 = vmin.f32 %v7242, 6.0
  %v7251 = vmin.f32 %v7243, 6.0
  %v7252 = vmin.f32 %v7244, 6.0
  %v7253 = vmin.f32 %v7245, 6.0
  %v7254 = vmin.f32 %v7246, 6.0
  %v7255 = vmin.f32 %v7247, 6.0
  %7256 = vst [vmem:[%s4] sm:$0x7f] %v7248
  %7257 = vst [vmem:[%s4 + $0x8] sm:$0x7f] %v7249
  %7258 = vst [vmem:[%s4 + $0x10] sm:$0x7f] %v7250
  %7259 = vst [vmem:[%s4 + $0x18] sm:$0x7f] %v7251
  %7260 = vst [vmem:[%s4 + $0x20] sm:$0x7f] %v7252
  %7261 = vst [vmem:[%s4 + $0x28] sm:$0x7f] %v7253
  %7262 = vst [vmem:[%s4 + $0x30] sm:$0x7f] %v7254
  %7263 = vst.msk [vmem:[%s4 + $0x38] sm:$0x7f] %vm1045, %v7255
  %v7264 = vld [vmem:[%s1964] sm:$0x7f]
  %v7265 = vld [vmem:[%s1964 + $0x8] sm:$0x7f]
  %v7266 = vld [vmem:[%s1964 + $0x10] sm:$0x7f]
  %v7267 = vld [vmem:[%s1964 + $0x18] sm:$0x7f]
  %v7268 = vld [vmem:[%s1964 + $0x20] sm:$0x7f]
  %v7269 = vld [vmem:[%s1964 + $0x28] sm:$0x7f]
  %v7270 = vld [vmem:[%s1964 + $0x30] sm:$0x7f]
  %v7271 = vld [vmem:[%s1964 + $0x38] sm:$0x7f]
  %v7272 = vmul.f32 %v7264, %v7079
  %v7273 = vmul.f32 %v7265, %v7083
  %v7274 = vmul.f32 %v7266, %v7087
  %v7275 = vmul.f32 %v7267, %v7091
  %v7276 = vmul.f32 %v7268, %v7095
  %v7277 = vmul.f32 %v7269, %v7099
  %v7278 = vmul.f32 %v7270, %v7103
  %v7279 = vmul.f32 %v7271, %v7107
  %v7280 = vadd.f32 %v7272, %v7195
  %v7281 = vadd.f32 %v7273, %v7199
  %v7282 = vadd.f32 %v7274, %v7203
  %v7283 = vadd.f32 %v7275, %v7207
  %v7284 = vadd.f32 %v7276, %v7211
  %v7285 = vadd.f32 %v7277, %v7215
  %v7286 = vadd.f32 %v7278, %v7219
  %v7287 = vadd.f32 %v7279, %v7223
  %v7288 = vmax.f32 %v7280, 0.0
  %v7289 = vmax.f32 %v7281, 0.0
  %v7290 = vmax.f32 %v7282, 0.0
  %v7291 = vmax.f32 %v7283, 0.0
  %v7292 = vmax.f32 %v7284, 0.0
  %v7293 = vmax.f32 %v7285, 0.0
  %v7294 = vmax.f32 %v7286, 0.0
  %v7295 = vmax.f32 %v7287, 0.0
  %v7296 = vmin.f32 %v7288, 6.0
  %v7297 = vmin.f32 %v7289, 6.0
  %v7298 = vmin.f32 %v7290, 6.0
  %v7299 = vmin.f32 %v7291, 6.0
  %v7300 = vmin.f32 %v7292, 6.0
  %v7301 = vmin.f32 %v7293, 6.0
  %v7302 = vmin.f32 %v7294, 6.0
  %v7303 = vmin.f32 %v7295, 6.0
  %7304 = vst [vmem:[%s1964] sm:$0x7f] %v7296
  %7305 = vst [vmem:[%s1964 + $0x8] sm:$0x7f] %v7297
  %7306 = vst [vmem:[%s1964 + $0x10] sm:$0x7f] %v7298
  %7307 = vst [vmem:[%s1964 + $0x18] sm:$0x7f] %v7299
  %7308 = vst [vmem:[%s1964 + $0x20] sm:$0x7f] %v7300
  %7309 = vst [vmem:[%s1964 + $0x28] sm:$0x7f] %v7301
  %7310 = vst [vmem:[%s1964 + $0x30] sm:$0x7f] %v7302
  %7311 = vst.msk [vmem:[%s1964 + $0x38] sm:$0x7f] %vm1045, %v7303
  %v7312 = vld [vmem:[%s2887] sm:$0x7f]
  %v7313 = vld [vmem:[%s2887 + $0x8] sm:$0x7f]
  %v7314 = vld [vmem:[%s2887 + $0x10] sm:$0x7f]
  %v7315 = vld [vmem:[%s2887 + $0x18] sm:$0x7f]
  %v7316 = vld [vmem:[%s2887 + $0x20] sm:$0x7f]
  %v7317 = vld [vmem:[%s2887 + $0x28] sm:$0x7f]
  %v7318 = vld [vmem:[%s2887 + $0x30] sm:$0x7f]
  %v7319 = vld [vmem:[%s2887 + $0x38] sm:$0x7f]
  %v7320 = vmul.f32 %v7312, %v7079
  %v7321 = vmul.f32 %v7313, %v7083
  %v7322 = vmul.f32 %v7314, %v7087
  %v7323 = vmul.f32 %v7315, %v7091
  %v7324 = vmul.f32 %v7316, %v7095
  %v7325 = vmul.f32 %v7317, %v7099
  %v7326 = vmul.f32 %v7318, %v7103
  %v7327 = vmul.f32 %v7319, %v7107
  %v7328 = vadd.f32 %v7320, %v7195
  %v7329 = vadd.f32 %v7321, %v7199
  %v7330 = vadd.f32 %v7322, %v7203
  %v7331 = vadd.f32 %v7323, %v7207
  %v7332 = vadd.f32 %v7324, %v7211
  %v7333 = vadd.f32 %v7325, %v7215
  %v7334 = vadd.f32 %v7326, %v7219
  %v7335 = vadd.f32 %v7327, %v7223
  %v7336 = vmax.f32 %v7328, 0.0
  %v7337 = vmax.f32 %v7329, 0.0
  %v7338 = vmax.f32 %v7330, 0.0
  %v7339 = vmax.f32 %v7331, 0.0
  %v7340 = vmax.f32 %v7332, 0.0
  %v7341 = vmax.f32 %v7333, 0.0
  %v7342 = vmax.f32 %v7334, 0.0
  %v7343 = vmax.f32 %v7335, 0.0
  %v7344 = vmin.f32 %v7336, 6.0
  %v7345 = vmin.f32 %v7337, 6.0
  %v7346 = vmin.f32 %v7338, 6.0
  %v7347 = vmin.f32 %v7339, 6.0
  %v7348 = vmin.f32 %v7340, 6.0
  %v7349 = vmin.f32 %v7341, 6.0
  %v7350 = vmin.f32 %v7342, 6.0
  %v7351 = vmin.f32 %v7343, 6.0
  %7352 = vst [vmem:[%s2887] sm:$0x7f] %v7344
  %7353 = vst [vmem:[%s2887 + $0x8] sm:$0x7f] %v7345
  %7354 = vst [vmem:[%s2887 + $0x10] sm:$0x7f] %v7346
  %7355 = vst [vmem:[%s2887 + $0x18] sm:$0x7f] %v7347
  %7356 = vst [vmem:[%s2887 + $0x20] sm:$0x7f] %v7348
  %7357 = vst [vmem:[%s2887 + $0x28] sm:$0x7f] %v7349
  %7358 = vst [vmem:[%s2887 + $0x30] sm:$0x7f] %v7350
  %7359 = vst.msk [vmem:[%s2887 + $0x38] sm:$0x7f] %vm1045, %v7351
  %v7360 = vld [vmem:[%s3810] sm:$0x7f]
  %v7361 = vld [vmem:[%s3810 + $0x8] sm:$0x7f]
  %v7362 = vld [vmem:[%s3810 + $0x10] sm:$0x7f]
  %v7363 = vld [vmem:[%s3810 + $0x18] sm:$0x7f]
  %v7364 = vld [vmem:[%s3810 + $0x20] sm:$0x7f]
  %v7365 = vld [vmem:[%s3810 + $0x28] sm:$0x7f]
  %v7366 = vld [vmem:[%s3810 + $0x30] sm:$0x7f]
  %v7367 = vld [vmem:[%s3810 + $0x38] sm:$0x7f]
  %v7368 = vmul.f32 %v7360, %v7079
  %v7369 = vmul.f32 %v7361, %v7083
  %v7370 = vmul.f32 %v7362, %v7087
  %v7371 = vmul.f32 %v7363, %v7091
  %v7372 = vmul.f32 %v7364, %v7095
  %v7373 = vmul.f32 %v7365, %v7099
  %v7374 = vmul.f32 %v7366, %v7103
  %v7375 = vmul.f32 %v7367, %v7107
  %v7376 = vadd.f32 %v7368, %v7195
  %v7377 = vadd.f32 %v7369, %v7199
  %v7378 = vadd.f32 %v7370, %v7203
  %v7379 = vadd.f32 %v7371, %v7207
  %v7380 = vadd.f32 %v7372, %v7211
  %v7381 = vadd.f32 %v7373, %v7215
  %v7382 = vadd.f32 %v7374, %v7219
  %v7383 = vadd.f32 %v7375, %v7223
  %v7384 = vmax.f32 %v7376, 0.0
  %v7385 = vmax.f32 %v7377, 0.0
  %v7386 = vmax.f32 %v7378, 0.0
  %v7387 = vmax.f32 %v7379, 0.0
  %v7388 = vmax.f32 %v7380, 0.0
  %v7389 = vmax.f32 %v7381, 0.0
  %v7390 = vmax.f32 %v7382, 0.0
  %v7391 = vmax.f32 %v7383, 0.0
  %v7392 = vmin.f32 %v7384, 6.0
  %v7393 = vmin.f32 %v7385, 6.0
  %v7394 = vmin.f32 %v7386, 6.0
  %v7395 = vmin.f32 %v7387, 6.0
  %v7396 = vmin.f32 %v7388, 6.0
  %v7397 = vmin.f32 %v7389, 6.0
  %v7398 = vmin.f32 %v7390, 6.0
  %v7399 = vmin.f32 %v7391, 6.0
  %7400 = vst [vmem:[%s3810] sm:$0x7f] %v7392
  %7401 = vst [vmem:[%s3810 + $0x8] sm:$0x7f] %v7393
  %7402 = vst [vmem:[%s3810 + $0x10] sm:$0x7f] %v7394
  %7403 = vst [vmem:[%s3810 + $0x18] sm:$0x7f] %v7395
  %7404 = vst [vmem:[%s3810 + $0x20] sm:$0x7f] %v7396
  %7405 = vst [vmem:[%s3810 + $0x28] sm:$0x7f] %v7397
  %7406 = vst [vmem:[%s3810 + $0x30] sm:$0x7f] %v7398
  %7407 = vst.msk [vmem:[%s3810 + $0x38] sm:$0x7f] %vm1045, %v7399
  %v7408 = vld [vmem:[%s4733] sm:$0x7f]
  %v7409 = vld [vmem:[%s4733 + $0x8] sm:$0x7f]
  %v7410 = vld [vmem:[%s4733 + $0x10] sm:$0x7f]
  %v7411 = vld [vmem:[%s4733 + $0x18] sm:$0x7f]
  %v7412 = vld [vmem:[%s4733 + $0x20] sm:$0x7f]
  %v7413 = vld [vmem:[%s4733 + $0x28] sm:$0x7f]
  %v7414 = vld [vmem:[%s4733 + $0x30] sm:$0x7f]
  %v7415 = vld [vmem:[%s4733 + $0x38] sm:$0x7f]
  %v7416 = vmul.f32 %v7408, %v7079
  %v7417 = vmul.f32 %v7409, %v7083
  %v7418 = vmul.f32 %v7410, %v7087
  %v7419 = vmul.f32 %v7411, %v7091
  %v7420 = vmul.f32 %v7412, %v7095
  %v7421 = vmul.f32 %v7413, %v7099
  %v7422 = vmul.f32 %v7414, %v7103
  %v7423 = vmul.f32 %v7415, %v7107
  %v7424 = vadd.f32 %v7416, %v7195
  %v7425 = vadd.f32 %v7417, %v7199
  %v7426 = vadd.f32 %v7418, %v7203
  %v7427 = vadd.f32 %v7419, %v7207
  %v7428 = vadd.f32 %v7420, %v7211
  %v7429 = vadd.f32 %v7421, %v7215
  %v7430 = vadd.f32 %v7422, %v7219
  %v7431 = vadd.f32 %v7423, %v7223
  %v7432 = vmax.f32 %v7424, 0.0
  %v7433 = vmax.f32 %v7425, 0.0
  %v7434 = vmax.f32 %v7426, 0.0
  %v7435 = vmax.f32 %v7427, 0.0
  %v7436 = vmax.f32 %v7428, 0.0
  %v7437 = vmax.f32 %v7429, 0.0
  %v7438 = vmax.f32 %v7430, 0.0
  %v7439 = vmax.f32 %v7431, 0.0
  %v7440 = vmin.f32 %v7432, 6.0
  %v7441 = vmin.f32 %v7433, 6.0
  %v7442 = vmin.f32 %v7434, 6.0
  %v7443 = vmin.f32 %v7435, 6.0
  %v7444 = vmin.f32 %v7436, 6.0
  %v7445 = vmin.f32 %v7437, 6.0
  %v7446 = vmin.f32 %v7438, 6.0
  %v7447 = vmin.f32 %v7439, 6.0
  %7448 = vst [vmem:[%s4733] sm:$0x7f] %v7440
  %7449 = vst [vmem:[%s4733 + $0x8] sm:$0x7f] %v7441
  %7450 = vst [vmem:[%s4733 + $0x10] sm:$0x7f] %v7442
  %7451 = vst [vmem:[%s4733 + $0x18] sm:$0x7f] %v7443
  %7452 = vst [vmem:[%s4733 + $0x20] sm:$0x7f] %v7444
  %7453 = vst [vmem:[%s4733 + $0x28] sm:$0x7f] %v7445
  %7454 = vst [vmem:[%s4733 + $0x30] sm:$0x7f] %v7446
  %7455 = vst.msk [vmem:[%s4733 + $0x38] sm:$0x7f] %vm1045, %v7447
  %v7456 = vld [vmem:[%s5656] sm:$0x7f]
  %v7457 = vld [vmem:[%s5656 + $0x8] sm:$0x7f]
  %v7458 = vld [vmem:[%s5656 + $0x10] sm:$0x7f]
  %v7459 = vld [vmem:[%s5656 + $0x18] sm:$0x7f]
  %v7460 = vld [vmem:[%s5656 + $0x20] sm:$0x7f]
  %v7461 = vld [vmem:[%s5656 + $0x28] sm:$0x7f]
  %v7462 = vld [vmem:[%s5656 + $0x30] sm:$0x7f]
  %v7463 = vld [vmem:[%s5656 + $0x38] sm:$0x7f]
  %v7464 = vmul.f32 %v7456, %v7079
  %v7465 = vmul.f32 %v7457, %v7083
  %v7466 = vmul.f32 %v7458, %v7087
  %v7467 = vmul.f32 %v7459, %v7091
  %v7468 = vmul.f32 %v7460, %v7095
  %v7469 = vmul.f32 %v7461, %v7099
  %v7470 = vmul.f32 %v7462, %v7103
  %v7471 = vmul.f32 %v7463, %v7107
  %v7472 = vadd.f32 %v7464, %v7195
  %v7473 = vadd.f32 %v7465, %v7199
  %v7474 = vadd.f32 %v7466, %v7203
  %v7475 = vadd.f32 %v7467, %v7207
  %v7476 = vadd.f32 %v7468, %v7211
  %v7477 = vadd.f32 %v7469, %v7215
  %v7478 = vadd.f32 %v7470, %v7219
  %v7479 = vadd.f32 %v7471, %v7223
  %v7480 = vmax.f32 %v7472, 0.0
  %v7481 = vmax.f32 %v7473, 0.0
  %v7482 = vmax.f32 %v7474, 0.0
  %v7483 = vmax.f32 %v7475, 0.0
  %v7484 = vmax.f32 %v7476, 0.0
  %v7485 = vmax.f32 %v7477, 0.0
  %v7486 = vmax.f32 %v7478, 0.0
  %v7487 = vmax.f32 %v7479, 0.0
  %v7488 = vmin.f32 %v7480, 6.0
  %v7489 = vmin.f32 %v7481, 6.0
  %v7490 = vmin.f32 %v7482, 6.0
  %v7491 = vmin.f32 %v7483, 6.0
  %v7492 = vmin.f32 %v7484, 6.0
  %v7493 = vmin.f32 %v7485, 6.0
  %v7494 = vmin.f32 %v7486, 6.0
  %v7495 = vmin.f32 %v7487, 6.0
  %7496 = vst [vmem:[%s5656] sm:$0x7f] %v7488
  %7497 = vst [vmem:[%s5656 + $0x8] sm:$0x7f] %v7489
  %7498 = vst [vmem:[%s5656 + $0x10] sm:$0x7f] %v7490
  %7499 = vst [vmem:[%s5656 + $0x18] sm:$0x7f] %v7491
  %7500 = vst [vmem:[%s5656 + $0x20] sm:$0x7f] %v7492
  %7501 = vst [vmem:[%s5656 + $0x28] sm:$0x7f] %v7493
  %7502 = vst [vmem:[%s5656 + $0x30] sm:$0x7f] %v7494
  %7503 = vst.msk [vmem:[%s5656 + $0x38] sm:$0x7f] %vm1045, %v7495
  %v7504 = vld [vmem:[%s6293] sm:$0x7f]
  %v7505 = vld [vmem:[%s6293 + $0x8] sm:$0x7f]
  %v7506 = vld [vmem:[%s6293 + $0x10] sm:$0x7f]
  %v7507 = vld [vmem:[%s6293 + $0x18] sm:$0x7f]
  %v7508 = vld [vmem:[%s6293 + $0x20] sm:$0x7f]
  %v7509 = vld [vmem:[%s6293 + $0x28] sm:$0x7f]
  %v7510 = vld [vmem:[%s6293 + $0x30] sm:$0x7f]
  %v7511 = vld [vmem:[%s6293 + $0x38] sm:$0x7f]
  %v7512 = vmul.f32 %v7504, %v7079
  %v7513 = vmul.f32 %v7505, %v7083
  %v7514 = vmul.f32 %v7506, %v7087
  %v7515 = vmul.f32 %v7507, %v7091
  %v7516 = vmul.f32 %v7508, %v7095
  %v7517 = vmul.f32 %v7509, %v7099
  %v7518 = vmul.f32 %v7510, %v7103
  %v7519 = vmul.f32 %v7511, %v7107
  %v7520 = vadd.f32 %v7512, %v7195
  %v7521 = vadd.f32 %v7513, %v7199
  %v7522 = vadd.f32 %v7514, %v7203
  %v7523 = vadd.f32 %v7515, %v7207
  %v7524 = vadd.f32 %v7516, %v7211
  %v7525 = vadd.f32 %v7517, %v7215
  %v7526 = vadd.f32 %v7518, %v7219
  %v7527 = vadd.f32 %v7519, %v7223
  %v7528 = vmax.f32 %v7520, 0.0
  %v7529 = vmax.f32 %v7521, 0.0
  %v7530 = vmax.f32 %v7522, 0.0
  %v7531 = vmax.f32 %v7523, 0.0
  %v7532 = vmax.f32 %v7524, 0.0
  %v7533 = vmax.f32 %v7525, 0.0
  %v7534 = vmax.f32 %v7526, 0.0
  %v7535 = vmax.f32 %v7527, 0.0
  %v7536 = vmin.f32 %v7528, 6.0
  %v7537 = vmin.f32 %v7529, 6.0
  %v7538 = vmin.f32 %v7530, 6.0
  %v7539 = vmin.f32 %v7531, 6.0
  %v7540 = vmin.f32 %v7532, 6.0
  %v7541 = vmin.f32 %v7533, 6.0
  %v7542 = vmin.f32 %v7534, 6.0
  %v7543 = vmin.f32 %v7535, 6.0
  %7544 = vst [vmem:[%s6293] sm:$0x7f] %v7536
  %7545 = vst [vmem:[%s6293 + $0x8] sm:$0x7f] %v7537
  %7546 = vst [vmem:[%s6293 + $0x10] sm:$0x7f] %v7538
  %7547 = vst [vmem:[%s6293 + $0x18] sm:$0x7f] %v7539
  %7548 = vst [vmem:[%s6293 + $0x20] sm:$0x7f] %v7540
  %7549 = vst [vmem:[%s6293 + $0x28] sm:$0x7f] %v7541
  %7550 = vst [vmem:[%s6293 + $0x30] sm:$0x7f] %v7542
  %7551 = vst.msk [vmem:[%s6293 + $0x38] sm:$0x7f] %vm1045, %v7543
  // Predicated region
  $region18: #{relu6_dwconv_bn_relu6.1} parent=0 // pred_check
    _
  $region19: #{relu6_dwconv_bn_relu6.1} parent=0 // pred_check_branch
    %7553 = sbr.rel (0) target = $region21
  $region20: #{relu6_dwconv_bn_relu6.1} parent=0 // pred_region
    _
  $region21: #{relu6_dwconv_bn_relu6.1} parent=0 // pred_fallthru
    _
  // Predicated region
  $region22: #{relu6_dwconv_bn_relu6.1} parent=0 // pred_check
    _
  $region23: #{relu6_dwconv_bn_relu6.1} parent=0 // pred_check_branch
    %7555 = sbr.rel (0) target = $region25
  $region24: #{relu6_dwconv_bn_relu6.1} parent=0 // pred_region
    _
  $region25: #{relu6_dwconv_bn_relu6.1} parent=0 // pred_fallthru
    _

</llo_original>
